<compile_context>
chip_gen: v6e
topology: v6e:2x2x1
jax: 0.10.0
libtpu: 0.0.40
codegen_flags: <defaults>
</compile_context>

<pallas_src>
import jax
import jax.numpy as jnp
import numpy as np
from jax import lax
from jax.experimental import pallas as pl
from jax.experimental.pallas import tpu as pltpu

_BN_EPS = 1e-5
_LANE = 128
_MAX_TILE_ROWS = 256        # (rows, 128) f32 result tile ~= 32 vregs


def _round_up(x, m):
    return (x + m - 1) // m * m


def _pad_channels(a, c):
    pad = c - a.shape[-1]
    if pad == 0:
        return a
    return jnp.pad(a, [(0, 0)] * (a.ndim - 1) + [(0, pad)])


def _pick_tile_rows(ho, wo, max_rows=_MAX_TILE_ROWS):
    th = 1
    for cand in range(1, ho + 1):
        if ho % cand == 0 and cand * wo <= max_rows:
            th = cand
    return th


def _vmem_capacity_bytes():
    try:
        cap = getattr(pltpu.get_tpu_info(), "vmem_capacity_bytes", None)
        if cap:
            return int(cap)
    except Exception:
        pass
    return 64 << 20     # conservative fallback (v7x physical VMEM per core)


def _fold_bn(bn):
    gamma, beta, mean, var = bn
    scale = gamma * lax.rsqrt(var + _BN_EPS)
    return scale, beta - mean * scale


def _conv_weight_mat(w_oihw, scale, cin_p, cout_p):
    """(O,I,kh,kw) conv weight -> (kh*kw*cin_p, cout_p) bf16 with BN scale folded."""
    o, i, kh, kw = w_oihw.shape
    wm = jnp.transpose(w_oihw, (2, 3, 1, 0)) * scale[None, None, None, :]
    wm = jnp.pad(wm, ((0, 0), (0, 0), (0, cin_p - i), (0, cout_p - o)))
    return wm.reshape(kh * kw * cin_p, cout_p).astype(jnp.bfloat16)


def _space_to_depth_planes(x, stride):
    """(N,H,W,C) -> (N,4,H/2+1,W/2+1,C): parity planes of the 3x3-padded image."""
    n, h, w_sp, c = x.shape
    ho, wo = h // stride, w_sp // stride
    xp = jnp.pad(x, ((0, 0), (1, 1), (1, 1), (0, 0)))
    planes = [xp[:, py::stride, px::stride, :][:, :ho + 1, :wo + 1, :]
              for py in range(stride) for px in range(stride)]
    return jnp.stack(planes, axis=1)


# ---------------------------------------------------------------------------
# Kernel: 3x3 conv (pad=1) as one im2col matmul per (batch, row-tile) step,
# fused with BN shift, optional residual (identity add or 1x1-conv shortcut)
# and optional ReLU.  stride==1 pads its halo in VMEM; stride==2 reads parity
# planes prepared by the wrapper.
# ---------------------------------------------------------------------------
def _make_conv3x3_kernel(*, stride, th, h, w_sp, wo, cin_p, cout_p,
                         res_cin_p, relu, res_mode):
    taps = [(dy, dx) for dy in range(3) for dx in range(3)]
    m = th * wo

    def kernel(*refs):
        if res_mode is None:
            x_ref, w_ref, shift_ref, o_ref, *scratch = refs
            r_ref = ws_ref = None
        elif res_mode == "add":
            x_ref, w_ref, shift_ref, r_ref, o_ref, *scratch = refs
            ws_ref = None
        else:  # "conv"
            x_ref, w_ref, shift_ref, r_ref, ws_ref, o_ref, *scratch = refs

        j = pl.program_id(1)
        r0 = j * th
        if th % 8 == 0:
            r0 = pl.multiple_of(r0, 8)

        if stride == 1:
            xpad_ref, col_ref = scratch
            # Zero halo, then fill the interior of the padded tile in VMEM
            # (no wrapper-side jnp.pad / extra HBM pass).
            xpad_ref[...] = jnp.zeros_like(xpad_ref)
            xpad_ref[pl.ds(1, th), pl.ds(1, w_sp), :] = x_ref[pl.ds(r0, th), :, :]

            @pl.when(r0 > 0)
            def _():
                top = jnp.maximum(r0 - 1, 0)
                xpad_ref[pl.ds(0, 1), pl.ds(1, w_sp), :] = x_ref[pl.ds(top, 1), :, :]

            @pl.when(r0 + th < h)
            def _():
                bot = jnp.minimum(r0 + th, h - 1)
                xpad_ref[pl.ds(th + 1, 1), pl.ds(1, w_sp), :] = x_ref[pl.ds(bot, 1), :, :]

            # im2col into VMEM scratch: K = 9 * cin_p, one wide MXU matmul below.
            for t, (dy, dx) in enumerate(taps):
                xt = xpad_ref[pl.ds(dy, th), pl.ds(dx, wo), :]
                col_ref[:, pl.ds(t * cin_p, cin_p)] = xt.reshape(m, cin_p)
        else:
            (col_ref,) = scratch
            for t, (dy, dx) in enumerate(taps):
                plane = (dy % 2) * 2 + (dx % 2)
                xt = x_ref[plane, pl.ds(r0 + dy // 2, th), pl.ds(dx // 2, wo), :]
                col_ref[:, pl.ds(t * cin_p, cin_p)] = xt.reshape(m, cin_p)

        y = jnp.dot(col_ref[...], w_ref[...], preferred_element_type=jnp.float32)
        y = y + shift_ref[...]                 # BN shift (scale folded into W)
        if res_mode == "add":
            y = y + r_ref[...].reshape(m, cout_p)              # identity shortcut (f32)
        elif res_mode == "conv":                                # fused 1x1 shortcut conv
            y = y + jnp.dot(r_ref[...].reshape(m, res_cin_p), ws_ref[...],
                            preferred_element_type=jnp.float32)
        if relu:
            y = jnp.maximum(y, 0.0)
        o_ref[...] = y.reshape(th, wo, cout_p).astype(o_ref.dtype)

    return kernel


def _conv3x3_call(x, w_mat, shift, *, stride, relu, res_add=None, res_conv=None,
                  out_dtype=jnp.float32, cin_true=None, cout_true=None):
    """Fused 3x3 conv + BN shift (+identity add | +1x1-conv shortcut) (+ReLU).

    x: stride==1 -> (N, H, W, cin_p) bf16 (unpadded; halo handled in-kernel)
       stride==2 -> (N, 4, Ho+1, Wo+1, cin_p) bf16 parity planes
    Output: (N, Ho, Wo, cout_p); padded channels are exactly zero.
    """
    assert stride in (1, 2)
    if stride == 1:
        n, h, w_sp, cin_p = x.shape
        ho, wo = h, w_sp
    else:
        n, s2, hp, wp, cin_p = x.shape
        assert s2 == 4
        ho, wo = hp - 1, wp - 1
        h, w_sp = ho, wo
    cout_p = w_mat.shape[1]
    th = _pick_tile_rows(ho, wo)

    in_specs, args = [], []
    if stride == 1:
        in_specs.append(pl.BlockSpec((None, h, w_sp, cin_p), lambda i, j: (i, 0, 0, 0)))
    else:
        in_specs.append(pl.BlockSpec((None, 4, ho + 1, wo + 1, cin_p),
                                     lambda i, j: (i, 0, 0, 0, 0)))
    args.append(x)
    in_specs.append(pl.BlockSpec((w_mat.shape[0], cout_p), lambda i, j: (0, 0)))
    args.append(w_mat)
    in_specs.append(pl.BlockSpec((1, cout_p), lambda i, j: (0, 0)))
    args.append(shift)

    res_mode, res_cin_p = None, 0
    if res_add is not None:
        res_mode = "add"
        in_specs.append(pl.BlockSpec((None, th, wo, cout_p), lambda i, j: (i, j, 0, 0)))
        args.append(res_add)
    elif res_conv is not None:
        res_mode = "conv"
        rsrc, ws_mat = res_conv
        res_cin_p = rsrc.shape[-1]
        in_specs.append(pl.BlockSpec((None, th, wo, res_cin_p), lambda i, j: (i, j, 0, 0)))
        args.append(rsrc)
        in_specs.append(pl.BlockSpec((res_cin_p, cout_p), lambda i, j: (0, 0)))
        args.append(ws_mat)

    out_specs = pl.BlockSpec((None, th, wo, cout_p), lambda i, j: (i, j, 0, 0))
    scratch_shapes = []
    if stride == 1:
        scratch_shapes.append(pltpu.VMEM((th + 2, w_sp + 2, cin_p), x.dtype))
    scratch_shapes.append(pltpu.VMEM((th * wo, 9 * cin_p), x.dtype))

    # Generation-aware VMEM limit (double-buffered blocks + scratch + slack).
    def _nbytes(a):
        return int(a.size) * a.dtype.itemsize

    out_block = th * wo * cout_p * jnp.dtype(out_dtype).itemsize
    blk_in = _nbytes(w_mat) + _nbytes(shift) + int(np.prod(x.shape[1:])) * x.dtype.itemsize
    if res_add is not None:
        blk_in += th * wo * cout_p * res_add.dtype.itemsize
    if res_conv is not None:
        blk_in += th * wo * res_cin_p * res_conv[0].dtype.itemsize + _nbytes(res_conv[1])
    scratch_b = th * wo * 9 * cin_p * 2
    if stride == 1:
        scratch_b += (th + 2) * (w_sp + 2) * cin_p * 2
    need = 2 * (blk_in + out_block) + scratch_b + (4 << 20)
    vmem_limit = int(min(max(need, 16 << 20), _vmem_capacity_bytes() * 3 // 4))

    cin_t = cin_true if cin_true is not None else cin_p
    cout_t = cout_true if cout_true is not None else cout_p
    flops = 2 * n * ho * wo * 9 * cin_t * cout_t
    if res_conv is not None:
        flops += 2 * n * ho * wo * cin_t * cout_t
    bytes_accessed = int(sum(_nbytes(a) for a in args)
                         + n * ho * wo * cout_p * jnp.dtype(out_dtype).itemsize)

    kernel = _make_conv3x3_kernel(stride=stride, th=th, h=h, w_sp=w_sp, wo=wo,
                                  cin_p=cin_p, cout_p=cout_p, res_cin_p=res_cin_p,
                                  relu=relu, res_mode=res_mode)

    return pl.pallas_call(
        kernel,
        out_shape=jax.ShapeDtypeStruct((n, ho, wo, cout_p), out_dtype),
        grid=(n, ho // th),
        in_specs=in_specs,
        out_specs=out_specs,
        scratch_shapes=scratch_shapes,
        compiler_params=pltpu.CompilerParams(
            dimension_semantics=("parallel", "parallel"),
            vmem_limit_bytes=vmem_limit),
        cost_estimate=pl.CostEstimate(flops=flops, transcendentals=0,
                                      bytes_accessed=bytes_accessed),
    )(*args)


# ---------------------------------------------------------------------------
# BasicBlockEnc forward (Pallas) and pure-JAX reference
# ---------------------------------------------------------------------------
def basic_block_enc_pallas(x_nchw, params, stride=1):
    if stride not in (1, 2):
        raise ValueError("stride must be 1 or 2")
    x = jnp.transpose(x_nchw, (0, 2, 3, 1)).astype(jnp.float32)    # NHWC f32
    n, h, w_sp, cin = x.shape
    if h % stride or w_sp % stride:
        raise ValueError("spatial dims must be divisible by stride")
    planes = cin * stride
    cin_p = _round_up(cin, _LANE)
    cp = _round_up(planes, _LANE)

    x_bf = _pad_channels(x.astype(jnp.bfloat16), cin_p)            # (N,H,W,cin_p)

    # conv1 (3x3, stride) + bn1 + relu; bf16 hand-off, padded channels are zero.
    s1, sh1 = _fold_bn(params["bn1"])
    w1_mat = _conv_weight_mat(params["w1"], s1, cin_p, cp)
    shift1 = _pad_channels(sh1, cp).reshape(1, cp).astype(jnp.float32)
    if stride == 1:
        out1 = _conv3x3_call(x_bf, w1_mat, shift1, stride=1, relu=True,
                             out_dtype=jnp.bfloat16, cin_true=cin, cout_true=planes)
    else:
        xplanes = _space_to_depth_planes(x_bf, stride)
        out1 = _conv3x3_call(xplanes, w1_mat, shift1, stride=2, relu=True,
                             out_dtype=jnp.bfloat16, cin_true=cin, cout_true=planes)

    # conv2 (3x3, s=1) + bn2 + shortcut + relu, all in ONE kernel.
    s2f, sh2 = _fold_bn(params["bn2"])
    w2_mat = _conv_weight_mat(params["w2"], s2f, cp, cp)
    if stride == 1:
        shift2 = _pad_channels(sh2, cp).reshape(1, cp).astype(jnp.float32)
        res = _pad_channels(x, cp)                                  # identity shortcut, f32
        out2 = _conv3x3_call(out1, w2_mat, shift2, stride=1, relu=True,
                             res_add=res, out_dtype=jnp.float32,
                             cin_true=planes, cout_true=planes)
    else:
        ss, shs = _fold_bn(params["bns"])
        ws_mat = _conv_weight_mat(params["ws"], ss, cin_p, cp)      # (cin_p, cp)
        shift_total = _pad_channels(sh2 + shs, cp).reshape(1, cp).astype(jnp.float32)
        rsrc = x_bf[:, ::stride, ::stride, :]                       # (N,Ho,Wo,cin_p)
        out2 = _conv3x3_call(out1, w2_mat, shift_total, stride=1, relu=True,
                             res_conv=(rsrc, ws_mat), out_dtype=jnp.float32,
                             cin_true=planes, cout_true=planes)

    out = out2[..., :planes]                                        # drop channel padding
    return jnp.transpose(out, (0, 3, 1, 2))                         # back to NCHW


def basic_block_enc_ref(x_nchw, params, stride):
    dn = ("NCHW", "OIHW", "NCHW")

    def bn(x, gamma, beta, mean, var):
        s = gamma / jnp.sqrt(var + _BN_EPS)
        return x * s[None, :, None, None] + (beta - mean * s)[None, :, None, None]

    out = lax.conv_general_dilated(x_nchw, params["w1"], (stride, stride),
                                   ((1, 1), (1, 1)), dimension_numbers=dn)
    out = jax.nn.relu(bn(out, *params["bn1"]))
    out = lax.conv_general_dilated(out, params["w2"], (1, 1),
                                   ((1, 1), (1, 1)), dimension_numbers=dn)
    out = bn(out, *params["bn2"])
    if stride == 1:
        sc = x_nchw
    else:
        sc = lax.conv_general_dilated(x_nchw, params["ws"], (stride, stride),
                                      ((0, 0), (0, 0)), dimension_numbers=dn)
        sc = bn(sc, *params["bns"])
    return jax.nn.relu(out + sc)


# ---------------------------------------------------------------------------
# Deterministic parameter initialization (shapes from BasicBlockEnc.__init__)
# ---------------------------------------------------------------------------
def init_params(key, in_planes, stride):
    planes = in_planes * stride
    ks = jax.random.split(key, 16)

    def bn_params(k0, k1, k2, k3, c):
        gamma = 1.0 + 0.1 * jax.random.normal(k0, (c,), jnp.float32)
        beta = 0.1 * jax.random.normal(k1, (c,), jnp.float32)
        mean = 0.05 * jax.random.normal(k2, (c,), jnp.float32)
        var = 1.0 + 0.2 * jnp.abs(jax.random.normal(k3, (c,), jnp.float32))
        return (gamma, beta, mean, var)

    params = {
        "w1": 0.1 * jax.random.normal(ks[0], (planes, in_planes, 3, 3), jnp.float32),
        "bn1": bn_params(ks[1], ks[2], ks[3], ks[4], planes),
        "w2": 0.1 * jax.random.normal(ks[5], (planes, planes, 3, 3), jnp.float32),
        "bn2": bn_params(ks[6], ks[7], ks[8], ks[9], planes),
    }
    if stride != 1:
        params["ws"] = 0.1 * jax.random.normal(ks[10], (planes, in_planes, 1, 1),
                                               jnp.float32)
        params["bns"] = bn_params(ks[11], ks[12], ks[13], ks[14], planes)
    return params


if __name__ == "__main__":
    key = jax.random.PRNGKey(0)
    fwd = jax.jit(basic_block_enc_pallas, static_argnames=("stride",))

    # (shape, stride): small primary cases + larger cases that exercise multiple
    # row tiles (interior halo, tiled identity add, tiled fused 1x1 shortcut).
    cases = [
        ((2, 4, 16, 16), 1),
        ((2, 4, 16, 16), 2),
        ((1, 4, 32, 32), 1),
        ((1, 4, 64, 64), 2),
    ]
    for idx, (shape, stride) in enumerate(cases):
        kx, kp = jax.random.split(jax.random.fold_in(key, idx))
        x = jax.random.normal(kx, shape, jnp.float32)
        params = init_params(kp, in_planes=shape[1], stride=stride)

        out = jax.block_until_ready(fwd(x, params, stride=stride))
        ref = basic_block_enc_ref(x, params, stride)
        np.testing.assert_allclose(np.asarray(out), np.asarray(ref),
                                   rtol=2e-2, atol=2e-2)
        expected = (shape[0], shape[1] * stride, shape[2] // stride, shape[3] // stride)
        assert out.shape == expected, (out.shape, expected)

    print("KERNEL_OK")
</pallas_src>

<mosaic_0001>
module attributes {stable_mosaic.version = 11 : i64} {
  func.func @kernel(%arg0: i32, %arg1: i32, %arg2: memref<1x16x16x128xbf16, #tpu.memory_space<vmem>>, %arg3: memref<1152x128xbf16, #tpu.memory_space<vmem>>, %arg4: memref<1x128xf32, #tpu.memory_space<vmem>>, %arg5: memref<1x16x16x128xf32, #tpu.memory_space<vmem>>, %arg6: memref<1x16x16x128xf32, #tpu.memory_space<vmem>>, %arg7: memref<18x18x128xbf16, #tpu.memory_space<vmem>>, %arg8: memref<256x1152xbf16, #tpu.memory_space<vmem>>) attributes {dimension_semantics = [#tpu.dimension_semantics<parallel>, #tpu.dimension_semantics<parallel>], iteration_bounds = array<i64: 2, 1>, scalar_prefetch = 0 : i64, scratch_operands = 2 : i64, tpu.core_type = #tpu.core_type<tc>, window_params = [{transform_indices = @transform_0, window_bounds = array<i64: 1, 16, 16, 128>}, {pipeline_mode = #tpu.pipeline_mode<synchronous>, transform_indices = @transform_1, window_bounds = array<i64: 1152, 128>}, {pipeline_mode = #tpu.pipeline_mode<synchronous>, transform_indices = @transform_2, window_bounds = array<i64: 1, 128>}, {transform_indices = @transform_3, window_bounds = array<i64: 1, 16, 16, 128>}, {transform_indices = @transform_4, window_bounds = array<i64: 1, 16, 16, 128>}]} {
    %c16_i32 = arith.constant 16 : i32
    %0 = arith.muli %arg1, %c16_i32 : i32
    %1 = tpu.assume_multiple %0, 8 : i32
    %cst = arith.constant 0.000000e+00 : bf16
    %2 = vector.broadcast %cst : bf16 to vector<18x18x128xbf16>
    %c0 = arith.constant 0 : index
    %c0_0 = arith.constant 0 : index
    %c0_1 = arith.constant 0 : index
    %3 = vector.load %arg7[%c0, %c0_0, %c0_1] : memref<18x18x128xbf16, #tpu.memory_space<vmem>>, vector<18x18x128xbf16>
    tpu.vector_store %arg7[%c0, %c0_0, %c0_1], %2 {strides = array<i32>} : memref<18x18x128xbf16, #tpu.memory_space<vmem>>, vector<18x18x128xbf16>,
    %c0_2 = arith.constant 0 : index
    %4 = arith.index_cast %1 : i32 to index
    %c0_3 = arith.constant 0 : index
    %c0_4 = arith.constant 0 : index
    %5 = vector.load %arg2[%c0_2, %4, %c0_3, %c0_4] : memref<1x16x16x128xbf16, #tpu.memory_space<vmem>>, vector<1x16x16x128xbf16>
    %6 = vector.shape_cast %5 : vector<1x16x16x128xbf16> to vector<16x16x128xbf16>
    %c1 = arith.constant 1 : index
    %c1_5 = arith.constant 1 : index
    %c0_6 = arith.constant 0 : index
    %7 = vector.load %arg7[%c1, %c1_5, %c0_6] : memref<18x18x128xbf16, #tpu.memory_space<vmem>>, vector<16x16x128xbf16>
    tpu.vector_store %arg7[%c1, %c1_5, %c0_6], %6 {strides = array<i32>} : memref<18x18x128xbf16, #tpu.memory_space<vmem>>, vector<16x16x128xbf16>,
    %c0_i32 = arith.constant 0 : i32
    %8 = arith.cmpi sgt, %1, %c0_i32 : i32
    %9 = arith.extui %8 : i1 to i32
    %c0_i32_7 = arith.constant 0 : i32
    %10 = arith.cmpi ne, %9, %c0_i32_7 : i32
    scf.if %10 {
      %c1_i32 = arith.constant 1 : i32
      %58 = arith.subi %1, %c1_i32 : i32
      %c0_i32_63 = arith.constant 0 : i32
      %59 = arith.maxsi %58, %c0_i32_63 : i32
      %c0_64 = arith.constant 0 : index
      %60 = arith.index_cast %59 : i32 to index
      %c0_65 = arith.constant 0 : index
      %c0_66 = arith.constant 0 : index
      %61 = vector.load %arg2[%c0_64, %60, %c0_65, %c0_66] : memref<1x16x16x128xbf16, #tpu.memory_space<vmem>>, vector<1x1x16x128xbf16>
      %62 = vector.shape_cast %61 : vector<1x1x16x128xbf16> to vector<1x16x128xbf16>
      %c0_67 = arith.constant 0 : index
      %c1_68 = arith.constant 1 : index
      %c0_69 = arith.constant 0 : index
      %63 = vector.load %arg7[%c0_67, %c1_68, %c0_69] : memref<18x18x128xbf16, #tpu.memory_space<vmem>>, vector<1x16x128xbf16>
      tpu.vector_store %arg7[%c0_67, %c1_68, %c0_69], %62 {strides = array<i32>} : memref<18x18x128xbf16, #tpu.memory_space<vmem>>, vector<1x16x128xbf16>,
    } else {
    }
    %c16_i32_8 = arith.constant 16 : i32
    %11 = arith.addi %1, %c16_i32_8 : i32
    %c16_i32_9 = arith.constant 16 : i32
    %12 = arith.cmpi slt, %11, %c16_i32_9 : i32
    %13 = arith.extui %12 : i1 to i32
    %c0_i32_10 = arith.constant 0 : i32
    %14 = arith.cmpi ne, %13, %c0_i32_10 : i32
    scf.if %14 {
      %c16_i32_63 = arith.constant 16 : i32
      %58 = arith.addi %1, %c16_i32_63 : i32
      %c15_i32 = arith.constant 15 : i32
      %59 = arith.minsi %58, %c15_i32 : i32
      %c0_64 = arith.constant 0 : index
      %60 = arith.index_cast %59 : i32 to index
      %c0_65 = arith.constant 0 : index
      %c0_66 = arith.constant 0 : index
      %61 = vector.load %arg2[%c0_64, %60, %c0_65, %c0_66] : memref<1x16x16x128xbf16, #tpu.memory_space<vmem>>, vector<1x1x16x128xbf16>
      %62 = vector.shape_cast %61 : vector<1x1x16x128xbf16> to vector<1x16x128xbf16>
      %c17 = arith.constant 17 : index
      %c1_67 = arith.constant 1 : index
      %c0_68 = arith.constant 0 : index
      %63 = vector.load %arg7[%c17, %c1_67, %c0_68] : memref<18x18x128xbf16, #tpu.memory_space<vmem>>, vector<1x16x128xbf16>
      tpu.vector_store %arg7[%c17, %c1_67, %c0_68], %62 {strides = array<i32>} : memref<18x18x128xbf16, #tpu.memory_space<vmem>>, vector<1x16x128xbf16>,
    } else {
    }
    %c0_11 = arith.constant 0 : index
    %c0_12 = arith.constant 0 : index
    %c0_13 = arith.constant 0 : index
    %15 = vector.load %arg7[%c0_11, %c0_12, %c0_13] : memref<18x18x128xbf16, #tpu.memory_space<vmem>>, vector<16x16x128xbf16>
    %16 = vector.shape_cast %15 : vector<16x16x128xbf16> to vector<256x128xbf16>
    %c0_14 = arith.constant 0 : index
    %c0_15 = arith.constant 0 : index
    %17 = vector.load %arg8[%c0_14, %c0_15] : memref<256x1152xbf16, #tpu.memory_space<vmem>>, vector<256x128xbf16>
    tpu.vector_store %arg8[%c0_14, %c0_15], %16 {strides = array<i32>} : memref<256x1152xbf16, #tpu.memory_space<vmem>>, vector<256x128xbf16>,
    %c0_16 = arith.constant 0 : index
    %c1_17 = arith.constant 1 : index
    %c0_18 = arith.constant 0 : index
    %18 = vector.load %arg7[%c0_16, %c1_17, %c0_18] : memref<18x18x128xbf16, #tpu.memory_space<vmem>>, vector<16x16x128xbf16>
    %19 = vector.shape_cast %18 : vector<16x16x128xbf16> to vector<256x128xbf16>
    %c0_19 = arith.constant 0 : index
    %c128 = arith.constant 128 : index
    %20 = vector.load %arg8[%c0_19, %c128] : memref<256x1152xbf16, #tpu.memory_space<vmem>>, vector<256x128xbf16>
    tpu.vector_store %arg8[%c0_19, %c128], %19 {strides = array<i32>} : memref<256x1152xbf16, #tpu.memory_space<vmem>>, vector<256x128xbf16>,
    %c0_20 = arith.constant 0 : index
    %c2 = arith.constant 2 : index
    %c0_21 = arith.constant 0 : index
    %21 = vector.load %arg7[%c0_20, %c2, %c0_21] : memref<18x18x128xbf16, #tpu.memory_space<vmem>>, vector<16x16x128xbf16>
    %22 = vector.shape_cast %21 : vector<16x16x128xbf16> to vector<256x128xbf16>
    %c0_22 = arith.constant 0 : index
    %c256 = arith.constant 256 : index
    %23 = vector.load %arg8[%c0_22, %c256] : memref<256x1152xbf16, #tpu.memory_space<vmem>>, vector<256x128xbf16>
    tpu.vector_store %arg8[%c0_22, %c256], %22 {strides = array<i32>} : memref<256x1152xbf16, #tpu.memory_space<vmem>>, vector<256x128xbf16>,
    %c1_23 = arith.constant 1 : index
    %c0_24 = arith.constant 0 : index
    %c0_25 = arith.constant 0 : index
    %24 = vector.load %arg7[%c1_23, %c0_24, %c0_25] : memref<18x18x128xbf16, #tpu.memory_space<vmem>>, vector<16x16x128xbf16>
    %25 = vector.shape_cast %24 : vector<16x16x128xbf16> to vector<256x128xbf16>
    %c0_26 = arith.constant 0 : index
    %c384 = arith.constant 384 : index
    %26 = vector.load %arg8[%c0_26, %c384] : memref<256x1152xbf16, #tpu.memory_space<vmem>>, vector<256x128xbf16>
    tpu.vector_store %arg8[%c0_26, %c384], %25 {strides = array<i32>} : memref<256x1152xbf16, #tpu.memory_space<vmem>>, vector<256x128xbf16>,
    %c1_27 = arith.constant 1 : index
    %c1_28 = arith.constant 1 : index
    %c0_29 = arith.constant 0 : index
    %27 = vector.load %arg7[%c1_27, %c1_28, %c0_29] : memref<18x18x128xbf16, #tpu.memory_space<vmem>>, vector<16x16x128xbf16>
    %28 = vector.shape_cast %27 : vector<16x16x128xbf16> to vector<256x128xbf16>
    %c0_30 = arith.constant 0 : index
    %c512 = arith.constant 512 : index
    %29 = vector.load %arg8[%c0_30, %c512] : memref<256x1152xbf16, #tpu.memory_space<vmem>>, vector<256x128xbf16>
    tpu.vector_store %arg8[%c0_30, %c512], %28 {strides = array<i32>} : memref<256x1152xbf16, #tpu.memory_space<vmem>>, vector<256x128xbf16>,
    %c1_31 = arith.constant 1 : index
    %c2_32 = arith.constant 2 : index
    %c0_33 = arith.constant 0 : index
    %30 = vector.load %arg7[%c1_31, %c2_32, %c0_33] : memref<18x18x128xbf16, #tpu.memory_space<vmem>>, vector<16x16x128xbf16>
    %31 = vector.shape_cast %30 : vector<16x16x128xbf16> to vector<256x128xbf16>
    %c0_34 = arith.constant 0 : index
    %c640 = arith.constant 640 : index
    %32 = vector.load %arg8[%c0_34, %c640] : memref<256x1152xbf16, #tpu.memory_space<vmem>>, vector<256x128xbf16>
    tpu.vector_store %arg8[%c0_34, %c640], %31 {strides = array<i32>} : memref<256x1152xbf16, #tpu.memory_space<vmem>>, vector<256x128xbf16>,
    %c2_35 = arith.constant 2 : index
    %c0_36 = arith.constant 0 : index
    %c0_37 = arith.constant 0 : index
    %33 = vector.load %arg7[%c2_35, %c0_36, %c0_37] : memref<18x18x128xbf16, #tpu.memory_space<vmem>>, vector<16x16x128xbf16>
    %34 = vector.shape_cast %33 : vector<16x16x128xbf16> to vector<256x128xbf16>
    %c0_38 = arith.constant 0 : index
    %c768 = arith.constant 768 : index
    %35 = vector.load %arg8[%c0_38, %c768] : memref<256x1152xbf16, #tpu.memory_space<vmem>>, vector<256x128xbf16>
    tpu.vector_store %arg8[%c0_38, %c768], %34 {strides = array<i32>} : memref<256x1152xbf16, #tpu.memory_space<vmem>>, vector<256x128xbf16>,
    %c2_39 = arith.constant 2 : index
    %c1_40 = arith.constant 1 : index
    %c0_41 = arith.constant 0 : index
    %36 = vector.load %arg7[%c2_39, %c1_40, %c0_41] : memref<18x18x128xbf16, #tpu.memory_space<vmem>>, vector<16x16x128xbf16>
    %37 = vector.shape_cast %36 : vector<16x16x128xbf16> to vector<256x128xbf16>
    %c0_42 = arith.constant 0 : index
    %c896 = arith.constant 896 : index
    %38 = vector.load %arg8[%c0_42, %c896] : memref<256x1152xbf16, #tpu.memory_space<vmem>>, vector<256x128xbf16>
    tpu.vector_store %arg8[%c0_42, %c896], %37 {strides = array<i32>} : memref<256x1152xbf16, #tpu.memory_space<vmem>>, vector<256x128xbf16>,
    %c2_43 = arith.constant 2 : index
    %c2_44 = arith.constant 2 : index
    %c0_45 = arith.constant 0 : index
    %39 = vector.load %arg7[%c2_43, %c2_44, %c0_45] : memref<18x18x128xbf16, #tpu.memory_space<vmem>>, vector<16x16x128xbf16>
    %40 = vector.shape_cast %39 : vector<16x16x128xbf16> to vector<256x128xbf16>
    %c0_46 = arith.constant 0 : index
    %c1024 = arith.constant 1024 : index
    %41 = vector.load %arg8[%c0_46, %c1024] : memref<256x1152xbf16, #tpu.memory_space<vmem>>, vector<256x128xbf16>
    tpu.vector_store %arg8[%c0_46, %c1024], %40 {strides = array<i32>} : memref<256x1152xbf16, #tpu.memory_space<vmem>>, vector<256x128xbf16>,
    %c0_47 = arith.constant 0 : index
    %c0_48 = arith.constant 0 : index
    %42 = vector.load %arg8[%c0_47, %c0_48] : memref<256x1152xbf16, #tpu.memory_space<vmem>>, vector<256x1152xbf16>
    %c0_49 = arith.constant 0 : index
    %c0_50 = arith.constant 0 : index
    %43 = vector.load %arg3[%c0_49, %c0_50] : memref<1152x128xbf16, #tpu.memory_space<vmem>>, vector<1152x128xbf16>
    %cst_51 = arith.constant dense<0.000000e+00> : vector<256x128xf32>
    %44 = tpu.matmul %42, %43, %cst_51 {dimension_numbers = #tpu.dot_dimension_numbers<[1], [0], [0], [1], [0, 0, 1, 1], [], []>} : vector<256x1152xbf16>, vector<1152x128xbf16>, vector<256x128xf32> -> vector<256x128xf32>
    %c0_52 = arith.constant 0 : index
    %c0_53 = arith.constant 0 : index
    %45 = vector.load %arg4[%c0_52, %c0_53] : memref<1x128xf32, #tpu.memory_space<vmem>>, vector<1x128xf32>
    %46 = vector.broadcast %45 : vector<1x128xf32> to vector<256x128xf32>
    %47 = arith.addf %44, %46 : vector<256x128xf32>
    %c0_54 = arith.constant 0 : index
    %c0_55 = arith.constant 0 : index
    %c0_56 = arith.constant 0 : index
    %c0_57 = arith.constant 0 : index
    %48 = vector.load %arg5[%c0_54, %c0_55, %c0_56, %c0_57] : memref<1x16x16x128xf32, #tpu.memory_space<vmem>>, vector<1x16x16x128xf32>
    %49 = vector.shape_cast %48 : vector<1x16x16x128xf32> to vector<16x16x128xf32>
    %50 = vector.shape_cast %49 : vector<16x16x128xf32> to vector<256x128xf32>
    %51 = arith.addf %47, %50 : vector<256x128xf32>
    %cst_58 = arith.constant 0.000000e+00 : f32
    %52 = vector.broadcast %cst_58 : f32 to vector<256x128xf32>
    %53 = arith.maximumf %51, %52 : vector<256x128xf32>
    %54 = vector.shape_cast %53 : vector<256x128xf32> to vector<16x16x128xf32>
    %c0_59 = arith.constant 0 : index
    %c0_60 = arith.constant 0 : index
    %c0_61 = arith.constant 0 : index
    %c0_62 = arith.constant 0 : index
    %55 = vector.load %arg6[%c0_59, %c0_60, %c0_61, %c0_62] : memref<1x16x16x128xf32, #tpu.memory_space<vmem>>, vector<1x16x16x128xf32>
    %56 = vector.shape_cast %55 : vector<1x16x16x128xf32> to vector<16x16x128xf32>
    %57 = vector.shape_cast %54 : vector<16x16x128xf32> to vector<1x16x16x128xf32>
    tpu.vector_store %arg6[%c0_59, %c0_60, %c0_61, %c0_62], %57 {strides = array<i32>} : memref<1x16x16x128xf32, #tpu.memory_space<vmem>>, vector<1x16x16x128xf32>,
    return
  }
  func.func @transform_0(%arg0: i32, %arg1: i32) -> (i32, i32, i32, i32) {
    %c0_i32 = arith.constant 0 : i32
    %c0_i32_0 = arith.constant 0 : i32
    %c0_i32_1 = arith.constant 0 : i32
    %c0_i32_2 = arith.constant 0 : i32
    return %arg0, %c0_i32, %c0_i32_0, %c0_i32_1 : i32, i32, i32, i32
  }
  func.func @transform_1(%arg0: i32, %arg1: i32) -> (i32, i32) {
    %c0_i32 = arith.constant 0 : i32
    %c0_i32_0 = arith.constant 0 : i32
    %c0_i32_1 = arith.constant 0 : i32
    return %c0_i32, %c0_i32_0 : i32, i32
  }
  func.func @transform_2(%arg0: i32, %arg1: i32) -> (i32, i32) {
    %c0_i32 = arith.constant 0 : i32
    %c0_i32_0 = arith.constant 0 : i32
    %c0_i32_1 = arith.constant 0 : i32
    return %c0_i32, %c0_i32_0 : i32, i32
  }
  func.func @transform_3(%arg0: i32, %arg1: i32) -> (i32, i32, i32, i32) {
    %c0_i32 = arith.constant 0 : i32
    %c0_i32_0 = arith.constant 0 : i32
    %c0_i32_1 = arith.constant 0 : i32
    return %arg0, %arg1, %c0_i32, %c0_i32_0 : i32, i32, i32, i32
  }
  func.func @transform_4(%arg0: i32, %arg1: i32) -> (i32, i32, i32, i32) {
    %c0_i32 = arith.constant 0 : i32
    %c0_i32_0 = arith.constant 0 : i32
    %c0_i32_1 = arith.constant 0 : i32
    return %arg0, %arg1, %c0_i32, %c0_i32_0 : i32, i32, i32, i32
  }
}

module attributes {stable_mosaic.version = 11 : i64} {
  func.func @kernel(%arg0: i32, %arg1: i32, %arg2: memref<1x16x16x128xbf16, #tpu.memory_space<vmem>>, %arg3: memref<1152x128xbf16, #tpu.memory_space<vmem>>, %arg4: memref<1x128xf32, #tpu.memory_space<vmem>>, %arg5: memref<1x16x16x128xbf16, #tpu.memory_space<vmem>>, %arg6: memref<18x18x128xbf16, #tpu.memory_space<vmem>>, %arg7: memref<256x1152xbf16, #tpu.memory_space<vmem>>) attributes {dimension_semantics = [#tpu.dimension_semantics<parallel>, #tpu.dimension_semantics<parallel>], iteration_bounds = array<i64: 2, 1>, scalar_prefetch = 0 : i64, scratch_operands = 2 : i64, tpu.core_type = #tpu.core_type<tc>, window_params = [{transform_indices = @transform_0, window_bounds = array<i64: 1, 16, 16, 128>}, {pipeline_mode = #tpu.pipeline_mode<synchronous>, transform_indices = @transform_1, window_bounds = array<i64: 1152, 128>}, {pipeline_mode = #tpu.pipeline_mode<synchronous>, transform_indices = @transform_2, window_bounds = array<i64: 1, 128>}, {transform_indices = @transform_3, window_bounds = array<i64: 1, 16, 16, 128>}]} {
    %c16_i32 = arith.constant 16 : i32
    %0 = arith.muli %arg1, %c16_i32 : i32
    %1 = tpu.assume_multiple %0, 8 : i32
    %cst = arith.constant 0.000000e+00 : bf16
    %2 = vector.broadcast %cst : bf16 to vector<18x18x128xbf16>
    %c0 = arith.constant 0 : index
    %c0_0 = arith.constant 0 : index
    %c0_1 = arith.constant 0 : index
    %3 = vector.load %arg6[%c0, %c0_0, %c0_1] : memref<18x18x128xbf16, #tpu.memory_space<vmem>>, vector<18x18x128xbf16>
    tpu.vector_store %arg6[%c0, %c0_0, %c0_1], %2 {strides = array<i32>} : memref<18x18x128xbf16, #tpu.memory_space<vmem>>, vector<18x18x128xbf16>,
    %c0_2 = arith.constant 0 : index
    %4 = arith.index_cast %1 : i32 to index
    %c0_3 = arith.constant 0 : index
    %c0_4 = arith.constant 0 : index
    %5 = vector.load %arg2[%c0_2, %4, %c0_3, %c0_4] : memref<1x16x16x128xbf16, #tpu.memory_space<vmem>>, vector<1x16x16x128xbf16>
    %6 = vector.shape_cast %5 : vector<1x16x16x128xbf16> to vector<16x16x128xbf16>
    %c1 = arith.constant 1 : index
    %c1_5 = arith.constant 1 : index
    %c0_6 = arith.constant 0 : index
    %7 = vector.load %arg6[%c1, %c1_5, %c0_6] : memref<18x18x128xbf16, #tpu.memory_space<vmem>>, vector<16x16x128xbf16>
    tpu.vector_store %arg6[%c1, %c1_5, %c0_6], %6 {strides = array<i32>} : memref<18x18x128xbf16, #tpu.memory_space<vmem>>, vector<16x16x128xbf16>,
    %c0_i32 = arith.constant 0 : i32
    %8 = arith.cmpi sgt, %1, %c0_i32 : i32
    %9 = arith.extui %8 : i1 to i32
    %c0_i32_7 = arith.constant 0 : i32
    %10 = arith.cmpi ne, %9, %c0_i32_7 : i32
    scf.if %10 {
      %c1_i32 = arith.constant 1 : i32
      %55 = arith.subi %1, %c1_i32 : i32
      %c0_i32_59 = arith.constant 0 : i32
      %56 = arith.maxsi %55, %c0_i32_59 : i32
      %c0_60 = arith.constant 0 : index
      %57 = arith.index_cast %56 : i32 to index
      %c0_61 = arith.constant 0 : index
      %c0_62 = arith.constant 0 : index
      %58 = vector.load %arg2[%c0_60, %57, %c0_61, %c0_62] : memref<1x16x16x128xbf16, #tpu.memory_space<vmem>>, vector<1x1x16x128xbf16>
      %59 = vector.shape_cast %58 : vector<1x1x16x128xbf16> to vector<1x16x128xbf16>
      %c0_63 = arith.constant 0 : index
      %c1_64 = arith.constant 1 : index
      %c0_65 = arith.constant 0 : index
      %60 = vector.load %arg6[%c0_63, %c1_64, %c0_65] : memref<18x18x128xbf16, #tpu.memory_space<vmem>>, vector<1x16x128xbf16>
      tpu.vector_store %arg6[%c0_63, %c1_64, %c0_65], %59 {strides = array<i32>} : memref<18x18x128xbf16, #tpu.memory_space<vmem>>, vector<1x16x128xbf16>,
    } else {
    }
    %c16_i32_8 = arith.constant 16 : i32
    %11 = arith.addi %1, %c16_i32_8 : i32
    %c16_i32_9 = arith.constant 16 : i32
    %12 = arith.cmpi slt, %11, %c16_i32_9 : i32
    %13 = arith.extui %12 : i1 to i32
    %c0_i32_10 = arith.constant 0 : i32
    %14 = arith.cmpi ne, %13, %c0_i32_10 : i32
    scf.if %14 {
      %c16_i32_59 = arith.constant 16 : i32
      %55 = arith.addi %1, %c16_i32_59 : i32
      %c15_i32 = arith.constant 15 : i32
      %56 = arith.minsi %55, %c15_i32 : i32
      %c0_60 = arith.constant 0 : index
      %57 = arith.index_cast %56 : i32 to index
      %c0_61 = arith.constant 0 : index
      %c0_62 = arith.constant 0 : index
      %58 = vector.load %arg2[%c0_60, %57, %c0_61, %c0_62] : memref<1x16x16x128xbf16, #tpu.memory_space<vmem>>, vector<1x1x16x128xbf16>
      %59 = vector.shape_cast %58 : vector<1x1x16x128xbf16> to vector<1x16x128xbf16>
      %c17 = arith.constant 17 : index
      %c1_63 = arith.constant 1 : index
      %c0_64 = arith.constant 0 : index
      %60 = vector.load %arg6[%c17, %c1_63, %c0_64] : memref<18x18x128xbf16, #tpu.memory_space<vmem>>, vector<1x16x128xbf16>
      tpu.vector_store %arg6[%c17, %c1_63, %c0_64], %59 {strides = array<i32>} : memref<18x18x128xbf16, #tpu.memory_space<vmem>>, vector<1x16x128xbf16>,
    } else {
    }
    %c0_11 = arith.constant 0 : index
    %c0_12 = arith.constant 0 : index
    %c0_13 = arith.constant 0 : index
    %15 = vector.load %arg6[%c0_11, %c0_12, %c0_13] : memref<18x18x128xbf16, #tpu.memory_space<vmem>>, vector<16x16x128xbf16>
    %16 = vector.shape_cast %15 : vector<16x16x128xbf16> to vector<256x128xbf16>
    %c0_14 = arith.constant 0 : index
    %c0_15 = arith.constant 0 : index
    %17 = vector.load %arg7[%c0_14, %c0_15] : memref<256x1152xbf16, #tpu.memory_space<vmem>>, vector<256x128xbf16>
    tpu.vector_store %arg7[%c0_14, %c0_15], %16 {strides = array<i32>} : memref<256x1152xbf16, #tpu.memory_space<vmem>>, vector<256x128xbf16>,
    %c0_16 = arith.constant 0 : index
    %c1_17 = arith.constant 1 : index
    %c0_18 = arith.constant 0 : index
    %18 = vector.load %arg6[%c0_16, %c1_17, %c0_18] : memref<18x18x128xbf16, #tpu.memory_space<vmem>>, vector<16x16x128xbf16>
    %19 = vector.shape_cast %18 : vector<16x16x128xbf16> to vector<256x128xbf16>
    %c0_19 = arith.constant 0 : index
    %c128 = arith.constant 128 : index
    %20 = vector.load %arg7[%c0_19, %c128] : memref<256x1152xbf16, #tpu.memory_space<vmem>>, vector<256x128xbf16>
    tpu.vector_store %arg7[%c0_19, %c128], %19 {strides = array<i32>} : memref<256x1152xbf16, #tpu.memory_space<vmem>>, vector<256x128xbf16>,
    %c0_20 = arith.constant 0 : index
    %c2 = arith.constant 2 : index
    %c0_21 = arith.constant 0 : index
    %21 = vector.load %arg6[%c0_20, %c2, %c0_21] : memref<18x18x128xbf16, #tpu.memory_space<vmem>>, vector<16x16x128xbf16>
    %22 = vector.shape_cast %21 : vector<16x16x128xbf16> to vector<256x128xbf16>
    %c0_22 = arith.constant 0 : index
    %c256 = arith.constant 256 : index
    %23 = vector.load %arg7[%c0_22, %c256] : memref<256x1152xbf16, #tpu.memory_space<vmem>>, vector<256x128xbf16>
    tpu.vector_store %arg7[%c0_22, %c256], %22 {strides = array<i32>} : memref<256x1152xbf16, #tpu.memory_space<vmem>>, vector<256x128xbf16>,
    %c1_23 = arith.constant 1 : index
    %c0_24 = arith.constant 0 : index
    %c0_25 = arith.constant 0 : index
    %24 = vector.load %arg6[%c1_23, %c0_24, %c0_25] : memref<18x18x128xbf16, #tpu.memory_space<vmem>>, vector<16x16x128xbf16>
    %25 = vector.shape_cast %24 : vector<16x16x128xbf16> to vector<256x128xbf16>
    %c0_26 = arith.constant 0 : index
    %c384 = arith.constant 384 : index
    %26 = vector.load %arg7[%c0_26, %c384] : memref<256x1152xbf16, #tpu.memory_space<vmem>>, vector<256x128xbf16>
    tpu.vector_store %arg7[%c0_26, %c384], %25 {strides = array<i32>} : memref<256x1152xbf16, #tpu.memory_space<vmem>>, vector<256x128xbf16>,
    %c1_27 = arith.constant 1 : index
    %c1_28 = arith.constant 1 : index
    %c0_29 = arith.constant 0 : index
    %27 = vector.load %arg6[%c1_27, %c1_28, %c0_29] : memref<18x18x128xbf16, #tpu.memory_space<vmem>>, vector<16x16x128xbf16>
    %28 = vector.shape_cast %27 : vector<16x16x128xbf16> to vector<256x128xbf16>
    %c0_30 = arith.constant 0 : index
    %c512 = arith.constant 512 : index
    %29 = vector.load %arg7[%c0_30, %c512] : memref<256x1152xbf16, #tpu.memory_space<vmem>>, vector<256x128xbf16>
    tpu.vector_store %arg7[%c0_30, %c512], %28 {strides = array<i32>} : memref<256x1152xbf16, #tpu.memory_space<vmem>>, vector<256x128xbf16>,
    %c1_31 = arith.constant 1 : index
    %c2_32 = arith.constant 2 : index
    %c0_33 = arith.constant 0 : index
    %30 = vector.load %arg6[%c1_31, %c2_32, %c0_33] : memref<18x18x128xbf16, #tpu.memory_space<vmem>>, vector<16x16x128xbf16>
    %31 = vector.shape_cast %30 : vector<16x16x128xbf16> to vector<256x128xbf16>
    %c0_34 = arith.constant 0 : index
    %c640 = arith.constant 640 : index
    %32 = vector.load %arg7[%c0_34, %c640] : memref<256x1152xbf16, #tpu.memory_space<vmem>>, vector<256x128xbf16>
    tpu.vector_store %arg7[%c0_34, %c640], %31 {strides = array<i32>} : memref<256x1152xbf16, #tpu.memory_space<vmem>>, vector<256x128xbf16>,
    %c2_35 = arith.constant 2 : index
    %c0_36 = arith.constant 0 : index
    %c0_37 = arith.constant 0 : index
    %33 = vector.load %arg6[%c2_35, %c0_36, %c0_37] : memref<18x18x128xbf16, #tpu.memory_space<vmem>>, vector<16x16x128xbf16>
    %34 = vector.shape_cast %33 : vector<16x16x128xbf16> to vector<256x128xbf16>
    %c0_38 = arith.constant 0 : index
    %c768 = arith.constant 768 : index
    %35 = vector.load %arg7[%c0_38, %c768] : memref<256x1152xbf16, #tpu.memory_space<vmem>>, vector<256x128xbf16>
    tpu.vector_store %arg7[%c0_38, %c768], %34 {strides = array<i32>} : memref<256x1152xbf16, #tpu.memory_space<vmem>>, vector<256x128xbf16>,
    %c2_39 = arith.constant 2 : index
    %c1_40 = arith.constant 1 : index
    %c0_41 = arith.constant 0 : index
    %36 = vector.load %arg6[%c2_39, %c1_40, %c0_41] : memref<18x18x128xbf16, #tpu.memory_space<vmem>>, vector<16x16x128xbf16>
    %37 = vector.shape_cast %36 : vector<16x16x128xbf16> to vector<256x128xbf16>
    %c0_42 = arith.constant 0 : index
    %c896 = arith.constant 896 : index
    %38 = vector.load %arg7[%c0_42, %c896] : memref<256x1152xbf16, #tpu.memory_space<vmem>>, vector<256x128xbf16>
    tpu.vector_store %arg7[%c0_42, %c896], %37 {strides = array<i32>} : memref<256x1152xbf16, #tpu.memory_space<vmem>>, vector<256x128xbf16>,
    %c2_43 = arith.constant 2 : index
    %c2_44 = arith.constant 2 : index
    %c0_45 = arith.constant 0 : index
    %39 = vector.load %arg6[%c2_43, %c2_44, %c0_45] : memref<18x18x128xbf16, #tpu.memory_space<vmem>>, vector<16x16x128xbf16>
    %40 = vector.shape_cast %39 : vector<16x16x128xbf16> to vector<256x128xbf16>
    %c0_46 = arith.constant 0 : index
    %c1024 = arith.constant 1024 : index
    %41 = vector.load %arg7[%c0_46, %c1024] : memref<256x1152xbf16, #tpu.memory_space<vmem>>, vector<256x128xbf16>
    tpu.vector_store %arg7[%c0_46, %c1024], %40 {strides = array<i32>} : memref<256x1152xbf16, #tpu.memory_space<vmem>>, vector<256x128xbf16>,
    %c0_47 = arith.constant 0 : index
    %c0_48 = arith.constant 0 : index
    %42 = vector.load %arg7[%c0_47, %c0_48] : memref<256x1152xbf16, #tpu.memory_space<vmem>>, vector<256x1152xbf16>
    %c0_49 = arith.constant 0 : index
    %c0_50 = arith.constant 0 : index
    %43 = vector.load %arg3[%c0_49, %c0_50] : memref<1152x128xbf16, #tpu.memory_space<vmem>>, vector<1152x128xbf16>
    %cst_51 = arith.constant dense<0.000000e+00> : vector<256x128xf32>
    %44 = tpu.matmul %42, %43, %cst_51 {dimension_numbers = #tpu.dot_dimension_numbers<[1], [0], [0], [1], [0, 0, 1, 1], [], []>} : vector<256x1152xbf16>, vector<1152x128xbf16>, vector<256x128xf32> -> vector<256x128xf32>
    %c0_52 = arith.constant 0 : index
    %c0_53 = arith.constant 0 : index
    %45 = vector.load %arg4[%c0_52, %c0_53] : memref<1x128xf32, #tpu.memory_space<vmem>>, vector<1x128xf32>
    %46 = vector.broadcast %45 : vector<1x128xf32> to vector<256x128xf32>
    %47 = arith.addf %44, %46 : vector<256x128xf32>
    %cst_54 = arith.constant 0.000000e+00 : f32
    %48 = vector.broadcast %cst_54 : f32 to vector<256x128xf32>
    %49 = arith.maximumf %47, %48 : vector<256x128xf32>
    %50 = vector.shape_cast %49 : vector<256x128xf32> to vector<16x16x128xf32>
    %51 = arith.truncf %50 : vector<16x16x128xf32> to vector<16x16x128xbf16>
    %c0_55 = arith.constant 0 : index
    %c0_56 = arith.constant 0 : index
    %c0_57 = arith.constant 0 : index
    %c0_58 = arith.constant 0 : index
    %52 = vector.load %arg5[%c0_55, %c0_56, %c0_57, %c0_58] : memref<1x16x16x128xbf16, #tpu.memory_space<vmem>>, vector<1x16x16x128xbf16>
    %53 = vector.shape_cast %52 : vector<1x16x16x128xbf16> to vector<16x16x128xbf16>
    %54 = vector.shape_cast %51 : vector<16x16x128xbf16> to vector<1x16x16x128xbf16>
    tpu.vector_store %arg5[%c0_55, %c0_56, %c0_57, %c0_58], %54 {strides = array<i32>} : memref<1x16x16x128xbf16, #tpu.memory_space<vmem>>, vector<1x16x16x128xbf16>,
    return
  }
  func.func @transform_0(%arg0: i32, %arg1: i32) -> (i32, i32, i32, i32) {
    %c0_i32 = arith.constant 0 : i32
    %c0_i32_0 = arith.constant 0 : i32
    %c0_i32_1 = arith.constant 0 : i32
    %c0_i32_2 = arith.constant 0 : i32
    return %arg0, %c0_i32, %c0_i32_0, %c0_i32_1 : i32, i32, i32, i32
  }
  func.func @transform_1(%arg0: i32, %arg1: i32) -> (i32, i32) {
    %c0_i32 = arith.constant 0 : i32
    %c0_i32_0 = arith.constant 0 : i32
    %c0_i32_1 = arith.constant 0 : i32
    return %c0_i32, %c0_i32_0 : i32, i32
  }
  func.func @transform_2(%arg0: i32, %arg1: i32) -> (i32, i32) {
    %c0_i32 = arith.constant 0 : i32
    %c0_i32_0 = arith.constant 0 : i32
    %c0_i32_1 = arith.constant 0 : i32
    return %c0_i32, %c0_i32_0 : i32, i32
  }
  func.func @transform_3(%arg0: i32, %arg1: i32) -> (i32, i32, i32, i32) {
    %c0_i32 = arith.constant 0 : i32
    %c0_i32_0 = arith.constant 0 : i32
    %c0_i32_1 = arith.constant 0 : i32
    return %arg0, %arg1, %c0_i32, %c0_i32_0 : i32, i32, i32, i32
  }
}

</mosaic_0001>

<llo_original>
// kernel: basic_block_enc_pallas.3
$region0: #{basic_block_enc_pallas.3}
  #allocation0 [shape = 'u32[]', space=smem, size = 0x4, offset = 0x4, fixed_abs, tag = 'smem constant byte address 0x4 - core index']
  #allocation1 [shape = 'u32[144,128]{1,0:T(1,128)}', space=vmem, size = 0x12000, scoped, tag = 'internal scratch']
  #allocation2 [shape = 'bf16[18,18,128]{2,1,0:T(8,128)(2,1)}', space=vmem, size = 0x1b000, scoped, tag = 'scratch operand']
  #allocation3 [shape = 'bf16[256,1152]{1,0:T(8,128)(2,1)}', space=vmem, size = 0x90000, scoped, tag = 'scratch operand']
  %s0 = inlined_call_operand.vmem [shape: bf16[2,16,16,128], index: 0, kind: input, shape index: {}]
  %s1 = inlined_call_operand.vmem [shape: bf16[1152,128], index: 1, kind: input, shape index: {}]
  %s2 = inlined_call_operand.vmem [shape: f32[1,128], index: 2, kind: input, shape index: {}]
  %s3 = inlined_call_operand.vmem [shape: f32[2,16,16,128], index: 3, kind: input, shape index: {}]
  %s4 = inlined_call_operand.vmem [shape: f32[2,16,16,128], index: 4, kind: output, shape index: {}]
  %s5 = sld [smem:[#allocation0]]
  $region57: #{basic_block_enc_pallas.3} parent=0
    _
  %s7 = ssub.s32 1, %s5
  %s8 = scalar_select 0, %s7, %s5
  loop: start=0, step=1, limit=4
  $region2: #{basic_block_enc_pallas.3} parent=0 // loop_pre_header
    _
  $region3: #{basic_block_enc_pallas.3} parent=0 // loop_header
    %s10 = sphi 0, %s14
    %p11 = scmp.ge.s32.totalorder %s10, 4
    %s17 = sphi 0, %s29
    %s18 = sphi 0, %s25
    %s19 = sphi 0, %s17
    %s20 = sphi 0, %s18
    %s21 = sphi 0, %s19
    %s22 = sphi 0, %s20
    %s32 = sphi 0, %s34
    %s35 = sphi 0, %s32
    %s36 = sphi 0, %s35
    %s52 = sphi 0, %s36
    %s56 = sphi 0, %s56
    %s58 = sphi 0, %s56
    %s59 = sphi 0, %s58
    %s73 = sphi 0, %s59
    %s77 = sphi 0, %s77
    %s79 = sphi 0, %s77
    %s80 = sphi 0, %s79
    %s94 = sphi 0, %s80
    %s102 = sphi 0, %s104
    %s105 = sphi 0, %s102
    %s106 = sphi 0, %s105
    %s122 = sphi 0, %s106
    %s130 = sphi 0, %s132
    %s133 = sphi 0, %s130
    %s134 = sphi 0, %s133
    %s150 = sphi 0, %s134
  $region4: #{basic_block_enc_pallas.3} parent=0 // loop_header_branch
    %13 = sbr.rel (%p11) target = $region8
  $region5: #{basic_block_enc_pallas.3} parent=0 // loop_body
    %s15 = ssub.s32 %s10, 1
    %s16 = ssub.s32 %s10, 2
    %s23 = sadd.s32 1, %s18
    %p24 = scmp.ge.s32.totalorder %s23, 1
    %s25 = scalar_select %p24, 0, %s23
    %s26 = sadd.s32 1, %s17
    %s27 = scalar_select %p24, %s26, %s17
    %p28 = scmp.ge.s32.totalorder %s27, 2
    %s29 = scalar_select %p28, 0, %s27
    %s30 = ssub.s32 %s17, %s29
    %p31 = scmp.eq.s32.totalorder %s30, 0
    %s33 = sadd.s32 %s32, 1
    %s34 = scalar_select %p31, %s32, %s33
    %p37 = pneg %p31
    %p38 = scmp.eq.s32.totalorder %s10, 1
    %p39 = por %p37, %p38
    %p40 = scmp.ne.s32.totalorder %s32, %s35
    %p41 = scmp.eq.s32.totalorder %s10, 0
    %p42 = por %p40, %p41
    %p43 = scmp.ne.s32.totalorder %s32, %s35
    %p44 = scmp.eq.s32.totalorder %s15, 1
    %p45 = por %p43, %p44
    %p46 = scmp.ne.s32.totalorder %s35, %s36
    %p47 = scmp.eq.s32.totalorder %s15, 0
    %p48 = por %p46, %p47
    %p49 = scmp.ne.s32.totalorder %s35, %s36
    %p50 = scmp.eq.s32.totalorder %s16, 1
    %p51 = por %p49, %p50
    %p53 = scmp.ne.s32.totalorder %s36, %s52
    %p54 = scmp.eq.s32.totalorder %s16, 0
    %p55 = por %p53, %p54
    %s57 = sadd.s32 %s56, 1
    %p60 = scmp.eq.s32.totalorder %s10, 1
    %p61 = scmp.ne.s32.totalorder %s56, %s58
    %p62 = scmp.eq.s32.totalorder %s10, 0
    %p63 = por %p61, %p62
    %p64 = scmp.ne.s32.totalorder %s56, %s58
    %p65 = scmp.eq.s32.totalorder %s15, 1
    %p66 = por %p64, %p65
    %p67 = scmp.ne.s32.totalorder %s58, %s59
    %p68 = scmp.eq.s32.totalorder %s15, 0
    %p69 = por %p67, %p68
    %p70 = scmp.ne.s32.totalorder %s58, %s59
    %p71 = scmp.eq.s32.totalorder %s16, 1
    %p72 = por %p70, %p71
    %p74 = scmp.ne.s32.totalorder %s59, %s73
    %p75 = scmp.eq.s32.totalorder %s16, 0
    %p76 = por %p74, %p75
    %s78 = sadd.s32 %s77, 1
    %p81 = scmp.eq.s32.totalorder %s10, 1
    %p82 = scmp.ne.s32.totalorder %s77, %s79
    %p83 = scmp.eq.s32.totalorder %s10, 0
    %p84 = por %p82, %p83
    %p85 = scmp.ne.s32.totalorder %s77, %s79
    %p86 = scmp.eq.s32.totalorder %s15, 1
    %p87 = por %p85, %p86
    %p88 = scmp.ne.s32.totalorder %s79, %s80
    %p89 = scmp.eq.s32.totalorder %s15, 0
    %p90 = por %p88, %p89
    %p91 = scmp.ne.s32.totalorder %s79, %s80
    %p92 = scmp.eq.s32.totalorder %s16, 1
    %p93 = por %p91, %p92
    %p95 = scmp.ne.s32.totalorder %s80, %s94
    %p96 = scmp.eq.s32.totalorder %s16, 0
    %p97 = por %p95, %p96
    %s98 = ssub.s32 %s17, %s29
    %s99 = ssub.s32 %s18, %s25
    %s100 = sor.u32 %s98, %s99
    %p101 = scmp.eq.s32.totalorder %s100, 0
    %s103 = sadd.s32 %s102, 1
    %s104 = scalar_select %p101, %s102, %s103
    %p107 = pneg %p101
    %p108 = scmp.eq.s32.totalorder %s10, 1
    %p109 = por %p107, %p108
    %p110 = scmp.ne.s32.totalorder %s102, %s105
    %p111 = scmp.eq.s32.totalorder %s10, 0
    %p112 = por %p110, %p111
    %p113 = scmp.ne.s32.totalorder %s102, %s105
    %p114 = scmp.eq.s32.totalorder %s15, 1
    %p115 = por %p113, %p114
    %p116 = scmp.ne.s32.totalorder %s105, %s106
    %p117 = scmp.eq.s32.totalorder %s15, 0
    %p118 = por %p116, %p117
    %p119 = scmp.ne.s32.totalorder %s105, %s106
    %p120 = scmp.eq.s32.totalorder %s16, 1
    %p121 = por %p119, %p120
    %p123 = scmp.ne.s32.totalorder %s106, %s122
    %p124 = scmp.eq.s32.totalorder %s16, 0
    %p125 = por %p123, %p124
    %s126 = ssub.s32 %s17, %s29
    %s127 = ssub.s32 %s18, %s25
    %s128 = sor.u32 %s126, %s127
    %p129 = scmp.eq.s32.totalorder %s128, 0
    %s131 = sadd.s32 %s130, 1
    %s132 = scalar_select %p129, %s130, %s131
    %p135 = pneg %p129
    %p136 = scmp.eq.s32.totalorder %s10, 1
    %p137 = por %p135, %p136
    %p138 = scmp.ne.s32.totalorder %s130, %s133
    %p139 = scmp.eq.s32.totalorder %s10, 0
    %p140 = por %p138, %p139
    %p141 = scmp.ne.s32.totalorder %s130, %s133
    %p142 = scmp.eq.s32.totalorder %s15, 1
    %p143 = por %p141, %p142
    %p144 = scmp.ne.s32.totalorder %s133, %s134
    %p145 = scmp.eq.s32.totalorder %s15, 0
    %p146 = por %p144, %p145
    %p147 = scmp.ne.s32.totalorder %s133, %s134
    %p148 = scmp.eq.s32.totalorder %s16, 1
    %p149 = por %p147, %p148
    %p151 = scmp.ne.s32.totalorder %s134, %s150
    %p152 = scmp.eq.s32.totalorder %s16, 0
    %p153 = por %p151, %p152
    %p154 = scmp.le.s32.totalorder 1, %s10
    %p155 = scmp.lt.s32.totalorder %s10, 3
    %p156 = pnand %p154, %p155
    %p157 = pneg %p156
    // Predicated region
    $region9: #{basic_block_enc_pallas.3} parent=5 // pred_check
      _
    $region10: #{basic_block_enc_pallas.3} parent=5 // pred_check_branch
      %159 = sbr.rel (%p156) target = $region12
    $region11: #{basic_block_enc_pallas.3} parent=5 // pred_region
      %s160 = ssub.s32 %s10, 1
      // Predicated region
      $region13: #{basic_block_enc_pallas.3} parent=11 // pred_check
        %p161 = pneg %p69
      $region14: #{basic_block_enc_pallas.3} parent=11 // pred_check_branch
        %163 = sbr.rel (%p161) target = $region16
      $region15: #{basic_block_enc_pallas.3} parent=11 // pred_region
        _
      $region16: #{basic_block_enc_pallas.3} parent=11 // pred_fallthru
        _
      // Predicated region
      $region17: #{basic_block_enc_pallas.3} parent=11 // pred_check
        %p164 = pneg %p90
      $region18: #{basic_block_enc_pallas.3} parent=11 // pred_check_branch
        %166 = sbr.rel (%p164) target = $region20
      $region19: #{basic_block_enc_pallas.3} parent=11 // pred_region
        _
      $region20: #{basic_block_enc_pallas.3} parent=11 // pred_fallthru
        _
    $region12: #{basic_block_enc_pallas.3} parent=5 // pred_fallthru
      _
    %p167 = scmp.lt.s32.totalorder %s10, 2
    // Predicated region
    $region21: #{basic_block_enc_pallas.3} parent=5 // pred_check
      %p168 = pneg %p167
    $region22: #{basic_block_enc_pallas.3} parent=5 // pred_check_branch
      %170 = sbr.rel (%p168) target = $region24
    $region23: #{basic_block_enc_pallas.3} parent=5 // pred_region
      // Predicated region
      $region25: #{basic_block_enc_pallas.3} parent=23 // pred_check
        %p171 = pneg %p42
      $region26: #{basic_block_enc_pallas.3} parent=23 // pred_check_branch
        %173 = sbr.rel (%p171) target = $region28
      $region27: #{basic_block_enc_pallas.3} parent=23 // pred_region
        %p174 = scmp.lt.s32.totalorder %s17, 1
        %s175 = scalar_select %p174, %s17, 1
        %s176 = smul.addr %s175, 32
        %s177 = smul.addr %s176, 4
        %s178 = scalar_lea.vmem %s0, %s177
      $region28: #{basic_block_enc_pallas.3} parent=23 // pred_fallthru
        _
      // Predicated region
      $region29: #{basic_block_enc_pallas.3} parent=23 // pred_check
        %p179 = pneg %p112
      $region30: #{basic_block_enc_pallas.3} parent=23 // pred_check_branch
        %181 = sbr.rel (%p179) target = $region32
      $region31: #{basic_block_enc_pallas.3} parent=23 // pred_region
        %s182 = smul.u32 16, %s18
        %p183 = scmp.lt.s32.totalorder %s17, 1
        %s184 = scalar_select %p183, %s17, 1
        %p185 = scmp.lt.s32.totalorder %s182, 15
        %s186 = scalar_select %p185, %s182, 15
        %s187 = smul.addr %s186, 2
        %s188 = smul.addr %s184, 32
        %s189 = sadd.s32 %s187, %s188
        %s190 = smul.addr %s189, 8
        %s191 = scalar_lea.vmem %s3, %s190
        %s192 = smul.u32 16, %s18
      $region32: #{basic_block_enc_pallas.3} parent=23 // pred_fallthru
        _
    $region24: #{basic_block_enc_pallas.3} parent=5 // pred_fallthru
      _
    %p193 = scmp.le.s32.totalorder 1, %s10
    %p194 = scmp.lt.s32.totalorder %s10, 3
    %p195 = pnand %p193, %p194
    %p196 = pneg %p195
    // Predicated region
    $region33: #{basic_block_enc_pallas.3} parent=5 // pred_check
      _
    $region34: #{basic_block_enc_pallas.3} parent=5 // pred_check_branch
      %198 = sbr.rel (%p195) target = $region36
    $region35: #{basic_block_enc_pallas.3} parent=5 // pred_region
      %s199 = ssub.s32 %s10, 1
      %p200 = scmp.lt.s32.totalorder %s19, 1
      %s201 = scalar_select %p200, %s19, 1
      %s202 = smul.addr %s201, 32
      %s203 = smul.addr %s202, 4
      %s204 = scalar_lea.vmem %s0, %s203
      %p205 = pneg %p48
      %p206 = pneg %p45
      %p207 = pneg %p69
      %p208 = pneg %p66
      %p209 = pneg %p90
      %p210 = pneg %p87
      %s211 = smul.u32 16, %s20
      %p212 = scmp.lt.s32.totalorder %s19, 1
      %s213 = scalar_select %p212, %s19, 1
      %p214 = scmp.lt.s32.totalorder %s211, 15
      %s215 = scalar_select %p214, %s211, 15
      %s216 = smul.addr %s215, 2
      %s217 = smul.addr %s213, 32
      %s218 = sadd.s32 %s216, %s217
      %s219 = smul.addr %s218, 8
      %s220 = scalar_lea.vmem %s3, %s219
      %p221 = pneg %p118
      %p222 = pneg %p115
      %p223 = pneg %p146
      %p224 = pneg %p143
      %s225 = smul.u32 16, %s20
      %p226 = scmp.lt.s32.totalorder %s19, 1
      %s227 = scalar_select %p226, %s19, 1
      %p228 = scmp.lt.s32.totalorder %s225, 15
      %s229 = scalar_select %p228, %s225, 15
      %s230 = smul.addr %s229, 2
      %s231 = smul.addr %s227, 32
      %s232 = sadd.s32 %s230, %s231
      %s233 = smul.addr %s232, 8
      %s234 = scalar_lea.vmem %s4, %s233
      %p235 = scmp.lt.s32.totalorder %s19, 1
      %s236 = scalar_select %p235, %s19, 1
      %s237 = smul.addr %s236, 32
      %s238 = smul.addr %s237, 4
      %s239 = scalar_lea.vmem %s0, %s238
      %s240 = smul.u32 16, %s20
      %p241 = scmp.lt.s32.totalorder %s19, 1
      %s242 = scalar_select %p241, %s19, 1
      %p243 = scmp.lt.s32.totalorder %s240, 15
      %s244 = scalar_select %p243, %s240, 15
      %s245 = smul.addr %s244, 2
      %s246 = smul.addr %s242, 32
      %s247 = sadd.s32 %s245, %s246
      %s248 = smul.addr %s247, 8
      %s249 = scalar_lea.vmem %s3, %s248
      %s250 = smul.u32 16, %s20
      %s251 = smul.u32 16, %s20
      %p252 = scmp.lt.s32.totalorder %s19, 1
      %s253 = scalar_select %p252, %s19, 1
      %p254 = scmp.lt.s32.totalorder %s251, 15
      %s255 = scalar_select %p254, %s251, 15
      %s256 = smul.addr %s255, 2
      %s257 = smul.addr %s253, 32
      %s258 = sadd.s32 %s256, %s257
      %s259 = smul.addr %s258, 8
      %s260 = scalar_lea.vmem %s4, %s259
      %s261 = smul.u32 16, %s20
      %s263 = smul.u32 %s20, 16
      %264 = vst [vmem:[#allocation2] sm:$0xf] 0
      %265 = vst [vmem:[#allocation2 + $0x4] sm:$0xf] 0
      %266 = vst [vmem:[#allocation2 + $0x8] sm:$0x1] 0
      %267 = vst [vmem:[#allocation2 + $0xc] sm:$0xf] 0
      %268 = vst [vmem:[#allocation2 + $0x10] sm:$0xf] 0
      %269 = vst [vmem:[#allocation2 + $0x14] sm:$0x1] 0
      %270 = vst [vmem:[#allocation2 + $0x18] sm:$0xf] 0
      %271 = vst [vmem:[#allocation2 + $0x1c] sm:$0xf] 0
      %272 = vst [vmem:[#allocation2 + $0x20] sm:$0x1] 0
      %273 = vst [vmem:[#allocation2 + $0x24] sm:$0xf] 0
      %274 = vst [vmem:[#allocation2 + $0x28] sm:$0xf] 0
      %275 = vst [vmem:[#allocation2 + $0x2c] sm:$0x1] 0
      %276 = vst [vmem:[#allocation2 + $0x30] sm:$0xf] 0
      %277 = vst [vmem:[#allocation2 + $0x34] sm:$0xf] 0
      %278 = vst [vmem:[#allocation2 + $0x38] sm:$0x1] 0
      %279 = vst [vmem:[#allocation2 + $0x3c] sm:$0xf] 0
      %280 = vst [vmem:[#allocation2 + $0x40] sm:$0xf] 0
      %281 = vst [vmem:[#allocation2 + $0x44] sm:$0x1] 0
      %282 = vst [vmem:[#allocation2 + $0x48] sm:$0xf] 0
      %283 = vst [vmem:[#allocation2 + $0x4c] sm:$0xf] 0
      %284 = vst [vmem:[#allocation2 + $0x50] sm:$0x1] 0
      %285 = vst [vmem:[#allocation2 + $0x54] sm:$0xf] 0
      %286 = vst [vmem:[#allocation2 + $0x58] sm:$0xf] 0
      %287 = vst [vmem:[#allocation2 + $0x5c] sm:$0x1] 0
      %288 = vst [vmem:[#allocation2 + $0x60] sm:$0xf] 0
      %289 = vst [vmem:[#allocation2 + $0x64] sm:$0xf] 0
      %290 = vst [vmem:[#allocation2 + $0x68] sm:$0x1] 0
      %291 = vst [vmem:[#allocation2 + $0x6c] sm:$0xf] 0
      %292 = vst [vmem:[#allocation2 + $0x70] sm:$0xf] 0
      %293 = vst [vmem:[#allocation2 + $0x74] sm:$0x1] 0
      %294 = vst [vmem:[#allocation2 + $0x78] sm:$0xf] 0
      %295 = vst [vmem:[#allocation2 + $0x7c] sm:$0xf] 0
      %296 = vst [vmem:[#allocation2 + $0x80] sm:$0x1] 0
      %297 = vst [vmem:[#allocation2 + $0x84] sm:$0xf] 0
      %298 = vst [vmem:[#allocation2 + $0x88] sm:$0xf] 0
      %299 = vst [vmem:[#allocation2 + $0x8c] sm:$0x1] 0
      %300 = vst [vmem:[#allocation2 + $0x90] sm:$0xf] 0
      %301 = vst [vmem:[#allocation2 + $0x94] sm:$0xf] 0
      %302 = vst [vmem:[#allocation2 + $0x98] sm:$0x1] 0
      %303 = vst [vmem:[#allocation2 + $0x9c] sm:$0xf] 0
      %304 = vst [vmem:[#allocation2 + $0xa0] sm:$0xf] 0
      %305 = vst [vmem:[#allocation2 + $0xa4] sm:$0x1] 0
      %306 = vst [vmem:[#allocation2 + $0xa8] sm:$0xf] 0
      %307 = vst [vmem:[#allocation2 + $0xac] sm:$0xf] 0
      %308 = vst [vmem:[#allocation2 + $0xb0] sm:$0x1] 0
      %309 = vst [vmem:[#allocation2 + $0xb4] sm:$0xf] 0
      %310 = vst [vmem:[#allocation2 + $0xb8] sm:$0xf] 0
      %311 = vst [vmem:[#allocation2 + $0xbc] sm:$0x1] 0
      %312 = vst [vmem:[#allocation2 + $0xc0] sm:$0xf] 0
      %313 = vst [vmem:[#allocation2 + $0xc4] sm:$0xf] 0
      %314 = vst [vmem:[#allocation2 + $0xc8] sm:$0x1] 0
      %315 = vst [vmem:[#allocation2 + $0xcc] sm:$0xf] 0
      %316 = vst [vmem:[#allocation2 + $0xd0] sm:$0xf] 0
      %317 = vst [vmem:[#allocation2 + $0xd4] sm:$0x1] 0
      %s318 = smul.u32 %s263, 2
      %s319 = smul.addr %s318, 4
      %s320 = scalar_lea.vmem %s239, %s319
      %v321 = vld [vmem:[%s320] sm:$0xf]
      %v322 = vld [vmem:[%s320 + $0x4] sm:$0xf]
      %v323 = vld [vmem:[%s320 + $0x8] sm:$0xf]
      %v324 = vld [vmem:[%s320 + $0xc] sm:$0xf]
      %v325 = vld [vmem:[%s320 + $0x10] sm:$0xf]
      %v326 = vld [vmem:[%s320 + $0x14] sm:$0xf]
      %v327 = vld [vmem:[%s320 + $0x18] sm:$0xf]
      %v328 = vld [vmem:[%s320 + $0x1c] sm:$0xf]
      %v329 = vld [vmem:[%s320 + $0x20] sm:$0xf]
      %v330 = vld [vmem:[%s320 + $0x24] sm:$0xf]
      %v331 = vld [vmem:[%s320 + $0x28] sm:$0xf]
      %v332 = vld [vmem:[%s320 + $0x2c] sm:$0xf]
      %v333 = vld [vmem:[%s320 + $0x30] sm:$0xf]
      %v334 = vld [vmem:[%s320 + $0x34] sm:$0xf]
      %v335 = vld [vmem:[%s320 + $0x38] sm:$0xf]
      %v336 = vld [vmem:[%s320 + $0x3c] sm:$0xf]
      %v337 = vld [vmem:[%s320 + $0x40] sm:$0xf]
      %v338 = vld [vmem:[%s320 + $0x44] sm:$0xf]
      %v339 = vld [vmem:[%s320 + $0x48] sm:$0xf]
      %v340 = vld [vmem:[%s320 + $0x4c] sm:$0xf]
      %v341 = vld [vmem:[%s320 + $0x50] sm:$0xf]
      %v342 = vld [vmem:[%s320 + $0x54] sm:$0xf]
      %v343 = vld [vmem:[%s320 + $0x58] sm:$0xf]
      %v344 = vld [vmem:[%s320 + $0x5c] sm:$0xf]
      %v345 = vld [vmem:[%s320 + $0x60] sm:$0xf]
      %v346 = vld [vmem:[%s320 + $0x64] sm:$0xf]
      %v347 = vld [vmem:[%s320 + $0x68] sm:$0xf]
      %v348 = vld [vmem:[%s320 + $0x6c] sm:$0xf]
      %v349 = vld [vmem:[%s320 + $0x70] sm:$0xf]
      %v350 = vld [vmem:[%s320 + $0x74] sm:$0xf]
      %v351 = vld [vmem:[%s320 + $0x78] sm:$0xf]
      %v352 = vld [vmem:[%s320 + $0x7c] sm:$0xf]
      %vm353 = vsmask.f32 256
      %vm354 = vsmask.f32 4368
      %vm355 = vmor %vm353, %vm354
      %v357 = vshrl.u32 %v321, 16
      %v359 = vrot.slane %v357, 7
      %v360 = vshll.u32 %v321, 16
      %v362 = vor.u32 %v359, %v360
      %v363 = vrot.slane %v359, 4
      %v365 = vshrl.u32 %v322, 16
      %v367 = vrot.slane %v365, 7
      %v368 = vshll.u32 %v322, 16
      %v370 = vor.u32 %v367, %v368
      %v371 = vsel %vm355, %v363, %v370
      %v372 = vrot.slane %v367, 4
      %v374 = vshrl.u32 %v323, 16
      %v376 = vrot.slane %v374, 7
      %v377 = vshll.u32 %v323, 16
      %v379 = vor.u32 %v376, %v377
      %v380 = vrot.slane %v376, 4
      %v382 = vshrl.u32 %v324, 16
      %v384 = vrot.slane %v382, 7
      %v385 = vshll.u32 %v324, 16
      %v387 = vor.u32 %v384, %v385
      %v388 = vsel %vm355, %v380, %v387
      %v389 = vrot.slane %v384, 4
      %v391 = vshrl.u32 %v325, 16
      %v393 = vrot.slane %v391, 7
      %v394 = vshll.u32 %v325, 16
      %v396 = vor.u32 %v393, %v394
      %v397 = vrot.slane %v393, 4
      %v399 = vshrl.u32 %v326, 16
      %v401 = vrot.slane %v399, 7
      %v402 = vshll.u32 %v326, 16
      %v404 = vor.u32 %v401, %v402
      %v405 = vsel %vm355, %v397, %v404
      %v406 = vrot.slane %v401, 4
      %v408 = vshrl.u32 %v327, 16
      %v410 = vrot.slane %v408, 7
      %v411 = vshll.u32 %v327, 16
      %v413 = vor.u32 %v410, %v411
      %v414 = vrot.slane %v410, 4
      %v416 = vshrl.u32 %v328, 16
      %v418 = vrot.slane %v416, 7
      %v419 = vshll.u32 %v328, 16
      %v421 = vor.u32 %v418, %v419
      %v422 = vsel %vm355, %v414, %v421
      %v423 = vrot.slane %v418, 4
      %v425 = vshrl.u32 %v329, 16
      %v427 = vrot.slane %v425, 7
      %v428 = vshll.u32 %v329, 16
      %v430 = vor.u32 %v427, %v428
      %v431 = vrot.slane %v427, 4
      %v433 = vshrl.u32 %v330, 16
      %v435 = vrot.slane %v433, 7
      %v436 = vshll.u32 %v330, 16
      %v438 = vor.u32 %v435, %v436
      %v439 = vsel %vm355, %v431, %v438
      %v440 = vrot.slane %v435, 4
      %v442 = vshrl.u32 %v331, 16
      %v444 = vrot.slane %v442, 7
      %v445 = vshll.u32 %v331, 16
      %v447 = vor.u32 %v444, %v445
      %v448 = vrot.slane %v444, 4
      %v450 = vshrl.u32 %v332, 16
      %v452 = vrot.slane %v450, 7
      %v453 = vshll.u32 %v332, 16
      %v455 = vor.u32 %v452, %v453
      %v456 = vsel %vm355, %v448, %v455
      %v457 = vrot.slane %v452, 4
      %v459 = vshrl.u32 %v333, 16
      %v461 = vrot.slane %v459, 7
      %v462 = vshll.u32 %v333, 16
      %v464 = vor.u32 %v461, %v462
      %v465 = vrot.slane %v461, 4
      %v467 = vshrl.u32 %v334, 16
      %v469 = vrot.slane %v467, 7
      %v470 = vshll.u32 %v334, 16
      %v472 = vor.u32 %v469, %v470
      %v473 = vsel %vm355, %v465, %v472
      %v474 = vrot.slane %v469, 4
      %v476 = vshrl.u32 %v335, 16
      %v478 = vrot.slane %v476, 7
      %v479 = vshll.u32 %v335, 16
      %v481 = vor.u32 %v478, %v479
      %v482 = vrot.slane %v478, 4
      %v484 = vshrl.u32 %v336, 16
      %v486 = vrot.slane %v484, 7
      %v487 = vshll.u32 %v336, 16
      %v489 = vor.u32 %v486, %v487
      %v490 = vsel %vm355, %v482, %v489
      %v491 = vrot.slane %v486, 4
      %v493 = vshrl.u32 %v337, 16
      %v495 = vrot.slane %v493, 7
      %v496 = vshll.u32 %v337, 16
      %v498 = vor.u32 %v495, %v496
      %v499 = vrot.slane %v495, 4
      %v501 = vshrl.u32 %v338, 16
      %v503 = vrot.slane %v501, 7
      %v504 = vshll.u32 %v338, 16
      %v506 = vor.u32 %v503, %v504
      %v507 = vsel %vm355, %v499, %v506
      %v508 = vrot.slane %v503, 4
      %v510 = vshrl.u32 %v339, 16
      %v512 = vrot.slane %v510, 7
      %v513 = vshll.u32 %v339, 16
      %v515 = vor.u32 %v512, %v513
      %v516 = vrot.slane %v512, 4
      %v518 = vshrl.u32 %v340, 16
      %v520 = vrot.slane %v518, 7
      %v521 = vshll.u32 %v340, 16
      %v523 = vor.u32 %v520, %v521
      %v524 = vsel %vm355, %v516, %v523
      %v525 = vrot.slane %v520, 4
      %v527 = vshrl.u32 %v341, 16
      %v529 = vrot.slane %v527, 7
      %v530 = vshll.u32 %v341, 16
      %v532 = vor.u32 %v529, %v530
      %v533 = vrot.slane %v529, 4
      %v535 = vshrl.u32 %v342, 16
      %v537 = vrot.slane %v535, 7
      %v538 = vshll.u32 %v342, 16
      %v540 = vor.u32 %v537, %v538
      %v541 = vsel %vm355, %v533, %v540
      %v542 = vrot.slane %v537, 4
      %v544 = vshrl.u32 %v343, 16
      %v546 = vrot.slane %v544, 7
      %v547 = vshll.u32 %v343, 16
      %v549 = vor.u32 %v546, %v547
      %v550 = vrot.slane %v546, 4
      %v552 = vshrl.u32 %v344, 16
      %v554 = vrot.slane %v552, 7
      %v555 = vshll.u32 %v344, 16
      %v557 = vor.u32 %v554, %v555
      %v558 = vsel %vm355, %v550, %v557
      %v559 = vrot.slane %v554, 4
      %v561 = vshrl.u32 %v345, 16
      %v563 = vrot.slane %v561, 7
      %v564 = vshll.u32 %v345, 16
      %v566 = vor.u32 %v563, %v564
      %v567 = vrot.slane %v563, 4
      %v569 = vshrl.u32 %v346, 16
      %v571 = vrot.slane %v569, 7
      %v572 = vshll.u32 %v346, 16
      %v574 = vor.u32 %v571, %v572
      %v575 = vsel %vm355, %v567, %v574
      %v576 = vrot.slane %v571, 4
      %v578 = vshrl.u32 %v347, 16
      %v580 = vrot.slane %v578, 7
      %v581 = vshll.u32 %v347, 16
      %v583 = vor.u32 %v580, %v581
      %v584 = vrot.slane %v580, 4
      %v586 = vshrl.u32 %v348, 16
      %v588 = vrot.slane %v586, 7
      %v589 = vshll.u32 %v348, 16
      %v591 = vor.u32 %v588, %v589
      %v592 = vsel %vm355, %v584, %v591
      %v593 = vrot.slane %v588, 4
      %v595 = vshrl.u32 %v349, 16
      %v597 = vrot.slane %v595, 7
      %v598 = vshll.u32 %v349, 16
      %v600 = vor.u32 %v597, %v598
      %v601 = vrot.slane %v597, 4
      %v603 = vshrl.u32 %v350, 16
      %v605 = vrot.slane %v603, 7
      %v606 = vshll.u32 %v350, 16
      %v608 = vor.u32 %v605, %v606
      %v609 = vsel %vm355, %v601, %v608
      %v610 = vrot.slane %v605, 4
      %v612 = vshrl.u32 %v351, 16
      %v614 = vrot.slane %v612, 7
      %v615 = vshll.u32 %v351, 16
      %v617 = vor.u32 %v614, %v615
      %v618 = vrot.slane %v614, 4
      %v620 = vshrl.u32 %v352, 16
      %v622 = vrot.slane %v620, 7
      %v623 = vshll.u32 %v352, 16
      %v625 = vor.u32 %v622, %v623
      %v626 = vsel %vm355, %v618, %v625
      %v627 = vrot.slane %v622, 4
      %s676 = scalar_lea.vmem [#allocation2], 12
      %vm677 = vcmask 1043456
      %vm678 = vsmask.f32 7938
      %vm679 = vmand %vm677, %vm678
      %v680 = vld [vmem:[%s676] sm:$0xf]
      %v681 = vsel %vm679, %v362, %v680
      %682 = vst [vmem:[%s676] sm:$0xf] %v681
      %683 = vst [vmem:[%s676 + $0x4] sm:$0xf] %v371
      %vm684 = vcmask 1040384
      %vm685 = vmand %vm684, %vm353
      %v686 = vld [vmem:[%s676 + $0x8] sm:$0x1]
      %v687 = vsel %vm685, %v372, %v686
      %688 = vst [vmem:[%s676 + $0x8] sm:$0x1] %v687
      %v689 = vld [vmem:[%s676 + $0xc] sm:$0xf]
      %v690 = vsel %vm679, %v379, %v689
      %691 = vst [vmem:[%s676 + $0xc] sm:$0xf] %v690
      %692 = vst [vmem:[%s676 + $0x10] sm:$0xf] %v388
      %v693 = vld [vmem:[%s676 + $0x14] sm:$0x1]
      %v694 = vsel %vm685, %v389, %v693
      %695 = vst [vmem:[%s676 + $0x14] sm:$0x1] %v694
      %v696 = vld [vmem:[%s676 + $0x18] sm:$0xf]
      %v697 = vsel %vm679, %v396, %v696
      %698 = vst [vmem:[%s676 + $0x18] sm:$0xf] %v697
      %699 = vst [vmem:[%s676 + $0x1c] sm:$0xf] %v405
      %v700 = vld [vmem:[%s676 + $0x20] sm:$0x1]
      %v701 = vsel %vm685, %v406, %v700
      %702 = vst [vmem:[%s676 + $0x20] sm:$0x1] %v701
      %v703 = vld [vmem:[%s676 + $0x24] sm:$0xf]
      %v704 = vsel %vm679, %v413, %v703
      %705 = vst [vmem:[%s676 + $0x24] sm:$0xf] %v704
      %706 = vst [vmem:[%s676 + $0x28] sm:$0xf] %v422
      %v707 = vld [vmem:[%s676 + $0x2c] sm:$0x1]
      %v708 = vsel %vm685, %v423, %v707
      %709 = vst [vmem:[%s676 + $0x2c] sm:$0x1] %v708
      %v710 = vld [vmem:[%s676 + $0x30] sm:$0xf]
      %v711 = vsel %vm679, %v430, %v710
      %712 = vst [vmem:[%s676 + $0x30] sm:$0xf] %v711
      %713 = vst [vmem:[%s676 + $0x34] sm:$0xf] %v439
      %v714 = vld [vmem:[%s676 + $0x38] sm:$0x1]
      %v715 = vsel %vm685, %v440, %v714
      %716 = vst [vmem:[%s676 + $0x38] sm:$0x1] %v715
      %v717 = vld [vmem:[%s676 + $0x3c] sm:$0xf]
      %v718 = vsel %vm679, %v447, %v717
      %719 = vst [vmem:[%s676 + $0x3c] sm:$0xf] %v718
      %720 = vst [vmem:[%s676 + $0x40] sm:$0xf] %v456
      %v721 = vld [vmem:[%s676 + $0x44] sm:$0x1]
      %v722 = vsel %vm685, %v457, %v721
      %723 = vst [vmem:[%s676 + $0x44] sm:$0x1] %v722
      %v724 = vld [vmem:[%s676 + $0x48] sm:$0xf]
      %v725 = vsel %vm679, %v464, %v724
      %726 = vst [vmem:[%s676 + $0x48] sm:$0xf] %v725
      %727 = vst [vmem:[%s676 + $0x4c] sm:$0xf] %v473
      %v728 = vld [vmem:[%s676 + $0x50] sm:$0x1]
      %v729 = vsel %vm685, %v474, %v728
      %730 = vst [vmem:[%s676 + $0x50] sm:$0x1] %v729
      %v731 = vld [vmem:[%s676 + $0x54] sm:$0xf]
      %v732 = vsel %vm679, %v481, %v731
      %733 = vst [vmem:[%s676 + $0x54] sm:$0xf] %v732
      %734 = vst [vmem:[%s676 + $0x58] sm:$0xf] %v490
      %v735 = vld [vmem:[%s676 + $0x5c] sm:$0x1]
      %v736 = vsel %vm685, %v491, %v735
      %737 = vst [vmem:[%s676 + $0x5c] sm:$0x1] %v736
      %v738 = vld [vmem:[%s676 + $0x60] sm:$0xf]
      %v739 = vsel %vm679, %v498, %v738
      %740 = vst [vmem:[%s676 + $0x60] sm:$0xf] %v739
      %741 = vst [vmem:[%s676 + $0x64] sm:$0xf] %v507
      %v742 = vld [vmem:[%s676 + $0x68] sm:$0x1]
      %v743 = vsel %vm685, %v508, %v742
      %744 = vst [vmem:[%s676 + $0x68] sm:$0x1] %v743
      %v745 = vld [vmem:[%s676 + $0x6c] sm:$0xf]
      %v746 = vsel %vm679, %v515, %v745
      %747 = vst [vmem:[%s676 + $0x6c] sm:$0xf] %v746
      %748 = vst [vmem:[%s676 + $0x70] sm:$0xf] %v524
      %v749 = vld [vmem:[%s676 + $0x74] sm:$0x1]
      %v750 = vsel %vm685, %v525, %v749
      %751 = vst [vmem:[%s676 + $0x74] sm:$0x1] %v750
      %v752 = vld [vmem:[%s676 + $0x78] sm:$0xf]
      %v753 = vsel %vm679, %v532, %v752
      %754 = vst [vmem:[%s676 + $0x78] sm:$0xf] %v753
      %755 = vst [vmem:[%s676 + $0x7c] sm:$0xf] %v541
      %v756 = vld [vmem:[%s676 + $0x80] sm:$0x1]
      %v757 = vsel %vm685, %v542, %v756
      %758 = vst [vmem:[%s676 + $0x80] sm:$0x1] %v757
      %v759 = vld [vmem:[%s676 + $0x84] sm:$0xf]
      %v760 = vsel %vm679, %v549, %v759
      %761 = vst [vmem:[%s676 + $0x84] sm:$0xf] %v760
      %762 = vst [vmem:[%s676 + $0x88] sm:$0xf] %v558
      %v763 = vld [vmem:[%s676 + $0x8c] sm:$0x1]
      %v764 = vsel %vm685, %v559, %v763
      %765 = vst [vmem:[%s676 + $0x8c] sm:$0x1] %v764
      %v766 = vld [vmem:[%s676 + $0x90] sm:$0xf]
      %v767 = vsel %vm679, %v566, %v766
      %768 = vst [vmem:[%s676 + $0x90] sm:$0xf] %v767
      %769 = vst [vmem:[%s676 + $0x94] sm:$0xf] %v575
      %v770 = vld [vmem:[%s676 + $0x98] sm:$0x1]
      %v771 = vsel %vm685, %v576, %v770
      %772 = vst [vmem:[%s676 + $0x98] sm:$0x1] %v771
      %v773 = vld [vmem:[%s676 + $0x9c] sm:$0xf]
      %v774 = vsel %vm679, %v583, %v773
      %775 = vst [vmem:[%s676 + $0x9c] sm:$0xf] %v774
      %776 = vst [vmem:[%s676 + $0xa0] sm:$0xf] %v592
      %v777 = vld [vmem:[%s676 + $0xa4] sm:$0x1]
      %v778 = vsel %vm685, %v593, %v777
      %779 = vst [vmem:[%s676 + $0xa4] sm:$0x1] %v778
      %v780 = vld [vmem:[%s676 + $0xa8] sm:$0xf]
      %v781 = vsel %vm679, %v600, %v780
      %782 = vst [vmem:[%s676 + $0xa8] sm:$0xf] %v781
      %783 = vst [vmem:[%s676 + $0xac] sm:$0xf] %v609
      %v784 = vld [vmem:[%s676 + $0xb0] sm:$0x1]
      %v785 = vsel %vm685, %v610, %v784
      %786 = vst [vmem:[%s676 + $0xb0] sm:$0x1] %v785
      %v787 = vld [vmem:[%s676 + $0xb4] sm:$0xf]
      %v788 = vsel %vm679, %v617, %v787
      %789 = vst [vmem:[%s676 + $0xb4] sm:$0xf] %v788
      %790 = vst [vmem:[%s676 + $0xb8] sm:$0xf] %v626
      %v791 = vld [vmem:[%s676 + $0xbc] sm:$0x1]
      %v792 = vsel %vm685, %v627, %v791
      %793 = vst [vmem:[%s676 + $0xbc] sm:$0x1] %v792
      %p794 = scmp.gt.s32.totalorder %s263, 0
      // Predicated region
      $region37: #{basic_block_enc_pallas.3} parent=35 // pred_check
        %p795 = pneg %p794
      $region38: #{basic_block_enc_pallas.3} parent=35 // pred_check_branch
        %797 = sbr.rel (%p795) target = $region40
      $region39: #{basic_block_enc_pallas.3} parent=35 // pred_region
        %s798 = ssub.s32 %s263, 1
        %p799 = scmp.gt.s32.totalorder %s798, 0
        %s800 = scalar_select %p799, %s798, 0
        %s801 = smul.u32 %s800, 2
        %s802 = smul.addr %s801, 4
        %s803 = scalar_lea.vmem %s239, %s802
        %v804 = vld [vmem:[%s803] sm:$0xf]
        %v805 = vld [vmem:[%s803 + $0x4] sm:$0xf]
        %v807 = vshrl.u32 %v804, 16
        %v809 = vrot.slane %v807, 7
        %v810 = vshll.u32 %v804, 16
        %v812 = vor.u32 %v809, %v810
        %v813 = vrot.slane %v809, 4
        %v815 = vshrl.u32 %v805, 16
        %v817 = vrot.slane %v815, 7
        %v818 = vshll.u32 %v805, 16
        %v820 = vor.u32 %v817, %v818
        %v821 = vsel %vm355, %v813, %v820
        %v822 = vrot.slane %v817, 4
        %v826 = vld [vmem:[#allocation2] sm:$0xf]
        %v827 = vsel %vm679, %v812, %v826
        %828 = vst [vmem:[#allocation2] sm:$0xf] %v827
        %829 = vst [vmem:[#allocation2 + $0x4] sm:$0xf] %v821
        %v830 = vld [vmem:[#allocation2 + $0x8] sm:$0x1]
        %v831 = vsel %vm685, %v822, %v830
        %832 = vst [vmem:[#allocation2 + $0x8] sm:$0x1] %v831
      $region40: #{basic_block_enc_pallas.3} parent=35 // pred_fallthru
        _
      %s833 = sadd.s32 %s263, 16
      %p834 = scmp.lt.s32.totalorder %s833, 16
      // Predicated region
      $region41: #{basic_block_enc_pallas.3} parent=35 // pred_check
        %p835 = pneg %p834
      $region42: #{basic_block_enc_pallas.3} parent=35 // pred_check_branch
        %837 = sbr.rel (%p835) target = $region44
      $region43: #{basic_block_enc_pallas.3} parent=35 // pred_region
        %p838 = scmp.lt.s32.totalorder %s833, 15
        %s839 = scalar_select %p838, %s833, 15
        %s840 = smul.u32 %s839, 2
        %s841 = smul.addr %s840, 4
        %s842 = scalar_lea.vmem %s239, %s841
        %v843 = vld [vmem:[%s842] sm:$0xf]
        %v844 = vld [vmem:[%s842 + $0x4] sm:$0xf]
        %v846 = vshrl.u32 %v843, 16
        %v848 = vrot.slane %v846, 7
        %v849 = vshll.u32 %v843, 16
        %v851 = vor.u32 %v848, %v849
        %v852 = vrot.slane %v848, 4
        %v854 = vshrl.u32 %v844, 16
        %v856 = vrot.slane %v854, 7
        %v857 = vshll.u32 %v844, 16
        %v859 = vor.u32 %v856, %v857
        %v860 = vsel %vm355, %v852, %v859
        %v861 = vrot.slane %v856, 4
        %s865 = scalar_lea.vmem [#allocation2], 204
        %v866 = vld [vmem:[%s865] sm:$0xf]
        %v867 = vsel %vm679, %v851, %v866
        %868 = vst [vmem:[%s865] sm:$0xf] %v867
        %869 = vst [vmem:[%s865 + $0x4] sm:$0xf] %v860
        %v870 = vld [vmem:[%s865 + $0x8] sm:$0x1]
        %v871 = vsel %vm685, %v861, %v870
        %872 = vst [vmem:[%s865 + $0x8] sm:$0x1] %v871
      $region44: #{basic_block_enc_pallas.3} parent=35 // pred_fallthru
        _
      %v873 = vld [vmem:[#allocation2] sm:$0xf]
      %v874 = vld [vmem:[#allocation2 + $0x4] sm:$0xf]
      %v875 = vld [vmem:[#allocation2 + $0xc] sm:$0xf]
      %v876 = vld [vmem:[#allocation2 + $0x10] sm:$0xf]
      %v877 = vld [vmem:[#allocation2 + $0x18] sm:$0xf]
      %v878 = vld [vmem:[#allocation2 + $0x1c] sm:$0xf]
      %v879 = vld [vmem:[#allocation2 + $0x24] sm:$0xf]
      %v880 = vld [vmem:[#allocation2 + $0x28] sm:$0xf]
      %v881 = vld [vmem:[#allocation2 + $0x30] sm:$0xf]
      %v882 = vld [vmem:[#allocation2 + $0x34] sm:$0xf]
      %v883 = vld [vmem:[#allocation2 + $0x3c] sm:$0xf]
      %v884 = vld [vmem:[#allocation2 + $0x40] sm:$0xf]
      %v885 = vld [vmem:[#allocation2 + $0x48] sm:$0xf]
      %v886 = vld [vmem:[#allocation2 + $0x4c] sm:$0xf]
      %v887 = vld [vmem:[#allocation2 + $0x54] sm:$0xf]
      %v888 = vld [vmem:[#allocation2 + $0x58] sm:$0xf]
      %v889 = vld [vmem:[#allocation2 + $0x60] sm:$0xf]
      %v890 = vld [vmem:[#allocation2 + $0x64] sm:$0xf]
      %v891 = vld [vmem:[#allocation2 + $0x6c] sm:$0xf]
      %v892 = vld [vmem:[#allocation2 + $0x70] sm:$0xf]
      %v893 = vld [vmem:[#allocation2 + $0x78] sm:$0xf]
      %v894 = vld [vmem:[#allocation2 + $0x7c] sm:$0xf]
      %v895 = vld [vmem:[#allocation2 + $0x84] sm:$0xf]
      %v896 = vld [vmem:[#allocation2 + $0x88] sm:$0xf]
      %v897 = vld [vmem:[#allocation2 + $0x90] sm:$0xf]
      %v898 = vld [vmem:[#allocation2 + $0x94] sm:$0xf]
      %v899 = vld [vmem:[#allocation2 + $0x9c] sm:$0xf]
      %v900 = vld [vmem:[#allocation2 + $0xa0] sm:$0xf]
      %v901 = vld [vmem:[#allocation2 + $0xa8] sm:$0xf]
      %v902 = vld [vmem:[#allocation2 + $0xac] sm:$0xf]
      %v903 = vld [vmem:[#allocation2 + $0xb4] sm:$0xf]
      %v904 = vld [vmem:[#allocation2 + $0xb8] sm:$0xf]
      %905 = vst [vmem:[#allocation3] sm:$0xf] %v873
      %906 = vst [vmem:[#allocation3 + $0x24] sm:$0xf] %v874
      %907 = vst [vmem:[#allocation3 + $0x48] sm:$0xf] %v875
      %908 = vst [vmem:[#allocation3 + $0x6c] sm:$0xf] %v876
      %909 = vst [vmem:[#allocation3 + $0x90] sm:$0xf] %v877
      %910 = vst [vmem:[#allocation3 + $0xb4] sm:$0xf] %v878
      %911 = vst [vmem:[#allocation3 + $0xd8] sm:$0xf] %v879
      %912 = vst [vmem:[#allocation3 + $0xfc] sm:$0xf] %v880
      %913 = vst [vmem:[#allocation3 + $0x120] sm:$0xf] %v881
      %914 = vst [vmem:[#allocation3 + $0x144] sm:$0xf] %v882
      %915 = vst [vmem:[#allocation3 + $0x168] sm:$0xf] %v883
      %916 = vst [vmem:[#allocation3 + $0x18c] sm:$0xf] %v884
      %917 = vst [vmem:[#allocation3 + $0x1b0] sm:$0xf] %v885
      %918 = vst [vmem:[#allocation3 + $0x1d4] sm:$0xf] %v886
      %919 = vst [vmem:[#allocation3 + $0x1f8] sm:$0xf] %v887
      %920 = vst [vmem:[#allocation3 + $0x21c] sm:$0xf] %v888
      %921 = vst [vmem:[#allocation3 + $0x240] sm:$0xf] %v889
      %922 = vst [vmem:[#allocation3 + $0x264] sm:$0xf] %v890
      %923 = vst [vmem:[#allocation3 + $0x288] sm:$0xf] %v891
      %924 = vst [vmem:[#allocation3 + $0x2ac] sm:$0xf] %v892
      %925 = vst [vmem:[#allocation3 + $0x2d0] sm:$0xf] %v893
      %926 = vst [vmem:[#allocation3 + $0x2f4] sm:$0xf] %v894
      %927 = vst [vmem:[#allocation3 + $0x318] sm:$0xf] %v895
      %928 = vst [vmem:[#allocation3 + $0x33c] sm:$0xf] %v896
      %929 = vst [vmem:[#allocation3 + $0x360] sm:$0xf] %v897
      %930 = vst [vmem:[#allocation3 + $0x384] sm:$0xf] %v898
      %931 = vst [vmem:[#allocation3 + $0x3a8] sm:$0xf] %v899
      %932 = vst [vmem:[#allocation3 + $0x3cc] sm:$0xf] %v900
      %933 = vst [vmem:[#allocation3 + $0x3f0] sm:$0xf] %v901
      %934 = vst [vmem:[#allocation3 + $0x414] sm:$0xf] %v902
      %935 = vst [vmem:[#allocation3 + $0x438] sm:$0xf] %v903
      %936 = vst [vmem:[#allocation3 + $0x45c] sm:$0xf] %v904
      %v937 = vld [vmem:[#allocation2] sm:$0xf]
      %v938 = vld [vmem:[#allocation2 + $0x4] sm:$0xf]
      %v939 = vld [vmem:[#allocation2 + $0x8] sm:$0x1]
      %v940 = vld [vmem:[#allocation2 + $0xc] sm:$0xf]
      %v941 = vld [vmem:[#allocation2 + $0x10] sm:$0xf]
      %v942 = vld [vmem:[#allocation2 + $0x14] sm:$0x1]
      %v943 = vld [vmem:[#allocation2 + $0x18] sm:$0xf]
      %v944 = vld [vmem:[#allocation2 + $0x1c] sm:$0xf]
      %v945 = vld [vmem:[#allocation2 + $0x20] sm:$0x1]
      %v946 = vld [vmem:[#allocation2 + $0x24] sm:$0xf]
      %v947 = vld [vmem:[#allocation2 + $0x28] sm:$0xf]
      %v948 = vld [vmem:[#allocation2 + $0x2c] sm:$0x1]
      %v949 = vld [vmem:[#allocation2 + $0x30] sm:$0xf]
      %v950 = vld [vmem:[#allocation2 + $0x34] sm:$0xf]
      %v951 = vld [vmem:[#allocation2 + $0x38] sm:$0x1]
      %v952 = vld [vmem:[#allocation2 + $0x3c] sm:$0xf]
      %v953 = vld [vmem:[#allocation2 + $0x40] sm:$0xf]
      %v954 = vld [vmem:[#allocation2 + $0x44] sm:$0x1]
      %v955 = vld [vmem:[#allocation2 + $0x48] sm:$0xf]
      %v956 = vld [vmem:[#allocation2 + $0x4c] sm:$0xf]
      %v957 = vld [vmem:[#allocation2 + $0x50] sm:$0x1]
      %v958 = vld [vmem:[#allocation2 + $0x54] sm:$0xf]
      %v959 = vld [vmem:[#allocation2 + $0x58] sm:$0xf]
      %v960 = vld [vmem:[#allocation2 + $0x5c] sm:$0x1]
      %v961 = vld [vmem:[#allocation2 + $0x60] sm:$0xf]
      %v962 = vld [vmem:[#allocation2 + $0x64] sm:$0xf]
      %v963 = vld [vmem:[#allocation2 + $0x68] sm:$0x1]
      %v964 = vld [vmem:[#allocation2 + $0x6c] sm:$0xf]
      %v965 = vld [vmem:[#allocation2 + $0x70] sm:$0xf]
      %v966 = vld [vmem:[#allocation2 + $0x74] sm:$0x1]
      %v967 = vld [vmem:[#allocation2 + $0x78] sm:$0xf]
      %v968 = vld [vmem:[#allocation2 + $0x7c] sm:$0xf]
      %v969 = vld [vmem:[#allocation2 + $0x80] sm:$0x1]
      %v970 = vld [vmem:[#allocation2 + $0x84] sm:$0xf]
      %v971 = vld [vmem:[#allocation2 + $0x88] sm:$0xf]
      %v972 = vld [vmem:[#allocation2 + $0x8c] sm:$0x1]
      %v973 = vld [vmem:[#allocation2 + $0x90] sm:$0xf]
      %v974 = vld [vmem:[#allocation2 + $0x94] sm:$0xf]
      %v975 = vld [vmem:[#allocation2 + $0x98] sm:$0x1]
      %v976 = vld [vmem:[#allocation2 + $0x9c] sm:$0xf]
      %v977 = vld [vmem:[#allocation2 + $0xa0] sm:$0xf]
      %v978 = vld [vmem:[#allocation2 + $0xa4] sm:$0x1]
      %v979 = vld [vmem:[#allocation2 + $0xa8] sm:$0xf]
      %v980 = vld [vmem:[#allocation2 + $0xac] sm:$0xf]
      %v981 = vld [vmem:[#allocation2 + $0xb0] sm:$0x1]
      %v982 = vld [vmem:[#allocation2 + $0xb4] sm:$0xf]
      %v983 = vld [vmem:[#allocation2 + $0xb8] sm:$0xf]
      %v984 = vld [vmem:[#allocation2 + $0xbc] sm:$0x1]
      %vm985 = vsmask.f32 3328
      %vm986 = vsmask.f32 7440
      %vm987 = vmor %vm985, %vm986
      %v989 = vshrl.u32 %v937, 16
      %v991 = vrot.slane %v989, 4
      %v992 = vshll.u32 %v937, 16
      %v994 = vrot.slane %v992, 5
      %v995 = vor.u32 %v991, %v994
      %v996 = vrot.slane %v995, 4
      %v998 = vshll.u32 %v938, 16
      %v1000 = vrot.slane %v998, 5
      %v1001 = vsel %vm987, %v996, %v1000
      %v1002 = vshrl.u32 %v938, 16
      %v1004 = vrot.slane %v1002, 4
      %v1005 = vor.u32 %v1004, %v1000
      %v1006 = vrot.slane %v1005, 4
      %v1008 = vshll.u32 %v939, 16
      %v1010 = vrot.slane %v1008, 5
      %v1011 = vsel %vm987, %v1006, %v1010
      %v1013 = vshrl.u32 %v940, 16
      %v1015 = vrot.slane %v1013, 4
      %v1016 = vshll.u32 %v940, 16
      %v1018 = vrot.slane %v1016, 5
      %v1019 = vor.u32 %v1015, %v1018
      %v1020 = vrot.slane %v1019, 4
      %v1022 = vshll.u32 %v941, 16
      %v1024 = vrot.slane %v1022, 5
      %v1025 = vsel %vm987, %v1020, %v1024
      %v1026 = vshrl.u32 %v941, 16
      %v1028 = vrot.slane %v1026, 4
      %v1029 = vor.u32 %v1028, %v1024
      %v1030 = vrot.slane %v1029, 4
      %v1032 = vshll.u32 %v942, 16
      %v1034 = vrot.slane %v1032, 5
      %v1035 = vsel %vm987, %v1030, %v1034
      %v1037 = vshrl.u32 %v943, 16
      %v1039 = vrot.slane %v1037, 4
      %v1040 = vshll.u32 %v943, 16
      %v1042 = vrot.slane %v1040, 5
      %v1043 = vor.u32 %v1039, %v1042
      %v1044 = vrot.slane %v1043, 4
      %v1046 = vshll.u32 %v944, 16
      %v1048 = vrot.slane %v1046, 5
      %v1049 = vsel %vm987, %v1044, %v1048
      %v1050 = vshrl.u32 %v944, 16
      %v1052 = vrot.slane %v1050, 4
      %v1053 = vor.u32 %v1052, %v1048
      %v1054 = vrot.slane %v1053, 4
      %v1056 = vshll.u32 %v945, 16
      %v1058 = vrot.slane %v1056, 5
      %v1059 = vsel %vm987, %v1054, %v1058
      %v1061 = vshrl.u32 %v946, 16
      %v1063 = vrot.slane %v1061, 4
      %v1064 = vshll.u32 %v946, 16
      %v1066 = vrot.slane %v1064, 5
      %v1067 = vor.u32 %v1063, %v1066
      %v1068 = vrot.slane %v1067, 4
      %v1070 = vshll.u32 %v947, 16
      %v1072 = vrot.slane %v1070, 5
      %v1073 = vsel %vm987, %v1068, %v1072
      %v1074 = vshrl.u32 %v947, 16
      %v1076 = vrot.slane %v1074, 4
      %v1077 = vor.u32 %v1076, %v1072
      %v1078 = vrot.slane %v1077, 4
      %v1080 = vshll.u32 %v948, 16
      %v1082 = vrot.slane %v1080, 5
      %v1083 = vsel %vm987, %v1078, %v1082
      %v1085 = vshrl.u32 %v949, 16
      %v1087 = vrot.slane %v1085, 4
      %v1088 = vshll.u32 %v949, 16
      %v1090 = vrot.slane %v1088, 5
      %v1091 = vor.u32 %v1087, %v1090
      %v1092 = vrot.slane %v1091, 4
      %v1094 = vshll.u32 %v950, 16
      %v1096 = vrot.slane %v1094, 5
      %v1097 = vsel %vm987, %v1092, %v1096
      %v1098 = vshrl.u32 %v950, 16
      %v1100 = vrot.slane %v1098, 4
      %v1101 = vor.u32 %v1100, %v1096
      %v1102 = vrot.slane %v1101, 4
      %v1104 = vshll.u32 %v951, 16
      %v1106 = vrot.slane %v1104, 5
      %v1107 = vsel %vm987, %v1102, %v1106
      %v1109 = vshrl.u32 %v952, 16
      %v1111 = vrot.slane %v1109, 4
      %v1112 = vshll.u32 %v952, 16
      %v1114 = vrot.slane %v1112, 5
      %v1115 = vor.u32 %v1111, %v1114
      %v1116 = vrot.slane %v1115, 4
      %v1118 = vshll.u32 %v953, 16
      %v1120 = vrot.slane %v1118, 5
      %v1121 = vsel %vm987, %v1116, %v1120
      %v1122 = vshrl.u32 %v953, 16
      %v1124 = vrot.slane %v1122, 4
      %v1125 = vor.u32 %v1124, %v1120
      %v1126 = vrot.slane %v1125, 4
      %v1128 = vshll.u32 %v954, 16
      %v1130 = vrot.slane %v1128, 5
      %v1131 = vsel %vm987, %v1126, %v1130
      %v1133 = vshrl.u32 %v955, 16
      %v1135 = vrot.slane %v1133, 4
      %v1136 = vshll.u32 %v955, 16
      %v1138 = vrot.slane %v1136, 5
      %v1139 = vor.u32 %v1135, %v1138
      %v1140 = vrot.slane %v1139, 4
      %v1142 = vshll.u32 %v956, 16
      %v1144 = vrot.slane %v1142, 5
      %v1145 = vsel %vm987, %v1140, %v1144
      %v1146 = vshrl.u32 %v956, 16
      %v1148 = vrot.slane %v1146, 4
      %v1149 = vor.u32 %v1148, %v1144
      %v1150 = vrot.slane %v1149, 4
      %v1152 = vshll.u32 %v957, 16
      %v1154 = vrot.slane %v1152, 5
      %v1155 = vsel %vm987, %v1150, %v1154
      %v1157 = vshrl.u32 %v958, 16
      %v1159 = vrot.slane %v1157, 4
      %v1160 = vshll.u32 %v958, 16
      %v1162 = vrot.slane %v1160, 5
      %v1163 = vor.u32 %v1159, %v1162
      %v1164 = vrot.slane %v1163, 4
      %v1166 = vshll.u32 %v959, 16
      %v1168 = vrot.slane %v1166, 5
      %v1169 = vsel %vm987, %v1164, %v1168
      %v1170 = vshrl.u32 %v959, 16
      %v1172 = vrot.slane %v1170, 4
      %v1173 = vor.u32 %v1172, %v1168
      %v1174 = vrot.slane %v1173, 4
      %v1176 = vshll.u32 %v960, 16
      %v1178 = vrot.slane %v1176, 5
      %v1179 = vsel %vm987, %v1174, %v1178
      %v1181 = vshrl.u32 %v961, 16
      %v1183 = vrot.slane %v1181, 4
      %v1184 = vshll.u32 %v961, 16
      %v1186 = vrot.slane %v1184, 5
      %v1187 = vor.u32 %v1183, %v1186
      %v1188 = vrot.slane %v1187, 4
      %v1190 = vshll.u32 %v962, 16
      %v1192 = vrot.slane %v1190, 5
      %v1193 = vsel %vm987, %v1188, %v1192
      %v1194 = vshrl.u32 %v962, 16
      %v1196 = vrot.slane %v1194, 4
      %v1197 = vor.u32 %v1196, %v1192
      %v1198 = vrot.slane %v1197, 4
      %v1200 = vshll.u32 %v963, 16
      %v1202 = vrot.slane %v1200, 5
      %v1203 = vsel %vm987, %v1198, %v1202
      %v1205 = vshrl.u32 %v964, 16
      %v1207 = vrot.slane %v1205, 4
      %v1208 = vshll.u32 %v964, 16
      %v1210 = vrot.slane %v1208, 5
      %v1211 = vor.u32 %v1207, %v1210
      %v1212 = vrot.slane %v1211, 4
      %v1214 = vshll.u32 %v965, 16
      %v1216 = vrot.slane %v1214, 5
      %v1217 = vsel %vm987, %v1212, %v1216
      %v1218 = vshrl.u32 %v965, 16
      %v1220 = vrot.slane %v1218, 4
      %v1221 = vor.u32 %v1220, %v1216
      %v1222 = vrot.slane %v1221, 4
      %v1224 = vshll.u32 %v966, 16
      %v1226 = vrot.slane %v1224, 5
      %v1227 = vsel %vm987, %v1222, %v1226
      %v1229 = vshrl.u32 %v967, 16
      %v1231 = vrot.slane %v1229, 4
      %v1232 = vshll.u32 %v967, 16
      %v1234 = vrot.slane %v1232, 5
      %v1235 = vor.u32 %v1231, %v1234
      %v1236 = vrot.slane %v1235, 4
      %v1238 = vshll.u32 %v968, 16
      %v1240 = vrot.slane %v1238, 5
      %v1241 = vsel %vm987, %v1236, %v1240
      %v1242 = vshrl.u32 %v968, 16
      %v1244 = vrot.slane %v1242, 4
      %v1245 = vor.u32 %v1244, %v1240
      %v1246 = vrot.slane %v1245, 4
      %v1248 = vshll.u32 %v969, 16
      %v1250 = vrot.slane %v1248, 5
      %v1251 = vsel %vm987, %v1246, %v1250
      %v1253 = vshrl.u32 %v970, 16
      %v1255 = vrot.slane %v1253, 4
      %v1256 = vshll.u32 %v970, 16
      %v1258 = vrot.slane %v1256, 5
      %v1259 = vor.u32 %v1255, %v1258
      %v1260 = vrot.slane %v1259, 4
      %v1262 = vshll.u32 %v971, 16
      %v1264 = vrot.slane %v1262, 5
      %v1265 = vsel %vm987, %v1260, %v1264
      %v1266 = vshrl.u32 %v971, 16
      %v1268 = vrot.slane %v1266, 4
      %v1269 = vor.u32 %v1268, %v1264
      %v1270 = vrot.slane %v1269, 4
      %v1272 = vshll.u32 %v972, 16
      %v1274 = vrot.slane %v1272, 5
      %v1275 = vsel %vm987, %v1270, %v1274
      %v1277 = vshrl.u32 %v973, 16
      %v1279 = vrot.slane %v1277, 4
      %v1280 = vshll.u32 %v973, 16
      %v1282 = vrot.slane %v1280, 5
      %v1283 = vor.u32 %v1279, %v1282
      %v1284 = vrot.slane %v1283, 4
      %v1286 = vshll.u32 %v974, 16
      %v1288 = vrot.slane %v1286, 5
      %v1289 = vsel %vm987, %v1284, %v1288
      %v1290 = vshrl.u32 %v974, 16
      %v1292 = vrot.slane %v1290, 4
      %v1293 = vor.u32 %v1292, %v1288
      %v1294 = vrot.slane %v1293, 4
      %v1296 = vshll.u32 %v975, 16
      %v1298 = vrot.slane %v1296, 5
      %v1299 = vsel %vm987, %v1294, %v1298
      %v1301 = vshrl.u32 %v976, 16
      %v1303 = vrot.slane %v1301, 4
      %v1304 = vshll.u32 %v976, 16
      %v1306 = vrot.slane %v1304, 5
      %v1307 = vor.u32 %v1303, %v1306
      %v1308 = vrot.slane %v1307, 4
      %v1310 = vshll.u32 %v977, 16
      %v1312 = vrot.slane %v1310, 5
      %v1313 = vsel %vm987, %v1308, %v1312
      %v1314 = vshrl.u32 %v977, 16
      %v1316 = vrot.slane %v1314, 4
      %v1317 = vor.u32 %v1316, %v1312
      %v1318 = vrot.slane %v1317, 4
      %v1320 = vshll.u32 %v978, 16
      %v1322 = vrot.slane %v1320, 5
      %v1323 = vsel %vm987, %v1318, %v1322
      %v1325 = vshrl.u32 %v979, 16
      %v1327 = vrot.slane %v1325, 4
      %v1328 = vshll.u32 %v979, 16
      %v1330 = vrot.slane %v1328, 5
      %v1331 = vor.u32 %v1327, %v1330
      %v1332 = vrot.slane %v1331, 4
      %v1334 = vshll.u32 %v980, 16
      %v1336 = vrot.slane %v1334, 5
      %v1337 = vsel %vm987, %v1332, %v1336
      %v1338 = vshrl.u32 %v980, 16
      %v1340 = vrot.slane %v1338, 4
      %v1341 = vor.u32 %v1340, %v1336
      %v1342 = vrot.slane %v1341, 4
      %v1344 = vshll.u32 %v981, 16
      %v1346 = vrot.slane %v1344, 5
      %v1347 = vsel %vm987, %v1342, %v1346
      %v1349 = vshrl.u32 %v982, 16
      %v1351 = vrot.slane %v1349, 4
      %v1352 = vshll.u32 %v982, 16
      %v1354 = vrot.slane %v1352, 5
      %v1355 = vor.u32 %v1351, %v1354
      %v1356 = vrot.slane %v1355, 4
      %v1358 = vshll.u32 %v983, 16
      %v1360 = vrot.slane %v1358, 5
      %v1361 = vsel %vm987, %v1356, %v1360
      %v1362 = vshrl.u32 %v983, 16
      %v1364 = vrot.slane %v1362, 4
      %v1365 = vor.u32 %v1364, %v1360
      %v1366 = vrot.slane %v1365, 4
      %v1368 = vshll.u32 %v984, 16
      %v1370 = vrot.slane %v1368, 5
      %v1371 = vsel %vm987, %v1366, %v1370
      %1404 = vst [vmem:[#allocation3 + $0x4] sm:$0xf] %v1001
      %1405 = vst [vmem:[#allocation3 + $0x28] sm:$0xf] %v1011
      %1406 = vst [vmem:[#allocation3 + $0x4c] sm:$0xf] %v1025
      %1407 = vst [vmem:[#allocation3 + $0x70] sm:$0xf] %v1035
      %1408 = vst [vmem:[#allocation3 + $0x94] sm:$0xf] %v1049
      %1409 = vst [vmem:[#allocation3 + $0xb8] sm:$0xf] %v1059
      %1410 = vst [vmem:[#allocation3 + $0xdc] sm:$0xf] %v1073
      %1411 = vst [vmem:[#allocation3 + $0x100] sm:$0xf] %v1083
      %1412 = vst [vmem:[#allocation3 + $0x124] sm:$0xf] %v1097
      %1413 = vst [vmem:[#allocation3 + $0x148] sm:$0xf] %v1107
      %1414 = vst [vmem:[#allocation3 + $0x16c] sm:$0xf] %v1121
      %1415 = vst [vmem:[#allocation3 + $0x190] sm:$0xf] %v1131
      %1416 = vst [vmem:[#allocation3 + $0x1b4] sm:$0xf] %v1145
      %1417 = vst [vmem:[#allocation3 + $0x1d8] sm:$0xf] %v1155
      %1418 = vst [vmem:[#allocation3 + $0x1fc] sm:$0xf] %v1169
      %1419 = vst [vmem:[#allocation3 + $0x220] sm:$0xf] %v1179
      %1420 = vst [vmem:[#allocation3 + $0x244] sm:$0xf] %v1193
      %1421 = vst [vmem:[#allocation3 + $0x268] sm:$0xf] %v1203
      %1422 = vst [vmem:[#allocation3 + $0x28c] sm:$0xf] %v1217
      %1423 = vst [vmem:[#allocation3 + $0x2b0] sm:$0xf] %v1227
      %1424 = vst [vmem:[#allocation3 + $0x2d4] sm:$0xf] %v1241
      %1425 = vst [vmem:[#allocation3 + $0x2f8] sm:$0xf] %v1251
      %1426 = vst [vmem:[#allocation3 + $0x31c] sm:$0xf] %v1265
      %1427 = vst [vmem:[#allocation3 + $0x340] sm:$0xf] %v1275
      %1428 = vst [vmem:[#allocation3 + $0x364] sm:$0xf] %v1289
      %1429 = vst [vmem:[#allocation3 + $0x388] sm:$0xf] %v1299
      %1430 = vst [vmem:[#allocation3 + $0x3ac] sm:$0xf] %v1313
      %1431 = vst [vmem:[#allocation3 + $0x3d0] sm:$0xf] %v1323
      %1432 = vst [vmem:[#allocation3 + $0x3f4] sm:$0xf] %v1337
      %1433 = vst [vmem:[#allocation3 + $0x418] sm:$0xf] %v1347
      %1434 = vst [vmem:[#allocation3 + $0x43c] sm:$0xf] %v1361
      %1435 = vst [vmem:[#allocation3 + $0x460] sm:$0xf] %v1371
      %v1436 = vld [vmem:[#allocation2] sm:$0xe]
      %v1437 = vld [vmem:[#allocation2 + $0x4] sm:$0xf]
      %v1438 = vld [vmem:[#allocation2 + $0x8] sm:$0x1]
      %v1439 = vld [vmem:[#allocation2 + $0xc] sm:$0xe]
      %v1440 = vld [vmem:[#allocation2 + $0x10] sm:$0xf]
      %v1441 = vld [vmem:[#allocation2 + $0x14] sm:$0x1]
      %v1442 = vld [vmem:[#allocation2 + $0x18] sm:$0xe]
      %v1443 = vld [vmem:[#allocation2 + $0x1c] sm:$0xf]
      %v1444 = vld [vmem:[#allocation2 + $0x20] sm:$0x1]
      %v1445 = vld [vmem:[#allocation2 + $0x24] sm:$0xe]
      %v1446 = vld [vmem:[#allocation2 + $0x28] sm:$0xf]
      %v1447 = vld [vmem:[#allocation2 + $0x2c] sm:$0x1]
      %v1448 = vld [vmem:[#allocation2 + $0x30] sm:$0xe]
      %v1449 = vld [vmem:[#allocation2 + $0x34] sm:$0xf]
      %v1450 = vld [vmem:[#allocation2 + $0x38] sm:$0x1]
      %v1451 = vld [vmem:[#allocation2 + $0x3c] sm:$0xe]
      %v1452 = vld [vmem:[#allocation2 + $0x40] sm:$0xf]
      %v1453 = vld [vmem:[#allocation2 + $0x44] sm:$0x1]
      %v1454 = vld [vmem:[#allocation2 + $0x48] sm:$0xe]
      %v1455 = vld [vmem:[#allocation2 + $0x4c] sm:$0xf]
      %v1456 = vld [vmem:[#allocation2 + $0x50] sm:$0x1]
      %v1457 = vld [vmem:[#allocation2 + $0x54] sm:$0xe]
      %v1458 = vld [vmem:[#allocation2 + $0x58] sm:$0xf]
      %v1459 = vld [vmem:[#allocation2 + $0x5c] sm:$0x1]
      %v1460 = vld [vmem:[#allocation2 + $0x60] sm:$0xe]
      %v1461 = vld [vmem:[#allocation2 + $0x64] sm:$0xf]
      %v1462 = vld [vmem:[#allocation2 + $0x68] sm:$0x1]
      %v1463 = vld [vmem:[#allocation2 + $0x6c] sm:$0xe]
      %v1464 = vld [vmem:[#allocation2 + $0x70] sm:$0xf]
      %v1465 = vld [vmem:[#allocation2 + $0x74] sm:$0x1]
      %v1466 = vld [vmem:[#allocation2 + $0x78] sm:$0xe]
      %v1467 = vld [vmem:[#allocation2 + $0x7c] sm:$0xf]
      %v1468 = vld [vmem:[#allocation2 + $0x80] sm:$0x1]
      %v1469 = vld [vmem:[#allocation2 + $0x84] sm:$0xe]
      %v1470 = vld [vmem:[#allocation2 + $0x88] sm:$0xf]
      %v1471 = vld [vmem:[#allocation2 + $0x8c] sm:$0x1]
      %v1472 = vld [vmem:[#allocation2 + $0x90] sm:$0xe]
      %v1473 = vld [vmem:[#allocation2 + $0x94] sm:$0xf]
      %v1474 = vld [vmem:[#allocation2 + $0x98] sm:$0x1]
      %v1475 = vld [vmem:[#allocation2 + $0x9c] sm:$0xe]
      %v1476 = vld [vmem:[#allocation2 + $0xa0] sm:$0xf]
      %v1477 = vld [vmem:[#allocation2 + $0xa4] sm:$0x1]
      %v1478 = vld [vmem:[#allocation2 + $0xa8] sm:$0xe]
      %v1479 = vld [vmem:[#allocation2 + $0xac] sm:$0xf]
      %v1480 = vld [vmem:[#allocation2 + $0xb0] sm:$0x1]
      %v1481 = vld [vmem:[#allocation2 + $0xb4] sm:$0xe]
      %v1482 = vld [vmem:[#allocation2 + $0xb8] sm:$0xf]
      %v1483 = vld [vmem:[#allocation2 + $0xbc] sm:$0x1]
      %vm1532 = vcmask 1042432
      %vm1533 = vcmask 1046532
      %vm1534 = vmor %vm1532, %vm1533
      %v1535 = vrot.slane %v1436, 5
      %v1536 = vrot.slane %v1535, 4
      %v1537 = vrot.slane %v1437, 5
      %v1538 = vsel %vm1534, %v1536, %v1537
      %v1539 = vrot.slane %v1537, 4
      %v1540 = vrot.slane %v1438, 5
      %v1541 = vsel %vm1534, %v1539, %v1540
      %v1542 = vrot.slane %v1439, 5
      %v1543 = vrot.slane %v1542, 4
      %v1544 = vrot.slane %v1440, 5
      %v1545 = vsel %vm1534, %v1543, %v1544
      %v1546 = vrot.slane %v1544, 4
      %v1547 = vrot.slane %v1441, 5
      %v1548 = vsel %vm1534, %v1546, %v1547
      %v1549 = vrot.slane %v1442, 5
      %v1550 = vrot.slane %v1549, 4
      %v1551 = vrot.slane %v1443, 5
      %v1552 = vsel %vm1534, %v1550, %v1551
      %v1553 = vrot.slane %v1551, 4
      %v1554 = vrot.slane %v1444, 5
      %v1555 = vsel %vm1534, %v1553, %v1554
      %v1556 = vrot.slane %v1445, 5
      %v1557 = vrot.slane %v1556, 4
      %v1558 = vrot.slane %v1446, 5
      %v1559 = vsel %vm1534, %v1557, %v1558
      %v1560 = vrot.slane %v1558, 4
      %v1561 = vrot.slane %v1447, 5
      %v1562 = vsel %vm1534, %v1560, %v1561
      %v1563 = vrot.slane %v1448, 5
      %v1564 = vrot.slane %v1563, 4
      %v1565 = vrot.slane %v1449, 5
      %v1566 = vsel %vm1534, %v1564, %v1565
      %v1567 = vrot.slane %v1565, 4
      %v1568 = vrot.slane %v1450, 5
      %v1569 = vsel %vm1534, %v1567, %v1568
      %v1570 = vrot.slane %v1451, 5
      %v1571 = vrot.slane %v1570, 4
      %v1572 = vrot.slane %v1452, 5
      %v1573 = vsel %vm1534, %v1571, %v1572
      %v1574 = vrot.slane %v1572, 4
      %v1575 = vrot.slane %v1453, 5
      %v1576 = vsel %vm1534, %v1574, %v1575
      %v1577 = vrot.slane %v1454, 5
      %v1578 = vrot.slane %v1577, 4
      %v1579 = vrot.slane %v1455, 5
      %v1580 = vsel %vm1534, %v1578, %v1579
      %v1581 = vrot.slane %v1579, 4
      %v1582 = vrot.slane %v1456, 5
      %v1583 = vsel %vm1534, %v1581, %v1582
      %v1584 = vrot.slane %v1457, 5
      %v1585 = vrot.slane %v1584, 4
      %v1586 = vrot.slane %v1458, 5
      %v1587 = vsel %vm1534, %v1585, %v1586
      %v1588 = vrot.slane %v1586, 4
      %v1589 = vrot.slane %v1459, 5
      %v1590 = vsel %vm1534, %v1588, %v1589
      %v1591 = vrot.slane %v1460, 5
      %v1592 = vrot.slane %v1591, 4
      %v1593 = vrot.slane %v1461, 5
      %v1594 = vsel %vm1534, %v1592, %v1593
      %v1595 = vrot.slane %v1593, 4
      %v1596 = vrot.slane %v1462, 5
      %v1597 = vsel %vm1534, %v1595, %v1596
      %v1598 = vrot.slane %v1463, 5
      %v1599 = vrot.slane %v1598, 4
      %v1600 = vrot.slane %v1464, 5
      %v1601 = vsel %vm1534, %v1599, %v1600
      %v1602 = vrot.slane %v1600, 4
      %v1603 = vrot.slane %v1465, 5
      %v1604 = vsel %vm1534, %v1602, %v1603
      %v1605 = vrot.slane %v1466, 5
      %v1606 = vrot.slane %v1605, 4
      %v1607 = vrot.slane %v1467, 5
      %v1608 = vsel %vm1534, %v1606, %v1607
      %v1609 = vrot.slane %v1607, 4
      %v1610 = vrot.slane %v1468, 5
      %v1611 = vsel %vm1534, %v1609, %v1610
      %v1612 = vrot.slane %v1469, 5
      %v1613 = vrot.slane %v1612, 4
      %v1614 = vrot.slane %v1470, 5
      %v1615 = vsel %vm1534, %v1613, %v1614
      %v1616 = vrot.slane %v1614, 4
      %v1617 = vrot.slane %v1471, 5
      %v1618 = vsel %vm1534, %v1616, %v1617
      %v1619 = vrot.slane %v1472, 5
      %v1620 = vrot.slane %v1619, 4
      %v1621 = vrot.slane %v1473, 5
      %v1622 = vsel %vm1534, %v1620, %v1621
      %v1623 = vrot.slane %v1621, 4
      %v1624 = vrot.slane %v1474, 5
      %v1625 = vsel %vm1534, %v1623, %v1624
      %v1626 = vrot.slane %v1475, 5
      %v1627 = vrot.slane %v1626, 4
      %v1628 = vrot.slane %v1476, 5
      %v1629 = vsel %vm1534, %v1627, %v1628
      %v1630 = vrot.slane %v1628, 4
      %v1631 = vrot.slane %v1477, 5
      %v1632 = vsel %vm1534, %v1630, %v1631
      %v1633 = vrot.slane %v1478, 5
      %v1634 = vrot.slane %v1633, 4
      %v1635 = vrot.slane %v1479, 5
      %v1636 = vsel %vm1534, %v1634, %v1635
      %v1637 = vrot.slane %v1635, 4
      %v1638 = vrot.slane %v1480, 5
      %v1639 = vsel %vm1534, %v1637, %v1638
      %v1640 = vrot.slane %v1481, 5
      %v1641 = vrot.slane %v1640, 4
      %v1642 = vrot.slane %v1482, 5
      %v1643 = vsel %vm1534, %v1641, %v1642
      %v1644 = vrot.slane %v1642, 4
      %v1645 = vrot.slane %v1483, 5
      %v1646 = vsel %vm1534, %v1644, %v1645
      %1679 = vst [vmem:[#allocation3 + $0x8] sm:$0xf] %v1538
      %1680 = vst [vmem:[#allocation3 + $0x2c] sm:$0xf] %v1541
      %1681 = vst [vmem:[#allocation3 + $0x50] sm:$0xf] %v1545
      %1682 = vst [vmem:[#allocation3 + $0x74] sm:$0xf] %v1548
      %1683 = vst [vmem:[#allocation3 + $0x98] sm:$0xf] %v1552
      %1684 = vst [vmem:[#allocation3 + $0xbc] sm:$0xf] %v1555
      %1685 = vst [vmem:[#allocation3 + $0xe0] sm:$0xf] %v1559
      %1686 = vst [vmem:[#allocation3 + $0x104] sm:$0xf] %v1562
      %1687 = vst [vmem:[#allocation3 + $0x128] sm:$0xf] %v1566
      %1688 = vst [vmem:[#allocation3 + $0x14c] sm:$0xf] %v1569
      %1689 = vst [vmem:[#allocation3 + $0x170] sm:$0xf] %v1573
      %1690 = vst [vmem:[#allocation3 + $0x194] sm:$0xf] %v1576
      %1691 = vst [vmem:[#allocation3 + $0x1b8] sm:$0xf] %v1580
      %1692 = vst [vmem:[#allocation3 + $0x1dc] sm:$0xf] %v1583
      %1693 = vst [vmem:[#allocation3 + $0x200] sm:$0xf] %v1587
      %1694 = vst [vmem:[#allocation3 + $0x224] sm:$0xf] %v1590
      %1695 = vst [vmem:[#allocation3 + $0x248] sm:$0xf] %v1594
      %1696 = vst [vmem:[#allocation3 + $0x26c] sm:$0xf] %v1597
      %1697 = vst [vmem:[#allocation3 + $0x290] sm:$0xf] %v1601
      %1698 = vst [vmem:[#allocation3 + $0x2b4] sm:$0xf] %v1604
      %1699 = vst [vmem:[#allocation3 + $0x2d8] sm:$0xf] %v1608
      %1700 = vst [vmem:[#allocation3 + $0x2fc] sm:$0xf] %v1611
      %1701 = vst [vmem:[#allocation3 + $0x320] sm:$0xf] %v1615
      %1702 = vst [vmem:[#allocation3 + $0x344] sm:$0xf] %v1618
      %1703 = vst [vmem:[#allocation3 + $0x368] sm:$0xf] %v1622
      %1704 = vst [vmem:[#allocation3 + $0x38c] sm:$0xf] %v1625
      %1705 = vst [vmem:[#allocation3 + $0x3b0] sm:$0xf] %v1629
      %1706 = vst [vmem:[#allocation3 + $0x3d4] sm:$0xf] %v1632
      %1707 = vst [vmem:[#allocation3 + $0x3f8] sm:$0xf] %v1636
      %1708 = vst [vmem:[#allocation3 + $0x41c] sm:$0xf] %v1639
      %1709 = vst [vmem:[#allocation3 + $0x440] sm:$0xf] %v1643
      %1710 = vst [vmem:[#allocation3 + $0x464] sm:$0xf] %v1646
      %v1711 = vld [vmem:[%s676] sm:$0xf]
      %v1712 = vld [vmem:[%s676 + $0x4] sm:$0xf]
      %v1713 = vld [vmem:[%s676 + $0xc] sm:$0xf]
      %v1714 = vld [vmem:[%s676 + $0x10] sm:$0xf]
      %v1715 = vld [vmem:[%s676 + $0x18] sm:$0xf]
      %v1716 = vld [vmem:[%s676 + $0x1c] sm:$0xf]
      %v1717 = vld [vmem:[%s676 + $0x24] sm:$0xf]
      %v1718 = vld [vmem:[%s676 + $0x28] sm:$0xf]
      %v1719 = vld [vmem:[%s676 + $0x30] sm:$0xf]
      %v1720 = vld [vmem:[%s676 + $0x34] sm:$0xf]
      %v1721 = vld [vmem:[%s676 + $0x3c] sm:$0xf]
      %v1722 = vld [vmem:[%s676 + $0x40] sm:$0xf]
      %v1723 = vld [vmem:[%s676 + $0x48] sm:$0xf]
      %v1724 = vld [vmem:[%s676 + $0x4c] sm:$0xf]
      %v1725 = vld [vmem:[%s676 + $0x54] sm:$0xf]
      %v1726 = vld [vmem:[%s676 + $0x58] sm:$0xf]
      %v1727 = vld [vmem:[%s676 + $0x60] sm:$0xf]
      %v1728 = vld [vmem:[%s676 + $0x64] sm:$0xf]
      %v1729 = vld [vmem:[%s676 + $0x6c] sm:$0xf]
      %v1730 = vld [vmem:[%s676 + $0x70] sm:$0xf]
      %v1731 = vld [vmem:[%s676 + $0x78] sm:$0xf]
      %v1732 = vld [vmem:[%s676 + $0x7c] sm:$0xf]
      %v1733 = vld [vmem:[%s676 + $0x84] sm:$0xf]
      %v1734 = vld [vmem:[%s676 + $0x88] sm:$0xf]
      %v1735 = vld [vmem:[%s676 + $0x90] sm:$0xf]
      %v1736 = vld [vmem:[%s676 + $0x94] sm:$0xf]
      %v1737 = vld [vmem:[%s676 + $0x9c] sm:$0xf]
      %v1738 = vld [vmem:[%s676 + $0xa0] sm:$0xf]
      %v1739 = vld [vmem:[%s676 + $0xa8] sm:$0xf]
      %v1740 = vld [vmem:[%s676 + $0xac] sm:$0xf]
      %v1741 = vld [vmem:[%s676 + $0xb4] sm:$0xf]
      %v1742 = vld [vmem:[%s676 + $0xb8] sm:$0xf]
      %1743 = vst [vmem:[#allocation3 + $0xc] sm:$0xf] %v1711
      %1744 = vst [vmem:[#allocation3 + $0x30] sm:$0xf] %v1712
      %1745 = vst [vmem:[#allocation3 + $0x54] sm:$0xf] %v1713
      %1746 = vst [vmem:[#allocation3 + $0x78] sm:$0xf] %v1714
      %1747 = vst [vmem:[#allocation3 + $0x9c] sm:$0xf] %v1715
      %1748 = vst [vmem:[#allocation3 + $0xc0] sm:$0xf] %v1716
      %1749 = vst [vmem:[#allocation3 + $0xe4] sm:$0xf] %v1717
      %1750 = vst [vmem:[#allocation3 + $0x108] sm:$0xf] %v1718
      %1751 = vst [vmem:[#allocation3 + $0x12c] sm:$0xf] %v1719
      %1752 = vst [vmem:[#allocation3 + $0x150] sm:$0xf] %v1720
      %1753 = vst [vmem:[#allocation3 + $0x174] sm:$0xf] %v1721
      %1754 = vst [vmem:[#allocation3 + $0x198] sm:$0xf] %v1722
      %1755 = vst [vmem:[#allocation3 + $0x1bc] sm:$0xf] %v1723
      %1756 = vst [vmem:[#allocation3 + $0x1e0] sm:$0xf] %v1724
      %1757 = vst [vmem:[#allocation3 + $0x204] sm:$0xf] %v1725
      %1758 = vst [vmem:[#allocation3 + $0x228] sm:$0xf] %v1726
      %1759 = vst [vmem:[#allocation3 + $0x24c] sm:$0xf] %v1727
      %1760 = vst [vmem:[#allocation3 + $0x270] sm:$0xf] %v1728
      %1761 = vst [vmem:[#allocation3 + $0x294] sm:$0xf] %v1729
      %1762 = vst [vmem:[#allocation3 + $0x2b8] sm:$0xf] %v1730
      %1763 = vst [vmem:[#allocation3 + $0x2dc] sm:$0xf] %v1731
      %1764 = vst [vmem:[#allocation3 + $0x300] sm:$0xf] %v1732
      %1765 = vst [vmem:[#allocation3 + $0x324] sm:$0xf] %v1733
      %1766 = vst [vmem:[#allocation3 + $0x348] sm:$0xf] %v1734
      %1767 = vst [vmem:[#allocation3 + $0x36c] sm:$0xf] %v1735
      %1768 = vst [vmem:[#allocation3 + $0x390] sm:$0xf] %v1736
      %1769 = vst [vmem:[#allocation3 + $0x3b4] sm:$0xf] %v1737
      %1770 = vst [vmem:[#allocation3 + $0x3d8] sm:$0xf] %v1738
      %1771 = vst [vmem:[#allocation3 + $0x3fc] sm:$0xf] %v1739
      %1772 = vst [vmem:[#allocation3 + $0x420] sm:$0xf] %v1740
      %1773 = vst [vmem:[#allocation3 + $0x444] sm:$0xf] %v1741
      %1774 = vst [vmem:[#allocation3 + $0x468] sm:$0xf] %v1742
      %v1775 = vld [vmem:[%s676] sm:$0xf]
      %v1776 = vld [vmem:[%s676 + $0x4] sm:$0xf]
      %v1777 = vld [vmem:[%s676 + $0x8] sm:$0x1]
      %v1778 = vld [vmem:[%s676 + $0xc] sm:$0xf]
      %v1779 = vld [vmem:[%s676 + $0x10] sm:$0xf]
      %v1780 = vld [vmem:[%s676 + $0x14] sm:$0x1]
      %v1781 = vld [vmem:[%s676 + $0x18] sm:$0xf]
      %v1782 = vld [vmem:[%s676 + $0x1c] sm:$0xf]
      %v1783 = vld [vmem:[%s676 + $0x20] sm:$0x1]
      %v1784 = vld [vmem:[%s676 + $0x24] sm:$0xf]
      %v1785 = vld [vmem:[%s676 + $0x28] sm:$0xf]
      %v1786 = vld [vmem:[%s676 + $0x2c] sm:$0x1]
      %v1787 = vld [vmem:[%s676 + $0x30] sm:$0xf]
      %v1788 = vld [vmem:[%s676 + $0x34] sm:$0xf]
      %v1789 = vld [vmem:[%s676 + $0x38] sm:$0x1]
      %v1790 = vld [vmem:[%s676 + $0x3c] sm:$0xf]
      %v1791 = vld [vmem:[%s676 + $0x40] sm:$0xf]
      %v1792 = vld [vmem:[%s676 + $0x44] sm:$0x1]
      %v1793 = vld [vmem:[%s676 + $0x48] sm:$0xf]
      %v1794 = vld [vmem:[%s676 + $0x4c] sm:$0xf]
      %v1795 = vld [vmem:[%s676 + $0x50] sm:$0x1]
      %v1796 = vld [vmem:[%s676 + $0x54] sm:$0xf]
      %v1797 = vld [vmem:[%s676 + $0x58] sm:$0xf]
      %v1798 = vld [vmem:[%s676 + $0x5c] sm:$0x1]
      %v1799 = vld [vmem:[%s676 + $0x60] sm:$0xf]
      %v1800 = vld [vmem:[%s676 + $0x64] sm:$0xf]
      %v1801 = vld [vmem:[%s676 + $0x68] sm:$0x1]
      %v1802 = vld [vmem:[%s676 + $0x6c] sm:$0xf]
      %v1803 = vld [vmem:[%s676 + $0x70] sm:$0xf]
      %v1804 = vld [vmem:[%s676 + $0x74] sm:$0x1]
      %v1805 = vld [vmem:[%s676 + $0x78] sm:$0xf]
      %v1806 = vld [vmem:[%s676 + $0x7c] sm:$0xf]
      %v1807 = vld [vmem:[%s676 + $0x80] sm:$0x1]
      %v1808 = vld [vmem:[%s676 + $0x84] sm:$0xf]
      %v1809 = vld [vmem:[%s676 + $0x88] sm:$0xf]
      %v1810 = vld [vmem:[%s676 + $0x8c] sm:$0x1]
      %v1811 = vld [vmem:[%s676 + $0x90] sm:$0xf]
      %v1812 = vld [vmem:[%s676 + $0x94] sm:$0xf]
      %v1813 = vld [vmem:[%s676 + $0x98] sm:$0x1]
      %v1814 = vld [vmem:[%s676 + $0x9c] sm:$0xf]
      %v1815 = vld [vmem:[%s676 + $0xa0] sm:$0xf]
      %v1816 = vld [vmem:[%s676 + $0xa4] sm:$0x1]
      %v1817 = vld [vmem:[%s676 + $0xa8] sm:$0xf]
      %v1818 = vld [vmem:[%s676 + $0xac] sm:$0xf]
      %v1819 = vld [vmem:[%s676 + $0xb0] sm:$0x1]
      %v1820 = vld [vmem:[%s676 + $0xb4] sm:$0xf]
      %v1821 = vld [vmem:[%s676 + $0xb8] sm:$0xf]
      %v1822 = vld [vmem:[%s676 + $0xbc] sm:$0x1]
      %v1824 = vshrl.u32 %v1775, 16
      %v1826 = vrot.slane %v1824, 4
      %v1827 = vshll.u32 %v1775, 16
      %v1829 = vrot.slane %v1827, 5
      %v1830 = vor.u32 %v1826, %v1829
      %v1831 = vrot.slane %v1830, 4
      %v1833 = vshll.u32 %v1776, 16
      %v1835 = vrot.slane %v1833, 5
      %v1836 = vsel %vm987, %v1831, %v1835
      %v1837 = vshrl.u32 %v1776, 16
      %v1839 = vrot.slane %v1837, 4
      %v1840 = vor.u32 %v1839, %v1835
      %v1841 = vrot.slane %v1840, 4
      %v1843 = vshll.u32 %v1777, 16
      %v1845 = vrot.slane %v1843, 5
      %v1846 = vsel %vm987, %v1841, %v1845
      %v1848 = vshrl.u32 %v1778, 16
      %v1850 = vrot.slane %v1848, 4
      %v1851 = vshll.u32 %v1778, 16
      %v1853 = vrot.slane %v1851, 5
      %v1854 = vor.u32 %v1850, %v1853
      %v1855 = vrot.slane %v1854, 4
      %v1857 = vshll.u32 %v1779, 16
      %v1859 = vrot.slane %v1857, 5
      %v1860 = vsel %vm987, %v1855, %v1859
      %v1861 = vshrl.u32 %v1779, 16
      %v1863 = vrot.slane %v1861, 4
      %v1864 = vor.u32 %v1863, %v1859
      %v1865 = vrot.slane %v1864, 4
      %v1867 = vshll.u32 %v1780, 16
      %v1869 = vrot.slane %v1867, 5
      %v1870 = vsel %vm987, %v1865, %v1869
      %v1872 = vshrl.u32 %v1781, 16
      %v1874 = vrot.slane %v1872, 4
      %v1875 = vshll.u32 %v1781, 16
      %v1877 = vrot.slane %v1875, 5
      %v1878 = vor.u32 %v1874, %v1877
      %v1879 = vrot.slane %v1878, 4
      %v1881 = vshll.u32 %v1782, 16
      %v1883 = vrot.slane %v1881, 5
      %v1884 = vsel %vm987, %v1879, %v1883
      %v1885 = vshrl.u32 %v1782, 16
      %v1887 = vrot.slane %v1885, 4
      %v1888 = vor.u32 %v1887, %v1883
      %v1889 = vrot.slane %v1888, 4
      %v1891 = vshll.u32 %v1783, 16
      %v1893 = vrot.slane %v1891, 5
      %v1894 = vsel %vm987, %v1889, %v1893
      %v1896 = vshrl.u32 %v1784, 16
      %v1898 = vrot.slane %v1896, 4
      %v1899 = vshll.u32 %v1784, 16
      %v1901 = vrot.slane %v1899, 5
      %v1902 = vor.u32 %v1898, %v1901
      %v1903 = vrot.slane %v1902, 4
      %v1905 = vshll.u32 %v1785, 16
      %v1907 = vrot.slane %v1905, 5
      %v1908 = vsel %vm987, %v1903, %v1907
      %v1909 = vshrl.u32 %v1785, 16
      %v1911 = vrot.slane %v1909, 4
      %v1912 = vor.u32 %v1911, %v1907
      %v1913 = vrot.slane %v1912, 4
      %v1915 = vshll.u32 %v1786, 16
      %v1917 = vrot.slane %v1915, 5
      %v1918 = vsel %vm987, %v1913, %v1917
      %v1920 = vshrl.u32 %v1787, 16
      %v1922 = vrot.slane %v1920, 4
      %v1923 = vshll.u32 %v1787, 16
      %v1925 = vrot.slane %v1923, 5
      %v1926 = vor.u32 %v1922, %v1925
      %v1927 = vrot.slane %v1926, 4
      %v1929 = vshll.u32 %v1788, 16
      %v1931 = vrot.slane %v1929, 5
      %v1932 = vsel %vm987, %v1927, %v1931
      %v1933 = vshrl.u32 %v1788, 16
      %v1935 = vrot.slane %v1933, 4
      %v1936 = vor.u32 %v1935, %v1931
      %v1937 = vrot.slane %v1936, 4
      %v1939 = vshll.u32 %v1789, 16
      %v1941 = vrot.slane %v1939, 5
      %v1942 = vsel %vm987, %v1937, %v1941
      %v1944 = vshrl.u32 %v1790, 16
      %v1946 = vrot.slane %v1944, 4
      %v1947 = vshll.u32 %v1790, 16
      %v1949 = vrot.slane %v1947, 5
      %v1950 = vor.u32 %v1946, %v1949
      %v1951 = vrot.slane %v1950, 4
      %v1953 = vshll.u32 %v1791, 16
      %v1955 = vrot.slane %v1953, 5
      %v1956 = vsel %vm987, %v1951, %v1955
      %v1957 = vshrl.u32 %v1791, 16
      %v1959 = vrot.slane %v1957, 4
      %v1960 = vor.u32 %v1959, %v1955
      %v1961 = vrot.slane %v1960, 4
      %v1963 = vshll.u32 %v1792, 16
      %v1965 = vrot.slane %v1963, 5
      %v1966 = vsel %vm987, %v1961, %v1965
      %v1968 = vshrl.u32 %v1793, 16
      %v1970 = vrot.slane %v1968, 4
      %v1971 = vshll.u32 %v1793, 16
      %v1973 = vrot.slane %v1971, 5
      %v1974 = vor.u32 %v1970, %v1973
      %v1975 = vrot.slane %v1974, 4
      %v1977 = vshll.u32 %v1794, 16
      %v1979 = vrot.slane %v1977, 5
      %v1980 = vsel %vm987, %v1975, %v1979
      %v1981 = vshrl.u32 %v1794, 16
      %v1983 = vrot.slane %v1981, 4
      %v1984 = vor.u32 %v1983, %v1979
      %v1985 = vrot.slane %v1984, 4
      %v1987 = vshll.u32 %v1795, 16
      %v1989 = vrot.slane %v1987, 5
      %v1990 = vsel %vm987, %v1985, %v1989
      %v1992 = vshrl.u32 %v1796, 16
      %v1994 = vrot.slane %v1992, 4
      %v1995 = vshll.u32 %v1796, 16
      %v1997 = vrot.slane %v1995, 5
      %v1998 = vor.u32 %v1994, %v1997
      %v1999 = vrot.slane %v1998, 4
      %v2001 = vshll.u32 %v1797, 16
      %v2003 = vrot.slane %v2001, 5
      %v2004 = vsel %vm987, %v1999, %v2003
      %v2005 = vshrl.u32 %v1797, 16
      %v2007 = vrot.slane %v2005, 4
      %v2008 = vor.u32 %v2007, %v2003
      %v2009 = vrot.slane %v2008, 4
      %v2011 = vshll.u32 %v1798, 16
      %v2013 = vrot.slane %v2011, 5
      %v2014 = vsel %vm987, %v2009, %v2013
      %v2016 = vshrl.u32 %v1799, 16
      %v2018 = vrot.slane %v2016, 4
      %v2019 = vshll.u32 %v1799, 16
      %v2021 = vrot.slane %v2019, 5
      %v2022 = vor.u32 %v2018, %v2021
      %v2023 = vrot.slane %v2022, 4
      %v2025 = vshll.u32 %v1800, 16
      %v2027 = vrot.slane %v2025, 5
      %v2028 = vsel %vm987, %v2023, %v2027
      %v2029 = vshrl.u32 %v1800, 16
      %v2031 = vrot.slane %v2029, 4
      %v2032 = vor.u32 %v2031, %v2027
      %v2033 = vrot.slane %v2032, 4
      %v2035 = vshll.u32 %v1801, 16
      %v2037 = vrot.slane %v2035, 5
      %v2038 = vsel %vm987, %v2033, %v2037
      %v2040 = vshrl.u32 %v1802, 16
      %v2042 = vrot.slane %v2040, 4
      %v2043 = vshll.u32 %v1802, 16
      %v2045 = vrot.slane %v2043, 5
      %v2046 = vor.u32 %v2042, %v2045
      %v2047 = vrot.slane %v2046, 4
      %v2049 = vshll.u32 %v1803, 16
      %v2051 = vrot.slane %v2049, 5
      %v2052 = vsel %vm987, %v2047, %v2051
      %v2053 = vshrl.u32 %v1803, 16
      %v2055 = vrot.slane %v2053, 4
      %v2056 = vor.u32 %v2055, %v2051
      %v2057 = vrot.slane %v2056, 4
      %v2059 = vshll.u32 %v1804, 16
      %v2061 = vrot.slane %v2059, 5
      %v2062 = vsel %vm987, %v2057, %v2061
      %v2064 = vshrl.u32 %v1805, 16
      %v2066 = vrot.slane %v2064, 4
      %v2067 = vshll.u32 %v1805, 16
      %v2069 = vrot.slane %v2067, 5
      %v2070 = vor.u32 %v2066, %v2069
      %v2071 = vrot.slane %v2070, 4
      %v2073 = vshll.u32 %v1806, 16
      %v2075 = vrot.slane %v2073, 5
      %v2076 = vsel %vm987, %v2071, %v2075
      %v2077 = vshrl.u32 %v1806, 16
      %v2079 = vrot.slane %v2077, 4
      %v2080 = vor.u32 %v2079, %v2075
      %v2081 = vrot.slane %v2080, 4
      %v2083 = vshll.u32 %v1807, 16
      %v2085 = vrot.slane %v2083, 5
      %v2086 = vsel %vm987, %v2081, %v2085
      %v2088 = vshrl.u32 %v1808, 16
      %v2090 = vrot.slane %v2088, 4
      %v2091 = vshll.u32 %v1808, 16
      %v2093 = vrot.slane %v2091, 5
      %v2094 = vor.u32 %v2090, %v2093
      %v2095 = vrot.slane %v2094, 4
      %v2097 = vshll.u32 %v1809, 16
      %v2099 = vrot.slane %v2097, 5
      %v2100 = vsel %vm987, %v2095, %v2099
      %v2101 = vshrl.u32 %v1809, 16
      %v2103 = vrot.slane %v2101, 4
      %v2104 = vor.u32 %v2103, %v2099
      %v2105 = vrot.slane %v2104, 4
      %v2107 = vshll.u32 %v1810, 16
      %v2109 = vrot.slane %v2107, 5
      %v2110 = vsel %vm987, %v2105, %v2109
      %v2112 = vshrl.u32 %v1811, 16
      %v2114 = vrot.slane %v2112, 4
      %v2115 = vshll.u32 %v1811, 16
      %v2117 = vrot.slane %v2115, 5
      %v2118 = vor.u32 %v2114, %v2117
      %v2119 = vrot.slane %v2118, 4
      %v2121 = vshll.u32 %v1812, 16
      %v2123 = vrot.slane %v2121, 5
      %v2124 = vsel %vm987, %v2119, %v2123
      %v2125 = vshrl.u32 %v1812, 16
      %v2127 = vrot.slane %v2125, 4
      %v2128 = vor.u32 %v2127, %v2123
      %v2129 = vrot.slane %v2128, 4
      %v2131 = vshll.u32 %v1813, 16
      %v2133 = vrot.slane %v2131, 5
      %v2134 = vsel %vm987, %v2129, %v2133
      %v2136 = vshrl.u32 %v1814, 16
      %v2138 = vrot.slane %v2136, 4
      %v2139 = vshll.u32 %v1814, 16
      %v2141 = vrot.slane %v2139, 5
      %v2142 = vor.u32 %v2138, %v2141
      %v2143 = vrot.slane %v2142, 4
      %v2145 = vshll.u32 %v1815, 16
      %v2147 = vrot.slane %v2145, 5
      %v2148 = vsel %vm987, %v2143, %v2147
      %v2149 = vshrl.u32 %v1815, 16
      %v2151 = vrot.slane %v2149, 4
      %v2152 = vor.u32 %v2151, %v2147
      %v2153 = vrot.slane %v2152, 4
      %v2155 = vshll.u32 %v1816, 16
      %v2157 = vrot.slane %v2155, 5
      %v2158 = vsel %vm987, %v2153, %v2157
      %v2160 = vshrl.u32 %v1817, 16
      %v2162 = vrot.slane %v2160, 4
      %v2163 = vshll.u32 %v1817, 16
      %v2165 = vrot.slane %v2163, 5
      %v2166 = vor.u32 %v2162, %v2165
      %v2167 = vrot.slane %v2166, 4
      %v2169 = vshll.u32 %v1818, 16
      %v2171 = vrot.slane %v2169, 5
      %v2172 = vsel %vm987, %v2167, %v2171
      %v2173 = vshrl.u32 %v1818, 16
      %v2175 = vrot.slane %v2173, 4
      %v2176 = vor.u32 %v2175, %v2171
      %v2177 = vrot.slane %v2176, 4
      %v2179 = vshll.u32 %v1819, 16
      %v2181 = vrot.slane %v2179, 5
      %v2182 = vsel %vm987, %v2177, %v2181
      %v2184 = vshrl.u32 %v1820, 16
      %v2186 = vrot.slane %v2184, 4
      %v2187 = vshll.u32 %v1820, 16
      %v2189 = vrot.slane %v2187, 5
      %v2190 = vor.u32 %v2186, %v2189
      %v2191 = vrot.slane %v2190, 4
      %v2193 = vshll.u32 %v1821, 16
      %v2195 = vrot.slane %v2193, 5
      %v2196 = vsel %vm987, %v2191, %v2195
      %v2197 = vshrl.u32 %v1821, 16
      %v2199 = vrot.slane %v2197, 4
      %v2200 = vor.u32 %v2199, %v2195
      %v2201 = vrot.slane %v2200, 4
      %v2203 = vshll.u32 %v1822, 16
      %v2205 = vrot.slane %v2203, 5
      %v2206 = vsel %vm987, %v2201, %v2205
      %2239 = vst [vmem:[#allocation3 + $0x10] sm:$0xf] %v1836
      %2240 = vst [vmem:[#allocation3 + $0x34] sm:$0xf] %v1846
      %2241 = vst [vmem:[#allocation3 + $0x58] sm:$0xf] %v1860
      %2242 = vst [vmem:[#allocation3 + $0x7c] sm:$0xf] %v1870
      %2243 = vst [vmem:[#allocation3 + $0xa0] sm:$0xf] %v1884
      %2244 = vst [vmem:[#allocation3 + $0xc4] sm:$0xf] %v1894
      %2245 = vst [vmem:[#allocation3 + $0xe8] sm:$0xf] %v1908
      %2246 = vst [vmem:[#allocation3 + $0x10c] sm:$0xf] %v1918
      %2247 = vst [vmem:[#allocation3 + $0x130] sm:$0xf] %v1932
      %2248 = vst [vmem:[#allocation3 + $0x154] sm:$0xf] %v1942
      %2249 = vst [vmem:[#allocation3 + $0x178] sm:$0xf] %v1956
      %2250 = vst [vmem:[#allocation3 + $0x19c] sm:$0xf] %v1966
      %2251 = vst [vmem:[#allocation3 + $0x1c0] sm:$0xf] %v1980
      %2252 = vst [vmem:[#allocation3 + $0x1e4] sm:$0xf] %v1990
      %2253 = vst [vmem:[#allocation3 + $0x208] sm:$0xf] %v2004
      %2254 = vst [vmem:[#allocation3 + $0x22c] sm:$0xf] %v2014
      %2255 = vst [vmem:[#allocation3 + $0x250] sm:$0xf] %v2028
      %2256 = vst [vmem:[#allocation3 + $0x274] sm:$0xf] %v2038
      %2257 = vst [vmem:[#allocation3 + $0x298] sm:$0xf] %v2052
      %2258 = vst [vmem:[#allocation3 + $0x2bc] sm:$0xf] %v2062
      %2259 = vst [vmem:[#allocation3 + $0x2e0] sm:$0xf] %v2076
      %2260 = vst [vmem:[#allocation3 + $0x304] sm:$0xf] %v2086
      %2261 = vst [vmem:[#allocation3 + $0x328] sm:$0xf] %v2100
      %2262 = vst [vmem:[#allocation3 + $0x34c] sm:$0xf] %v2110
      %2263 = vst [vmem:[#allocation3 + $0x370] sm:$0xf] %v2124
      %2264 = vst [vmem:[#allocation3 + $0x394] sm:$0xf] %v2134
      %2265 = vst [vmem:[#allocation3 + $0x3b8] sm:$0xf] %v2148
      %2266 = vst [vmem:[#allocation3 + $0x3dc] sm:$0xf] %v2158
      %2267 = vst [vmem:[#allocation3 + $0x400] sm:$0xf] %v2172
      %2268 = vst [vmem:[#allocation3 + $0x424] sm:$0xf] %v2182
      %2269 = vst [vmem:[#allocation3 + $0x448] sm:$0xf] %v2196
      %2270 = vst [vmem:[#allocation3 + $0x46c] sm:$0xf] %v2206
      %v2271 = vld [vmem:[%s676] sm:$0xe]
      %v2272 = vld [vmem:[%s676 + $0x4] sm:$0xf]
      %v2273 = vld [vmem:[%s676 + $0x8] sm:$0x1]
      %v2274 = vld [vmem:[%s676 + $0xc] sm:$0xe]
      %v2275 = vld [vmem:[%s676 + $0x10] sm:$0xf]
      %v2276 = vld [vmem:[%s676 + $0x14] sm:$0x1]
      %v2277 = vld [vmem:[%s676 + $0x18] sm:$0xe]
      %v2278 = vld [vmem:[%s676 + $0x1c] sm:$0xf]
      %v2279 = vld [vmem:[%s676 + $0x20] sm:$0x1]
      %v2280 = vld [vmem:[%s676 + $0x24] sm:$0xe]
      %v2281 = vld [vmem:[%s676 + $0x28] sm:$0xf]
      %v2282 = vld [vmem:[%s676 + $0x2c] sm:$0x1]
      %v2283 = vld [vmem:[%s676 + $0x30] sm:$0xe]
      %v2284 = vld [vmem:[%s676 + $0x34] sm:$0xf]
      %v2285 = vld [vmem:[%s676 + $0x38] sm:$0x1]
      %v2286 = vld [vmem:[%s676 + $0x3c] sm:$0xe]
      %v2287 = vld [vmem:[%s676 + $0x40] sm:$0xf]
      %v2288 = vld [vmem:[%s676 + $0x44] sm:$0x1]
      %v2289 = vld [vmem:[%s676 + $0x48] sm:$0xe]
      %v2290 = vld [vmem:[%s676 + $0x4c] sm:$0xf]
      %v2291 = vld [vmem:[%s676 + $0x50] sm:$0x1]
      %v2292 = vld [vmem:[%s676 + $0x54] sm:$0xe]
      %v2293 = vld [vmem:[%s676 + $0x58] sm:$0xf]
      %v2294 = vld [vmem:[%s676 + $0x5c] sm:$0x1]
      %v2295 = vld [vmem:[%s676 + $0x60] sm:$0xe]
      %v2296 = vld [vmem:[%s676 + $0x64] sm:$0xf]
      %v2297 = vld [vmem:[%s676 + $0x68] sm:$0x1]
      %v2298 = vld [vmem:[%s676 + $0x6c] sm:$0xe]
      %v2299 = vld [vmem:[%s676 + $0x70] sm:$0xf]
      %v2300 = vld [vmem:[%s676 + $0x74] sm:$0x1]
      %v2301 = vld [vmem:[%s676 + $0x78] sm:$0xe]
      %v2302 = vld [vmem:[%s676 + $0x7c] sm:$0xf]
      %v2303 = vld [vmem:[%s676 + $0x80] sm:$0x1]
      %v2304 = vld [vmem:[%s676 + $0x84] sm:$0xe]
      %v2305 = vld [vmem:[%s676 + $0x88] sm:$0xf]
      %v2306 = vld [vmem:[%s676 + $0x8c] sm:$0x1]
      %v2307 = vld [vmem:[%s676 + $0x90] sm:$0xe]
      %v2308 = vld [vmem:[%s676 + $0x94] sm:$0xf]
      %v2309 = vld [vmem:[%s676 + $0x98] sm:$0x1]
      %v2310 = vld [vmem:[%s676 + $0x9c] sm:$0xe]
      %v2311 = vld [vmem:[%s676 + $0xa0] sm:$0xf]
      %v2312 = vld [vmem:[%s676 + $0xa4] sm:$0x1]
      %v2313 = vld [vmem:[%s676 + $0xa8] sm:$0xe]
      %v2314 = vld [vmem:[%s676 + $0xac] sm:$0xf]
      %v2315 = vld [vmem:[%s676 + $0xb0] sm:$0x1]
      %v2316 = vld [vmem:[%s676 + $0xb4] sm:$0xe]
      %v2317 = vld [vmem:[%s676 + $0xb8] sm:$0xf]
      %v2318 = vld [vmem:[%s676 + $0xbc] sm:$0x1]
      %v2367 = vrot.slane %v2271, 5
      %v2368 = vrot.slane %v2367, 4
      %v2369 = vrot.slane %v2272, 5
      %v2370 = vsel %vm1534, %v2368, %v2369
      %v2371 = vrot.slane %v2369, 4
      %v2372 = vrot.slane %v2273, 5
      %v2373 = vsel %vm1534, %v2371, %v2372
      %v2374 = vrot.slane %v2274, 5
      %v2375 = vrot.slane %v2374, 4
      %v2376 = vrot.slane %v2275, 5
      %v2377 = vsel %vm1534, %v2375, %v2376
      %v2378 = vrot.slane %v2376, 4
      %v2379 = vrot.slane %v2276, 5
      %v2380 = vsel %vm1534, %v2378, %v2379
      %v2381 = vrot.slane %v2277, 5
      %v2382 = vrot.slane %v2381, 4
      %v2383 = vrot.slane %v2278, 5
      %v2384 = vsel %vm1534, %v2382, %v2383
      %v2385 = vrot.slane %v2383, 4
      %v2386 = vrot.slane %v2279, 5
      %v2387 = vsel %vm1534, %v2385, %v2386
      %v2388 = vrot.slane %v2280, 5
      %v2389 = vrot.slane %v2388, 4
      %v2390 = vrot.slane %v2281, 5
      %v2391 = vsel %vm1534, %v2389, %v2390
      %v2392 = vrot.slane %v2390, 4
      %v2393 = vrot.slane %v2282, 5
      %v2394 = vsel %vm1534, %v2392, %v2393
      %v2395 = vrot.slane %v2283, 5
      %v2396 = vrot.slane %v2395, 4
      %v2397 = vrot.slane %v2284, 5
      %v2398 = vsel %vm1534, %v2396, %v2397
      %v2399 = vrot.slane %v2397, 4
      %v2400 = vrot.slane %v2285, 5
      %v2401 = vsel %vm1534, %v2399, %v2400
      %v2402 = vrot.slane %v2286, 5
      %v2403 = vrot.slane %v2402, 4
      %v2404 = vrot.slane %v2287, 5
      %v2405 = vsel %vm1534, %v2403, %v2404
      %v2406 = vrot.slane %v2404, 4
      %v2407 = vrot.slane %v2288, 5
      %v2408 = vsel %vm1534, %v2406, %v2407
      %v2409 = vrot.slane %v2289, 5
      %v2410 = vrot.slane %v2409, 4
      %v2411 = vrot.slane %v2290, 5
      %v2412 = vsel %vm1534, %v2410, %v2411
      %v2413 = vrot.slane %v2411, 4
      %v2414 = vrot.slane %v2291, 5
      %v2415 = vsel %vm1534, %v2413, %v2414
      %v2416 = vrot.slane %v2292, 5
      %v2417 = vrot.slane %v2416, 4
      %v2418 = vrot.slane %v2293, 5
      %v2419 = vsel %vm1534, %v2417, %v2418
      %v2420 = vrot.slane %v2418, 4
      %v2421 = vrot.slane %v2294, 5
      %v2422 = vsel %vm1534, %v2420, %v2421
      %v2423 = vrot.slane %v2295, 5
      %v2424 = vrot.slane %v2423, 4
      %v2425 = vrot.slane %v2296, 5
      %v2426 = vsel %vm1534, %v2424, %v2425
      %v2427 = vrot.slane %v2425, 4
      %v2428 = vrot.slane %v2297, 5
      %v2429 = vsel %vm1534, %v2427, %v2428
      %v2430 = vrot.slane %v2298, 5
      %v2431 = vrot.slane %v2430, 4
      %v2432 = vrot.slane %v2299, 5
      %v2433 = vsel %vm1534, %v2431, %v2432
      %v2434 = vrot.slane %v2432, 4
      %v2435 = vrot.slane %v2300, 5
      %v2436 = vsel %vm1534, %v2434, %v2435
      %v2437 = vrot.slane %v2301, 5
      %v2438 = vrot.slane %v2437, 4
      %v2439 = vrot.slane %v2302, 5
      %v2440 = vsel %vm1534, %v2438, %v2439
      %v2441 = vrot.slane %v2439, 4
      %v2442 = vrot.slane %v2303, 5
      %v2443 = vsel %vm1534, %v2441, %v2442
      %v2444 = vrot.slane %v2304, 5
      %v2445 = vrot.slane %v2444, 4
      %v2446 = vrot.slane %v2305, 5
      %v2447 = vsel %vm1534, %v2445, %v2446
      %v2448 = vrot.slane %v2446, 4
      %v2449 = vrot.slane %v2306, 5
      %v2450 = vsel %vm1534, %v2448, %v2449
      %v2451 = vrot.slane %v2307, 5
      %v2452 = vrot.slane %v2451, 4
      %v2453 = vrot.slane %v2308, 5
      %v2454 = vsel %vm1534, %v2452, %v2453
      %v2455 = vrot.slane %v2453, 4
      %v2456 = vrot.slane %v2309, 5
      %v2457 = vsel %vm1534, %v2455, %v2456
      %v2458 = vrot.slane %v2310, 5
      %v2459 = vrot.slane %v2458, 4
      %v2460 = vrot.slane %v2311, 5
      %v2461 = vsel %vm1534, %v2459, %v2460
      %v2462 = vrot.slane %v2460, 4
      %v2463 = vrot.slane %v2312, 5
      %v2464 = vsel %vm1534, %v2462, %v2463
      %v2465 = vrot.slane %v2313, 5
      %v2466 = vrot.slane %v2465, 4
      %v2467 = vrot.slane %v2314, 5
      %v2468 = vsel %vm1534, %v2466, %v2467
      %v2469 = vrot.slane %v2467, 4
      %v2470 = vrot.slane %v2315, 5
      %v2471 = vsel %vm1534, %v2469, %v2470
      %v2472 = vrot.slane %v2316, 5
      %v2473 = vrot.slane %v2472, 4
      %v2474 = vrot.slane %v2317, 5
      %v2475 = vsel %vm1534, %v2473, %v2474
      %v2476 = vrot.slane %v2474, 4
      %v2477 = vrot.slane %v2318, 5
      %v2478 = vsel %vm1534, %v2476, %v2477
      %2511 = vst [vmem:[#allocation3 + $0x14] sm:$0xf] %v2370
      %2512 = vst [vmem:[#allocation3 + $0x38] sm:$0xf] %v2373
      %2513 = vst [vmem:[#allocation3 + $0x5c] sm:$0xf] %v2377
      %2514 = vst [vmem:[#allocation3 + $0x80] sm:$0xf] %v2380
      %2515 = vst [vmem:[#allocation3 + $0xa4] sm:$0xf] %v2384
      %2516 = vst [vmem:[#allocation3 + $0xc8] sm:$0xf] %v2387
      %2517 = vst [vmem:[#allocation3 + $0xec] sm:$0xf] %v2391
      %2518 = vst [vmem:[#allocation3 + $0x110] sm:$0xf] %v2394
      %2519 = vst [vmem:[#allocation3 + $0x134] sm:$0xf] %v2398
      %2520 = vst [vmem:[#allocation3 + $0x158] sm:$0xf] %v2401
      %2521 = vst [vmem:[#allocation3 + $0x17c] sm:$0xf] %v2405
      %2522 = vst [vmem:[#allocation3 + $0x1a0] sm:$0xf] %v2408
      %2523 = vst [vmem:[#allocation3 + $0x1c4] sm:$0xf] %v2412
      %2524 = vst [vmem:[#allocation3 + $0x1e8] sm:$0xf] %v2415
      %2525 = vst [vmem:[#allocation3 + $0x20c] sm:$0xf] %v2419
      %2526 = vst [vmem:[#allocation3 + $0x230] sm:$0xf] %v2422
      %2527 = vst [vmem:[#allocation3 + $0x254] sm:$0xf] %v2426
      %2528 = vst [vmem:[#allocation3 + $0x278] sm:$0xf] %v2429
      %2529 = vst [vmem:[#allocation3 + $0x29c] sm:$0xf] %v2433
      %2530 = vst [vmem:[#allocation3 + $0x2c0] sm:$0xf] %v2436
      %2531 = vst [vmem:[#allocation3 + $0x2e4] sm:$0xf] %v2440
      %2532 = vst [vmem:[#allocation3 + $0x308] sm:$0xf] %v2443
      %2533 = vst [vmem:[#allocation3 + $0x32c] sm:$0xf] %v2447
      %2534 = vst [vmem:[#allocation3 + $0x350] sm:$0xf] %v2450
      %2535 = vst [vmem:[#allocation3 + $0x374] sm:$0xf] %v2454
      %2536 = vst [vmem:[#allocation3 + $0x398] sm:$0xf] %v2457
      %2537 = vst [vmem:[#allocation3 + $0x3bc] sm:$0xf] %v2461
      %2538 = vst [vmem:[#allocation3 + $0x3e0] sm:$0xf] %v2464
      %2539 = vst [vmem:[#allocation3 + $0x404] sm:$0xf] %v2468
      %2540 = vst [vmem:[#allocation3 + $0x428] sm:$0xf] %v2471
      %2541 = vst [vmem:[#allocation3 + $0x44c] sm:$0xf] %v2475
      %2542 = vst [vmem:[#allocation3 + $0x470] sm:$0xf] %v2478
      %s2543 = scalar_lea.vmem [#allocation2], 24
      %v2544 = vld [vmem:[%s2543] sm:$0xf]
      %v2545 = vld [vmem:[%s2543 + $0x4] sm:$0xf]
      %v2546 = vld [vmem:[%s2543 + $0xc] sm:$0xf]
      %v2547 = vld [vmem:[%s2543 + $0x10] sm:$0xf]
      %v2548 = vld [vmem:[%s2543 + $0x18] sm:$0xf]
      %v2549 = vld [vmem:[%s2543 + $0x1c] sm:$0xf]
      %v2550 = vld [vmem:[%s2543 + $0x24] sm:$0xf]
      %v2551 = vld [vmem:[%s2543 + $0x28] sm:$0xf]
      %v2552 = vld [vmem:[%s2543 + $0x30] sm:$0xf]
      %v2553 = vld [vmem:[%s2543 + $0x34] sm:$0xf]
      %v2554 = vld [vmem:[%s2543 + $0x3c] sm:$0xf]
      %v2555 = vld [vmem:[%s2543 + $0x40] sm:$0xf]
      %v2556 = vld [vmem:[%s2543 + $0x48] sm:$0xf]
      %v2557 = vld [vmem:[%s2543 + $0x4c] sm:$0xf]
      %v2558 = vld [vmem:[%s2543 + $0x54] sm:$0xf]
      %v2559 = vld [vmem:[%s2543 + $0x58] sm:$0xf]
      %v2560 = vld [vmem:[%s2543 + $0x60] sm:$0xf]
      %v2561 = vld [vmem:[%s2543 + $0x64] sm:$0xf]
      %v2562 = vld [vmem:[%s2543 + $0x6c] sm:$0xf]
      %v2563 = vld [vmem:[%s2543 + $0x70] sm:$0xf]
      %v2564 = vld [vmem:[%s2543 + $0x78] sm:$0xf]
      %v2565 = vld [vmem:[%s2543 + $0x7c] sm:$0xf]
      %v2566 = vld [vmem:[%s2543 + $0x84] sm:$0xf]
      %v2567 = vld [vmem:[%s2543 + $0x88] sm:$0xf]
      %v2568 = vld [vmem:[%s2543 + $0x90] sm:$0xf]
      %v2569 = vld [vmem:[%s2543 + $0x94] sm:$0xf]
      %v2570 = vld [vmem:[%s2543 + $0x9c] sm:$0xf]
      %v2571 = vld [vmem:[%s2543 + $0xa0] sm:$0xf]
      %v2572 = vld [vmem:[%s2543 + $0xa8] sm:$0xf]
      %v2573 = vld [vmem:[%s2543 + $0xac] sm:$0xf]
      %v2574 = vld [vmem:[%s2543 + $0xb4] sm:$0xf]
      %v2575 = vld [vmem:[%s2543 + $0xb8] sm:$0xf]
      %2576 = vst [vmem:[#allocation3 + $0x18] sm:$0xf] %v2544
      %2577 = vst [vmem:[#allocation3 + $0x3c] sm:$0xf] %v2545
      %2578 = vst [vmem:[#allocation3 + $0x60] sm:$0xf] %v2546
      %2579 = vst [vmem:[#allocation3 + $0x84] sm:$0xf] %v2547
      %2580 = vst [vmem:[#allocation3 + $0xa8] sm:$0xf] %v2548
      %2581 = vst [vmem:[#allocation3 + $0xcc] sm:$0xf] %v2549
      %2582 = vst [vmem:[#allocation3 + $0xf0] sm:$0xf] %v2550
      %2583 = vst [vmem:[#allocation3 + $0x114] sm:$0xf] %v2551
      %2584 = vst [vmem:[#allocation3 + $0x138] sm:$0xf] %v2552
      %2585 = vst [vmem:[#allocation3 + $0x15c] sm:$0xf] %v2553
      %2586 = vst [vmem:[#allocation3 + $0x180] sm:$0xf] %v2554
      %2587 = vst [vmem:[#allocation3 + $0x1a4] sm:$0xf] %v2555
      %2588 = vst [vmem:[#allocation3 + $0x1c8] sm:$0xf] %v2556
      %2589 = vst [vmem:[#allocation3 + $0x1ec] sm:$0xf] %v2557
      %2590 = vst [vmem:[#allocation3 + $0x210] sm:$0xf] %v2558
      %2591 = vst [vmem:[#allocation3 + $0x234] sm:$0xf] %v2559
      %2592 = vst [vmem:[#allocation3 + $0x258] sm:$0xf] %v2560
      %2593 = vst [vmem:[#allocation3 + $0x27c] sm:$0xf] %v2561
      %2594 = vst [vmem:[#allocation3 + $0x2a0] sm:$0xf] %v2562
      %2595 = vst [vmem:[#allocation3 + $0x2c4] sm:$0xf] %v2563
      %2596 = vst [vmem:[#allocation3 + $0x2e8] sm:$0xf] %v2564
      %2597 = vst [vmem:[#allocation3 + $0x30c] sm:$0xf] %v2565
      %2598 = vst [vmem:[#allocation3 + $0x330] sm:$0xf] %v2566
      %2599 = vst [vmem:[#allocation3 + $0x354] sm:$0xf] %v2567
      %2600 = vst [vmem:[#allocation3 + $0x378] sm:$0xf] %v2568
      %2601 = vst [vmem:[#allocation3 + $0x39c] sm:$0xf] %v2569
      %2602 = vst [vmem:[#allocation3 + $0x3c0] sm:$0xf] %v2570
      %2603 = vst [vmem:[#allocation3 + $0x3e4] sm:$0xf] %v2571
      %2604 = vst [vmem:[#allocation3 + $0x408] sm:$0xf] %v2572
      %2605 = vst [vmem:[#allocation3 + $0x42c] sm:$0xf] %v2573
      %2606 = vst [vmem:[#allocation3 + $0x450] sm:$0xf] %v2574
      %2607 = vst [vmem:[#allocation3 + $0x474] sm:$0xf] %v2575
      %v2608 = vld [vmem:[%s2543] sm:$0xf]
      %v2609 = vld [vmem:[%s2543 + $0x4] sm:$0xf]
      %v2610 = vld [vmem:[%s2543 + $0x8] sm:$0x1]
      %v2611 = vld [vmem:[%s2543 + $0xc] sm:$0xf]
      %v2612 = vld [vmem:[%s2543 + $0x10] sm:$0xf]
      %v2613 = vld [vmem:[%s2543 + $0x14] sm:$0x1]
      %v2614 = vld [vmem:[%s2543 + $0x18] sm:$0xf]
      %v2615 = vld [vmem:[%s2543 + $0x1c] sm:$0xf]
      %v2616 = vld [vmem:[%s2543 + $0x20] sm:$0x1]
      %v2617 = vld [vmem:[%s2543 + $0x24] sm:$0xf]
      %v2618 = vld [vmem:[%s2543 + $0x28] sm:$0xf]
      %v2619 = vld [vmem:[%s2543 + $0x2c] sm:$0x1]
      %v2620 = vld [vmem:[%s2543 + $0x30] sm:$0xf]
      %v2621 = vld [vmem:[%s2543 + $0x34] sm:$0xf]
      %v2622 = vld [vmem:[%s2543 + $0x38] sm:$0x1]
      %v2623 = vld [vmem:[%s2543 + $0x3c] sm:$0xf]
      %v2624 = vld [vmem:[%s2543 + $0x40] sm:$0xf]
      %v2625 = vld [vmem:[%s2543 + $0x44] sm:$0x1]
      %v2626 = vld [vmem:[%s2543 + $0x48] sm:$0xf]
      %v2627 = vld [vmem:[%s2543 + $0x4c] sm:$0xf]
      %v2628 = vld [vmem:[%s2543 + $0x50] sm:$0x1]
      %v2629 = vld [vmem:[%s2543 + $0x54] sm:$0xf]
      %v2630 = vld [vmem:[%s2543 + $0x58] sm:$0xf]
      %v2631 = vld [vmem:[%s2543 + $0x5c] sm:$0x1]
      %v2632 = vld [vmem:[%s2543 + $0x60] sm:$0xf]
      %v2633 = vld [vmem:[%s2543 + $0x64] sm:$0xf]
      %v2634 = vld [vmem:[%s2543 + $0x68] sm:$0x1]
      %v2635 = vld [vmem:[%s2543 + $0x6c] sm:$0xf]
      %v2636 = vld [vmem:[%s2543 + $0x70] sm:$0xf]
      %v2637 = vld [vmem:[%s2543 + $0x74] sm:$0x1]
      %v2638 = vld [vmem:[%s2543 + $0x78] sm:$0xf]
      %v2639 = vld [vmem:[%s2543 + $0x7c] sm:$0xf]
      %v2640 = vld [vmem:[%s2543 + $0x80] sm:$0x1]
      %v2641 = vld [vmem:[%s2543 + $0x84] sm:$0xf]
      %v2642 = vld [vmem:[%s2543 + $0x88] sm:$0xf]
      %v2643 = vld [vmem:[%s2543 + $0x8c] sm:$0x1]
      %v2644 = vld [vmem:[%s2543 + $0x90] sm:$0xf]
      %v2645 = vld [vmem:[%s2543 + $0x94] sm:$0xf]
      %v2646 = vld [vmem:[%s2543 + $0x98] sm:$0x1]
      %v2647 = vld [vmem:[%s2543 + $0x9c] sm:$0xf]
      %v2648 = vld [vmem:[%s2543 + $0xa0] sm:$0xf]
      %v2649 = vld [vmem:[%s2543 + $0xa4] sm:$0x1]
      %v2650 = vld [vmem:[%s2543 + $0xa8] sm:$0xf]
      %v2651 = vld [vmem:[%s2543 + $0xac] sm:$0xf]
      %v2652 = vld [vmem:[%s2543 + $0xb0] sm:$0x1]
      %v2653 = vld [vmem:[%s2543 + $0xb4] sm:$0xf]
      %v2654 = vld [vmem:[%s2543 + $0xb8] sm:$0xf]
      %v2655 = vld [vmem:[%s2543 + $0xbc] sm:$0x1]
      %v2657 = vshrl.u32 %v2608, 16
      %v2659 = vrot.slane %v2657, 4
      %v2660 = vshll.u32 %v2608, 16
      %v2662 = vrot.slane %v2660, 5
      %v2663 = vor.u32 %v2659, %v2662
      %v2664 = vrot.slane %v2663, 4
      %v2666 = vshll.u32 %v2609, 16
      %v2668 = vrot.slane %v2666, 5
      %v2669 = vsel %vm987, %v2664, %v2668
      %v2670 = vshrl.u32 %v2609, 16
      %v2672 = vrot.slane %v2670, 4
      %v2673 = vor.u32 %v2672, %v2668
      %v2674 = vrot.slane %v2673, 4
      %v2676 = vshll.u32 %v2610, 16
      %v2678 = vrot.slane %v2676, 5
      %v2679 = vsel %vm987, %v2674, %v2678
      %v2681 = vshrl.u32 %v2611, 16
      %v2683 = vrot.slane %v2681, 4
      %v2684 = vshll.u32 %v2611, 16
      %v2686 = vrot.slane %v2684, 5
      %v2687 = vor.u32 %v2683, %v2686
      %v2688 = vrot.slane %v2687, 4
      %v2690 = vshll.u32 %v2612, 16
      %v2692 = vrot.slane %v2690, 5
      %v2693 = vsel %vm987, %v2688, %v2692
      %v2694 = vshrl.u32 %v2612, 16
      %v2696 = vrot.slane %v2694, 4
      %v2697 = vor.u32 %v2696, %v2692
      %v2698 = vrot.slane %v2697, 4
      %v2700 = vshll.u32 %v2613, 16
      %v2702 = vrot.slane %v2700, 5
      %v2703 = vsel %vm987, %v2698, %v2702
      %v2705 = vshrl.u32 %v2614, 16
      %v2707 = vrot.slane %v2705, 4
      %v2708 = vshll.u32 %v2614, 16
      %v2710 = vrot.slane %v2708, 5
      %v2711 = vor.u32 %v2707, %v2710
      %v2712 = vrot.slane %v2711, 4
      %v2714 = vshll.u32 %v2615, 16
      %v2716 = vrot.slane %v2714, 5
      %v2717 = vsel %vm987, %v2712, %v2716
      %v2718 = vshrl.u32 %v2615, 16
      %v2720 = vrot.slane %v2718, 4
      %v2721 = vor.u32 %v2720, %v2716
      %v2722 = vrot.slane %v2721, 4
      %v2724 = vshll.u32 %v2616, 16
      %v2726 = vrot.slane %v2724, 5
      %v2727 = vsel %vm987, %v2722, %v2726
      %v2729 = vshrl.u32 %v2617, 16
      %v2731 = vrot.slane %v2729, 4
      %v2732 = vshll.u32 %v2617, 16
      %v2734 = vrot.slane %v2732, 5
      %v2735 = vor.u32 %v2731, %v2734
      %v2736 = vrot.slane %v2735, 4
      %v2738 = vshll.u32 %v2618, 16
      %v2740 = vrot.slane %v2738, 5
      %v2741 = vsel %vm987, %v2736, %v2740
      %v2742 = vshrl.u32 %v2618, 16
      %v2744 = vrot.slane %v2742, 4
      %v2745 = vor.u32 %v2744, %v2740
      %v2746 = vrot.slane %v2745, 4
      %v2748 = vshll.u32 %v2619, 16
      %v2750 = vrot.slane %v2748, 5
      %v2751 = vsel %vm987, %v2746, %v2750
      %v2753 = vshrl.u32 %v2620, 16
      %v2755 = vrot.slane %v2753, 4
      %v2756 = vshll.u32 %v2620, 16
      %v2758 = vrot.slane %v2756, 5
      %v2759 = vor.u32 %v2755, %v2758
      %v2760 = vrot.slane %v2759, 4
      %v2762 = vshll.u32 %v2621, 16
      %v2764 = vrot.slane %v2762, 5
      %v2765 = vsel %vm987, %v2760, %v2764
      %v2766 = vshrl.u32 %v2621, 16
      %v2768 = vrot.slane %v2766, 4
      %v2769 = vor.u32 %v2768, %v2764
      %v2770 = vrot.slane %v2769, 4
      %v2772 = vshll.u32 %v2622, 16
      %v2774 = vrot.slane %v2772, 5
      %v2775 = vsel %vm987, %v2770, %v2774
      %v2777 = vshrl.u32 %v2623, 16
      %v2779 = vrot.slane %v2777, 4
      %v2780 = vshll.u32 %v2623, 16
      %v2782 = vrot.slane %v2780, 5
      %v2783 = vor.u32 %v2779, %v2782
      %v2784 = vrot.slane %v2783, 4
      %v2786 = vshll.u32 %v2624, 16
      %v2788 = vrot.slane %v2786, 5
      %v2789 = vsel %vm987, %v2784, %v2788
      %v2790 = vshrl.u32 %v2624, 16
      %v2792 = vrot.slane %v2790, 4
      %v2793 = vor.u32 %v2792, %v2788
      %v2794 = vrot.slane %v2793, 4
      %v2796 = vshll.u32 %v2625, 16
      %v2798 = vrot.slane %v2796, 5
      %v2799 = vsel %vm987, %v2794, %v2798
      %v2801 = vshrl.u32 %v2626, 16
      %v2803 = vrot.slane %v2801, 4
      %v2804 = vshll.u32 %v2626, 16
      %v2806 = vrot.slane %v2804, 5
      %v2807 = vor.u32 %v2803, %v2806
      %v2808 = vrot.slane %v2807, 4
      %v2810 = vshll.u32 %v2627, 16
      %v2812 = vrot.slane %v2810, 5
      %v2813 = vsel %vm987, %v2808, %v2812
      %v2814 = vshrl.u32 %v2627, 16
      %v2816 = vrot.slane %v2814, 4
      %v2817 = vor.u32 %v2816, %v2812
      %v2818 = vrot.slane %v2817, 4
      %v2820 = vshll.u32 %v2628, 16
      %v2822 = vrot.slane %v2820, 5
      %v2823 = vsel %vm987, %v2818, %v2822
      %v2825 = vshrl.u32 %v2629, 16
      %v2827 = vrot.slane %v2825, 4
      %v2828 = vshll.u32 %v2629, 16
      %v2830 = vrot.slane %v2828, 5
      %v2831 = vor.u32 %v2827, %v2830
      %v2832 = vrot.slane %v2831, 4
      %v2834 = vshll.u32 %v2630, 16
      %v2836 = vrot.slane %v2834, 5
      %v2837 = vsel %vm987, %v2832, %v2836
      %v2838 = vshrl.u32 %v2630, 16
      %v2840 = vrot.slane %v2838, 4
      %v2841 = vor.u32 %v2840, %v2836
      %v2842 = vrot.slane %v2841, 4
      %v2844 = vshll.u32 %v2631, 16
      %v2846 = vrot.slane %v2844, 5
      %v2847 = vsel %vm987, %v2842, %v2846
      %v2849 = vshrl.u32 %v2632, 16
      %v2851 = vrot.slane %v2849, 4
      %v2852 = vshll.u32 %v2632, 16
      %v2854 = vrot.slane %v2852, 5
      %v2855 = vor.u32 %v2851, %v2854
      %v2856 = vrot.slane %v2855, 4
      %v2858 = vshll.u32 %v2633, 16
      %v2860 = vrot.slane %v2858, 5
      %v2861 = vsel %vm987, %v2856, %v2860
      %v2862 = vshrl.u32 %v2633, 16
      %v2864 = vrot.slane %v2862, 4
      %v2865 = vor.u32 %v2864, %v2860
      %v2866 = vrot.slane %v2865, 4
      %v2868 = vshll.u32 %v2634, 16
      %v2870 = vrot.slane %v2868, 5
      %v2871 = vsel %vm987, %v2866, %v2870
      %v2873 = vshrl.u32 %v2635, 16
      %v2875 = vrot.slane %v2873, 4
      %v2876 = vshll.u32 %v2635, 16
      %v2878 = vrot.slane %v2876, 5
      %v2879 = vor.u32 %v2875, %v2878
      %v2880 = vrot.slane %v2879, 4
      %v2882 = vshll.u32 %v2636, 16
      %v2884 = vrot.slane %v2882, 5
      %v2885 = vsel %vm987, %v2880, %v2884
      %v2886 = vshrl.u32 %v2636, 16
      %v2888 = vrot.slane %v2886, 4
      %v2889 = vor.u32 %v2888, %v2884
      %v2890 = vrot.slane %v2889, 4
      %v2892 = vshll.u32 %v2637, 16
      %v2894 = vrot.slane %v2892, 5
      %v2895 = vsel %vm987, %v2890, %v2894
      %v2897 = vshrl.u32 %v2638, 16
      %v2899 = vrot.slane %v2897, 4
      %v2900 = vshll.u32 %v2638, 16
      %v2902 = vrot.slane %v2900, 5
      %v2903 = vor.u32 %v2899, %v2902
      %v2904 = vrot.slane %v2903, 4
      %v2906 = vshll.u32 %v2639, 16
      %v2908 = vrot.slane %v2906, 5
      %v2909 = vsel %vm987, %v2904, %v2908
      %v2910 = vshrl.u32 %v2639, 16
      %v2912 = vrot.slane %v2910, 4
      %v2913 = vor.u32 %v2912, %v2908
      %v2914 = vrot.slane %v2913, 4
      %v2916 = vshll.u32 %v2640, 16
      %v2918 = vrot.slane %v2916, 5
      %v2919 = vsel %vm987, %v2914, %v2918
      %v2921 = vshrl.u32 %v2641, 16
      %v2923 = vrot.slane %v2921, 4
      %v2924 = vshll.u32 %v2641, 16
      %v2926 = vrot.slane %v2924, 5
      %v2927 = vor.u32 %v2923, %v2926
      %v2928 = vrot.slane %v2927, 4
      %v2930 = vshll.u32 %v2642, 16
      %v2932 = vrot.slane %v2930, 5
      %v2933 = vsel %vm987, %v2928, %v2932
      %v2934 = vshrl.u32 %v2642, 16
      %v2936 = vrot.slane %v2934, 4
      %v2937 = vor.u32 %v2936, %v2932
      %v2938 = vrot.slane %v2937, 4
      %v2940 = vshll.u32 %v2643, 16
      %v2942 = vrot.slane %v2940, 5
      %v2943 = vsel %vm987, %v2938, %v2942
      %v2945 = vshrl.u32 %v2644, 16
      %v2947 = vrot.slane %v2945, 4
      %v2948 = vshll.u32 %v2644, 16
      %v2950 = vrot.slane %v2948, 5
      %v2951 = vor.u32 %v2947, %v2950
      %v2952 = vrot.slane %v2951, 4
      %v2954 = vshll.u32 %v2645, 16
      %v2956 = vrot.slane %v2954, 5
      %v2957 = vsel %vm987, %v2952, %v2956
      %v2958 = vshrl.u32 %v2645, 16
      %v2960 = vrot.slane %v2958, 4
      %v2961 = vor.u32 %v2960, %v2956
      %v2962 = vrot.slane %v2961, 4
      %v2964 = vshll.u32 %v2646, 16
      %v2966 = vrot.slane %v2964, 5
      %v2967 = vsel %vm987, %v2962, %v2966
      %v2969 = vshrl.u32 %v2647, 16
      %v2971 = vrot.slane %v2969, 4
      %v2972 = vshll.u32 %v2647, 16
      %v2974 = vrot.slane %v2972, 5
      %v2975 = vor.u32 %v2971, %v2974
      %v2976 = vrot.slane %v2975, 4
      %v2978 = vshll.u32 %v2648, 16
      %v2980 = vrot.slane %v2978, 5
      %v2981 = vsel %vm987, %v2976, %v2980
      %v2982 = vshrl.u32 %v2648, 16
      %v2984 = vrot.slane %v2982, 4
      %v2985 = vor.u32 %v2984, %v2980
      %v2986 = vrot.slane %v2985, 4
      %v2988 = vshll.u32 %v2649, 16
      %v2990 = vrot.slane %v2988, 5
      %v2991 = vsel %vm987, %v2986, %v2990
      %v2993 = vshrl.u32 %v2650, 16
      %v2995 = vrot.slane %v2993, 4
      %v2996 = vshll.u32 %v2650, 16
      %v2998 = vrot.slane %v2996, 5
      %v2999 = vor.u32 %v2995, %v2998
      %v3000 = vrot.slane %v2999, 4
      %v3002 = vshll.u32 %v2651, 16
      %v3004 = vrot.slane %v3002, 5
      %v3005 = vsel %vm987, %v3000, %v3004
      %v3006 = vshrl.u32 %v2651, 16
      %v3008 = vrot.slane %v3006, 4
      %v3009 = vor.u32 %v3008, %v3004
      %v3010 = vrot.slane %v3009, 4
      %v3012 = vshll.u32 %v2652, 16
      %v3014 = vrot.slane %v3012, 5
      %v3015 = vsel %vm987, %v3010, %v3014
      %v3017 = vshrl.u32 %v2653, 16
      %v3019 = vrot.slane %v3017, 4
      %v3020 = vshll.u32 %v2653, 16
      %v3022 = vrot.slane %v3020, 5
      %v3023 = vor.u32 %v3019, %v3022
      %v3024 = vrot.slane %v3023, 4
      %v3026 = vshll.u32 %v2654, 16
      %v3028 = vrot.slane %v3026, 5
      %v3029 = vsel %vm987, %v3024, %v3028
      %v3030 = vshrl.u32 %v2654, 16
      %v3032 = vrot.slane %v3030, 4
      %v3033 = vor.u32 %v3032, %v3028
      %v3034 = vrot.slane %v3033, 4
      %v3036 = vshll.u32 %v2655, 16
      %v3038 = vrot.slane %v3036, 5
      %v3039 = vsel %vm987, %v3034, %v3038
      %3072 = vst [vmem:[#allocation3 + $0x1c] sm:$0xf] %v2669
      %3073 = vst [vmem:[#allocation3 + $0x40] sm:$0xf] %v2679
      %3074 = vst [vmem:[#allocation3 + $0x64] sm:$0xf] %v2693
      %3075 = vst [vmem:[#allocation3 + $0x88] sm:$0xf] %v2703
      %3076 = vst [vmem:[#allocation3 + $0xac] sm:$0xf] %v2717
      %3077 = vst [vmem:[#allocation3 + $0xd0] sm:$0xf] %v2727
      %3078 = vst [vmem:[#allocation3 + $0xf4] sm:$0xf] %v2741
      %3079 = vst [vmem:[#allocation3 + $0x118] sm:$0xf] %v2751
      %3080 = vst [vmem:[#allocation3 + $0x13c] sm:$0xf] %v2765
      %3081 = vst [vmem:[#allocation3 + $0x160] sm:$0xf] %v2775
      %3082 = vst [vmem:[#allocation3 + $0x184] sm:$0xf] %v2789
      %3083 = vst [vmem:[#allocation3 + $0x1a8] sm:$0xf] %v2799
      %3084 = vst [vmem:[#allocation3 + $0x1cc] sm:$0xf] %v2813
      %3085 = vst [vmem:[#allocation3 + $0x1f0] sm:$0xf] %v2823
      %3086 = vst [vmem:[#allocation3 + $0x214] sm:$0xf] %v2837
      %3087 = vst [vmem:[#allocation3 + $0x238] sm:$0xf] %v2847
      %3088 = vst [vmem:[#allocation3 + $0x25c] sm:$0xf] %v2861
      %3089 = vst [vmem:[#allocation3 + $0x280] sm:$0xf] %v2871
      %3090 = vst [vmem:[#allocation3 + $0x2a4] sm:$0xf] %v2885
      %3091 = vst [vmem:[#allocation3 + $0x2c8] sm:$0xf] %v2895
      %3092 = vst [vmem:[#allocation3 + $0x2ec] sm:$0xf] %v2909
      %3093 = vst [vmem:[#allocation3 + $0x310] sm:$0xf] %v2919
      %3094 = vst [vmem:[#allocation3 + $0x334] sm:$0xf] %v2933
      %3095 = vst [vmem:[#allocation3 + $0x358] sm:$0xf] %v2943
      %3096 = vst [vmem:[#allocation3 + $0x37c] sm:$0xf] %v2957
      %3097 = vst [vmem:[#allocation3 + $0x3a0] sm:$0xf] %v2967
      %3098 = vst [vmem:[#allocation3 + $0x3c4] sm:$0xf] %v2981
      %3099 = vst [vmem:[#allocation3 + $0x3e8] sm:$0xf] %v2991
      %3100 = vst [vmem:[#allocation3 + $0x40c] sm:$0xf] %v3005
      %3101 = vst [vmem:[#allocation3 + $0x430] sm:$0xf] %v3015
      %3102 = vst [vmem:[#allocation3 + $0x454] sm:$0xf] %v3029
      %3103 = vst [vmem:[#allocation3 + $0x478] sm:$0xf] %v3039
      %v3104 = vld [vmem:[%s2543] sm:$0xe]
      %v3105 = vld [vmem:[%s2543 + $0x4] sm:$0xf]
      %v3106 = vld [vmem:[%s2543 + $0x8] sm:$0x1]
      %v3107 = vld [vmem:[%s2543 + $0xc] sm:$0xe]
      %v3108 = vld [vmem:[%s2543 + $0x10] sm:$0xf]
      %v3109 = vld [vmem:[%s2543 + $0x14] sm:$0x1]
      %v3110 = vld [vmem:[%s2543 + $0x18] sm:$0xe]
      %v3111 = vld [vmem:[%s2543 + $0x1c] sm:$0xf]
      %v3112 = vld [vmem:[%s2543 + $0x20] sm:$0x1]
      %v3113 = vld [vmem:[%s2543 + $0x24] sm:$0xe]
      %v3114 = vld [vmem:[%s2543 + $0x28] sm:$0xf]
      %v3115 = vld [vmem:[%s2543 + $0x2c] sm:$0x1]
      %v3116 = vld [vmem:[%s2543 + $0x30] sm:$0xe]
      %v3117 = vld [vmem:[%s2543 + $0x34] sm:$0xf]
      %v3118 = vld [vmem:[%s2543 + $0x38] sm:$0x1]
      %v3119 = vld [vmem:[%s2543 + $0x3c] sm:$0xe]
      %v3120 = vld [vmem:[%s2543 + $0x40] sm:$0xf]
      %v3121 = vld [vmem:[%s2543 + $0x44] sm:$0x1]
      %v3122 = vld [vmem:[%s2543 + $0x48] sm:$0xe]
      %v3123 = vld [vmem:[%s2543 + $0x4c] sm:$0xf]
      %v3124 = vld [vmem:[%s2543 + $0x50] sm:$0x1]
      %v3125 = vld [vmem:[%s2543 + $0x54] sm:$0xe]
      %v3126 = vld [vmem:[%s2543 + $0x58] sm:$0xf]
      %v3127 = vld [vmem:[%s2543 + $0x5c] sm:$0x1]
      %v3128 = vld [vmem:[%s2543 + $0x60] sm:$0xe]
      %v3129 = vld [vmem:[%s2543 + $0x64] sm:$0xf]
      %v3130 = vld [vmem:[%s2543 + $0x68] sm:$0x1]
      %v3131 = vld [vmem:[%s2543 + $0x6c] sm:$0xe]
      %v3132 = vld [vmem:[%s2543 + $0x70] sm:$0xf]
      %v3133 = vld [vmem:[%s2543 + $0x74] sm:$0x1]
      %v3134 = vld [vmem:[%s2543 + $0x78] sm:$0xe]
      %v3135 = vld [vmem:[%s2543 + $0x7c] sm:$0xf]
      %v3136 = vld [vmem:[%s2543 + $0x80] sm:$0x1]
      %v3137 = vld [vmem:[%s2543 + $0x84] sm:$0xe]
      %v3138 = vld [vmem:[%s2543 + $0x88] sm:$0xf]
      %v3139 = vld [vmem:[%s2543 + $0x8c] sm:$0x1]
      %v3140 = vld [vmem:[%s2543 + $0x90] sm:$0xe]
      %v3141 = vld [vmem:[%s2543 + $0x94] sm:$0xf]
      %v3142 = vld [vmem:[%s2543 + $0x98] sm:$0x1]
      %v3143 = vld [vmem:[%s2543 + $0x9c] sm:$0xe]
      %v3144 = vld [vmem:[%s2543 + $0xa0] sm:$0xf]
      %v3145 = vld [vmem:[%s2543 + $0xa4] sm:$0x1]
      %v3146 = vld [vmem:[%s2543 + $0xa8] sm:$0xe]
      %v3147 = vld [vmem:[%s2543 + $0xac] sm:$0xf]
      %v3148 = vld [vmem:[%s2543 + $0xb0] sm:$0x1]
      %v3149 = vld [vmem:[%s2543 + $0xb4] sm:$0xe]
      %v3150 = vld [vmem:[%s2543 + $0xb8] sm:$0xf]
      %v3151 = vld [vmem:[%s2543 + $0xbc] sm:$0x1]
      %v3200 = vrot.slane %v3104, 5
      %v3201 = vrot.slane %v3200, 4
      %v3202 = vrot.slane %v3105, 5
      %v3203 = vsel %vm1534, %v3201, %v3202
      %v3204 = vrot.slane %v3202, 4
      %v3205 = vrot.slane %v3106, 5
      %v3206 = vsel %vm1534, %v3204, %v3205
      %v3207 = vrot.slane %v3107, 5
      %v3208 = vrot.slane %v3207, 4
      %v3209 = vrot.slane %v3108, 5
      %v3210 = vsel %vm1534, %v3208, %v3209
      %v3211 = vrot.slane %v3209, 4
      %v3212 = vrot.slane %v3109, 5
      %v3213 = vsel %vm1534, %v3211, %v3212
      %v3214 = vrot.slane %v3110, 5
      %v3215 = vrot.slane %v3214, 4
      %v3216 = vrot.slane %v3111, 5
      %v3217 = vsel %vm1534, %v3215, %v3216
      %v3218 = vrot.slane %v3216, 4
      %v3219 = vrot.slane %v3112, 5
      %v3220 = vsel %vm1534, %v3218, %v3219
      %v3221 = vrot.slane %v3113, 5
      %v3222 = vrot.slane %v3221, 4
      %v3223 = vrot.slane %v3114, 5
      %v3224 = vsel %vm1534, %v3222, %v3223
      %v3225 = vrot.slane %v3223, 4
      %v3226 = vrot.slane %v3115, 5
      %v3227 = vsel %vm1534, %v3225, %v3226
      %v3228 = vrot.slane %v3116, 5
      %v3229 = vrot.slane %v3228, 4
      %v3230 = vrot.slane %v3117, 5
      %v3231 = vsel %vm1534, %v3229, %v3230
      %v3232 = vrot.slane %v3230, 4
      %v3233 = vrot.slane %v3118, 5
      %v3234 = vsel %vm1534, %v3232, %v3233
      %v3235 = vrot.slane %v3119, 5
      %v3236 = vrot.slane %v3235, 4
      %v3237 = vrot.slane %v3120, 5
      %v3238 = vsel %vm1534, %v3236, %v3237
      %v3239 = vrot.slane %v3237, 4
      %v3240 = vrot.slane %v3121, 5
      %v3241 = vsel %vm1534, %v3239, %v3240
      %v3242 = vrot.slane %v3122, 5
      %v3243 = vrot.slane %v3242, 4
      %v3244 = vrot.slane %v3123, 5
      %v3245 = vsel %vm1534, %v3243, %v3244
      %v3246 = vrot.slane %v3244, 4
      %v3247 = vrot.slane %v3124, 5
      %v3248 = vsel %vm1534, %v3246, %v3247
      %v3249 = vrot.slane %v3125, 5
      %v3250 = vrot.slane %v3249, 4
      %v3251 = vrot.slane %v3126, 5
      %v3252 = vsel %vm1534, %v3250, %v3251
      %v3253 = vrot.slane %v3251, 4
      %v3254 = vrot.slane %v3127, 5
      %v3255 = vsel %vm1534, %v3253, %v3254
      %v3256 = vrot.slane %v3128, 5
      %v3257 = vrot.slane %v3256, 4
      %v3258 = vrot.slane %v3129, 5
      %v3259 = vsel %vm1534, %v3257, %v3258
      %v3260 = vrot.slane %v3258, 4
      %v3261 = vrot.slane %v3130, 5
      %v3262 = vsel %vm1534, %v3260, %v3261
      %v3263 = vrot.slane %v3131, 5
      %v3264 = vrot.slane %v3263, 4
      %v3265 = vrot.slane %v3132, 5
      %v3266 = vsel %vm1534, %v3264, %v3265
      %v3267 = vrot.slane %v3265, 4
      %v3268 = vrot.slane %v3133, 5
      %v3269 = vsel %vm1534, %v3267, %v3268
      %v3270 = vrot.slane %v3134, 5
      %v3271 = vrot.slane %v3270, 4
      %v3272 = vrot.slane %v3135, 5
      %v3273 = vsel %vm1534, %v3271, %v3272
      %v3274 = vrot.slane %v3272, 4
      %v3275 = vrot.slane %v3136, 5
      %v3276 = vsel %vm1534, %v3274, %v3275
      %v3277 = vrot.slane %v3137, 5
      %v3278 = vrot.slane %v3277, 4
      %v3279 = vrot.slane %v3138, 5
      %v3280 = vsel %vm1534, %v3278, %v3279
      %v3281 = vrot.slane %v3279, 4
      %v3282 = vrot.slane %v3139, 5
      %v3283 = vsel %vm1534, %v3281, %v3282
      %v3284 = vrot.slane %v3140, 5
      %v3285 = vrot.slane %v3284, 4
      %v3286 = vrot.slane %v3141, 5
      %v3287 = vsel %vm1534, %v3285, %v3286
      %v3288 = vrot.slane %v3286, 4
      %v3289 = vrot.slane %v3142, 5
      %v3290 = vsel %vm1534, %v3288, %v3289
      %v3291 = vrot.slane %v3143, 5
      %v3292 = vrot.slane %v3291, 4
      %v3293 = vrot.slane %v3144, 5
      %v3294 = vsel %vm1534, %v3292, %v3293
      %v3295 = vrot.slane %v3293, 4
      %v3296 = vrot.slane %v3145, 5
      %v3297 = vsel %vm1534, %v3295, %v3296
      %v3298 = vrot.slane %v3146, 5
      %v3299 = vrot.slane %v3298, 4
      %v3300 = vrot.slane %v3147, 5
      %v3301 = vsel %vm1534, %v3299, %v3300
      %v3302 = vrot.slane %v3300, 4
      %v3303 = vrot.slane %v3148, 5
      %v3304 = vsel %vm1534, %v3302, %v3303
      %v3305 = vrot.slane %v3149, 5
      %v3306 = vrot.slane %v3305, 4
      %v3307 = vrot.slane %v3150, 5
      %v3308 = vsel %vm1534, %v3306, %v3307
      %v3309 = vrot.slane %v3307, 4
      %v3310 = vrot.slane %v3151, 5
      %v3311 = vsel %vm1534, %v3309, %v3310
      %3344 = vst [vmem:[#allocation3 + $0x20] sm:$0xf] %v3203
      %3345 = vst [vmem:[#allocation3 + $0x44] sm:$0xf] %v3206
      %3346 = vst [vmem:[#allocation3 + $0x68] sm:$0xf] %v3210
      %3347 = vst [vmem:[#allocation3 + $0x8c] sm:$0xf] %v3213
      %3348 = vst [vmem:[#allocation3 + $0xb0] sm:$0xf] %v3217
      %3349 = vst [vmem:[#allocation3 + $0xd4] sm:$0xf] %v3220
      %3350 = vst [vmem:[#allocation3 + $0xf8] sm:$0xf] %v3224
      %3351 = vst [vmem:[#allocation3 + $0x11c] sm:$0xf] %v3227
      %3352 = vst [vmem:[#allocation3 + $0x140] sm:$0xf] %v3231
      %3353 = vst [vmem:[#allocation3 + $0x164] sm:$0xf] %v3234
      %3354 = vst [vmem:[#allocation3 + $0x188] sm:$0xf] %v3238
      %3355 = vst [vmem:[#allocation3 + $0x1ac] sm:$0xf] %v3241
      %3356 = vst [vmem:[#allocation3 + $0x1d0] sm:$0xf] %v3245
      %3357 = vst [vmem:[#allocation3 + $0x1f4] sm:$0xf] %v3248
      %3358 = vst [vmem:[#allocation3 + $0x218] sm:$0xf] %v3252
      %3359 = vst [vmem:[#allocation3 + $0x23c] sm:$0xf] %v3255
      %3360 = vst [vmem:[#allocation3 + $0x260] sm:$0xf] %v3259
      %3361 = vst [vmem:[#allocation3 + $0x284] sm:$0xf] %v3262
      %3362 = vst [vmem:[#allocation3 + $0x2a8] sm:$0xf] %v3266
      %3363 = vst [vmem:[#allocation3 + $0x2cc] sm:$0xf] %v3269
      %3364 = vst [vmem:[#allocation3 + $0x2f0] sm:$0xf] %v3273
      %3365 = vst [vmem:[#allocation3 + $0x314] sm:$0xf] %v3276
      %3366 = vst [vmem:[#allocation3 + $0x338] sm:$0xf] %v3280
      %3367 = vst [vmem:[#allocation3 + $0x35c] sm:$0xf] %v3283
      %3368 = vst [vmem:[#allocation3 + $0x380] sm:$0xf] %v3287
      %3369 = vst [vmem:[#allocation3 + $0x3a4] sm:$0xf] %v3290
      %3370 = vst [vmem:[#allocation3 + $0x3c8] sm:$0xf] %v3294
      %3371 = vst [vmem:[#allocation3 + $0x3ec] sm:$0xf] %v3297
      %3372 = vst [vmem:[#allocation3 + $0x410] sm:$0xf] %v3301
      %3373 = vst [vmem:[#allocation3 + $0x434] sm:$0xf] %v3304
      %3374 = vst [vmem:[#allocation3 + $0x458] sm:$0xf] %v3308
      %3375 = vst [vmem:[#allocation3 + $0x47c] sm:$0xf] %v3311
      %v3376 = vld [vmem:[#allocation3] sm:$0xff]
      %v3377 = vld [vmem:[#allocation3 + $0x8] sm:$0xff]
      %v3378 = vld [vmem:[#allocation3 + $0x10] sm:$0xff]
      %v3379 = vld [vmem:[#allocation3 + $0x18] sm:$0xff]
      %v3380 = vld [vmem:[#allocation3 + $0x20] sm:$0xf]
      %v3381 = vld [vmem:[#allocation3 + $0x24] sm:$0xff]
      %v3382 = vld [vmem:[#allocation3 + $0x2c] sm:$0xff]
      %v3383 = vld [vmem:[#allocation3 + $0x34] sm:$0xff]
      %v3384 = vld [vmem:[#allocation3 + $0x3c] sm:$0xff]
      %v3385 = vld [vmem:[#allocation3 + $0x44] sm:$0xf]
      %v3386 = vld [vmem:[#allocation3 + $0x48] sm:$0xff]
      %v3387 = vld [vmem:[#allocation3 + $0x50] sm:$0xff]
      %v3388 = vld [vmem:[#allocation3 + $0x58] sm:$0xff]
      %v3389 = vld [vmem:[#allocation3 + $0x60] sm:$0xff]
      %v3390 = vld [vmem:[#allocation3 + $0x68] sm:$0xf]
      %v3391 = vld [vmem:[#allocation3 + $0x6c] sm:$0xff]
      %v3392 = vld [vmem:[#allocation3 + $0x74] sm:$0xff]
      %v3393 = vld [vmem:[#allocation3 + $0x7c] sm:$0xff]
      %v3394 = vld [vmem:[#allocation3 + $0x84] sm:$0xff]
      %v3395 = vld [vmem:[#allocation3 + $0x8c] sm:$0xf]
      %v3396 = vld [vmem:[#allocation3 + $0x90] sm:$0xff]
      %v3397 = vld [vmem:[#allocation3 + $0x98] sm:$0xff]
      %v3398 = vld [vmem:[#allocation3 + $0xa0] sm:$0xff]
      %v3399 = vld [vmem:[#allocation3 + $0xa8] sm:$0xff]
      %v3400 = vld [vmem:[#allocation3 + $0xb0] sm:$0xf]
      %v3401 = vld [vmem:[#allocation3 + $0xb4] sm:$0xff]
      %v3402 = vld [vmem:[#allocation3 + $0xbc] sm:$0xff]
      %v3403 = vld [vmem:[#allocation3 + $0xc4] sm:$0xff]
      %v3404 = vld [vmem:[#allocation3 + $0xcc] sm:$0xff]
      %v3405 = vld [vmem:[#allocation3 + $0xd4] sm:$0xf]
      %v3406 = vld [vmem:[#allocation3 + $0xd8] sm:$0xff]
      %v3407 = vld [vmem:[#allocation3 + $0xe0] sm:$0xff]
      %v3408 = vld [vmem:[#allocation3 + $0xe8] sm:$0xff]
      %v3409 = vld [vmem:[#allocation3 + $0xf0] sm:$0xff]
      %v3410 = vld [vmem:[#allocation3 + $0xf8] sm:$0xf]
      %v3411 = vld [vmem:[#allocation3 + $0xfc] sm:$0xff]
      %v3412 = vld [vmem:[#allocation3 + $0x104] sm:$0xff]
      %v3413 = vld [vmem:[#allocation3 + $0x10c] sm:$0xff]
      %v3414 = vld [vmem:[#allocation3 + $0x114] sm:$0xff]
      %v3415 = vld [vmem:[#allocation3 + $0x11c] sm:$0xf]
      %v3416 = vld [vmem:[#allocation3 + $0x120] sm:$0xff]
      %v3417 = vld [vmem:[#allocation3 + $0x128] sm:$0xff]
      %v3418 = vld [vmem:[#allocation3 + $0x130] sm:$0xff]
      %v3419 = vld [vmem:[#allocation3 + $0x138] sm:$0xff]
      %v3420 = vld [vmem:[#allocation3 + $0x140] sm:$0xf]
      %v3421 = vld [vmem:[#allocation3 + $0x144] sm:$0xff]
      %v3422 = vld [vmem:[#allocation3 + $0x14c] sm:$0xff]
      %v3423 = vld [vmem:[#allocation3 + $0x154] sm:$0xff]
      %v3424 = vld [vmem:[#allocation3 + $0x15c] sm:$0xff]
      %v3425 = vld [vmem:[#allocation3 + $0x164] sm:$0xf]
      %v3426 = vld [vmem:[#allocation3 + $0x168] sm:$0xff]
      %v3427 = vld [vmem:[#allocation3 + $0x170] sm:$0xff]
      %v3428 = vld [vmem:[#allocation3 + $0x178] sm:$0xff]
      %v3429 = vld [vmem:[#allocation3 + $0x180] sm:$0xff]
      %v3430 = vld [vmem:[#allocation3 + $0x188] sm:$0xf]
      %v3431 = vld [vmem:[#allocation3 + $0x18c] sm:$0xff]
      %v3432 = vld [vmem:[#allocation3 + $0x194] sm:$0xff]
      %v3433 = vld [vmem:[#allocation3 + $0x19c] sm:$0xff]
      %v3434 = vld [vmem:[#allocation3 + $0x1a4] sm:$0xff]
      %v3435 = vld [vmem:[#allocation3 + $0x1ac] sm:$0xf]
      %v3436 = vld [vmem:[#allocation3 + $0x1b0] sm:$0xff]
      %v3437 = vld [vmem:[#allocation3 + $0x1b8] sm:$0xff]
      %v3438 = vld [vmem:[#allocation3 + $0x1c0] sm:$0xff]
      %v3439 = vld [vmem:[#allocation3 + $0x1c8] sm:$0xff]
      %v3440 = vld [vmem:[#allocation3 + $0x1d0] sm:$0xf]
      %v3441 = vld [vmem:[#allocation3 + $0x1d4] sm:$0xff]
      %v3442 = vld [vmem:[#allocation3 + $0x1dc] sm:$0xff]
      %v3443 = vld [vmem:[#allocation3 + $0x1e4] sm:$0xff]
      %v3444 = vld [vmem:[#allocation3 + $0x1ec] sm:$0xff]
      %v3445 = vld [vmem:[#allocation3 + $0x1f4] sm:$0xf]
      %v3446 = vld [vmem:[#allocation3 + $0x1f8] sm:$0xff]
      %v3447 = vld [vmem:[#allocation3 + $0x200] sm:$0xff]
      %v3448 = vld [vmem:[#allocation3 + $0x208] sm:$0xff]
      %v3449 = vld [vmem:[#allocation3 + $0x210] sm:$0xff]
      %v3450 = vld [vmem:[#allocation3 + $0x218] sm:$0xf]
      %v3451 = vld [vmem:[#allocation3 + $0x21c] sm:$0xff]
      %v3452 = vld [vmem:[#allocation3 + $0x224] sm:$0xff]
      %v3453 = vld [vmem:[#allocation3 + $0x22c] sm:$0xff]
      %v3454 = vld [vmem:[#allocation3 + $0x234] sm:$0xff]
      %v3455 = vld [vmem:[#allocation3 + $0x23c] sm:$0xf]
      %v3456 = vld [vmem:[#allocation3 + $0x240] sm:$0xff]
      %v3457 = vld [vmem:[#allocation3 + $0x248] sm:$0xff]
      %v3458 = vld [vmem:[#allocation3 + $0x250] sm:$0xff]
      %v3459 = vld [vmem:[#allocation3 + $0x258] sm:$0xff]
      %v3460 = vld [vmem:[#allocation3 + $0x260] sm:$0xf]
      %v3461 = vld [vmem:[#allocation3 + $0x264] sm:$0xff]
      %v3462 = vld [vmem:[#allocation3 + $0x26c] sm:$0xff]
      %v3463 = vld [vmem:[#allocation3 + $0x274] sm:$0xff]
      %v3464 = vld [vmem:[#allocation3 + $0x27c] sm:$0xff]
      %v3465 = vld [vmem:[#allocation3 + $0x284] sm:$0xf]
      %v3466 = vld [vmem:[#allocation3 + $0x288] sm:$0xff]
      %v3467 = vld [vmem:[#allocation3 + $0x290] sm:$0xff]
      %v3468 = vld [vmem:[#allocation3 + $0x298] sm:$0xff]
      %v3469 = vld [vmem:[#allocation3 + $0x2a0] sm:$0xff]
      %v3470 = vld [vmem:[#allocation3 + $0x2a8] sm:$0xf]
      %v3471 = vld [vmem:[#allocation3 + $0x2ac] sm:$0xff]
      %v3472 = vld [vmem:[#allocation3 + $0x2b4] sm:$0xff]
      %v3473 = vld [vmem:[#allocation3 + $0x2bc] sm:$0xff]
      %v3474 = vld [vmem:[#allocation3 + $0x2c4] sm:$0xff]
      %v3475 = vld [vmem:[#allocation3 + $0x2cc] sm:$0xf]
      %v3476 = vld [vmem:[#allocation3 + $0x2d0] sm:$0xff]
      %v3477 = vld [vmem:[#allocation3 + $0x2d8] sm:$0xff]
      %v3478 = vld [vmem:[#allocation3 + $0x2e0] sm:$0xff]
      %v3479 = vld [vmem:[#allocation3 + $0x2e8] sm:$0xff]
      %v3480 = vld [vmem:[#allocation3 + $0x2f0] sm:$0xf]
      %v3481 = vld [vmem:[#allocation3 + $0x2f4] sm:$0xff]
      %v3482 = vld [vmem:[#allocation3 + $0x2fc] sm:$0xff]
      %v3483 = vld [vmem:[#allocation3 + $0x304] sm:$0xff]
      %v3484 = vld [vmem:[#allocation3 + $0x30c] sm:$0xff]
      %v3485 = vld [vmem:[#allocation3 + $0x314] sm:$0xf]
      %v3486 = vld [vmem:[#allocation3 + $0x318] sm:$0xff]
      %v3487 = vld [vmem:[#allocation3 + $0x320] sm:$0xff]
      %v3488 = vld [vmem:[#allocation3 + $0x328] sm:$0xff]
      %v3489 = vld [vmem:[#allocation3 + $0x330] sm:$0xff]
      %v3490 = vld [vmem:[#allocation3 + $0x338] sm:$0xf]
      %v3491 = vld [vmem:[#allocation3 + $0x33c] sm:$0xff]
      %v3492 = vld [vmem:[#allocation3 + $0x344] sm:$0xff]
      %v3493 = vld [vmem:[#allocation3 + $0x34c] sm:$0xff]
      %v3494 = vld [vmem:[#allocation3 + $0x354] sm:$0xff]
      %v3495 = vld [vmem:[#allocation3 + $0x35c] sm:$0xf]
      %v3496 = vld [vmem:[#allocation3 + $0x360] sm:$0xff]
      %v3497 = vld [vmem:[#allocation3 + $0x368] sm:$0xff]
      %v3498 = vld [vmem:[#allocation3 + $0x370] sm:$0xff]
      %v3499 = vld [vmem:[#allocation3 + $0x378] sm:$0xff]
      %v3500 = vld [vmem:[#allocation3 + $0x380] sm:$0xf]
      %v3501 = vld [vmem:[#allocation3 + $0x384] sm:$0xff]
      %v3502 = vld [vmem:[#allocation3 + $0x38c] sm:$0xff]
      %v3503 = vld [vmem:[#allocation3 + $0x394] sm:$0xff]
      %v3504 = vld [vmem:[#allocation3 + $0x39c] sm:$0xff]
      %v3505 = vld [vmem:[#allocation3 + $0x3a4] sm:$0xf]
      %v3506 = vld [vmem:[#allocation3 + $0x3a8] sm:$0xff]
      %v3507 = vld [vmem:[#allocation3 + $0x3b0] sm:$0xff]
      %v3508 = vld [vmem:[#allocation3 + $0x3b8] sm:$0xff]
      %v3509 = vld [vmem:[#allocation3 + $0x3c0] sm:$0xff]
      %v3510 = vld [vmem:[#allocation3 + $0x3c8] sm:$0xf]
      %v3511 = vld [vmem:[#allocation3 + $0x3cc] sm:$0xff]
      %v3512 = vld [vmem:[#allocation3 + $0x3d4] sm:$0xff]
      %v3513 = vld [vmem:[#allocation3 + $0x3dc] sm:$0xff]
      %v3514 = vld [vmem:[#allocation3 + $0x3e4] sm:$0xff]
      %v3515 = vld [vmem:[#allocation3 + $0x3ec] sm:$0xf]
      %v3516 = vld [vmem:[#allocation3 + $0x3f0] sm:$0xff]
      %v3517 = vld [vmem:[#allocation3 + $0x3f8] sm:$0xff]
      %v3518 = vld [vmem:[#allocation3 + $0x400] sm:$0xff]
      %v3519 = vld [vmem:[#allocation3 + $0x408] sm:$0xff]
      %v3520 = vld [vmem:[#allocation3 + $0x410] sm:$0xf]
      %v3521 = vld [vmem:[#allocation3 + $0x414] sm:$0xff]
      %v3522 = vld [vmem:[#allocation3 + $0x41c] sm:$0xff]
      %v3523 = vld [vmem:[#allocation3 + $0x424] sm:$0xff]
      %v3524 = vld [vmem:[#allocation3 + $0x42c] sm:$0xff]
      %v3525 = vld [vmem:[#allocation3 + $0x434] sm:$0xf]
      %v3526 = vld [vmem:[#allocation3 + $0x438] sm:$0xff]
      %v3527 = vld [vmem:[#allocation3 + $0x440] sm:$0xff]
      %v3528 = vld [vmem:[#allocation3 + $0x448] sm:$0xff]
      %v3529 = vld [vmem:[#allocation3 + $0x450] sm:$0xff]
      %v3530 = vld [vmem:[#allocation3 + $0x458] sm:$0xf]
      %v3531 = vld [vmem:[#allocation3 + $0x45c] sm:$0xff]
      %v3532 = vld [vmem:[#allocation3 + $0x464] sm:$0xff]
      %v3533 = vld [vmem:[#allocation3 + $0x46c] sm:$0xff]
      %v3534 = vld [vmem:[#allocation3 + $0x474] sm:$0xff]
      %v3535 = vld [vmem:[#allocation3 + $0x47c] sm:$0xf]
      %v3536 = vld [vmem:[%s1] sm:$0xf]
      %v3537 = vld [vmem:[%s1 + $0x4] sm:$0xf]
      %v3538 = vld [vmem:[%s1 + $0x8] sm:$0xf]
      %v3539 = vld [vmem:[%s1 + $0xc] sm:$0xf]
      %v3540 = vld [vmem:[%s1 + $0x10] sm:$0xf]
      %v3541 = vld [vmem:[%s1 + $0x14] sm:$0xf]
      %v3542 = vld [vmem:[%s1 + $0x18] sm:$0xf]
      %v3543 = vld [vmem:[%s1 + $0x1c] sm:$0xf]
      %v3544 = vld [vmem:[%s1 + $0x20] sm:$0xf]
      %v3545 = vld [vmem:[%s1 + $0x24] sm:$0xf]
      %v3546 = vld [vmem:[%s1 + $0x28] sm:$0xf]
      %v3547 = vld [vmem:[%s1 + $0x2c] sm:$0xf]
      %v3548 = vld [vmem:[%s1 + $0x30] sm:$0xf]
      %v3549 = vld [vmem:[%s1 + $0x34] sm:$0xf]
      %v3550 = vld [vmem:[%s1 + $0x38] sm:$0xf]
      %v3551 = vld [vmem:[%s1 + $0x3c] sm:$0xf]
      %v3552 = vld [vmem:[%s1 + $0x40] sm:$0xf]
      %v3553 = vld [vmem:[%s1 + $0x44] sm:$0xf]
      %v3554 = vld [vmem:[%s1 + $0x48] sm:$0xf]
      %v3555 = vld [vmem:[%s1 + $0x4c] sm:$0xf]
      %v3556 = vld [vmem:[%s1 + $0x50] sm:$0xf]
      %v3557 = vld [vmem:[%s1 + $0x54] sm:$0xf]
      %v3558 = vld [vmem:[%s1 + $0x58] sm:$0xf]
      %v3559 = vld [vmem:[%s1 + $0x5c] sm:$0xf]
      %v3560 = vld [vmem:[%s1 + $0x60] sm:$0xf]
      %v3561 = vld [vmem:[%s1 + $0x64] sm:$0xf]
      %v3562 = vld [vmem:[%s1 + $0x68] sm:$0xf]
      %v3563 = vld [vmem:[%s1 + $0x6c] sm:$0xf]
      %v3564 = vld [vmem:[%s1 + $0x70] sm:$0xf]
      %v3565 = vld [vmem:[%s1 + $0x74] sm:$0xf]
      %v3566 = vld [vmem:[%s1 + $0x78] sm:$0xf]
      %v3567 = vld [vmem:[%s1 + $0x7c] sm:$0xf]
      %v3568 = vld [vmem:[%s1 + $0x80] sm:$0xf]
      %v3569 = vld [vmem:[%s1 + $0x84] sm:$0xf]
      %v3570 = vld [vmem:[%s1 + $0x88] sm:$0xf]
      %v3571 = vld [vmem:[%s1 + $0x8c] sm:$0xf]
      %v3572 = vld [vmem:[%s1 + $0x90] sm:$0xf]
      %v3573 = vld [vmem:[%s1 + $0x94] sm:$0xf]
      %v3574 = vld [vmem:[%s1 + $0x98] sm:$0xf]
      %v3575 = vld [vmem:[%s1 + $0x9c] sm:$0xf]
      %v3576 = vld [vmem:[%s1 + $0xa0] sm:$0xf]
      %v3577 = vld [vmem:[%s1 + $0xa4] sm:$0xf]
      %v3578 = vld [vmem:[%s1 + $0xa8] sm:$0xf]
      %v3579 = vld [vmem:[%s1 + $0xac] sm:$0xf]
      %v3580 = vld [vmem:[%s1 + $0xb0] sm:$0xf]
      %v3581 = vld [vmem:[%s1 + $0xb4] sm:$0xf]
      %v3582 = vld [vmem:[%s1 + $0xb8] sm:$0xf]
      %v3583 = vld [vmem:[%s1 + $0xbc] sm:$0xf]
      %v3584 = vld [vmem:[%s1 + $0xc0] sm:$0xf]
      %v3585 = vld [vmem:[%s1 + $0xc4] sm:$0xf]
      %v3586 = vld [vmem:[%s1 + $0xc8] sm:$0xf]
      %v3587 = vld [vmem:[%s1 + $0xcc] sm:$0xf]
      %v3588 = vld [vmem:[%s1 + $0xd0] sm:$0xf]
      %v3589 = vld [vmem:[%s1 + $0xd4] sm:$0xf]
      %v3590 = vld [vmem:[%s1 + $0xd8] sm:$0xf]
      %v3591 = vld [vmem:[%s1 + $0xdc] sm:$0xf]
      %v3592 = vld [vmem:[%s1 + $0xe0] sm:$0xf]
      %v3593 = vld [vmem:[%s1 + $0xe4] sm:$0xf]
      %v3594 = vld [vmem:[%s1 + $0xe8] sm:$0xf]
      %v3595 = vld [vmem:[%s1 + $0xec] sm:$0xf]
      %v3596 = vld [vmem:[%s1 + $0xf0] sm:$0xf]
      %v3597 = vld [vmem:[%s1 + $0xf4] sm:$0xf]
      %v3598 = vld [vmem:[%s1 + $0xf8] sm:$0xf]
      %v3599 = vld [vmem:[%s1 + $0xfc] sm:$0xf]
      %v3600 = vld [vmem:[%s1 + $0x100] sm:$0xf]
      %v3601 = vld [vmem:[%s1 + $0x104] sm:$0xf]
      %v3602 = vld [vmem:[%s1 + $0x108] sm:$0xf]
      %v3603 = vld [vmem:[%s1 + $0x10c] sm:$0xf]
      %v3604 = vld [vmem:[%s1 + $0x110] sm:$0xf]
      %v3605 = vld [vmem:[%s1 + $0x114] sm:$0xf]
      %v3606 = vld [vmem:[%s1 + $0x118] sm:$0xf]
      %v3607 = vld [vmem:[%s1 + $0x11c] sm:$0xf]
      %v3608 = vld [vmem:[%s1 + $0x120] sm:$0xf]
      %v3609 = vld [vmem:[%s1 + $0x124] sm:$0xf]
      %v3610 = vld [vmem:[%s1 + $0x128] sm:$0xf]
      %v3611 = vld [vmem:[%s1 + $0x12c] sm:$0xf]
      %v3612 = vld [vmem:[%s1 + $0x130] sm:$0xf]
      %v3613 = vld [vmem:[%s1 + $0x134] sm:$0xf]
      %v3614 = vld [vmem:[%s1 + $0x138] sm:$0xf]
      %v3615 = vld [vmem:[%s1 + $0x13c] sm:$0xf]
      %v3616 = vld [vmem:[%s1 + $0x140] sm:$0xf]
      %v3617 = vld [vmem:[%s1 + $0x144] sm:$0xf]
      %v3618 = vld [vmem:[%s1 + $0x148] sm:$0xf]
      %v3619 = vld [vmem:[%s1 + $0x14c] sm:$0xf]
      %v3620 = vld [vmem:[%s1 + $0x150] sm:$0xf]
      %v3621 = vld [vmem:[%s1 + $0x154] sm:$0xf]
      %v3622 = vld [vmem:[%s1 + $0x158] sm:$0xf]
      %v3623 = vld [vmem:[%s1 + $0x15c] sm:$0xf]
      %v3624 = vld [vmem:[%s1 + $0x160] sm:$0xf]
      %v3625 = vld [vmem:[%s1 + $0x164] sm:$0xf]
      %v3626 = vld [vmem:[%s1 + $0x168] sm:$0xf]
      %v3627 = vld [vmem:[%s1 + $0x16c] sm:$0xf]
      %v3628 = vld [vmem:[%s1 + $0x170] sm:$0xf]
      %v3629 = vld [vmem:[%s1 + $0x174] sm:$0xf]
      %v3630 = vld [vmem:[%s1 + $0x178] sm:$0xf]
      %v3631 = vld [vmem:[%s1 + $0x17c] sm:$0xf]
      %v3632 = vld [vmem:[%s1 + $0x180] sm:$0xf]
      %v3633 = vld [vmem:[%s1 + $0x184] sm:$0xf]
      %v3634 = vld [vmem:[%s1 + $0x188] sm:$0xf]
      %v3635 = vld [vmem:[%s1 + $0x18c] sm:$0xf]
      %v3636 = vld [vmem:[%s1 + $0x190] sm:$0xf]
      %v3637 = vld [vmem:[%s1 + $0x194] sm:$0xf]
      %v3638 = vld [vmem:[%s1 + $0x198] sm:$0xf]
      %v3639 = vld [vmem:[%s1 + $0x19c] sm:$0xf]
      %v3640 = vld [vmem:[%s1 + $0x1a0] sm:$0xf]
      %v3641 = vld [vmem:[%s1 + $0x1a4] sm:$0xf]
      %v3642 = vld [vmem:[%s1 + $0x1a8] sm:$0xf]
      %v3643 = vld [vmem:[%s1 + $0x1ac] sm:$0xf]
      %v3644 = vld [vmem:[%s1 + $0x1b0] sm:$0xf]
      %v3645 = vld [vmem:[%s1 + $0x1b4] sm:$0xf]
      %v3646 = vld [vmem:[%s1 + $0x1b8] sm:$0xf]
      %v3647 = vld [vmem:[%s1 + $0x1bc] sm:$0xf]
      %v3648 = vld [vmem:[%s1 + $0x1c0] sm:$0xf]
      %v3649 = vld [vmem:[%s1 + $0x1c4] sm:$0xf]
      %v3650 = vld [vmem:[%s1 + $0x1c8] sm:$0xf]
      %v3651 = vld [vmem:[%s1 + $0x1cc] sm:$0xf]
      %v3652 = vld [vmem:[%s1 + $0x1d0] sm:$0xf]
      %v3653 = vld [vmem:[%s1 + $0x1d4] sm:$0xf]
      %v3654 = vld [vmem:[%s1 + $0x1d8] sm:$0xf]
      %v3655 = vld [vmem:[%s1 + $0x1dc] sm:$0xf]
      %v3656 = vld [vmem:[%s1 + $0x1e0] sm:$0xf]
      %v3657 = vld [vmem:[%s1 + $0x1e4] sm:$0xf]
      %v3658 = vld [vmem:[%s1 + $0x1e8] sm:$0xf]
      %v3659 = vld [vmem:[%s1 + $0x1ec] sm:$0xf]
      %v3660 = vld [vmem:[%s1 + $0x1f0] sm:$0xf]
      %v3661 = vld [vmem:[%s1 + $0x1f4] sm:$0xf]
      %v3662 = vld [vmem:[%s1 + $0x1f8] sm:$0xf]
      %v3663 = vld [vmem:[%s1 + $0x1fc] sm:$0xf]
      %v3664 = vld [vmem:[%s1 + $0x200] sm:$0xf]
      %v3665 = vld [vmem:[%s1 + $0x204] sm:$0xf]
      %v3666 = vld [vmem:[%s1 + $0x208] sm:$0xf]
      %v3667 = vld [vmem:[%s1 + $0x20c] sm:$0xf]
      %v3668 = vld [vmem:[%s1 + $0x210] sm:$0xf]
      %v3669 = vld [vmem:[%s1 + $0x214] sm:$0xf]
      %v3670 = vld [vmem:[%s1 + $0x218] sm:$0xf]
      %v3671 = vld [vmem:[%s1 + $0x21c] sm:$0xf]
      %v3672 = vld [vmem:[%s1 + $0x220] sm:$0xf]
      %v3673 = vld [vmem:[%s1 + $0x224] sm:$0xf]
      %v3674 = vld [vmem:[%s1 + $0x228] sm:$0xf]
      %v3675 = vld [vmem:[%s1 + $0x22c] sm:$0xf]
      %v3676 = vld [vmem:[%s1 + $0x230] sm:$0xf]
      %v3677 = vld [vmem:[%s1 + $0x234] sm:$0xf]
      %v3678 = vld [vmem:[%s1 + $0x238] sm:$0xf]
      %v3679 = vld [vmem:[%s1 + $0x23c] sm:$0xf]
      %v3680 = vld [vmem:[%s2] sm:$0x1]
      %v3682 = vlaneseq
      %v3683 = vshrl.u32 %v3682, 7
      %v3684 = vsub.s32 0, %v3683
      %v3685 = vrot.slane %v3680, %v3684
      %v3847 = vunpack.c.l.b16 %v3376
      %v3848 = vunpack.c.h.b16 %v3376
      %v3849 = vunpack.c.l.b16 %v3377
      %v3850 = vunpack.c.h.b16 %v3377
      %v3851 = vunpack.c.l.b16 %v3378
      %v3852 = vunpack.c.h.b16 %v3378
      %v3853 = vunpack.c.l.b16 %v3379
      %v3854 = vunpack.c.h.b16 %v3379
      %v3855 = vunpack.c.l.b16 %v3380
      %v3856 = vunpack.c.l.b16 %v3381
      %v3857 = vunpack.c.h.b16 %v3381
      %v3858 = vunpack.c.l.b16 %v3382
      %v3859 = vunpack.c.h.b16 %v3382
      %v3860 = vunpack.c.l.b16 %v3383
      %v3861 = vunpack.c.h.b16 %v3383
      %v3862 = vunpack.c.l.b16 %v3384
      %v3863 = vunpack.c.h.b16 %v3384
      %v3864 = vunpack.c.l.b16 %v3385
      %v3865 = vunpack.c.l.b16 %v3386
      %v3866 = vunpack.c.h.b16 %v3386
      %v3867 = vunpack.c.l.b16 %v3387
      %v3868 = vunpack.c.h.b16 %v3387
      %v3869 = vunpack.c.l.b16 %v3388
      %v3870 = vunpack.c.h.b16 %v3388
      %v3871 = vunpack.c.l.b16 %v3389
      %v3872 = vunpack.c.h.b16 %v3389
      %v3873 = vunpack.c.l.b16 %v3390
      %v3874 = vunpack.c.l.b16 %v3391
      %v3875 = vunpack.c.h.b16 %v3391
      %v3876 = vunpack.c.l.b16 %v3392
      %v3877 = vunpack.c.h.b16 %v3392
      %v3878 = vunpack.c.l.b16 %v3393
      %v3879 = vunpack.c.h.b16 %v3393
      %v3880 = vunpack.c.l.b16 %v3394
      %v3881 = vunpack.c.h.b16 %v3394
      %v3882 = vunpack.c.l.b16 %v3395
      %v3883 = vunpack.c.l.b16 %v3396
      %v3884 = vunpack.c.h.b16 %v3396
      %v3885 = vunpack.c.l.b16 %v3397
      %v3886 = vunpack.c.h.b16 %v3397
      %v3887 = vunpack.c.l.b16 %v3398
      %v3888 = vunpack.c.h.b16 %v3398
      %v3889 = vunpack.c.l.b16 %v3399
      %v3890 = vunpack.c.h.b16 %v3399
      %v3891 = vunpack.c.l.b16 %v3400
      %v3892 = vunpack.c.l.b16 %v3401
      %v3893 = vunpack.c.h.b16 %v3401
      %v3894 = vunpack.c.l.b16 %v3402
      %v3895 = vunpack.c.h.b16 %v3402
      %v3896 = vunpack.c.l.b16 %v3403
      %v3897 = vunpack.c.h.b16 %v3403
      %v3898 = vunpack.c.l.b16 %v3404
      %v3899 = vunpack.c.h.b16 %v3404
      %v3900 = vunpack.c.l.b16 %v3405
      %v3901 = vunpack.c.l.b16 %v3406
      %v3902 = vunpack.c.h.b16 %v3406
      %v3903 = vunpack.c.l.b16 %v3407
      %v3904 = vunpack.c.h.b16 %v3407
      %v3905 = vunpack.c.l.b16 %v3408
      %v3906 = vunpack.c.h.b16 %v3408
      %v3907 = vunpack.c.l.b16 %v3409
      %v3908 = vunpack.c.h.b16 %v3409
      %v3909 = vunpack.c.l.b16 %v3410
      %v3910 = vunpack.c.l.b16 %v3411
      %v3911 = vunpack.c.h.b16 %v3411
      %v3912 = vunpack.c.l.b16 %v3412
      %v3913 = vunpack.c.h.b16 %v3412
      %v3914 = vunpack.c.l.b16 %v3413
      %v3915 = vunpack.c.h.b16 %v3413
      %v3916 = vunpack.c.l.b16 %v3414
      %v3917 = vunpack.c.h.b16 %v3414
      %v3918 = vunpack.c.l.b16 %v3415
      %v3919 = vunpack.c.l.b16 %v3416
      %v3920 = vunpack.c.h.b16 %v3416
      %v3921 = vunpack.c.l.b16 %v3417
      %v3922 = vunpack.c.h.b16 %v3417
      %v3923 = vunpack.c.l.b16 %v3418
      %v3924 = vunpack.c.h.b16 %v3418
      %v3925 = vunpack.c.l.b16 %v3419
      %v3926 = vunpack.c.h.b16 %v3419
      %v3927 = vunpack.c.l.b16 %v3420
      %v3928 = vunpack.c.l.b16 %v3421
      %v3929 = vunpack.c.h.b16 %v3421
      %v3930 = vunpack.c.l.b16 %v3422
      %v3931 = vunpack.c.h.b16 %v3422
      %v3932 = vunpack.c.l.b16 %v3423
      %v3933 = vunpack.c.h.b16 %v3423
      %v3934 = vunpack.c.l.b16 %v3424
      %v3935 = vunpack.c.h.b16 %v3424
      %v3936 = vunpack.c.l.b16 %v3425
      %v3937 = vunpack.c.l.b16 %v3426
      %v3938 = vunpack.c.h.b16 %v3426
      %v3939 = vunpack.c.l.b16 %v3427
      %v3940 = vunpack.c.h.b16 %v3427
      %v3941 = vunpack.c.l.b16 %v3428
      %v3942 = vunpack.c.h.b16 %v3428
      %v3943 = vunpack.c.l.b16 %v3429
      %v3944 = vunpack.c.h.b16 %v3429
      %v3945 = vunpack.c.l.b16 %v3430
      %v3946 = vunpack.c.l.b16 %v3431
      %v3947 = vunpack.c.h.b16 %v3431
      %v3948 = vunpack.c.l.b16 %v3432
      %v3949 = vunpack.c.h.b16 %v3432
      %v3950 = vunpack.c.l.b16 %v3433
      %v3951 = vunpack.c.h.b16 %v3433
      %v3952 = vunpack.c.l.b16 %v3434
      %v3953 = vunpack.c.h.b16 %v3434
      %v3954 = vunpack.c.l.b16 %v3435
      %v3955 = vunpack.c.l.b16 %v3436
      %v3956 = vunpack.c.h.b16 %v3436
      %v3957 = vunpack.c.l.b16 %v3437
      %v3958 = vunpack.c.h.b16 %v3437
      %v3959 = vunpack.c.l.b16 %v3438
      %v3960 = vunpack.c.h.b16 %v3438
      %v3961 = vunpack.c.l.b16 %v3439
      %v3962 = vunpack.c.h.b16 %v3439
      %v3963 = vunpack.c.l.b16 %v3440
      %v3964 = vunpack.c.l.b16 %v3441
      %v3965 = vunpack.c.h.b16 %v3441
      %v3966 = vunpack.c.l.b16 %v3442
      %v3967 = vunpack.c.h.b16 %v3442
      %v3968 = vunpack.c.l.b16 %v3443
      %v3969 = vunpack.c.h.b16 %v3443
      %v3970 = vunpack.c.l.b16 %v3444
      %v3971 = vunpack.c.h.b16 %v3444
      %v3972 = vunpack.c.l.b16 %v3445
      %v3973 = vunpack.c.l.b16 %v3446
      %v3974 = vunpack.c.h.b16 %v3446
      %v3975 = vunpack.c.l.b16 %v3447
      %v3976 = vunpack.c.h.b16 %v3447
      %v3977 = vunpack.c.l.b16 %v3448
      %v3978 = vunpack.c.h.b16 %v3448
      %v3979 = vunpack.c.l.b16 %v3449
      %v3980 = vunpack.c.h.b16 %v3449
      %v3981 = vunpack.c.l.b16 %v3450
      %v3982 = vunpack.c.l.b16 %v3451
      %v3983 = vunpack.c.h.b16 %v3451
      %v3984 = vunpack.c.l.b16 %v3452
      %v3985 = vunpack.c.h.b16 %v3452
      %v3986 = vunpack.c.l.b16 %v3453
      %v3987 = vunpack.c.h.b16 %v3453
      %v3988 = vunpack.c.l.b16 %v3454
      %v3989 = vunpack.c.h.b16 %v3454
      %v3990 = vunpack.c.l.b16 %v3455
      %v3991 = vunpack.c.l.b16 %v3456
      %v3992 = vunpack.c.h.b16 %v3456
      %v3993 = vunpack.c.l.b16 %v3457
      %v3994 = vunpack.c.h.b16 %v3457
      %v3995 = vunpack.c.l.b16 %v3458
      %v3996 = vunpack.c.h.b16 %v3458
      %v3997 = vunpack.c.l.b16 %v3459
      %v3998 = vunpack.c.h.b16 %v3459
      %v3999 = vunpack.c.l.b16 %v3460
      %v4000 = vunpack.c.l.b16 %v3461
      %v4001 = vunpack.c.h.b16 %v3461
      %v4002 = vunpack.c.l.b16 %v3462
      %v4003 = vunpack.c.h.b16 %v3462
      %v4004 = vunpack.c.l.b16 %v3463
      %v4005 = vunpack.c.h.b16 %v3463
      %v4006 = vunpack.c.l.b16 %v3464
      %v4007 = vunpack.c.h.b16 %v3464
      %v4008 = vunpack.c.l.b16 %v3465
      %v4009 = vunpack.c.l.b16 %v3466
      %v4010 = vunpack.c.h.b16 %v3466
      %v4011 = vunpack.c.l.b16 %v3467
      %v4012 = vunpack.c.h.b16 %v3467
      %v4013 = vunpack.c.l.b16 %v3468
      %v4014 = vunpack.c.h.b16 %v3468
      %v4015 = vunpack.c.l.b16 %v3469
      %v4016 = vunpack.c.h.b16 %v3469
      %v4017 = vunpack.c.l.b16 %v3470
      %v4018 = vunpack.c.l.b16 %v3471
      %v4019 = vunpack.c.h.b16 %v3471
      %v4020 = vunpack.c.l.b16 %v3472
      %v4021 = vunpack.c.h.b16 %v3472
      %v4022 = vunpack.c.l.b16 %v3473
      %v4023 = vunpack.c.h.b16 %v3473
      %v4024 = vunpack.c.l.b16 %v3474
      %v4025 = vunpack.c.h.b16 %v3474
      %v4026 = vunpack.c.l.b16 %v3475
      %v4027 = vunpack.c.l.b16 %v3476
      %v4028 = vunpack.c.h.b16 %v3476
      %v4029 = vunpack.c.l.b16 %v3477
      %v4030 = vunpack.c.h.b16 %v3477
      %v4031 = vunpack.c.l.b16 %v3478
      %v4032 = vunpack.c.h.b16 %v3478
      %v4033 = vunpack.c.l.b16 %v3479
      %v4034 = vunpack.c.h.b16 %v3479
      %v4035 = vunpack.c.l.b16 %v3480
      %v4036 = vunpack.c.l.b16 %v3481
      %v4037 = vunpack.c.h.b16 %v3481
      %v4038 = vunpack.c.l.b16 %v3482
      %v4039 = vunpack.c.h.b16 %v3482
      %v4040 = vunpack.c.l.b16 %v3483
      %v4041 = vunpack.c.h.b16 %v3483
      %v4042 = vunpack.c.l.b16 %v3484
      %v4043 = vunpack.c.h.b16 %v3484
      %v4044 = vunpack.c.l.b16 %v3485
      %v4045 = vunpack.c.l.b16 %v3486
      %v4046 = vunpack.c.h.b16 %v3486
      %v4047 = vunpack.c.l.b16 %v3487
      %v4048 = vunpack.c.h.b16 %v3487
      %v4049 = vunpack.c.l.b16 %v3488
      %v4050 = vunpack.c.h.b16 %v3488
      %v4051 = vunpack.c.l.b16 %v3489
      %v4052 = vunpack.c.h.b16 %v3489
      %v4053 = vunpack.c.l.b16 %v3490
      %v4054 = vunpack.c.l.b16 %v3491
      %v4055 = vunpack.c.h.b16 %v3491
      %v4056 = vunpack.c.l.b16 %v3492
      %v4057 = vunpack.c.h.b16 %v3492
      %v4058 = vunpack.c.l.b16 %v3493
      %v4059 = vunpack.c.h.b16 %v3493
      %v4060 = vunpack.c.l.b16 %v3494
      %v4061 = vunpack.c.h.b16 %v3494
      %v4062 = vunpack.c.l.b16 %v3495
      %v4063 = vunpack.c.l.b16 %v3496
      %v4064 = vunpack.c.h.b16 %v3496
      %v4065 = vunpack.c.l.b16 %v3497
      %v4066 = vunpack.c.h.b16 %v3497
      %v4067 = vunpack.c.l.b16 %v3498
      %v4068 = vunpack.c.h.b16 %v3498
      %v4069 = vunpack.c.l.b16 %v3499
      %v4070 = vunpack.c.h.b16 %v3499
      %v4071 = vunpack.c.l.b16 %v3500
      %v4072 = vunpack.c.l.b16 %v3501
      %v4073 = vunpack.c.h.b16 %v3501
      %v4074 = vunpack.c.l.b16 %v3502
      %v4075 = vunpack.c.h.b16 %v3502
      %v4076 = vunpack.c.l.b16 %v3503
      %v4077 = vunpack.c.h.b16 %v3503
      %v4078 = vunpack.c.l.b16 %v3504
      %v4079 = vunpack.c.h.b16 %v3504
      %v4080 = vunpack.c.l.b16 %v3505
      %v4081 = vunpack.c.l.b16 %v3506
      %v4082 = vunpack.c.h.b16 %v3506
      %v4083 = vunpack.c.l.b16 %v3507
      %v4084 = vunpack.c.h.b16 %v3507
      %v4085 = vunpack.c.l.b16 %v3508
      %v4086 = vunpack.c.h.b16 %v3508
      %v4087 = vunpack.c.l.b16 %v3509
      %v4088 = vunpack.c.h.b16 %v3509
      %v4089 = vunpack.c.l.b16 %v3510
      %v4090 = vunpack.c.l.b16 %v3511
      %v4091 = vunpack.c.h.b16 %v3511
      %v4092 = vunpack.c.l.b16 %v3512
      %v4093 = vunpack.c.h.b16 %v3512
      %v4094 = vunpack.c.l.b16 %v3513
      %v4095 = vunpack.c.h.b16 %v3513
      %v4096 = vunpack.c.l.b16 %v3514
      %v4097 = vunpack.c.h.b16 %v3514
      %v4098 = vunpack.c.l.b16 %v3515
      %v4099 = vunpack.c.l.b16 %v3516
      %v4100 = vunpack.c.h.b16 %v3516
      %v4101 = vunpack.c.l.b16 %v3517
      %v4102 = vunpack.c.h.b16 %v3517
      %v4103 = vunpack.c.l.b16 %v3518
      %v4104 = vunpack.c.h.b16 %v3518
      %v4105 = vunpack.c.l.b16 %v3519
      %v4106 = vunpack.c.h.b16 %v3519
      %v4107 = vunpack.c.l.b16 %v3520
      %v4108 = vunpack.c.l.b16 %v3521
      %v4109 = vunpack.c.h.b16 %v3521
      %v4110 = vunpack.c.l.b16 %v3522
      %v4111 = vunpack.c.h.b16 %v3522
      %v4112 = vunpack.c.l.b16 %v3523
      %v4113 = vunpack.c.h.b16 %v3523
      %v4114 = vunpack.c.l.b16 %v3524
      %v4115 = vunpack.c.h.b16 %v3524
      %v4116 = vunpack.c.l.b16 %v3525
      %v4117 = vunpack.c.l.b16 %v3526
      %v4118 = vunpack.c.h.b16 %v3526
      %v4119 = vunpack.c.l.b16 %v3527
      %v4120 = vunpack.c.h.b16 %v3527
      %v4121 = vunpack.c.l.b16 %v3528
      %v4122 = vunpack.c.h.b16 %v3528
      %v4123 = vunpack.c.l.b16 %v3529
      %v4124 = vunpack.c.h.b16 %v3529
      %v4125 = vunpack.c.l.b16 %v3530
      %v4126 = vunpack.c.l.b16 %v3531
      %v4127 = vunpack.c.h.b16 %v3531
      %v4128 = vunpack.c.l.b16 %v3532
      %v4129 = vunpack.c.h.b16 %v3532
      %v4130 = vunpack.c.l.b16 %v3533
      %v4131 = vunpack.c.h.b16 %v3533
      %v4132 = vunpack.c.l.b16 %v3534
      %v4133 = vunpack.c.h.b16 %v3534
      %v4134 = vunpack.c.l.b16 %v3535
      %v4135 = vpack.c.b16 %v3856, %v3847
      %v4136 = vpack.c.b16 %v3857, %v3848
      %v4137 = vpack.c.b16 %v3858, %v3849
      %v4138 = vpack.c.b16 %v3859, %v3850
      %v4139 = vpack.c.b16 %v3860, %v3851
      %v4140 = vpack.c.b16 %v3861, %v3852
      %v4141 = vpack.c.b16 %v3862, %v3853
      %v4142 = vpack.c.b16 %v3863, %v3854
      %v4143 = vpack.c.b16 %v3864, %v3855
      %v4144 = vpack.c.b16 %v3874, %v3865
      %v4145 = vpack.c.b16 %v3875, %v3866
      %v4146 = vpack.c.b16 %v3876, %v3867
      %v4147 = vpack.c.b16 %v3877, %v3868
      %v4148 = vpack.c.b16 %v3878, %v3869
      %v4149 = vpack.c.b16 %v3879, %v3870
      %v4150 = vpack.c.b16 %v3880, %v3871
      %v4151 = vpack.c.b16 %v3881, %v3872
      %v4152 = vpack.c.b16 %v3882, %v3873
      %v4153 = vpack.c.b16 %v3892, %v3883
      %v4154 = vpack.c.b16 %v3893, %v3884
      %v4155 = vpack.c.b16 %v3894, %v3885
      %v4156 = vpack.c.b16 %v3895, %v3886
      %v4157 = vpack.c.b16 %v3896, %v3887
      %v4158 = vpack.c.b16 %v3897, %v3888
      %v4159 = vpack.c.b16 %v3898, %v3889
      %v4160 = vpack.c.b16 %v3899, %v3890
      %v4161 = vpack.c.b16 %v3900, %v3891
      %v4162 = vpack.c.b16 %v3910, %v3901
      %v4163 = vpack.c.b16 %v3911, %v3902
      %v4164 = vpack.c.b16 %v3912, %v3903
      %v4165 = vpack.c.b16 %v3913, %v3904
      %v4166 = vpack.c.b16 %v3914, %v3905
      %v4167 = vpack.c.b16 %v3915, %v3906
      %v4168 = vpack.c.b16 %v3916, %v3907
      %v4169 = vpack.c.b16 %v3917, %v3908
      %v4170 = vpack.c.b16 %v3918, %v3909
      %v4171 = vpack.c.b16 %v3928, %v3919
      %v4172 = vpack.c.b16 %v3929, %v3920
      %v4173 = vpack.c.b16 %v3930, %v3921
      %v4174 = vpack.c.b16 %v3931, %v3922
      %v4175 = vpack.c.b16 %v3932, %v3923
      %v4176 = vpack.c.b16 %v3933, %v3924
      %v4177 = vpack.c.b16 %v3934, %v3925
      %v4178 = vpack.c.b16 %v3935, %v3926
      %v4179 = vpack.c.b16 %v3936, %v3927
      %v4180 = vpack.c.b16 %v3946, %v3937
      %v4181 = vpack.c.b16 %v3947, %v3938
      %v4182 = vpack.c.b16 %v3948, %v3939
      %v4183 = vpack.c.b16 %v3949, %v3940
      %v4184 = vpack.c.b16 %v3950, %v3941
      %v4185 = vpack.c.b16 %v3951, %v3942
      %v4186 = vpack.c.b16 %v3952, %v3943
      %v4187 = vpack.c.b16 %v3953, %v3944
      %v4188 = vpack.c.b16 %v3954, %v3945
      %v4189 = vpack.c.b16 %v3964, %v3955
      %v4190 = vpack.c.b16 %v3965, %v3956
      %v4191 = vpack.c.b16 %v3966, %v3957
      %v4192 = vpack.c.b16 %v3967, %v3958
      %v4193 = vpack.c.b16 %v3968, %v3959
      %v4194 = vpack.c.b16 %v3969, %v3960
      %v4195 = vpack.c.b16 %v3970, %v3961
      %v4196 = vpack.c.b16 %v3971, %v3962
      %v4197 = vpack.c.b16 %v3972, %v3963
      %v4198 = vpack.c.b16 %v3982, %v3973
      %v4199 = vpack.c.b16 %v3983, %v3974
      %v4200 = vpack.c.b16 %v3984, %v3975
      %v4201 = vpack.c.b16 %v3985, %v3976
      %v4202 = vpack.c.b16 %v3986, %v3977
      %v4203 = vpack.c.b16 %v3987, %v3978
      %v4204 = vpack.c.b16 %v3988, %v3979
      %v4205 = vpack.c.b16 %v3989, %v3980
      %v4206 = vpack.c.b16 %v3990, %v3981
      %v4207 = vpack.c.b16 %v4000, %v3991
      %v4208 = vpack.c.b16 %v4001, %v3992
      %v4209 = vpack.c.b16 %v4002, %v3993
      %v4210 = vpack.c.b16 %v4003, %v3994
      %v4211 = vpack.c.b16 %v4004, %v3995
      %v4212 = vpack.c.b16 %v4005, %v3996
      %v4213 = vpack.c.b16 %v4006, %v3997
      %v4214 = vpack.c.b16 %v4007, %v3998
      %v4215 = vpack.c.b16 %v4008, %v3999
      %v4216 = vpack.c.b16 %v4018, %v4009
      %v4217 = vpack.c.b16 %v4019, %v4010
      %v4218 = vpack.c.b16 %v4020, %v4011
      %v4219 = vpack.c.b16 %v4021, %v4012
      %v4220 = vpack.c.b16 %v4022, %v4013
      %v4221 = vpack.c.b16 %v4023, %v4014
      %v4222 = vpack.c.b16 %v4024, %v4015
      %v4223 = vpack.c.b16 %v4025, %v4016
      %v4224 = vpack.c.b16 %v4026, %v4017
      %v4225 = vpack.c.b16 %v4036, %v4027
      %v4226 = vpack.c.b16 %v4037, %v4028
      %v4227 = vpack.c.b16 %v4038, %v4029
      %v4228 = vpack.c.b16 %v4039, %v4030
      %v4229 = vpack.c.b16 %v4040, %v4031
      %v4230 = vpack.c.b16 %v4041, %v4032
      %v4231 = vpack.c.b16 %v4042, %v4033
      %v4232 = vpack.c.b16 %v4043, %v4034
      %v4233 = vpack.c.b16 %v4044, %v4035
      %v4234 = vpack.c.b16 %v4054, %v4045
      %v4235 = vpack.c.b16 %v4055, %v4046
      %v4236 = vpack.c.b16 %v4056, %v4047
      %v4237 = vpack.c.b16 %v4057, %v4048
      %v4238 = vpack.c.b16 %v4058, %v4049
      %v4239 = vpack.c.b16 %v4059, %v4050
      %v4240 = vpack.c.b16 %v4060, %v4051
      %v4241 = vpack.c.b16 %v4061, %v4052
      %v4242 = vpack.c.b16 %v4062, %v4053
      %v4243 = vpack.c.b16 %v4072, %v4063
      %v4244 = vpack.c.b16 %v4073, %v4064
      %v4245 = vpack.c.b16 %v4074, %v4065
      %v4246 = vpack.c.b16 %v4075, %v4066
      %v4247 = vpack.c.b16 %v4076, %v4067
      %v4248 = vpack.c.b16 %v4077, %v4068
      %v4249 = vpack.c.b16 %v4078, %v4069
      %v4250 = vpack.c.b16 %v4079, %v4070
      %v4251 = vpack.c.b16 %v4080, %v4071
      %v4252 = vpack.c.b16 %v4090, %v4081
      %v4253 = vpack.c.b16 %v4091, %v4082
      %v4254 = vpack.c.b16 %v4092, %v4083
      %v4255 = vpack.c.b16 %v4093, %v4084
      %v4256 = vpack.c.b16 %v4094, %v4085
      %v4257 = vpack.c.b16 %v4095, %v4086
      %v4258 = vpack.c.b16 %v4096, %v4087
      %v4259 = vpack.c.b16 %v4097, %v4088
      %v4260 = vpack.c.b16 %v4098, %v4089
      %v4261 = vpack.c.b16 %v4108, %v4099
      %v4262 = vpack.c.b16 %v4109, %v4100
      %v4263 = vpack.c.b16 %v4110, %v4101
      %v4264 = vpack.c.b16 %v4111, %v4102
      %v4265 = vpack.c.b16 %v4112, %v4103
      %v4266 = vpack.c.b16 %v4113, %v4104
      %v4267 = vpack.c.b16 %v4114, %v4105
      %v4268 = vpack.c.b16 %v4115, %v4106
      %v4269 = vpack.c.b16 %v4116, %v4107
      %v4270 = vpack.c.b16 %v4126, %v4117
      %v4271 = vpack.c.b16 %v4127, %v4118
      %v4272 = vpack.c.b16 %v4128, %v4119
      %v4273 = vpack.c.b16 %v4129, %v4120
      %v4274 = vpack.c.b16 %v4130, %v4121
      %v4275 = vpack.c.b16 %v4131, %v4122
      %v4276 = vpack.c.b16 %v4132, %v4123
      %v4277 = vpack.c.b16 %v4133, %v4124
      %v4278 = vpack.c.b16 %v4134, %v4125
      %v4567 = vunpack.c.l.b16 %v3536
      %v4568 = vunpack.c.l.b16 %v3537
      %v4569 = vunpack.c.l.b16 %v3538
      %v4570 = vunpack.c.l.b16 %v3539
      %v4571 = vunpack.c.l.b16 %v3540
      %v4572 = vunpack.c.l.b16 %v3541
      %v4573 = vunpack.c.l.b16 %v3542
      %v4574 = vunpack.c.l.b16 %v3543
      %v4575 = vunpack.c.l.b16 %v3544
      %v4576 = vunpack.c.l.b16 %v3545
      %v4577 = vunpack.c.l.b16 %v3546
      %v4578 = vunpack.c.l.b16 %v3547
      %v4579 = vunpack.c.l.b16 %v3548
      %v4580 = vunpack.c.l.b16 %v3549
      %v4581 = vunpack.c.l.b16 %v3550
      %v4582 = vunpack.c.l.b16 %v3551
      %v4583 = vunpack.c.l.b16 %v3552
      %v4584 = vunpack.c.l.b16 %v3553
      %v4585 = vunpack.c.l.b16 %v3554
      %v4586 = vunpack.c.l.b16 %v3555
      %v4587 = vunpack.c.l.b16 %v3556
      %v4588 = vunpack.c.l.b16 %v3557
      %v4589 = vunpack.c.l.b16 %v3558
      %v4590 = vunpack.c.l.b16 %v3559
      %v4591 = vunpack.c.l.b16 %v3560
      %v4592 = vunpack.c.l.b16 %v3561
      %v4593 = vunpack.c.l.b16 %v3562
      %v4594 = vunpack.c.l.b16 %v3563
      %v4595 = vunpack.c.l.b16 %v3564
      %v4596 = vunpack.c.l.b16 %v3565
      %v4597 = vunpack.c.l.b16 %v3566
      %v4598 = vunpack.c.l.b16 %v3567
      %v4599 = vunpack.c.l.b16 %v3568
      %v4600 = vunpack.c.l.b16 %v3569
      %v4601 = vunpack.c.l.b16 %v3570
      %v4602 = vunpack.c.l.b16 %v3571
      %v4603 = vunpack.c.l.b16 %v3572
      %v4604 = vunpack.c.l.b16 %v3573
      %v4605 = vunpack.c.l.b16 %v3574
      %v4606 = vunpack.c.l.b16 %v3575
      %v4607 = vunpack.c.l.b16 %v3576
      %v4608 = vunpack.c.l.b16 %v3577
      %v4609 = vunpack.c.l.b16 %v3578
      %v4610 = vunpack.c.l.b16 %v3579
      %v4611 = vunpack.c.l.b16 %v3580
      %v4612 = vunpack.c.l.b16 %v3581
      %v4613 = vunpack.c.l.b16 %v3582
      %v4614 = vunpack.c.l.b16 %v3583
      %v4615 = vunpack.c.l.b16 %v3584
      %v4616 = vunpack.c.l.b16 %v3585
      %v4617 = vunpack.c.l.b16 %v3586
      %v4618 = vunpack.c.l.b16 %v3587
      %v4619 = vunpack.c.l.b16 %v3588
      %v4620 = vunpack.c.l.b16 %v3589
      %v4621 = vunpack.c.l.b16 %v3590
      %v4622 = vunpack.c.l.b16 %v3591
      %v4623 = vunpack.c.l.b16 %v3592
      %v4624 = vunpack.c.l.b16 %v3593
      %v4625 = vunpack.c.l.b16 %v3594
      %v4626 = vunpack.c.l.b16 %v3595
      %v4627 = vunpack.c.l.b16 %v3596
      %v4628 = vunpack.c.l.b16 %v3597
      %v4629 = vunpack.c.l.b16 %v3598
      %v4630 = vunpack.c.l.b16 %v3599
      %v4631 = vunpack.c.l.b16 %v3600
      %v4632 = vunpack.c.l.b16 %v3601
      %v4633 = vunpack.c.l.b16 %v3602
      %v4634 = vunpack.c.l.b16 %v3603
      %v4635 = vunpack.c.l.b16 %v3604
      %v4636 = vunpack.c.l.b16 %v3605
      %v4637 = vunpack.c.l.b16 %v3606
      %v4638 = vunpack.c.l.b16 %v3607
      %v4639 = vunpack.c.l.b16 %v3608
      %v4640 = vunpack.c.l.b16 %v3609
      %v4641 = vunpack.c.l.b16 %v3610
      %v4642 = vunpack.c.l.b16 %v3611
      %v4643 = vunpack.c.l.b16 %v3612
      %v4644 = vunpack.c.l.b16 %v3613
      %v4645 = vunpack.c.l.b16 %v3614
      %v4646 = vunpack.c.l.b16 %v3615
      %v4647 = vunpack.c.l.b16 %v3616
      %v4648 = vunpack.c.l.b16 %v3617
      %v4649 = vunpack.c.l.b16 %v3618
      %v4650 = vunpack.c.l.b16 %v3619
      %v4651 = vunpack.c.l.b16 %v3620
      %v4652 = vunpack.c.l.b16 %v3621
      %v4653 = vunpack.c.l.b16 %v3622
      %v4654 = vunpack.c.l.b16 %v3623
      %v4655 = vunpack.c.l.b16 %v3624
      %v4656 = vunpack.c.l.b16 %v3625
      %v4657 = vunpack.c.l.b16 %v3626
      %v4658 = vunpack.c.l.b16 %v3627
      %v4659 = vunpack.c.l.b16 %v3628
      %v4660 = vunpack.c.l.b16 %v3629
      %v4661 = vunpack.c.l.b16 %v3630
      %v4662 = vunpack.c.l.b16 %v3631
      %v4663 = vunpack.c.l.b16 %v3632
      %v4664 = vunpack.c.l.b16 %v3633
      %v4665 = vunpack.c.l.b16 %v3634
      %v4666 = vunpack.c.l.b16 %v3635
      %v4667 = vunpack.c.l.b16 %v3636
      %v4668 = vunpack.c.l.b16 %v3637
      %v4669 = vunpack.c.l.b16 %v3638
      %v4670 = vunpack.c.l.b16 %v3639
      %v4671 = vunpack.c.l.b16 %v3640
      %v4672 = vunpack.c.l.b16 %v3641
      %v4673 = vunpack.c.l.b16 %v3642
      %v4674 = vunpack.c.l.b16 %v3643
      %v4675 = vunpack.c.l.b16 %v3644
      %v4676 = vunpack.c.l.b16 %v3645
      %v4677 = vunpack.c.l.b16 %v3646
      %v4678 = vunpack.c.l.b16 %v3647
      %v4679 = vunpack.c.l.b16 %v3648
      %v4680 = vunpack.c.l.b16 %v3649
      %v4681 = vunpack.c.l.b16 %v3650
      %v4682 = vunpack.c.l.b16 %v3651
      %v4683 = vunpack.c.l.b16 %v3652
      %v4684 = vunpack.c.l.b16 %v3653
      %v4685 = vunpack.c.l.b16 %v3654
      %v4686 = vunpack.c.l.b16 %v3655
      %v4687 = vunpack.c.l.b16 %v3656
      %v4688 = vunpack.c.l.b16 %v3657
      %v4689 = vunpack.c.l.b16 %v3658
      %v4690 = vunpack.c.l.b16 %v3659
      %v4691 = vunpack.c.l.b16 %v3660
      %v4692 = vunpack.c.l.b16 %v3661
      %v4693 = vunpack.c.l.b16 %v3662
      %v4694 = vunpack.c.l.b16 %v3663
      %v4695 = vunpack.c.l.b16 %v3664
      %v4696 = vunpack.c.l.b16 %v3665
      %v4697 = vunpack.c.l.b16 %v3666
      %v4698 = vunpack.c.l.b16 %v3667
      %v4699 = vunpack.c.l.b16 %v3668
      %v4700 = vunpack.c.l.b16 %v3669
      %v4701 = vunpack.c.l.b16 %v3670
      %v4702 = vunpack.c.l.b16 %v3671
      %v4703 = vunpack.c.l.b16 %v3672
      %v4704 = vunpack.c.l.b16 %v3673
      %v4705 = vunpack.c.l.b16 %v3674
      %v4706 = vunpack.c.l.b16 %v3675
      %v4707 = vunpack.c.l.b16 %v3676
      %v4708 = vunpack.c.l.b16 %v3677
      %v4709 = vunpack.c.l.b16 %v3678
      %v4710 = vunpack.c.l.b16 %v3679
      %v4711 = vpack.c.b16 %v4568, %v4567
      %v4712 = vpack.c.b16 %v4570, %v4569
      %v4713 = vpack.c.b16 %v4572, %v4571
      %v4714 = vpack.c.b16 %v4574, %v4573
      %v4715 = vpack.c.b16 %v4576, %v4575
      %v4716 = vpack.c.b16 %v4578, %v4577
      %v4717 = vpack.c.b16 %v4580, %v4579
      %v4718 = vpack.c.b16 %v4582, %v4581
      %v4719 = vpack.c.b16 %v4584, %v4583
      %v4720 = vpack.c.b16 %v4586, %v4585
      %v4721 = vpack.c.b16 %v4588, %v4587
      %v4722 = vpack.c.b16 %v4590, %v4589
      %v4723 = vpack.c.b16 %v4592, %v4591
      %v4724 = vpack.c.b16 %v4594, %v4593
      %v4725 = vpack.c.b16 %v4596, %v4595
      %v4726 = vpack.c.b16 %v4598, %v4597
      %v4727 = vpack.c.b16 %v4600, %v4599
      %v4728 = vpack.c.b16 %v4602, %v4601
      %v4729 = vpack.c.b16 %v4604, %v4603
      %v4730 = vpack.c.b16 %v4606, %v4605
      %v4731 = vpack.c.b16 %v4608, %v4607
      %v4732 = vpack.c.b16 %v4610, %v4609
      %v4733 = vpack.c.b16 %v4612, %v4611
      %v4734 = vpack.c.b16 %v4614, %v4613
      %v4735 = vpack.c.b16 %v4616, %v4615
      %v4736 = vpack.c.b16 %v4618, %v4617
      %v4737 = vpack.c.b16 %v4620, %v4619
      %v4738 = vpack.c.b16 %v4622, %v4621
      %v4739 = vpack.c.b16 %v4624, %v4623
      %v4740 = vpack.c.b16 %v4626, %v4625
      %v4741 = vpack.c.b16 %v4628, %v4627
      %v4742 = vpack.c.b16 %v4630, %v4629
      %v4743 = vpack.c.b16 %v4632, %v4631
      %v4744 = vpack.c.b16 %v4634, %v4633
      %v4745 = vpack.c.b16 %v4636, %v4635
      %v4746 = vpack.c.b16 %v4638, %v4637
      %v4747 = vpack.c.b16 %v4640, %v4639
      %v4748 = vpack.c.b16 %v4642, %v4641
      %v4749 = vpack.c.b16 %v4644, %v4643
      %v4750 = vpack.c.b16 %v4646, %v4645
      %v4751 = vpack.c.b16 %v4648, %v4647
      %v4752 = vpack.c.b16 %v4650, %v4649
      %v4753 = vpack.c.b16 %v4652, %v4651
      %v4754 = vpack.c.b16 %v4654, %v4653
      %v4755 = vpack.c.b16 %v4656, %v4655
      %v4756 = vpack.c.b16 %v4658, %v4657
      %v4757 = vpack.c.b16 %v4660, %v4659
      %v4758 = vpack.c.b16 %v4662, %v4661
      %v4759 = vpack.c.b16 %v4664, %v4663
      %v4760 = vpack.c.b16 %v4666, %v4665
      %v4761 = vpack.c.b16 %v4668, %v4667
      %v4762 = vpack.c.b16 %v4670, %v4669
      %v4763 = vpack.c.b16 %v4672, %v4671
      %v4764 = vpack.c.b16 %v4674, %v4673
      %v4765 = vpack.c.b16 %v4676, %v4675
      %v4766 = vpack.c.b16 %v4678, %v4677
      %v4767 = vpack.c.b16 %v4680, %v4679
      %v4768 = vpack.c.b16 %v4682, %v4681
      %v4769 = vpack.c.b16 %v4684, %v4683
      %v4770 = vpack.c.b16 %v4686, %v4685
      %v4771 = vpack.c.b16 %v4688, %v4687
      %v4772 = vpack.c.b16 %v4690, %v4689
      %v4773 = vpack.c.b16 %v4692, %v4691
      %v4774 = vpack.c.b16 %v4694, %v4693
      %v4775 = vpack.c.b16 %v4696, %v4695
      %v4776 = vpack.c.b16 %v4698, %v4697
      %v4777 = vpack.c.b16 %v4700, %v4699
      %v4778 = vpack.c.b16 %v4702, %v4701
      %v4779 = vpack.c.b16 %v4704, %v4703
      %v4780 = vpack.c.b16 %v4706, %v4705
      %v4781 = vpack.c.b16 %v4708, %v4707
      %v4782 = vpack.c.b16 %v4710, %v4709
      %4855 = vmatprep.subr.bf16.mxu0 0
      %4856 = vmatpush1.bf16.msra.mxu0 %v4718
      %4857 = vmatprep.subr.bf16.mxu0 0
      %4858 = vmatpush1.bf16.msra.mxu0 %v4717
      %4859 = vmatprep.subr.bf16.mxu0 0
      %4860 = vmatpush1.bf16.msra.mxu0 %v4716
      %4861 = vmatprep.subr.bf16.mxu0 0
      %4862 = vmatpush1.bf16.msra.mxu0 %v4715
      %4863 = vmatprep.subr.bf16.mxu0 0
      %4864 = vmatpush1.bf16.msra.mxu0 %v4714
      %4865 = vmatprep.subr.bf16.mxu0 0
      %4866 = vmatpush1.bf16.msra.mxu0 %v4713
      %4867 = vmatprep.subr.bf16.mxu0 0
      %4868 = vmatpush1.bf16.msra.mxu0 %v4712
      %4869 = vmatprep.subr.bf16.mxu0 0
      %4870 = vmatpush1.bf16.msra.mxu0 %v4711
      %4871 = vmatprep.subr.bf16.mxu0 0
      %4872 = vmatpush2.bf16.msra.mxu0 %v4726
      %4873 = vmatprep.subr.bf16.mxu0 0
      %4874 = vmatpush2.bf16.msra.mxu0 %v4725
      %4875 = vmatprep.subr.bf16.mxu0 0
      %4876 = vmatpush2.bf16.msra.mxu0 %v4724
      %4877 = vmatprep.subr.bf16.mxu0 0
      %4878 = vmatpush2.bf16.msra.mxu0 %v4723
      %4879 = vmatprep.subr.bf16.mxu0 0
      %4880 = vmatpush2.bf16.msra.mxu0 %v4722
      %4881 = vmatprep.subr.bf16.mxu0 0
      %4882 = vmatpush2.bf16.msra.mxu0 %v4721
      %4883 = vmatprep.subr.bf16.mxu0 0
      %4884 = vmatpush2.bf16.msra.mxu0 %v4720
      %4885 = vmatprep.subr.bf16.mxu0 0
      %4886 = vmatpush2.bf16.msra.mxu0 %v4719
      %4887 = vmatprep.mubr.bf16.mxu0 %v4136
      %4888 = vmatmul.mubr.bf16.gmra.mxu0 %v4135
      %v4889 = vpop.f32.mrf.mxu0
      %v4890 = vadd.f32 %v3685, %v4889
      %v4891 = vpop.f32.mrf.mxu0
      %v4892 = vpop.f32.mrf.mxu0
      %v4893 = vadd.f32 %v3685, %v4892
      %v4894 = vpop.f32.mrf.mxu0
      %4895 = vmatprep.mubr.bf16.mxu0 %v4145
      %4896 = vmatmul.mubr.bf16.gmra.mxu0 %v4144
      %v4897 = vpop.f32.mrf.mxu0
      %v4898 = vadd.f32 %v3685, %v4897
      %v4899 = vpop.f32.mrf.mxu0
      %v4900 = vpop.f32.mrf.mxu0
      %v4901 = vadd.f32 %v3685, %v4900
      %v4902 = vpop.f32.mrf.mxu0
      %4903 = vmatprep.mubr.bf16.mxu0 %v4154
      %4904 = vmatmul.mubr.bf16.gmra.mxu0 %v4153
      %v4905 = vpop.f32.mrf.mxu0
      %v4906 = vadd.f32 %v3685, %v4905
      %v4907 = vpop.f32.mrf.mxu0
      %v4908 = vpop.f32.mrf.mxu0
      %v4909 = vadd.f32 %v3685, %v4908
      %v4910 = vpop.f32.mrf.mxu0
      %4911 = vmatprep.mubr.bf16.mxu0 %v4163
      %4912 = vmatmul.mubr.bf16.gmra.mxu0 %v4162
      %v4913 = vpop.f32.mrf.mxu0
      %v4914 = vadd.f32 %v3685, %v4913
      %v4915 = vpop.f32.mrf.mxu0
      %v4916 = vpop.f32.mrf.mxu0
      %v4917 = vadd.f32 %v3685, %v4916
      %v4918 = vpop.f32.mrf.mxu0
      %4919 = vmatprep.mubr.bf16.mxu0 %v4172
      %4920 = vmatmul.mubr.bf16.gmra.mxu0 %v4171
      %v4921 = vpop.f32.mrf.mxu0
      %v4922 = vadd.f32 %v3685, %v4921
      %v4923 = vpop.f32.mrf.mxu0
      %v4924 = vpop.f32.mrf.mxu0
      %v4925 = vadd.f32 %v3685, %v4924
      %v4926 = vpop.f32.mrf.mxu0
      %4927 = vmatprep.mubr.bf16.mxu0 %v4181
      %4928 = vmatmul.mubr.bf16.gmra.mxu0 %v4180
      %v4929 = vpop.f32.mrf.mxu0
      %v4930 = vadd.f32 %v3685, %v4929
      %v4931 = vpop.f32.mrf.mxu0
      %v4932 = vpop.f32.mrf.mxu0
      %v4933 = vadd.f32 %v3685, %v4932
      %v4934 = vpop.f32.mrf.mxu0
      %4935 = vmatprep.mubr.bf16.mxu0 %v4190
      %4936 = vmatmul.mubr.bf16.gmra.mxu0 %v4189
      %v4937 = vpop.f32.mrf.mxu0
      %v4938 = vadd.f32 %v3685, %v4937
      %v4939 = vpop.f32.mrf.mxu0
      %v4940 = vpop.f32.mrf.mxu0
      %v4941 = vadd.f32 %v3685, %v4940
      %v4942 = vpop.f32.mrf.mxu0
      %4943 = vmatprep.mubr.bf16.mxu0 %v4199
      %4944 = vmatmul.mubr.bf16.gmra.mxu0 %v4198
      %v4945 = vpop.f32.mrf.mxu0
      %v4946 = vadd.f32 %v3685, %v4945
      %v4947 = vpop.f32.mrf.mxu0
      %v4948 = vpop.f32.mrf.mxu0
      %v4949 = vadd.f32 %v3685, %v4948
      %v4950 = vpop.f32.mrf.mxu0
      %4951 = vmatprep.mubr.bf16.mxu0 %v4208
      %4952 = vmatmul.mubr.bf16.gmra.mxu0 %v4207
      %v4953 = vpop.f32.mrf.mxu0
      %v4954 = vadd.f32 %v3685, %v4953
      %v4955 = vpop.f32.mrf.mxu0
      %v4956 = vpop.f32.mrf.mxu0
      %v4957 = vadd.f32 %v3685, %v4956
      %v4958 = vpop.f32.mrf.mxu0
      %4959 = vmatprep.mubr.bf16.mxu0 %v4217
      %4960 = vmatmul.mubr.bf16.gmra.mxu0 %v4216
      %v4961 = vpop.f32.mrf.mxu0
      %v4962 = vadd.f32 %v3685, %v4961
      %v4963 = vpop.f32.mrf.mxu0
      %v4964 = vpop.f32.mrf.mxu0
      %v4965 = vadd.f32 %v3685, %v4964
      %v4966 = vpop.f32.mrf.mxu0
      %4967 = vmatprep.mubr.bf16.mxu0 %v4226
      %4968 = vmatmul.mubr.bf16.gmra.mxu0 %v4225
      %v4969 = vpop.f32.mrf.mxu0
      %v4970 = vadd.f32 %v3685, %v4969
      %v4971 = vpop.f32.mrf.mxu0
      %v4972 = vpop.f32.mrf.mxu0
      %v4973 = vadd.f32 %v3685, %v4972
      %v4974 = vpop.f32.mrf.mxu0
      %4975 = vmatprep.mubr.bf16.mxu0 %v4235
      %4976 = vmatmul.mubr.bf16.gmra.mxu0 %v4234
      %v4977 = vpop.f32.mrf.mxu0
      %v4978 = vadd.f32 %v3685, %v4977
      %v4979 = vpop.f32.mrf.mxu0
      %v4980 = vpop.f32.mrf.mxu0
      %v4981 = vadd.f32 %v3685, %v4980
      %v4982 = vpop.f32.mrf.mxu0
      %4983 = vmatprep.mubr.bf16.mxu0 %v4244
      %4984 = vmatmul.mubr.bf16.gmra.mxu0 %v4243
      %v4985 = vpop.f32.mrf.mxu0
      %v4986 = vadd.f32 %v3685, %v4985
      %v4987 = vpop.f32.mrf.mxu0
      %v4988 = vpop.f32.mrf.mxu0
      %v4989 = vadd.f32 %v3685, %v4988
      %v4990 = vpop.f32.mrf.mxu0
      %4991 = vmatprep.mubr.bf16.mxu0 %v4253
      %4992 = vmatmul.mubr.bf16.gmra.mxu0 %v4252
      %v4993 = vpop.f32.mrf.mxu0
      %v4994 = vadd.f32 %v3685, %v4993
      %v4995 = vpop.f32.mrf.mxu0
      %v4996 = vpop.f32.mrf.mxu0
      %v4997 = vadd.f32 %v3685, %v4996
      %v4998 = vpop.f32.mrf.mxu0
      %4999 = vmatprep.mubr.bf16.mxu0 %v4262
      %5000 = vmatmul.mubr.bf16.gmra.mxu0 %v4261
      %v5001 = vpop.f32.mrf.mxu0
      %v5002 = vadd.f32 %v3685, %v5001
      %v5003 = vpop.f32.mrf.mxu0
      %v5004 = vpop.f32.mrf.mxu0
      %v5005 = vadd.f32 %v3685, %v5004
      %v5006 = vpop.f32.mrf.mxu0
      %5007 = vmatprep.mubr.bf16.mxu0 %v4271
      %5008 = vmatmul.mubr.bf16.gmra.mxu0 %v4270
      %v5009 = vpop.f32.mrf.mxu0
      %v5010 = vadd.f32 %v3685, %v5009
      %v5011 = vpop.f32.mrf.mxu0
      %v5012 = vpop.f32.mrf.mxu0
      %v5013 = vadd.f32 %v3685, %v5012
      %v5014 = vpop.f32.mrf.mxu0
      %5015 = vdwg.mxu0
      %5016 = vmatprep.subr.bf16.mxu0 0
      %5017 = vmatpush1.bf16.msra.mxu0 %v4734
      %5018 = vmatprep.subr.bf16.mxu0 0
      %5019 = vmatpush1.bf16.msra.mxu0 %v4733
      %5020 = vmatprep.subr.bf16.mxu0 0
      %5021 = vmatpush1.bf16.msra.mxu0 %v4732
      %5022 = vmatprep.subr.bf16.mxu0 0
      %5023 = vmatpush1.bf16.msra.mxu0 %v4731
      %5024 = vmatprep.subr.bf16.mxu0 0
      %5025 = vmatpush1.bf16.msra.mxu0 %v4730
      %5026 = vmatprep.subr.bf16.mxu0 0
      %5027 = vmatpush1.bf16.msra.mxu0 %v4729
      %5028 = vmatprep.subr.bf16.mxu0 0
      %5029 = vmatpush1.bf16.msra.mxu0 %v4728
      %5030 = vmatprep.subr.bf16.mxu0 0
      %5031 = vmatpush1.bf16.msra.mxu0 %v4727
      %5032 = vmatprep.subr.bf16.mxu0 0
      %5033 = vmatpush2.bf16.msra.mxu0 %v4742
      %5034 = vmatprep.subr.bf16.mxu0 0
      %5035 = vmatpush2.bf16.msra.mxu0 %v4741
      %5036 = vmatprep.subr.bf16.mxu0 0
      %5037 = vmatpush2.bf16.msra.mxu0 %v4740
      %5038 = vmatprep.subr.bf16.mxu0 0
      %5039 = vmatpush2.bf16.msra.mxu0 %v4739
      %5040 = vmatprep.subr.bf16.mxu0 0
      %5041 = vmatpush2.bf16.msra.mxu0 %v4738
      %5042 = vmatprep.subr.bf16.mxu0 0
      %5043 = vmatpush2.bf16.msra.mxu0 %v4737
      %5044 = vmatprep.subr.bf16.mxu0 0
      %5045 = vmatpush2.bf16.msra.mxu0 %v4736
      %5046 = vmatprep.subr.bf16.mxu0 0
      %5047 = vmatpush2.bf16.msra.mxu0 %v4735
      %5048 = vmatprep.mubr.bf16.mxu0 %v4138
      %5049 = vmatmul.mubr.bf16.gmra.mxu0 %v4137
      %v5050 = vpop.f32.mrf.mxu0
      %v5051 = vadd.f32 %v4890, %v5050
      %v5052 = vpop.f32.mrf.mxu0
      %v5053 = vpop.f32.mrf.mxu0
      %v5054 = vadd.f32 %v4893, %v5053
      %v5055 = vpop.f32.mrf.mxu0
      %5056 = vmatprep.mubr.bf16.mxu0 %v4147
      %5057 = vmatmul.mubr.bf16.gmra.mxu0 %v4146
      %v5058 = vpop.f32.mrf.mxu0
      %v5059 = vadd.f32 %v4898, %v5058
      %v5060 = vpop.f32.mrf.mxu0
      %v5061 = vpop.f32.mrf.mxu0
      %v5062 = vadd.f32 %v4901, %v5061
      %v5063 = vpop.f32.mrf.mxu0
      %5064 = vmatprep.mubr.bf16.mxu0 %v4156
      %5065 = vmatmul.mubr.bf16.gmra.mxu0 %v4155
      %v5066 = vpop.f32.mrf.mxu0
      %v5067 = vadd.f32 %v4906, %v5066
      %v5068 = vpop.f32.mrf.mxu0
      %v5069 = vpop.f32.mrf.mxu0
      %v5070 = vadd.f32 %v4909, %v5069
      %v5071 = vpop.f32.mrf.mxu0
      %5072 = vmatprep.mubr.bf16.mxu0 %v4165
      %5073 = vmatmul.mubr.bf16.gmra.mxu0 %v4164
      %v5074 = vpop.f32.mrf.mxu0
      %v5075 = vadd.f32 %v4914, %v5074
      %v5076 = vpop.f32.mrf.mxu0
      %v5077 = vpop.f32.mrf.mxu0
      %v5078 = vadd.f32 %v4917, %v5077
      %v5079 = vpop.f32.mrf.mxu0
      %5080 = vmatprep.mubr.bf16.mxu0 %v4174
      %5081 = vmatmul.mubr.bf16.gmra.mxu0 %v4173
      %v5082 = vpop.f32.mrf.mxu0
      %v5083 = vadd.f32 %v4922, %v5082
      %v5084 = vpop.f32.mrf.mxu0
      %v5085 = vpop.f32.mrf.mxu0
      %v5086 = vadd.f32 %v4925, %v5085
      %v5087 = vpop.f32.mrf.mxu0
      %5088 = vmatprep.mubr.bf16.mxu0 %v4183
      %5089 = vmatmul.mubr.bf16.gmra.mxu0 %v4182
      %v5090 = vpop.f32.mrf.mxu0
      %v5091 = vadd.f32 %v4930, %v5090
      %v5092 = vpop.f32.mrf.mxu0
      %v5093 = vpop.f32.mrf.mxu0
      %v5094 = vadd.f32 %v4933, %v5093
      %v5095 = vpop.f32.mrf.mxu0
      %5096 = vmatprep.mubr.bf16.mxu0 %v4192
      %5097 = vmatmul.mubr.bf16.gmra.mxu0 %v4191
      %v5098 = vpop.f32.mrf.mxu0
      %v5099 = vadd.f32 %v4938, %v5098
      %v5100 = vpop.f32.mrf.mxu0
      %v5101 = vpop.f32.mrf.mxu0
      %v5102 = vadd.f32 %v4941, %v5101
      %v5103 = vpop.f32.mrf.mxu0
      %5104 = vmatprep.mubr.bf16.mxu0 %v4201
      %5105 = vmatmul.mubr.bf16.gmra.mxu0 %v4200
      %v5106 = vpop.f32.mrf.mxu0
      %v5107 = vadd.f32 %v4946, %v5106
      %v5108 = vpop.f32.mrf.mxu0
      %v5109 = vpop.f32.mrf.mxu0
      %v5110 = vadd.f32 %v4949, %v5109
      %v5111 = vpop.f32.mrf.mxu0
      %5112 = vmatprep.mubr.bf16.mxu0 %v4210
      %5113 = vmatmul.mubr.bf16.gmra.mxu0 %v4209
      %v5114 = vpop.f32.mrf.mxu0
      %v5115 = vadd.f32 %v4954, %v5114
      %v5116 = vpop.f32.mrf.mxu0
      %v5117 = vpop.f32.mrf.mxu0
      %v5118 = vadd.f32 %v4957, %v5117
      %v5119 = vpop.f32.mrf.mxu0
      %5120 = vmatprep.mubr.bf16.mxu0 %v4219
      %5121 = vmatmul.mubr.bf16.gmra.mxu0 %v4218
      %v5122 = vpop.f32.mrf.mxu0
      %v5123 = vadd.f32 %v4962, %v5122
      %v5124 = vpop.f32.mrf.mxu0
      %v5125 = vpop.f32.mrf.mxu0
      %v5126 = vadd.f32 %v4965, %v5125
      %v5127 = vpop.f32.mrf.mxu0
      %5128 = vmatprep.mubr.bf16.mxu0 %v4228
      %5129 = vmatmul.mubr.bf16.gmra.mxu0 %v4227
      %v5130 = vpop.f32.mrf.mxu0
      %v5131 = vadd.f32 %v4970, %v5130
      %v5132 = vpop.f32.mrf.mxu0
      %v5133 = vpop.f32.mrf.mxu0
      %v5134 = vadd.f32 %v4973, %v5133
      %v5135 = vpop.f32.mrf.mxu0
      %5136 = vmatprep.mubr.bf16.mxu0 %v4237
      %5137 = vmatmul.mubr.bf16.gmra.mxu0 %v4236
      %v5138 = vpop.f32.mrf.mxu0
      %v5139 = vadd.f32 %v4978, %v5138
      %v5140 = vpop.f32.mrf.mxu0
      %v5141 = vpop.f32.mrf.mxu0
      %v5142 = vadd.f32 %v4981, %v5141
      %v5143 = vpop.f32.mrf.mxu0
      %5144 = vmatprep.mubr.bf16.mxu0 %v4246
      %5145 = vmatmul.mubr.bf16.gmra.mxu0 %v4245
      %v5146 = vpop.f32.mrf.mxu0
      %v5147 = vadd.f32 %v4986, %v5146
      %v5148 = vpop.f32.mrf.mxu0
      %v5149 = vpop.f32.mrf.mxu0
      %v5150 = vadd.f32 %v4989, %v5149
      %v5151 = vpop.f32.mrf.mxu0
      %5152 = vmatprep.mubr.bf16.mxu0 %v4255
      %5153 = vmatmul.mubr.bf16.gmra.mxu0 %v4254
      %v5154 = vpop.f32.mrf.mxu0
      %v5155 = vadd.f32 %v4994, %v5154
      %v5156 = vpop.f32.mrf.mxu0
      %v5157 = vpop.f32.mrf.mxu0
      %v5158 = vadd.f32 %v4997, %v5157
      %v5159 = vpop.f32.mrf.mxu0
      %5160 = vmatprep.mubr.bf16.mxu0 %v4264
      %5161 = vmatmul.mubr.bf16.gmra.mxu0 %v4263
      %v5162 = vpop.f32.mrf.mxu0
      %v5163 = vadd.f32 %v5002, %v5162
      %v5164 = vpop.f32.mrf.mxu0
      %v5165 = vpop.f32.mrf.mxu0
      %v5166 = vadd.f32 %v5005, %v5165
      %v5167 = vpop.f32.mrf.mxu0
      %5168 = vmatprep.mubr.bf16.mxu0 %v4273
      %5169 = vmatmul.mubr.bf16.gmra.mxu0 %v4272
      %v5170 = vpop.f32.mrf.mxu0
      %v5171 = vadd.f32 %v5010, %v5170
      %v5172 = vpop.f32.mrf.mxu0
      %v5173 = vpop.f32.mrf.mxu0
      %v5174 = vadd.f32 %v5013, %v5173
      %v5175 = vpop.f32.mrf.mxu0
      %5176 = vdwg.mxu0
      %5177 = vmatprep.subr.bf16.mxu0 0
      %5178 = vmatpush1.bf16.msra.mxu0 %v4750
      %5179 = vmatprep.subr.bf16.mxu0 0
      %5180 = vmatpush1.bf16.msra.mxu0 %v4749
      %5181 = vmatprep.subr.bf16.mxu0 0
      %5182 = vmatpush1.bf16.msra.mxu0 %v4748
      %5183 = vmatprep.subr.bf16.mxu0 0
      %5184 = vmatpush1.bf16.msra.mxu0 %v4747
      %5185 = vmatprep.subr.bf16.mxu0 0
      %5186 = vmatpush1.bf16.msra.mxu0 %v4746
      %5187 = vmatprep.subr.bf16.mxu0 0
      %5188 = vmatpush1.bf16.msra.mxu0 %v4745
      %5189 = vmatprep.subr.bf16.mxu0 0
      %5190 = vmatpush1.bf16.msra.mxu0 %v4744
      %5191 = vmatprep.subr.bf16.mxu0 0
      %5192 = vmatpush1.bf16.msra.mxu0 %v4743
      %5193 = vmatprep.subr.bf16.mxu0 0
      %5194 = vmatpush2.bf16.msra.mxu0 %v4758
      %5195 = vmatprep.subr.bf16.mxu0 0
      %5196 = vmatpush2.bf16.msra.mxu0 %v4757
      %5197 = vmatprep.subr.bf16.mxu0 0
      %5198 = vmatpush2.bf16.msra.mxu0 %v4756
      %5199 = vmatprep.subr.bf16.mxu0 0
      %5200 = vmatpush2.bf16.msra.mxu0 %v4755
      %5201 = vmatprep.subr.bf16.mxu0 0
      %5202 = vmatpush2.bf16.msra.mxu0 %v4754
      %5203 = vmatprep.subr.bf16.mxu0 0
      %5204 = vmatpush2.bf16.msra.mxu0 %v4753
      %5205 = vmatprep.subr.bf16.mxu0 0
      %5206 = vmatpush2.bf16.msra.mxu0 %v4752
      %5207 = vmatprep.subr.bf16.mxu0 0
      %5208 = vmatpush2.bf16.msra.mxu0 %v4751
      %5209 = vmatprep.mubr.bf16.mxu0 %v4140
      %5210 = vmatmul.mubr.bf16.gmra.mxu0 %v4139
      %v5211 = vpop.f32.mrf.mxu0
      %v5212 = vadd.f32 %v5051, %v5211
      %v5213 = vpop.f32.mrf.mxu0
      %v5214 = vpop.f32.mrf.mxu0
      %v5215 = vadd.f32 %v5054, %v5214
      %v5216 = vpop.f32.mrf.mxu0
      %5217 = vmatprep.mubr.bf16.mxu0 %v4149
      %5218 = vmatmul.mubr.bf16.gmra.mxu0 %v4148
      %v5219 = vpop.f32.mrf.mxu0
      %v5220 = vadd.f32 %v5059, %v5219
      %v5221 = vpop.f32.mrf.mxu0
      %v5222 = vpop.f32.mrf.mxu0
      %v5223 = vadd.f32 %v5062, %v5222
      %v5224 = vpop.f32.mrf.mxu0
      %5225 = vmatprep.mubr.bf16.mxu0 %v4158
      %5226 = vmatmul.mubr.bf16.gmra.mxu0 %v4157
      %v5227 = vpop.f32.mrf.mxu0
      %v5228 = vadd.f32 %v5067, %v5227
      %v5229 = vpop.f32.mrf.mxu0
      %v5230 = vpop.f32.mrf.mxu0
      %v5231 = vadd.f32 %v5070, %v5230
      %v5232 = vpop.f32.mrf.mxu0
      %5233 = vmatprep.mubr.bf16.mxu0 %v4167
      %5234 = vmatmul.mubr.bf16.gmra.mxu0 %v4166
      %v5235 = vpop.f32.mrf.mxu0
      %v5236 = vadd.f32 %v5075, %v5235
      %v5237 = vpop.f32.mrf.mxu0
      %v5238 = vpop.f32.mrf.mxu0
      %v5239 = vadd.f32 %v5078, %v5238
      %v5240 = vpop.f32.mrf.mxu0
      %5241 = vmatprep.mubr.bf16.mxu0 %v4176
      %5242 = vmatmul.mubr.bf16.gmra.mxu0 %v4175
      %v5243 = vpop.f32.mrf.mxu0
      %v5244 = vadd.f32 %v5083, %v5243
      %v5245 = vpop.f32.mrf.mxu0
      %v5246 = vpop.f32.mrf.mxu0
      %v5247 = vadd.f32 %v5086, %v5246
      %v5248 = vpop.f32.mrf.mxu0
      %5249 = vmatprep.mubr.bf16.mxu0 %v4185
      %5250 = vmatmul.mubr.bf16.gmra.mxu0 %v4184
      %v5251 = vpop.f32.mrf.mxu0
      %v5252 = vadd.f32 %v5091, %v5251
      %v5253 = vpop.f32.mrf.mxu0
      %v5254 = vpop.f32.mrf.mxu0
      %v5255 = vadd.f32 %v5094, %v5254
      %v5256 = vpop.f32.mrf.mxu0
      %5257 = vmatprep.mubr.bf16.mxu0 %v4194
      %5258 = vmatmul.mubr.bf16.gmra.mxu0 %v4193
      %v5259 = vpop.f32.mrf.mxu0
      %v5260 = vadd.f32 %v5099, %v5259
      %v5261 = vpop.f32.mrf.mxu0
      %v5262 = vpop.f32.mrf.mxu0
      %v5263 = vadd.f32 %v5102, %v5262
      %v5264 = vpop.f32.mrf.mxu0
      %5265 = vmatprep.mubr.bf16.mxu0 %v4203
      %5266 = vmatmul.mubr.bf16.gmra.mxu0 %v4202
      %v5267 = vpop.f32.mrf.mxu0
      %v5268 = vadd.f32 %v5107, %v5267
      %v5269 = vpop.f32.mrf.mxu0
      %v5270 = vpop.f32.mrf.mxu0
      %v5271 = vadd.f32 %v5110, %v5270
      %v5272 = vpop.f32.mrf.mxu0
      %5273 = vmatprep.mubr.bf16.mxu0 %v4212
      %5274 = vmatmul.mubr.bf16.gmra.mxu0 %v4211
      %v5275 = vpop.f32.mrf.mxu0
      %v5276 = vadd.f32 %v5115, %v5275
      %v5277 = vpop.f32.mrf.mxu0
      %v5278 = vpop.f32.mrf.mxu0
      %v5279 = vadd.f32 %v5118, %v5278
      %v5280 = vpop.f32.mrf.mxu0
      %5281 = vmatprep.mubr.bf16.mxu0 %v4221
      %5282 = vmatmul.mubr.bf16.gmra.mxu0 %v4220
      %v5283 = vpop.f32.mrf.mxu0
      %v5284 = vadd.f32 %v5123, %v5283
      %v5285 = vpop.f32.mrf.mxu0
      %v5286 = vpop.f32.mrf.mxu0
      %v5287 = vadd.f32 %v5126, %v5286
      %v5288 = vpop.f32.mrf.mxu0
      %5289 = vmatprep.mubr.bf16.mxu0 %v4230
      %5290 = vmatmul.mubr.bf16.gmra.mxu0 %v4229
      %v5291 = vpop.f32.mrf.mxu0
      %v5292 = vadd.f32 %v5131, %v5291
      %v5293 = vpop.f32.mrf.mxu0
      %v5294 = vpop.f32.mrf.mxu0
      %v5295 = vadd.f32 %v5134, %v5294
      %v5296 = vpop.f32.mrf.mxu0
      %5297 = vmatprep.mubr.bf16.mxu0 %v4239
      %5298 = vmatmul.mubr.bf16.gmra.mxu0 %v4238
      %v5299 = vpop.f32.mrf.mxu0
      %v5300 = vadd.f32 %v5139, %v5299
      %v5301 = vpop.f32.mrf.mxu0
      %v5302 = vpop.f32.mrf.mxu0
      %v5303 = vadd.f32 %v5142, %v5302
      %v5304 = vpop.f32.mrf.mxu0
      %5305 = vmatprep.mubr.bf16.mxu0 %v4248
      %5306 = vmatmul.mubr.bf16.gmra.mxu0 %v4247
      %v5307 = vpop.f32.mrf.mxu0
      %v5308 = vadd.f32 %v5147, %v5307
      %v5309 = vpop.f32.mrf.mxu0
      %v5310 = vpop.f32.mrf.mxu0
      %v5311 = vadd.f32 %v5150, %v5310
      %v5312 = vpop.f32.mrf.mxu0
      %5313 = vmatprep.mubr.bf16.mxu0 %v4257
      %5314 = vmatmul.mubr.bf16.gmra.mxu0 %v4256
      %v5315 = vpop.f32.mrf.mxu0
      %v5316 = vadd.f32 %v5155, %v5315
      %v5317 = vpop.f32.mrf.mxu0
      %v5318 = vpop.f32.mrf.mxu0
      %v5319 = vadd.f32 %v5158, %v5318
      %v5320 = vpop.f32.mrf.mxu0
      %5321 = vmatprep.mubr.bf16.mxu0 %v4266
      %5322 = vmatmul.mubr.bf16.gmra.mxu0 %v4265
      %v5323 = vpop.f32.mrf.mxu0
      %v5324 = vadd.f32 %v5163, %v5323
      %v5325 = vpop.f32.mrf.mxu0
      %v5326 = vpop.f32.mrf.mxu0
      %v5327 = vadd.f32 %v5166, %v5326
      %v5328 = vpop.f32.mrf.mxu0
      %5329 = vmatprep.mubr.bf16.mxu0 %v4275
      %5330 = vmatmul.mubr.bf16.gmra.mxu0 %v4274
      %v5331 = vpop.f32.mrf.mxu0
      %v5332 = vadd.f32 %v5171, %v5331
      %v5333 = vpop.f32.mrf.mxu0
      %v5334 = vpop.f32.mrf.mxu0
      %v5335 = vadd.f32 %v5174, %v5334
      %v5336 = vpop.f32.mrf.mxu0
      %5337 = vdwg.mxu0
      %5338 = vmatprep.subr.bf16.mxu0 0
      %5339 = vmatpush1.bf16.msra.mxu0 %v4766
      %5340 = vmatprep.subr.bf16.mxu0 0
      %5341 = vmatpush1.bf16.msra.mxu0 %v4765
      %5342 = vmatprep.subr.bf16.mxu0 0
      %5343 = vmatpush1.bf16.msra.mxu0 %v4764
      %5344 = vmatprep.subr.bf16.mxu0 0
      %5345 = vmatpush1.bf16.msra.mxu0 %v4763
      %5346 = vmatprep.subr.bf16.mxu0 0
      %5347 = vmatpush1.bf16.msra.mxu0 %v4762
      %5348 = vmatprep.subr.bf16.mxu0 0
      %5349 = vmatpush1.bf16.msra.mxu0 %v4761
      %5350 = vmatprep.subr.bf16.mxu0 0
      %5351 = vmatpush1.bf16.msra.mxu0 %v4760
      %5352 = vmatprep.subr.bf16.mxu0 0
      %5353 = vmatpush1.bf16.msra.mxu0 %v4759
      %5354 = vmatprep.subr.bf16.mxu0 0
      %5355 = vmatpush2.bf16.msra.mxu0 %v4774
      %5356 = vmatprep.subr.bf16.mxu0 0
      %5357 = vmatpush2.bf16.msra.mxu0 %v4773
      %5358 = vmatprep.subr.bf16.mxu0 0
      %5359 = vmatpush2.bf16.msra.mxu0 %v4772
      %5360 = vmatprep.subr.bf16.mxu0 0
      %5361 = vmatpush2.bf16.msra.mxu0 %v4771
      %5362 = vmatprep.subr.bf16.mxu0 0
      %5363 = vmatpush2.bf16.msra.mxu0 %v4770
      %5364 = vmatprep.subr.bf16.mxu0 0
      %5365 = vmatpush2.bf16.msra.mxu0 %v4769
      %5366 = vmatprep.subr.bf16.mxu0 0
      %5367 = vmatpush2.bf16.msra.mxu0 %v4768
      %5368 = vmatprep.subr.bf16.mxu0 0
      %5369 = vmatpush2.bf16.msra.mxu0 %v4767
      %5370 = vmatprep.mubr.bf16.mxu0 %v4142
      %5371 = vmatmul.mubr.bf16.gmra.mxu0 %v4141
      %v5372 = vpop.f32.mrf.mxu0
      %v5373 = vadd.f32 %v5212, %v5372
      %v5374 = vpop.f32.mrf.mxu0
      %v5375 = vpop.f32.mrf.mxu0
      %v5376 = vadd.f32 %v5215, %v5375
      %v5377 = vpop.f32.mrf.mxu0
      %5378 = vmatprep.mubr.bf16.mxu0 %v4151
      %5379 = vmatmul.mubr.bf16.gmra.mxu0 %v4150
      %v5380 = vpop.f32.mrf.mxu0
      %v5381 = vadd.f32 %v5220, %v5380
      %v5382 = vpop.f32.mrf.mxu0
      %v5383 = vpop.f32.mrf.mxu0
      %v5384 = vadd.f32 %v5223, %v5383
      %v5385 = vpop.f32.mrf.mxu0
      %5386 = vmatprep.mubr.bf16.mxu0 %v4160
      %5387 = vmatmul.mubr.bf16.gmra.mxu0 %v4159
      %v5388 = vpop.f32.mrf.mxu0
      %v5389 = vadd.f32 %v5228, %v5388
      %v5390 = vpop.f32.mrf.mxu0
      %v5391 = vpop.f32.mrf.mxu0
      %v5392 = vadd.f32 %v5231, %v5391
      %v5393 = vpop.f32.mrf.mxu0
      %5394 = vmatprep.mubr.bf16.mxu0 %v4169
      %5395 = vmatmul.mubr.bf16.gmra.mxu0 %v4168
      %v5396 = vpop.f32.mrf.mxu0
      %v5397 = vadd.f32 %v5236, %v5396
      %v5398 = vpop.f32.mrf.mxu0
      %v5399 = vpop.f32.mrf.mxu0
      %v5400 = vadd.f32 %v5239, %v5399
      %v5401 = vpop.f32.mrf.mxu0
      %5402 = vmatprep.mubr.bf16.mxu0 %v4178
      %5403 = vmatmul.mubr.bf16.gmra.mxu0 %v4177
      %v5404 = vpop.f32.mrf.mxu0
      %v5405 = vadd.f32 %v5244, %v5404
      %v5406 = vpop.f32.mrf.mxu0
      %v5407 = vpop.f32.mrf.mxu0
      %v5408 = vadd.f32 %v5247, %v5407
      %v5409 = vpop.f32.mrf.mxu0
      %5410 = vmatprep.mubr.bf16.mxu0 %v4187
      %5411 = vmatmul.mubr.bf16.gmra.mxu0 %v4186
      %v5412 = vpop.f32.mrf.mxu0
      %v5413 = vadd.f32 %v5252, %v5412
      %v5414 = vpop.f32.mrf.mxu0
      %v5415 = vpop.f32.mrf.mxu0
      %v5416 = vadd.f32 %v5255, %v5415
      %v5417 = vpop.f32.mrf.mxu0
      %5418 = vmatprep.mubr.bf16.mxu0 %v4196
      %5419 = vmatmul.mubr.bf16.gmra.mxu0 %v4195
      %v5420 = vpop.f32.mrf.mxu0
      %v5421 = vadd.f32 %v5260, %v5420
      %v5422 = vpop.f32.mrf.mxu0
      %v5423 = vpop.f32.mrf.mxu0
      %v5424 = vadd.f32 %v5263, %v5423
      %v5425 = vpop.f32.mrf.mxu0
      %5426 = vmatprep.mubr.bf16.mxu0 %v4205
      %5427 = vmatmul.mubr.bf16.gmra.mxu0 %v4204
      %v5428 = vpop.f32.mrf.mxu0
      %v5429 = vadd.f32 %v5268, %v5428
      %v5430 = vpop.f32.mrf.mxu0
      %v5431 = vpop.f32.mrf.mxu0
      %v5432 = vadd.f32 %v5271, %v5431
      %v5433 = vpop.f32.mrf.mxu0
      %5434 = vmatprep.mubr.bf16.mxu0 %v4214
      %5435 = vmatmul.mubr.bf16.gmra.mxu0 %v4213
      %v5436 = vpop.f32.mrf.mxu0
      %v5437 = vadd.f32 %v5276, %v5436
      %v5438 = vpop.f32.mrf.mxu0
      %v5439 = vpop.f32.mrf.mxu0
      %v5440 = vadd.f32 %v5279, %v5439
      %v5441 = vpop.f32.mrf.mxu0
      %5442 = vmatprep.mubr.bf16.mxu0 %v4223
      %5443 = vmatmul.mubr.bf16.gmra.mxu0 %v4222
      %v5444 = vpop.f32.mrf.mxu0
      %v5445 = vadd.f32 %v5284, %v5444
      %v5446 = vpop.f32.mrf.mxu0
      %v5447 = vpop.f32.mrf.mxu0
      %v5448 = vadd.f32 %v5287, %v5447
      %v5449 = vpop.f32.mrf.mxu0
      %5450 = vmatprep.mubr.bf16.mxu0 %v4232
      %5451 = vmatmul.mubr.bf16.gmra.mxu0 %v4231
      %v5452 = vpop.f32.mrf.mxu0
      %v5453 = vadd.f32 %v5292, %v5452
      %v5454 = vpop.f32.mrf.mxu0
      %v5455 = vpop.f32.mrf.mxu0
      %v5456 = vadd.f32 %v5295, %v5455
      %v5457 = vpop.f32.mrf.mxu0
      %5458 = vmatprep.mubr.bf16.mxu0 %v4241
      %5459 = vmatmul.mubr.bf16.gmra.mxu0 %v4240
      %v5460 = vpop.f32.mrf.mxu0
      %v5461 = vadd.f32 %v5300, %v5460
      %v5462 = vpop.f32.mrf.mxu0
      %v5463 = vpop.f32.mrf.mxu0
      %v5464 = vadd.f32 %v5303, %v5463
      %v5465 = vpop.f32.mrf.mxu0
      %5466 = vmatprep.mubr.bf16.mxu0 %v4250
      %5467 = vmatmul.mubr.bf16.gmra.mxu0 %v4249
      %v5468 = vpop.f32.mrf.mxu0
      %v5469 = vadd.f32 %v5308, %v5468
      %v5470 = vpop.f32.mrf.mxu0
      %v5471 = vpop.f32.mrf.mxu0
      %v5472 = vadd.f32 %v5311, %v5471
      %v5473 = vpop.f32.mrf.mxu0
      %5474 = vmatprep.mubr.bf16.mxu0 %v4259
      %5475 = vmatmul.mubr.bf16.gmra.mxu0 %v4258
      %v5476 = vpop.f32.mrf.mxu0
      %v5477 = vadd.f32 %v5316, %v5476
      %v5478 = vpop.f32.mrf.mxu0
      %v5479 = vpop.f32.mrf.mxu0
      %v5480 = vadd.f32 %v5319, %v5479
      %v5481 = vpop.f32.mrf.mxu0
      %5482 = vmatprep.mubr.bf16.mxu0 %v4268
      %5483 = vmatmul.mubr.bf16.gmra.mxu0 %v4267
      %v5484 = vpop.f32.mrf.mxu0
      %v5485 = vadd.f32 %v5324, %v5484
      %v5486 = vpop.f32.mrf.mxu0
      %v5487 = vpop.f32.mrf.mxu0
      %v5488 = vadd.f32 %v5327, %v5487
      %v5489 = vpop.f32.mrf.mxu0
      %5490 = vmatprep.mubr.bf16.mxu0 %v4277
      %5491 = vmatmul.mubr.bf16.gmra.mxu0 %v4276
      %v5492 = vpop.f32.mrf.mxu0
      %v5493 = vadd.f32 %v5332, %v5492
      %v5494 = vpop.f32.mrf.mxu0
      %v5495 = vpop.f32.mrf.mxu0
      %v5496 = vadd.f32 %v5335, %v5495
      %v5497 = vpop.f32.mrf.mxu0
      %5498 = vdwg.mxu0
      %5499 = vmatprep.subr.bf16.mxu0 0
      %5500 = vmatpush1.bf16.msra.mxu0 %v4782
      %5501 = vmatprep.subr.bf16.mxu0 0
      %5502 = vmatpush1.bf16.msra.mxu0 %v4781
      %5503 = vmatprep.subr.bf16.mxu0 0
      %5504 = vmatpush1.bf16.msra.mxu0 %v4780
      %5505 = vmatprep.subr.bf16.mxu0 0
      %5506 = vmatpush1.bf16.msra.mxu0 %v4779
      %5507 = vmatprep.subr.bf16.mxu0 0
      %5508 = vmatpush1.bf16.msra.mxu0 %v4778
      %5509 = vmatprep.subr.bf16.mxu0 0
      %5510 = vmatpush1.bf16.msra.mxu0 %v4777
      %5511 = vmatprep.subr.bf16.mxu0 0
      %5512 = vmatpush1.bf16.msra.mxu0 %v4776
      %5513 = vmatprep.subr.bf16.mxu0 0
      %5514 = vmatpush1.bf16.msra.mxu0 %v4775
      %5515 = vmatprep.subr.bf16.mxu0 0
      %5516 = vmatpush2.bf16.msra.mxu0 0
      %5517 = vmatprep.subr.bf16.mxu0 0
      %5518 = vmatpush2.bf16.msra.mxu0 0
      %5519 = vmatprep.subr.bf16.mxu0 0
      %5520 = vmatpush2.bf16.msra.mxu0 0
      %5521 = vmatprep.subr.bf16.mxu0 0
      %5522 = vmatpush2.bf16.msra.mxu0 0
      %5523 = vmatprep.subr.bf16.mxu0 0
      %5524 = vmatpush2.bf16.msra.mxu0 0
      %5525 = vmatprep.subr.bf16.mxu0 0
      %5526 = vmatpush2.bf16.msra.mxu0 0
      %5527 = vmatprep.subr.bf16.mxu0 0
      %5528 = vmatpush2.bf16.msra.mxu0 0
      %5529 = vmatprep.subr.bf16.mxu0 0
      %5530 = vmatpush2.bf16.msra.mxu0 0
      %5531 = vmatprep.mubr.bf16.mxu0 0
      %5532 = vmatmul.mubr.bf16.gmra.mxu0 %v4143
      %v5533 = vpop.f32.mrf.mxu0
      %v5534 = vadd.f32 %v5373, %v5533
      %v5535 = vpop.f32.mrf.mxu0
      %v5536 = vpop.f32.mrf.mxu0
      %v5537 = vadd.f32 %v5376, %v5536
      %v5538 = vpop.f32.mrf.mxu0
      %5539 = vmatprep.mubr.bf16.mxu0 0
      %5540 = vmatmul.mubr.bf16.gmra.mxu0 %v4152
      %v5541 = vpop.f32.mrf.mxu0
      %v5542 = vadd.f32 %v5381, %v5541
      %v5543 = vpop.f32.mrf.mxu0
      %v5544 = vpop.f32.mrf.mxu0
      %v5545 = vadd.f32 %v5384, %v5544
      %v5546 = vpop.f32.mrf.mxu0
      %5547 = vmatprep.mubr.bf16.mxu0 0
      %5548 = vmatmul.mubr.bf16.gmra.mxu0 %v4161
      %v5549 = vpop.f32.mrf.mxu0
      %v5550 = vadd.f32 %v5389, %v5549
      %v5551 = vpop.f32.mrf.mxu0
      %v5552 = vpop.f32.mrf.mxu0
      %v5553 = vadd.f32 %v5392, %v5552
      %v5554 = vpop.f32.mrf.mxu0
      %5555 = vmatprep.mubr.bf16.mxu0 0
      %5556 = vmatmul.mubr.bf16.gmra.mxu0 %v4170
      %v5557 = vpop.f32.mrf.mxu0
      %v5558 = vadd.f32 %v5397, %v5557
      %v5559 = vpop.f32.mrf.mxu0
      %v5560 = vpop.f32.mrf.mxu0
      %v5561 = vadd.f32 %v5400, %v5560
      %v5562 = vpop.f32.mrf.mxu0
      %5563 = vmatprep.mubr.bf16.mxu0 0
      %5564 = vmatmul.mubr.bf16.gmra.mxu0 %v4179
      %v5565 = vpop.f32.mrf.mxu0
      %v5566 = vadd.f32 %v5405, %v5565
      %v5567 = vpop.f32.mrf.mxu0
      %v5568 = vpop.f32.mrf.mxu0
      %v5569 = vadd.f32 %v5408, %v5568
      %v5570 = vpop.f32.mrf.mxu0
      %5571 = vmatprep.mubr.bf16.mxu0 0
      %5572 = vmatmul.mubr.bf16.gmra.mxu0 %v4188
      %v5573 = vpop.f32.mrf.mxu0
      %v5574 = vadd.f32 %v5413, %v5573
      %v5575 = vpop.f32.mrf.mxu0
      %v5576 = vpop.f32.mrf.mxu0
      %v5577 = vadd.f32 %v5416, %v5576
      %v5578 = vpop.f32.mrf.mxu0
      %5579 = vmatprep.mubr.bf16.mxu0 0
      %5580 = vmatmul.mubr.bf16.gmra.mxu0 %v4197
      %v5581 = vpop.f32.mrf.mxu0
      %v5582 = vadd.f32 %v5421, %v5581
      %v5583 = vpop.f32.mrf.mxu0
      %v5584 = vpop.f32.mrf.mxu0
      %v5585 = vadd.f32 %v5424, %v5584
      %v5586 = vpop.f32.mrf.mxu0
      %5587 = vmatprep.mubr.bf16.mxu0 0
      %5588 = vmatmul.mubr.bf16.gmra.mxu0 %v4206
      %v5589 = vpop.f32.mrf.mxu0
      %v5590 = vadd.f32 %v5429, %v5589
      %v5591 = vpop.f32.mrf.mxu0
      %v5592 = vpop.f32.mrf.mxu0
      %v5593 = vadd.f32 %v5432, %v5592
      %v5594 = vpop.f32.mrf.mxu0
      %5595 = vmatprep.mubr.bf16.mxu0 0
      %5596 = vmatmul.mubr.bf16.gmra.mxu0 %v4215
      %v5597 = vpop.f32.mrf.mxu0
      %v5598 = vadd.f32 %v5437, %v5597
      %v5599 = vpop.f32.mrf.mxu0
      %v5600 = vpop.f32.mrf.mxu0
      %v5601 = vadd.f32 %v5440, %v5600
      %v5602 = vpop.f32.mrf.mxu0
      %5603 = vmatprep.mubr.bf16.mxu0 0
      %5604 = vmatmul.mubr.bf16.gmra.mxu0 %v4224
      %v5605 = vpop.f32.mrf.mxu0
      %v5606 = vadd.f32 %v5445, %v5605
      %v5607 = vpop.f32.mrf.mxu0
      %v5608 = vpop.f32.mrf.mxu0
      %v5609 = vadd.f32 %v5448, %v5608
      %v5610 = vpop.f32.mrf.mxu0
      %5611 = vmatprep.mubr.bf16.mxu0 0
      %5612 = vmatmul.mubr.bf16.gmra.mxu0 %v4233
      %v5613 = vpop.f32.mrf.mxu0
      %v5614 = vadd.f32 %v5453, %v5613
      %v5615 = vpop.f32.mrf.mxu0
      %v5616 = vpop.f32.mrf.mxu0
      %v5617 = vadd.f32 %v5456, %v5616
      %v5618 = vpop.f32.mrf.mxu0
      %5619 = vmatprep.mubr.bf16.mxu0 0
      %5620 = vmatmul.mubr.bf16.gmra.mxu0 %v4242
      %v5621 = vpop.f32.mrf.mxu0
      %v5622 = vadd.f32 %v5461, %v5621
      %v5623 = vpop.f32.mrf.mxu0
      %v5624 = vpop.f32.mrf.mxu0
      %v5625 = vadd.f32 %v5464, %v5624
      %v5626 = vpop.f32.mrf.mxu0
      %5627 = vmatprep.mubr.bf16.mxu0 0
      %5628 = vmatmul.mubr.bf16.gmra.mxu0 %v4251
      %v5629 = vpop.f32.mrf.mxu0
      %v5630 = vadd.f32 %v5469, %v5629
      %v5631 = vpop.f32.mrf.mxu0
      %v5632 = vpop.f32.mrf.mxu0
      %v5633 = vadd.f32 %v5472, %v5632
      %v5634 = vpop.f32.mrf.mxu0
      %5635 = vmatprep.mubr.bf16.mxu0 0
      %5636 = vmatmul.mubr.bf16.gmra.mxu0 %v4260
      %v5637 = vpop.f32.mrf.mxu0
      %v5638 = vadd.f32 %v5477, %v5637
      %v5639 = vpop.f32.mrf.mxu0
      %v5640 = vpop.f32.mrf.mxu0
      %v5641 = vadd.f32 %v5480, %v5640
      %v5642 = vpop.f32.mrf.mxu0
      %5643 = vmatprep.mubr.bf16.mxu0 0
      %5644 = vmatmul.mubr.bf16.gmra.mxu0 %v4269
      %v5645 = vpop.f32.mrf.mxu0
      %v5646 = vadd.f32 %v5485, %v5645
      %v5647 = vpop.f32.mrf.mxu0
      %v5648 = vpop.f32.mrf.mxu0
      %v5649 = vadd.f32 %v5488, %v5648
      %v5650 = vpop.f32.mrf.mxu0
      %5651 = vmatprep.mubr.bf16.mxu0 0
      %5652 = vmatmul.mubr.bf16.gmra.mxu0 %v4278
      %v5653 = vpop.f32.mrf.mxu0
      %v5654 = vadd.f32 %v5493, %v5653
      %v5655 = vpop.f32.mrf.mxu0
      %v5656 = vpop.f32.mrf.mxu0
      %v5657 = vadd.f32 %v5496, %v5656
      %v5658 = vpop.f32.mrf.mxu0
      %5659 = vdwg.mxu0
      %v5660 = vld [vmem:[%s249] sm:$0xff]
      %v5661 = vld [vmem:[%s249 + $0x8] sm:$0xff]
      %v5662 = vld [vmem:[%s249 + $0x10] sm:$0xff]
      %v5663 = vld [vmem:[%s249 + $0x18] sm:$0xff]
      %v5664 = vld [vmem:[%s249 + $0x20] sm:$0xff]
      %v5665 = vld [vmem:[%s249 + $0x28] sm:$0xff]
      %v5666 = vld [vmem:[%s249 + $0x30] sm:$0xff]
      %v5667 = vld [vmem:[%s249 + $0x38] sm:$0xff]
      %v5668 = vld [vmem:[%s249 + $0x40] sm:$0xff]
      %v5669 = vld [vmem:[%s249 + $0x48] sm:$0xff]
      %v5670 = vld [vmem:[%s249 + $0x50] sm:$0xff]
      %v5671 = vld [vmem:[%s249 + $0x58] sm:$0xff]
      %v5672 = vld [vmem:[%s249 + $0x60] sm:$0xff]
      %v5673 = vld [vmem:[%s249 + $0x68] sm:$0xff]
      %v5674 = vld [vmem:[%s249 + $0x70] sm:$0xff]
      %v5675 = vld [vmem:[%s249 + $0x78] sm:$0xff]
      %v5676 = vld [vmem:[%s249 + $0x80] sm:$0xff]
      %v5677 = vld [vmem:[%s249 + $0x88] sm:$0xff]
      %v5678 = vld [vmem:[%s249 + $0x90] sm:$0xff]
      %v5679 = vld [vmem:[%s249 + $0x98] sm:$0xff]
      %v5680 = vld [vmem:[%s249 + $0xa0] sm:$0xff]
      %v5681 = vld [vmem:[%s249 + $0xa8] sm:$0xff]
      %v5682 = vld [vmem:[%s249 + $0xb0] sm:$0xff]
      %v5683 = vld [vmem:[%s249 + $0xb8] sm:$0xff]
      %v5684 = vld [vmem:[%s249 + $0xc0] sm:$0xff]
      %v5685 = vld [vmem:[%s249 + $0xc8] sm:$0xff]
      %v5686 = vld [vmem:[%s249 + $0xd0] sm:$0xff]
      %v5687 = vld [vmem:[%s249 + $0xd8] sm:$0xff]
      %v5688 = vld [vmem:[%s249 + $0xe0] sm:$0xff]
      %v5689 = vld [vmem:[%s249 + $0xe8] sm:$0xff]
      %v5690 = vld [vmem:[%s249 + $0xf0] sm:$0xff]
      %v5691 = vld [vmem:[%s249 + $0xf8] sm:$0xff]
      %v5692 = vadd.f32 %v5534, %v5660
      %v5693 = vadd.f32 %v5537, %v5661
      %v5694 = vadd.f32 %v5542, %v5662
      %v5695 = vadd.f32 %v5545, %v5663
      %v5696 = vadd.f32 %v5550, %v5664
      %v5697 = vadd.f32 %v5553, %v5665
      %v5698 = vadd.f32 %v5558, %v5666
      %v5699 = vadd.f32 %v5561, %v5667
      %v5700 = vadd.f32 %v5566, %v5668
      %v5701 = vadd.f32 %v5569, %v5669
      %v5702 = vadd.f32 %v5574, %v5670
      %v5703 = vadd.f32 %v5577, %v5671
      %v5704 = vadd.f32 %v5582, %v5672
      %v5705 = vadd.f32 %v5585, %v5673
      %v5706 = vadd.f32 %v5590, %v5674
      %v5707 = vadd.f32 %v5593, %v5675
      %v5708 = vadd.f32 %v5598, %v5676
      %v5709 = vadd.f32 %v5601, %v5677
      %v5710 = vadd.f32 %v5606, %v5678
      %v5711 = vadd.f32 %v5609, %v5679
      %v5712 = vadd.f32 %v5614, %v5680
      %v5713 = vadd.f32 %v5617, %v5681
      %v5714 = vadd.f32 %v5622, %v5682
      %v5715 = vadd.f32 %v5625, %v5683
      %v5716 = vadd.f32 %v5630, %v5684
      %v5717 = vadd.f32 %v5633, %v5685
      %v5718 = vadd.f32 %v5638, %v5686
      %v5719 = vadd.f32 %v5641, %v5687
      %v5720 = vadd.f32 %v5646, %v5688
      %v5721 = vadd.f32 %v5649, %v5689
      %v5722 = vadd.f32 %v5654, %v5690
      %v5723 = vadd.f32 %v5657, %v5691
      %v5724 = vmax.f32 %v5692, 0.0
      %v5725 = vmax.f32 %v5693, 0.0
      %v5726 = vmax.f32 %v5694, 0.0
      %v5727 = vmax.f32 %v5695, 0.0
      %v5728 = vmax.f32 %v5696, 0.0
      %v5729 = vmax.f32 %v5697, 0.0
      %v5730 = vmax.f32 %v5698, 0.0
      %v5731 = vmax.f32 %v5699, 0.0
      %v5732 = vmax.f32 %v5700, 0.0
      %v5733 = vmax.f32 %v5701, 0.0
      %v5734 = vmax.f32 %v5702, 0.0
      %v5735 = vmax.f32 %v5703, 0.0
      %v5736 = vmax.f32 %v5704, 0.0
      %v5737 = vmax.f32 %v5705, 0.0
      %v5738 = vmax.f32 %v5706, 0.0
      %v5739 = vmax.f32 %v5707, 0.0
      %v5740 = vmax.f32 %v5708, 0.0
      %v5741 = vmax.f32 %v5709, 0.0
      %v5742 = vmax.f32 %v5710, 0.0
      %v5743 = vmax.f32 %v5711, 0.0
      %v5744 = vmax.f32 %v5712, 0.0
      %v5745 = vmax.f32 %v5713, 0.0
      %v5746 = vmax.f32 %v5714, 0.0
      %v5747 = vmax.f32 %v5715, 0.0
      %v5748 = vmax.f32 %v5716, 0.0
      %v5749 = vmax.f32 %v5717, 0.0
      %v5750 = vmax.f32 %v5718, 0.0
      %v5751 = vmax.f32 %v5719, 0.0
      %v5752 = vmax.f32 %v5720, 0.0
      %v5753 = vmax.f32 %v5721, 0.0
      %v5754 = vmax.f32 %v5722, 0.0
      %v5755 = vmax.f32 %v5723, 0.0
      %5756 = vst [vmem:[%s260] sm:$0xff] %v5724
      %5757 = vst [vmem:[%s260 + $0x8] sm:$0xff] %v5725
      %5758 = vst [vmem:[%s260 + $0x10] sm:$0xff] %v5726
      %5759 = vst [vmem:[%s260 + $0x18] sm:$0xff] %v5727
      %5760 = vst [vmem:[%s260 + $0x20] sm:$0xff] %v5728
      %5761 = vst [vmem:[%s260 + $0x28] sm:$0xff] %v5729
      %5762 = vst [vmem:[%s260 + $0x30] sm:$0xff] %v5730
      %5763 = vst [vmem:[%s260 + $0x38] sm:$0xff] %v5731
      %5764 = vst [vmem:[%s260 + $0x40] sm:$0xff] %v5732
      %5765 = vst [vmem:[%s260 + $0x48] sm:$0xff] %v5733
      %5766 = vst [vmem:[%s260 + $0x50] sm:$0xff] %v5734
      %5767 = vst [vmem:[%s260 + $0x58] sm:$0xff] %v5735
      %5768 = vst [vmem:[%s260 + $0x60] sm:$0xff] %v5736
      %5769 = vst [vmem:[%s260 + $0x68] sm:$0xff] %v5737
      %5770 = vst [vmem:[%s260 + $0x70] sm:$0xff] %v5738
      %5771 = vst [vmem:[%s260 + $0x78] sm:$0xff] %v5739
      %5772 = vst [vmem:[%s260 + $0x80] sm:$0xff] %v5740
      %5773 = vst [vmem:[%s260 + $0x88] sm:$0xff] %v5741
      %5774 = vst [vmem:[%s260 + $0x90] sm:$0xff] %v5742
      %5775 = vst [vmem:[%s260 + $0x98] sm:$0xff] %v5743
      %5776 = vst [vmem:[%s260 + $0xa0] sm:$0xff] %v5744
      %5777 = vst [vmem:[%s260 + $0xa8] sm:$0xff] %v5745
      %5778 = vst [vmem:[%s260 + $0xb0] sm:$0xff] %v5746
      %5779 = vst [vmem:[%s260 + $0xb8] sm:$0xff] %v5747
      %5780 = vst [vmem:[%s260 + $0xc0] sm:$0xff] %v5748
      %5781 = vst [vmem:[%s260 + $0xc8] sm:$0xff] %v5749
      %5782 = vst [vmem:[%s260 + $0xd0] sm:$0xff] %v5750
      %5783 = vst [vmem:[%s260 + $0xd8] sm:$0xff] %v5751
      %5784 = vst [vmem:[%s260 + $0xe0] sm:$0xff] %v5752
      %5785 = vst [vmem:[%s260 + $0xe8] sm:$0xff] %v5753
      %5786 = vst [vmem:[%s260 + $0xf0] sm:$0xff] %v5754
      %5787 = vst [vmem:[%s260 + $0xf8] sm:$0xff] %v5755
      %s5788 = smul.u32 16, %s20
      %p5789 = scmp.lt.s32.totalorder %s19, 1
      %s5790 = scalar_select %p5789, %s19, 1
      %p5791 = scmp.lt.s32.totalorder %s5788, 15
      %s5792 = scalar_select %p5791, %s5788, 15
      %s5793 = smul.addr %s5792, 2
      %s5794 = smul.addr %s5790, 32
      %s5795 = sadd.s32 %s5793, %s5794
      %s5796 = smul.addr %s5795, 8
      %s5797 = scalar_lea.vmem %s4, %s5796
      // Predicated region
      $region45: #{basic_block_enc_pallas.3} parent=35 // pred_check
        %p5798 = pneg %p143
      $region46: #{basic_block_enc_pallas.3} parent=35 // pred_check_branch
        %5800 = sbr.rel (%p5798) target = $region48
      $region47: #{basic_block_enc_pallas.3} parent=35 // pred_region
        %s5801 = smul.u32 16, %s20
      $region48: #{basic_block_enc_pallas.3} parent=35 // pred_fallthru
        _
    $region36: #{basic_block_enc_pallas.3} parent=5 // pred_fallthru
      _
    %p5802 = scmp.le.s32.totalorder 2, %s10
    // Predicated region
    $region49: #{basic_block_enc_pallas.3} parent=5 // pred_check
      %p5803 = pneg %p5802
    $region50: #{basic_block_enc_pallas.3} parent=5 // pred_check_branch
      %5805 = sbr.rel (%p5803) target = $region52
    $region51: #{basic_block_enc_pallas.3} parent=5 // pred_region
      %s5806 = ssub.s32 %s10, 2
      // Predicated region
      $region53: #{basic_block_enc_pallas.3} parent=51 // pred_check
        %p5807 = pneg %p149
      $region54: #{basic_block_enc_pallas.3} parent=51 // pred_check_branch
        %5809 = sbr.rel (%p5807) target = $region56
      $region55: #{basic_block_enc_pallas.3} parent=51 // pred_region
        %s5810 = smul.u32 16, %s22
        %p5811 = scmp.lt.s32.totalorder %s21, 1
        %s5812 = scalar_select %p5811, %s21, 1
        %p5813 = scmp.lt.s32.totalorder %s5810, 15
        %s5814 = scalar_select %p5813, %s5810, 15
        %s5815 = smul.addr %s5814, 2
        %s5816 = smul.addr %s5812, 32
        %s5817 = sadd.s32 %s5815, %s5816
        %s5818 = smul.addr %s5817, 8
        %s5819 = scalar_lea.vmem %s4, %s5818
      $region56: #{basic_block_enc_pallas.3} parent=51 // pred_fallthru
        _
    $region52: #{basic_block_enc_pallas.3} parent=5 // pred_fallthru
      _
  $region6: #{basic_block_enc_pallas.3} parent=0 // loop_footer
    %s14 = sadd.s32 1, %s10
  $region7: #{basic_block_enc_pallas.3} parent=0 // loop_footer_branch
    %9 = sbr.rel target = $region3
  $region8: #{basic_block_enc_pallas.3} parent=0 // loop_exit
    _

// kernel: basic_block_enc_pallas.2
$region0: #{basic_block_enc_pallas.2}
  #allocation0 [shape = 'u32[]', space=smem, size = 0x4, offset = 0x4, fixed_abs, tag = 'smem constant byte address 0x4 - core index']
  #allocation1 [shape = 'u32[144,128]{1,0:T(1,128)}', space=vmem, size = 0x12000, scoped, tag = 'internal scratch']
  #allocation2 [shape = 'bf16[18,18,128]{2,1,0:T(8,128)(2,1)}', space=vmem, size = 0x1b000, scoped, tag = 'scratch operand']
  #allocation3 [shape = 'bf16[256,1152]{1,0:T(8,128)(2,1)}', space=vmem, size = 0x90000, scoped, tag = 'scratch operand']
  %s0 = inlined_call_operand.vmem [shape: bf16[2,16,16,128], index: 0, kind: input, shape index: {}]
  %s1 = inlined_call_operand.vmem [shape: bf16[1152,128], index: 1, kind: input, shape index: {}]
  %s2 = inlined_call_operand.vmem [shape: f32[1,128], index: 2, kind: input, shape index: {}]
  %s3 = inlined_call_operand.vmem [shape: bf16[2,16,16,128], index: 3, kind: output, shape index: {}]
  %s4 = sld [smem:[#allocation0]]
  $region53: #{basic_block_enc_pallas.2} parent=0
    _
  %s6 = ssub.s32 1, %s4
  %s7 = scalar_select 0, %s6, %s4
  loop: start=0, step=1, limit=4
  $region2: #{basic_block_enc_pallas.2} parent=0 // loop_pre_header
    _
  $region3: #{basic_block_enc_pallas.2} parent=0 // loop_header
    %s9 = sphi 0, %s13
    %p10 = scmp.ge.s32.totalorder %s9, 4
    %s16 = sphi 0, %s28
    %s17 = sphi 0, %s24
    %s18 = sphi 0, %s16
    %s19 = sphi 0, %s17
    %s20 = sphi 0, %s18
    %s21 = sphi 0, %s19
    %s31 = sphi 0, %s33
    %s34 = sphi 0, %s31
    %s35 = sphi 0, %s34
    %s51 = sphi 0, %s35
    %s55 = sphi 0, %s55
    %s57 = sphi 0, %s55
    %s58 = sphi 0, %s57
    %s72 = sphi 0, %s58
    %s76 = sphi 0, %s76
    %s78 = sphi 0, %s76
    %s79 = sphi 0, %s78
    %s93 = sphi 0, %s79
    %s101 = sphi 0, %s103
    %s104 = sphi 0, %s101
    %s105 = sphi 0, %s104
    %s121 = sphi 0, %s105
  $region4: #{basic_block_enc_pallas.2} parent=0 // loop_header_branch
    %12 = sbr.rel (%p10) target = $region8
  $region5: #{basic_block_enc_pallas.2} parent=0 // loop_body
    %s14 = ssub.s32 %s9, 1
    %s15 = ssub.s32 %s9, 2
    %s22 = sadd.s32 1, %s17
    %p23 = scmp.ge.s32.totalorder %s22, 1
    %s24 = scalar_select %p23, 0, %s22
    %s25 = sadd.s32 1, %s16
    %s26 = scalar_select %p23, %s25, %s16
    %p27 = scmp.ge.s32.totalorder %s26, 2
    %s28 = scalar_select %p27, 0, %s26
    %s29 = ssub.s32 %s16, %s28
    %p30 = scmp.eq.s32.totalorder %s29, 0
    %s32 = sadd.s32 %s31, 1
    %s33 = scalar_select %p30, %s31, %s32
    %p36 = pneg %p30
    %p37 = scmp.eq.s32.totalorder %s9, 1
    %p38 = por %p36, %p37
    %p39 = scmp.ne.s32.totalorder %s31, %s34
    %p40 = scmp.eq.s32.totalorder %s9, 0
    %p41 = por %p39, %p40
    %p42 = scmp.ne.s32.totalorder %s31, %s34
    %p43 = scmp.eq.s32.totalorder %s14, 1
    %p44 = por %p42, %p43
    %p45 = scmp.ne.s32.totalorder %s34, %s35
    %p46 = scmp.eq.s32.totalorder %s14, 0
    %p47 = por %p45, %p46
    %p48 = scmp.ne.s32.totalorder %s34, %s35
    %p49 = scmp.eq.s32.totalorder %s15, 1
    %p50 = por %p48, %p49
    %p52 = scmp.ne.s32.totalorder %s35, %s51
    %p53 = scmp.eq.s32.totalorder %s15, 0
    %p54 = por %p52, %p53
    %s56 = sadd.s32 %s55, 1
    %p59 = scmp.eq.s32.totalorder %s9, 1
    %p60 = scmp.ne.s32.totalorder %s55, %s57
    %p61 = scmp.eq.s32.totalorder %s9, 0
    %p62 = por %p60, %p61
    %p63 = scmp.ne.s32.totalorder %s55, %s57
    %p64 = scmp.eq.s32.totalorder %s14, 1
    %p65 = por %p63, %p64
    %p66 = scmp.ne.s32.totalorder %s57, %s58
    %p67 = scmp.eq.s32.totalorder %s14, 0
    %p68 = por %p66, %p67
    %p69 = scmp.ne.s32.totalorder %s57, %s58
    %p70 = scmp.eq.s32.totalorder %s15, 1
    %p71 = por %p69, %p70
    %p73 = scmp.ne.s32.totalorder %s58, %s72
    %p74 = scmp.eq.s32.totalorder %s15, 0
    %p75 = por %p73, %p74
    %s77 = sadd.s32 %s76, 1
    %p80 = scmp.eq.s32.totalorder %s9, 1
    %p81 = scmp.ne.s32.totalorder %s76, %s78
    %p82 = scmp.eq.s32.totalorder %s9, 0
    %p83 = por %p81, %p82
    %p84 = scmp.ne.s32.totalorder %s76, %s78
    %p85 = scmp.eq.s32.totalorder %s14, 1
    %p86 = por %p84, %p85
    %p87 = scmp.ne.s32.totalorder %s78, %s79
    %p88 = scmp.eq.s32.totalorder %s14, 0
    %p89 = por %p87, %p88
    %p90 = scmp.ne.s32.totalorder %s78, %s79
    %p91 = scmp.eq.s32.totalorder %s15, 1
    %p92 = por %p90, %p91
    %p94 = scmp.ne.s32.totalorder %s79, %s93
    %p95 = scmp.eq.s32.totalorder %s15, 0
    %p96 = por %p94, %p95
    %s97 = ssub.s32 %s16, %s28
    %s98 = ssub.s32 %s17, %s24
    %s99 = sor.u32 %s97, %s98
    %p100 = scmp.eq.s32.totalorder %s99, 0
    %s102 = sadd.s32 %s101, 1
    %s103 = scalar_select %p100, %s101, %s102
    %p106 = pneg %p100
    %p107 = scmp.eq.s32.totalorder %s9, 1
    %p108 = por %p106, %p107
    %p109 = scmp.ne.s32.totalorder %s101, %s104
    %p110 = scmp.eq.s32.totalorder %s9, 0
    %p111 = por %p109, %p110
    %p112 = scmp.ne.s32.totalorder %s101, %s104
    %p113 = scmp.eq.s32.totalorder %s14, 1
    %p114 = por %p112, %p113
    %p115 = scmp.ne.s32.totalorder %s104, %s105
    %p116 = scmp.eq.s32.totalorder %s14, 0
    %p117 = por %p115, %p116
    %p118 = scmp.ne.s32.totalorder %s104, %s105
    %p119 = scmp.eq.s32.totalorder %s15, 1
    %p120 = por %p118, %p119
    %p122 = scmp.ne.s32.totalorder %s105, %s121
    %p123 = scmp.eq.s32.totalorder %s15, 0
    %p124 = por %p122, %p123
    %p125 = scmp.le.s32.totalorder 1, %s9
    %p126 = scmp.lt.s32.totalorder %s9, 3
    %p127 = pnand %p125, %p126
    %p128 = pneg %p127
    // Predicated region
    $region9: #{basic_block_enc_pallas.2} parent=5 // pred_check
      _
    $region10: #{basic_block_enc_pallas.2} parent=5 // pred_check_branch
      %130 = sbr.rel (%p127) target = $region12
    $region11: #{basic_block_enc_pallas.2} parent=5 // pred_region
      %s131 = ssub.s32 %s9, 1
      // Predicated region
      $region13: #{basic_block_enc_pallas.2} parent=11 // pred_check
        %p132 = pneg %p68
      $region14: #{basic_block_enc_pallas.2} parent=11 // pred_check_branch
        %134 = sbr.rel (%p132) target = $region16
      $region15: #{basic_block_enc_pallas.2} parent=11 // pred_region
        _
      $region16: #{basic_block_enc_pallas.2} parent=11 // pred_fallthru
        _
      // Predicated region
      $region17: #{basic_block_enc_pallas.2} parent=11 // pred_check
        %p135 = pneg %p89
      $region18: #{basic_block_enc_pallas.2} parent=11 // pred_check_branch
        %137 = sbr.rel (%p135) target = $region20
      $region19: #{basic_block_enc_pallas.2} parent=11 // pred_region
        _
      $region20: #{basic_block_enc_pallas.2} parent=11 // pred_fallthru
        _
    $region12: #{basic_block_enc_pallas.2} parent=5 // pred_fallthru
      _
    %p138 = scmp.lt.s32.totalorder %s9, 2
    // Predicated region
    $region21: #{basic_block_enc_pallas.2} parent=5 // pred_check
      %p139 = pneg %p138
    $region22: #{basic_block_enc_pallas.2} parent=5 // pred_check_branch
      %141 = sbr.rel (%p139) target = $region24
    $region23: #{basic_block_enc_pallas.2} parent=5 // pred_region
      // Predicated region
      $region25: #{basic_block_enc_pallas.2} parent=23 // pred_check
        %p142 = pneg %p41
      $region26: #{basic_block_enc_pallas.2} parent=23 // pred_check_branch
        %144 = sbr.rel (%p142) target = $region28
      $region27: #{basic_block_enc_pallas.2} parent=23 // pred_region
        %p145 = scmp.lt.s32.totalorder %s16, 1
        %s146 = scalar_select %p145, %s16, 1
        %s147 = smul.addr %s146, 32
        %s148 = smul.addr %s147, 4
        %s149 = scalar_lea.vmem %s0, %s148
      $region28: #{basic_block_enc_pallas.2} parent=23 // pred_fallthru
        _
    $region24: #{basic_block_enc_pallas.2} parent=5 // pred_fallthru
      _
    %p150 = scmp.le.s32.totalorder 1, %s9
    %p151 = scmp.lt.s32.totalorder %s9, 3
    %p152 = pnand %p150, %p151
    %p153 = pneg %p152
    // Predicated region
    $region29: #{basic_block_enc_pallas.2} parent=5 // pred_check
      _
    $region30: #{basic_block_enc_pallas.2} parent=5 // pred_check_branch
      %155 = sbr.rel (%p152) target = $region32
    $region31: #{basic_block_enc_pallas.2} parent=5 // pred_region
      %s156 = ssub.s32 %s9, 1
      %p157 = scmp.lt.s32.totalorder %s18, 1
      %s158 = scalar_select %p157, %s18, 1
      %s159 = smul.addr %s158, 32
      %s160 = smul.addr %s159, 4
      %s161 = scalar_lea.vmem %s0, %s160
      %p162 = pneg %p47
      %p163 = pneg %p44
      %p164 = pneg %p68
      %p165 = pneg %p65
      %p166 = pneg %p89
      %p167 = pneg %p86
      %p168 = pneg %p117
      %p169 = pneg %p114
      %s170 = smul.u32 16, %s19
      %p171 = scmp.lt.s32.totalorder %s18, 1
      %s172 = scalar_select %p171, %s18, 1
      %p173 = scmp.lt.s32.totalorder %s170, 15
      %s174 = scalar_select %p173, %s170, 15
      %s175 = smul.addr %s174, 2
      %s176 = smul.addr %s172, 32
      %s177 = sadd.s32 %s175, %s176
      %s178 = smul.addr %s177, 4
      %s179 = scalar_lea.vmem %s3, %s178
      %p180 = scmp.lt.s32.totalorder %s18, 1
      %s181 = scalar_select %p180, %s18, 1
      %s182 = smul.addr %s181, 32
      %s183 = smul.addr %s182, 4
      %s184 = scalar_lea.vmem %s0, %s183
      %s185 = smul.u32 16, %s19
      %p186 = scmp.lt.s32.totalorder %s18, 1
      %s187 = scalar_select %p186, %s18, 1
      %p188 = scmp.lt.s32.totalorder %s185, 15
      %s189 = scalar_select %p188, %s185, 15
      %s190 = smul.addr %s189, 2
      %s191 = smul.addr %s187, 32
      %s192 = sadd.s32 %s190, %s191
      %s193 = smul.addr %s192, 4
      %s194 = scalar_lea.vmem %s3, %s193
      %s195 = smul.u32 16, %s19
      %s197 = smul.u32 %s19, 16
      %198 = vst [vmem:[#allocation2] sm:$0xf] 0
      %199 = vst [vmem:[#allocation2 + $0x4] sm:$0xf] 0
      %200 = vst [vmem:[#allocation2 + $0x8] sm:$0x1] 0
      %201 = vst [vmem:[#allocation2 + $0xc] sm:$0xf] 0
      %202 = vst [vmem:[#allocation2 + $0x10] sm:$0xf] 0
      %203 = vst [vmem:[#allocation2 + $0x14] sm:$0x1] 0
      %204 = vst [vmem:[#allocation2 + $0x18] sm:$0xf] 0
      %205 = vst [vmem:[#allocation2 + $0x1c] sm:$0xf] 0
      %206 = vst [vmem:[#allocation2 + $0x20] sm:$0x1] 0
      %207 = vst [vmem:[#allocation2 + $0x24] sm:$0xf] 0
      %208 = vst [vmem:[#allocation2 + $0x28] sm:$0xf] 0
      %209 = vst [vmem:[#allocation2 + $0x2c] sm:$0x1] 0
      %210 = vst [vmem:[#allocation2 + $0x30] sm:$0xf] 0
      %211 = vst [vmem:[#allocation2 + $0x34] sm:$0xf] 0
      %212 = vst [vmem:[#allocation2 + $0x38] sm:$0x1] 0
      %213 = vst [vmem:[#allocation2 + $0x3c] sm:$0xf] 0
      %214 = vst [vmem:[#allocation2 + $0x40] sm:$0xf] 0
      %215 = vst [vmem:[#allocation2 + $0x44] sm:$0x1] 0
      %216 = vst [vmem:[#allocation2 + $0x48] sm:$0xf] 0
      %217 = vst [vmem:[#allocation2 + $0x4c] sm:$0xf] 0
      %218 = vst [vmem:[#allocation2 + $0x50] sm:$0x1] 0
      %219 = vst [vmem:[#allocation2 + $0x54] sm:$0xf] 0
      %220 = vst [vmem:[#allocation2 + $0x58] sm:$0xf] 0
      %221 = vst [vmem:[#allocation2 + $0x5c] sm:$0x1] 0
      %222 = vst [vmem:[#allocation2 + $0x60] sm:$0xf] 0
      %223 = vst [vmem:[#allocation2 + $0x64] sm:$0xf] 0
      %224 = vst [vmem:[#allocation2 + $0x68] sm:$0x1] 0
      %225 = vst [vmem:[#allocation2 + $0x6c] sm:$0xf] 0
      %226 = vst [vmem:[#allocation2 + $0x70] sm:$0xf] 0
      %227 = vst [vmem:[#allocation2 + $0x74] sm:$0x1] 0
      %228 = vst [vmem:[#allocation2 + $0x78] sm:$0xf] 0
      %229 = vst [vmem:[#allocation2 + $0x7c] sm:$0xf] 0
      %230 = vst [vmem:[#allocation2 + $0x80] sm:$0x1] 0
      %231 = vst [vmem:[#allocation2 + $0x84] sm:$0xf] 0
      %232 = vst [vmem:[#allocation2 + $0x88] sm:$0xf] 0
      %233 = vst [vmem:[#allocation2 + $0x8c] sm:$0x1] 0
      %234 = vst [vmem:[#allocation2 + $0x90] sm:$0xf] 0
      %235 = vst [vmem:[#allocation2 + $0x94] sm:$0xf] 0
      %236 = vst [vmem:[#allocation2 + $0x98] sm:$0x1] 0
      %237 = vst [vmem:[#allocation2 + $0x9c] sm:$0xf] 0
      %238 = vst [vmem:[#allocation2 + $0xa0] sm:$0xf] 0
      %239 = vst [vmem:[#allocation2 + $0xa4] sm:$0x1] 0
      %240 = vst [vmem:[#allocation2 + $0xa8] sm:$0xf] 0
      %241 = vst [vmem:[#allocation2 + $0xac] sm:$0xf] 0
      %242 = vst [vmem:[#allocation2 + $0xb0] sm:$0x1] 0
      %243 = vst [vmem:[#allocation2 + $0xb4] sm:$0xf] 0
      %244 = vst [vmem:[#allocation2 + $0xb8] sm:$0xf] 0
      %245 = vst [vmem:[#allocation2 + $0xbc] sm:$0x1] 0
      %246 = vst [vmem:[#allocation2 + $0xc0] sm:$0xf] 0
      %247 = vst [vmem:[#allocation2 + $0xc4] sm:$0xf] 0
      %248 = vst [vmem:[#allocation2 + $0xc8] sm:$0x1] 0
      %249 = vst [vmem:[#allocation2 + $0xcc] sm:$0xf] 0
      %250 = vst [vmem:[#allocation2 + $0xd0] sm:$0xf] 0
      %251 = vst [vmem:[#allocation2 + $0xd4] sm:$0x1] 0
      %s252 = smul.u32 %s197, 2
      %s253 = smul.addr %s252, 4
      %s254 = scalar_lea.vmem %s184, %s253
      %v255 = vld [vmem:[%s254] sm:$0xf]
      %v256 = vld [vmem:[%s254 + $0x4] sm:$0xf]
      %v257 = vld [vmem:[%s254 + $0x8] sm:$0xf]
      %v258 = vld [vmem:[%s254 + $0xc] sm:$0xf]
      %v259 = vld [vmem:[%s254 + $0x10] sm:$0xf]
      %v260 = vld [vmem:[%s254 + $0x14] sm:$0xf]
      %v261 = vld [vmem:[%s254 + $0x18] sm:$0xf]
      %v262 = vld [vmem:[%s254 + $0x1c] sm:$0xf]
      %v263 = vld [vmem:[%s254 + $0x20] sm:$0xf]
      %v264 = vld [vmem:[%s254 + $0x24] sm:$0xf]
      %v265 = vld [vmem:[%s254 + $0x28] sm:$0xf]
      %v266 = vld [vmem:[%s254 + $0x2c] sm:$0xf]
      %v267 = vld [vmem:[%s254 + $0x30] sm:$0xf]
      %v268 = vld [vmem:[%s254 + $0x34] sm:$0xf]
      %v269 = vld [vmem:[%s254 + $0x38] sm:$0xf]
      %v270 = vld [vmem:[%s254 + $0x3c] sm:$0xf]
      %v271 = vld [vmem:[%s254 + $0x40] sm:$0xf]
      %v272 = vld [vmem:[%s254 + $0x44] sm:$0xf]
      %v273 = vld [vmem:[%s254 + $0x48] sm:$0xf]
      %v274 = vld [vmem:[%s254 + $0x4c] sm:$0xf]
      %v275 = vld [vmem:[%s254 + $0x50] sm:$0xf]
      %v276 = vld [vmem:[%s254 + $0x54] sm:$0xf]
      %v277 = vld [vmem:[%s254 + $0x58] sm:$0xf]
      %v278 = vld [vmem:[%s254 + $0x5c] sm:$0xf]
      %v279 = vld [vmem:[%s254 + $0x60] sm:$0xf]
      %v280 = vld [vmem:[%s254 + $0x64] sm:$0xf]
      %v281 = vld [vmem:[%s254 + $0x68] sm:$0xf]
      %v282 = vld [vmem:[%s254 + $0x6c] sm:$0xf]
      %v283 = vld [vmem:[%s254 + $0x70] sm:$0xf]
      %v284 = vld [vmem:[%s254 + $0x74] sm:$0xf]
      %v285 = vld [vmem:[%s254 + $0x78] sm:$0xf]
      %v286 = vld [vmem:[%s254 + $0x7c] sm:$0xf]
      %vm287 = vsmask.f32 256
      %vm288 = vsmask.f32 4368
      %vm289 = vmor %vm287, %vm288
      %v291 = vshrl.u32 %v255, 16
      %v293 = vrot.slane %v291, 7
      %v294 = vshll.u32 %v255, 16
      %v296 = vor.u32 %v293, %v294
      %v297 = vrot.slane %v293, 4
      %v299 = vshrl.u32 %v256, 16
      %v301 = vrot.slane %v299, 7
      %v302 = vshll.u32 %v256, 16
      %v304 = vor.u32 %v301, %v302
      %v305 = vsel %vm289, %v297, %v304
      %v306 = vrot.slane %v301, 4
      %v308 = vshrl.u32 %v257, 16
      %v310 = vrot.slane %v308, 7
      %v311 = vshll.u32 %v257, 16
      %v313 = vor.u32 %v310, %v311
      %v314 = vrot.slane %v310, 4
      %v316 = vshrl.u32 %v258, 16
      %v318 = vrot.slane %v316, 7
      %v319 = vshll.u32 %v258, 16
      %v321 = vor.u32 %v318, %v319
      %v322 = vsel %vm289, %v314, %v321
      %v323 = vrot.slane %v318, 4
      %v325 = vshrl.u32 %v259, 16
      %v327 = vrot.slane %v325, 7
      %v328 = vshll.u32 %v259, 16
      %v330 = vor.u32 %v327, %v328
      %v331 = vrot.slane %v327, 4
      %v333 = vshrl.u32 %v260, 16
      %v335 = vrot.slane %v333, 7
      %v336 = vshll.u32 %v260, 16
      %v338 = vor.u32 %v335, %v336
      %v339 = vsel %vm289, %v331, %v338
      %v340 = vrot.slane %v335, 4
      %v342 = vshrl.u32 %v261, 16
      %v344 = vrot.slane %v342, 7
      %v345 = vshll.u32 %v261, 16
      %v347 = vor.u32 %v344, %v345
      %v348 = vrot.slane %v344, 4
      %v350 = vshrl.u32 %v262, 16
      %v352 = vrot.slane %v350, 7
      %v353 = vshll.u32 %v262, 16
      %v355 = vor.u32 %v352, %v353
      %v356 = vsel %vm289, %v348, %v355
      %v357 = vrot.slane %v352, 4
      %v359 = vshrl.u32 %v263, 16
      %v361 = vrot.slane %v359, 7
      %v362 = vshll.u32 %v263, 16
      %v364 = vor.u32 %v361, %v362
      %v365 = vrot.slane %v361, 4
      %v367 = vshrl.u32 %v264, 16
      %v369 = vrot.slane %v367, 7
      %v370 = vshll.u32 %v264, 16
      %v372 = vor.u32 %v369, %v370
      %v373 = vsel %vm289, %v365, %v372
      %v374 = vrot.slane %v369, 4
      %v376 = vshrl.u32 %v265, 16
      %v378 = vrot.slane %v376, 7
      %v379 = vshll.u32 %v265, 16
      %v381 = vor.u32 %v378, %v379
      %v382 = vrot.slane %v378, 4
      %v384 = vshrl.u32 %v266, 16
      %v386 = vrot.slane %v384, 7
      %v387 = vshll.u32 %v266, 16
      %v389 = vor.u32 %v386, %v387
      %v390 = vsel %vm289, %v382, %v389
      %v391 = vrot.slane %v386, 4
      %v393 = vshrl.u32 %v267, 16
      %v395 = vrot.slane %v393, 7
      %v396 = vshll.u32 %v267, 16
      %v398 = vor.u32 %v395, %v396
      %v399 = vrot.slane %v395, 4
      %v401 = vshrl.u32 %v268, 16
      %v403 = vrot.slane %v401, 7
      %v404 = vshll.u32 %v268, 16
      %v406 = vor.u32 %v403, %v404
      %v407 = vsel %vm289, %v399, %v406
      %v408 = vrot.slane %v403, 4
      %v410 = vshrl.u32 %v269, 16
      %v412 = vrot.slane %v410, 7
      %v413 = vshll.u32 %v269, 16
      %v415 = vor.u32 %v412, %v413
      %v416 = vrot.slane %v412, 4
      %v418 = vshrl.u32 %v270, 16
      %v420 = vrot.slane %v418, 7
      %v421 = vshll.u32 %v270, 16
      %v423 = vor.u32 %v420, %v421
      %v424 = vsel %vm289, %v416, %v423
      %v425 = vrot.slane %v420, 4
      %v427 = vshrl.u32 %v271, 16
      %v429 = vrot.slane %v427, 7
      %v430 = vshll.u32 %v271, 16
      %v432 = vor.u32 %v429, %v430
      %v433 = vrot.slane %v429, 4
      %v435 = vshrl.u32 %v272, 16
      %v437 = vrot.slane %v435, 7
      %v438 = vshll.u32 %v272, 16
      %v440 = vor.u32 %v437, %v438
      %v441 = vsel %vm289, %v433, %v440
      %v442 = vrot.slane %v437, 4
      %v444 = vshrl.u32 %v273, 16
      %v446 = vrot.slane %v444, 7
      %v447 = vshll.u32 %v273, 16
      %v449 = vor.u32 %v446, %v447
      %v450 = vrot.slane %v446, 4
      %v452 = vshrl.u32 %v274, 16
      %v454 = vrot.slane %v452, 7
      %v455 = vshll.u32 %v274, 16
      %v457 = vor.u32 %v454, %v455
      %v458 = vsel %vm289, %v450, %v457
      %v459 = vrot.slane %v454, 4
      %v461 = vshrl.u32 %v275, 16
      %v463 = vrot.slane %v461, 7
      %v464 = vshll.u32 %v275, 16
      %v466 = vor.u32 %v463, %v464
      %v467 = vrot.slane %v463, 4
      %v469 = vshrl.u32 %v276, 16
      %v471 = vrot.slane %v469, 7
      %v472 = vshll.u32 %v276, 16
      %v474 = vor.u32 %v471, %v472
      %v475 = vsel %vm289, %v467, %v474
      %v476 = vrot.slane %v471, 4
      %v478 = vshrl.u32 %v277, 16
      %v480 = vrot.slane %v478, 7
      %v481 = vshll.u32 %v277, 16
      %v483 = vor.u32 %v480, %v481
      %v484 = vrot.slane %v480, 4
      %v486 = vshrl.u32 %v278, 16
      %v488 = vrot.slane %v486, 7
      %v489 = vshll.u32 %v278, 16
      %v491 = vor.u32 %v488, %v489
      %v492 = vsel %vm289, %v484, %v491
      %v493 = vrot.slane %v488, 4
      %v495 = vshrl.u32 %v279, 16
      %v497 = vrot.slane %v495, 7
      %v498 = vshll.u32 %v279, 16
      %v500 = vor.u32 %v497, %v498
      %v501 = vrot.slane %v497, 4
      %v503 = vshrl.u32 %v280, 16
      %v505 = vrot.slane %v503, 7
      %v506 = vshll.u32 %v280, 16
      %v508 = vor.u32 %v505, %v506
      %v509 = vsel %vm289, %v501, %v508
      %v510 = vrot.slane %v505, 4
      %v512 = vshrl.u32 %v281, 16
      %v514 = vrot.slane %v512, 7
      %v515 = vshll.u32 %v281, 16
      %v517 = vor.u32 %v514, %v515
      %v518 = vrot.slane %v514, 4
      %v520 = vshrl.u32 %v282, 16
      %v522 = vrot.slane %v520, 7
      %v523 = vshll.u32 %v282, 16
      %v525 = vor.u32 %v522, %v523
      %v526 = vsel %vm289, %v518, %v525
      %v527 = vrot.slane %v522, 4
      %v529 = vshrl.u32 %v283, 16
      %v531 = vrot.slane %v529, 7
      %v532 = vshll.u32 %v283, 16
      %v534 = vor.u32 %v531, %v532
      %v535 = vrot.slane %v531, 4
      %v537 = vshrl.u32 %v284, 16
      %v539 = vrot.slane %v537, 7
      %v540 = vshll.u32 %v284, 16
      %v542 = vor.u32 %v539, %v540
      %v543 = vsel %vm289, %v535, %v542
      %v544 = vrot.slane %v539, 4
      %v546 = vshrl.u32 %v285, 16
      %v548 = vrot.slane %v546, 7
      %v549 = vshll.u32 %v285, 16
      %v551 = vor.u32 %v548, %v549
      %v552 = vrot.slane %v548, 4
      %v554 = vshrl.u32 %v286, 16
      %v556 = vrot.slane %v554, 7
      %v557 = vshll.u32 %v286, 16
      %v559 = vor.u32 %v556, %v557
      %v560 = vsel %vm289, %v552, %v559
      %v561 = vrot.slane %v556, 4
      %s610 = scalar_lea.vmem [#allocation2], 12
      %vm611 = vcmask 1043456
      %vm612 = vsmask.f32 7938
      %vm613 = vmand %vm611, %vm612
      %v614 = vld [vmem:[%s610] sm:$0xf]
      %v615 = vsel %vm613, %v296, %v614
      %616 = vst [vmem:[%s610] sm:$0xf] %v615
      %617 = vst [vmem:[%s610 + $0x4] sm:$0xf] %v305
      %vm618 = vcmask 1040384
      %vm619 = vmand %vm618, %vm287
      %v620 = vld [vmem:[%s610 + $0x8] sm:$0x1]
      %v621 = vsel %vm619, %v306, %v620
      %622 = vst [vmem:[%s610 + $0x8] sm:$0x1] %v621
      %v623 = vld [vmem:[%s610 + $0xc] sm:$0xf]
      %v624 = vsel %vm613, %v313, %v623
      %625 = vst [vmem:[%s610 + $0xc] sm:$0xf] %v624
      %626 = vst [vmem:[%s610 + $0x10] sm:$0xf] %v322
      %v627 = vld [vmem:[%s610 + $0x14] sm:$0x1]
      %v628 = vsel %vm619, %v323, %v627
      %629 = vst [vmem:[%s610 + $0x14] sm:$0x1] %v628
      %v630 = vld [vmem:[%s610 + $0x18] sm:$0xf]
      %v631 = vsel %vm613, %v330, %v630
      %632 = vst [vmem:[%s610 + $0x18] sm:$0xf] %v631
      %633 = vst [vmem:[%s610 + $0x1c] sm:$0xf] %v339
      %v634 = vld [vmem:[%s610 + $0x20] sm:$0x1]
      %v635 = vsel %vm619, %v340, %v634
      %636 = vst [vmem:[%s610 + $0x20] sm:$0x1] %v635
      %v637 = vld [vmem:[%s610 + $0x24] sm:$0xf]
      %v638 = vsel %vm613, %v347, %v637
      %639 = vst [vmem:[%s610 + $0x24] sm:$0xf] %v638
      %640 = vst [vmem:[%s610 + $0x28] sm:$0xf] %v356
      %v641 = vld [vmem:[%s610 + $0x2c] sm:$0x1]
      %v642 = vsel %vm619, %v357, %v641
      %643 = vst [vmem:[%s610 + $0x2c] sm:$0x1] %v642
      %v644 = vld [vmem:[%s610 + $0x30] sm:$0xf]
      %v645 = vsel %vm613, %v364, %v644
      %646 = vst [vmem:[%s610 + $0x30] sm:$0xf] %v645
      %647 = vst [vmem:[%s610 + $0x34] sm:$0xf] %v373
      %v648 = vld [vmem:[%s610 + $0x38] sm:$0x1]
      %v649 = vsel %vm619, %v374, %v648
      %650 = vst [vmem:[%s610 + $0x38] sm:$0x1] %v649
      %v651 = vld [vmem:[%s610 + $0x3c] sm:$0xf]
      %v652 = vsel %vm613, %v381, %v651
      %653 = vst [vmem:[%s610 + $0x3c] sm:$0xf] %v652
      %654 = vst [vmem:[%s610 + $0x40] sm:$0xf] %v390
      %v655 = vld [vmem:[%s610 + $0x44] sm:$0x1]
      %v656 = vsel %vm619, %v391, %v655
      %657 = vst [vmem:[%s610 + $0x44] sm:$0x1] %v656
      %v658 = vld [vmem:[%s610 + $0x48] sm:$0xf]
      %v659 = vsel %vm613, %v398, %v658
      %660 = vst [vmem:[%s610 + $0x48] sm:$0xf] %v659
      %661 = vst [vmem:[%s610 + $0x4c] sm:$0xf] %v407
      %v662 = vld [vmem:[%s610 + $0x50] sm:$0x1]
      %v663 = vsel %vm619, %v408, %v662
      %664 = vst [vmem:[%s610 + $0x50] sm:$0x1] %v663
      %v665 = vld [vmem:[%s610 + $0x54] sm:$0xf]
      %v666 = vsel %vm613, %v415, %v665
      %667 = vst [vmem:[%s610 + $0x54] sm:$0xf] %v666
      %668 = vst [vmem:[%s610 + $0x58] sm:$0xf] %v424
      %v669 = vld [vmem:[%s610 + $0x5c] sm:$0x1]
      %v670 = vsel %vm619, %v425, %v669
      %671 = vst [vmem:[%s610 + $0x5c] sm:$0x1] %v670
      %v672 = vld [vmem:[%s610 + $0x60] sm:$0xf]
      %v673 = vsel %vm613, %v432, %v672
      %674 = vst [vmem:[%s610 + $0x60] sm:$0xf] %v673
      %675 = vst [vmem:[%s610 + $0x64] sm:$0xf] %v441
      %v676 = vld [vmem:[%s610 + $0x68] sm:$0x1]
      %v677 = vsel %vm619, %v442, %v676
      %678 = vst [vmem:[%s610 + $0x68] sm:$0x1] %v677
      %v679 = vld [vmem:[%s610 + $0x6c] sm:$0xf]
      %v680 = vsel %vm613, %v449, %v679
      %681 = vst [vmem:[%s610 + $0x6c] sm:$0xf] %v680
      %682 = vst [vmem:[%s610 + $0x70] sm:$0xf] %v458
      %v683 = vld [vmem:[%s610 + $0x74] sm:$0x1]
      %v684 = vsel %vm619, %v459, %v683
      %685 = vst [vmem:[%s610 + $0x74] sm:$0x1] %v684
      %v686 = vld [vmem:[%s610 + $0x78] sm:$0xf]
      %v687 = vsel %vm613, %v466, %v686
      %688 = vst [vmem:[%s610 + $0x78] sm:$0xf] %v687
      %689 = vst [vmem:[%s610 + $0x7c] sm:$0xf] %v475
      %v690 = vld [vmem:[%s610 + $0x80] sm:$0x1]
      %v691 = vsel %vm619, %v476, %v690
      %692 = vst [vmem:[%s610 + $0x80] sm:$0x1] %v691
      %v693 = vld [vmem:[%s610 + $0x84] sm:$0xf]
      %v694 = vsel %vm613, %v483, %v693
      %695 = vst [vmem:[%s610 + $0x84] sm:$0xf] %v694
      %696 = vst [vmem:[%s610 + $0x88] sm:$0xf] %v492
      %v697 = vld [vmem:[%s610 + $0x8c] sm:$0x1]
      %v698 = vsel %vm619, %v493, %v697
      %699 = vst [vmem:[%s610 + $0x8c] sm:$0x1] %v698
      %v700 = vld [vmem:[%s610 + $0x90] sm:$0xf]
      %v701 = vsel %vm613, %v500, %v700
      %702 = vst [vmem:[%s610 + $0x90] sm:$0xf] %v701
      %703 = vst [vmem:[%s610 + $0x94] sm:$0xf] %v509
      %v704 = vld [vmem:[%s610 + $0x98] sm:$0x1]
      %v705 = vsel %vm619, %v510, %v704
      %706 = vst [vmem:[%s610 + $0x98] sm:$0x1] %v705
      %v707 = vld [vmem:[%s610 + $0x9c] sm:$0xf]
      %v708 = vsel %vm613, %v517, %v707
      %709 = vst [vmem:[%s610 + $0x9c] sm:$0xf] %v708
      %710 = vst [vmem:[%s610 + $0xa0] sm:$0xf] %v526
      %v711 = vld [vmem:[%s610 + $0xa4] sm:$0x1]
      %v712 = vsel %vm619, %v527, %v711
      %713 = vst [vmem:[%s610 + $0xa4] sm:$0x1] %v712
      %v714 = vld [vmem:[%s610 + $0xa8] sm:$0xf]
      %v715 = vsel %vm613, %v534, %v714
      %716 = vst [vmem:[%s610 + $0xa8] sm:$0xf] %v715
      %717 = vst [vmem:[%s610 + $0xac] sm:$0xf] %v543
      %v718 = vld [vmem:[%s610 + $0xb0] sm:$0x1]
      %v719 = vsel %vm619, %v544, %v718
      %720 = vst [vmem:[%s610 + $0xb0] sm:$0x1] %v719
      %v721 = vld [vmem:[%s610 + $0xb4] sm:$0xf]
      %v722 = vsel %vm613, %v551, %v721
      %723 = vst [vmem:[%s610 + $0xb4] sm:$0xf] %v722
      %724 = vst [vmem:[%s610 + $0xb8] sm:$0xf] %v560
      %v725 = vld [vmem:[%s610 + $0xbc] sm:$0x1]
      %v726 = vsel %vm619, %v561, %v725
      %727 = vst [vmem:[%s610 + $0xbc] sm:$0x1] %v726
      %p728 = scmp.gt.s32.totalorder %s197, 0
      // Predicated region
      $region33: #{basic_block_enc_pallas.2} parent=31 // pred_check
        %p729 = pneg %p728
      $region34: #{basic_block_enc_pallas.2} parent=31 // pred_check_branch
        %731 = sbr.rel (%p729) target = $region36
      $region35: #{basic_block_enc_pallas.2} parent=31 // pred_region
        %s732 = ssub.s32 %s197, 1
        %p733 = scmp.gt.s32.totalorder %s732, 0
        %s734 = scalar_select %p733, %s732, 0
        %s735 = smul.u32 %s734, 2
        %s736 = smul.addr %s735, 4
        %s737 = scalar_lea.vmem %s184, %s736
        %v738 = vld [vmem:[%s737] sm:$0xf]
        %v739 = vld [vmem:[%s737 + $0x4] sm:$0xf]
        %v741 = vshrl.u32 %v738, 16
        %v743 = vrot.slane %v741, 7
        %v744 = vshll.u32 %v738, 16
        %v746 = vor.u32 %v743, %v744
        %v747 = vrot.slane %v743, 4
        %v749 = vshrl.u32 %v739, 16
        %v751 = vrot.slane %v749, 7
        %v752 = vshll.u32 %v739, 16
        %v754 = vor.u32 %v751, %v752
        %v755 = vsel %vm289, %v747, %v754
        %v756 = vrot.slane %v751, 4
        %v760 = vld [vmem:[#allocation2] sm:$0xf]
        %v761 = vsel %vm613, %v746, %v760
        %762 = vst [vmem:[#allocation2] sm:$0xf] %v761
        %763 = vst [vmem:[#allocation2 + $0x4] sm:$0xf] %v755
        %v764 = vld [vmem:[#allocation2 + $0x8] sm:$0x1]
        %v765 = vsel %vm619, %v756, %v764
        %766 = vst [vmem:[#allocation2 + $0x8] sm:$0x1] %v765
      $region36: #{basic_block_enc_pallas.2} parent=31 // pred_fallthru
        _
      %s767 = sadd.s32 %s197, 16
      %p768 = scmp.lt.s32.totalorder %s767, 16
      // Predicated region
      $region37: #{basic_block_enc_pallas.2} parent=31 // pred_check
        %p769 = pneg %p768
      $region38: #{basic_block_enc_pallas.2} parent=31 // pred_check_branch
        %771 = sbr.rel (%p769) target = $region40
      $region39: #{basic_block_enc_pallas.2} parent=31 // pred_region
        %p772 = scmp.lt.s32.totalorder %s767, 15
        %s773 = scalar_select %p772, %s767, 15
        %s774 = smul.u32 %s773, 2
        %s775 = smul.addr %s774, 4
        %s776 = scalar_lea.vmem %s184, %s775
        %v777 = vld [vmem:[%s776] sm:$0xf]
        %v778 = vld [vmem:[%s776 + $0x4] sm:$0xf]
        %v780 = vshrl.u32 %v777, 16
        %v782 = vrot.slane %v780, 7
        %v783 = vshll.u32 %v777, 16
        %v785 = vor.u32 %v782, %v783
        %v786 = vrot.slane %v782, 4
        %v788 = vshrl.u32 %v778, 16
        %v790 = vrot.slane %v788, 7
        %v791 = vshll.u32 %v778, 16
        %v793 = vor.u32 %v790, %v791
        %v794 = vsel %vm289, %v786, %v793
        %v795 = vrot.slane %v790, 4
        %s799 = scalar_lea.vmem [#allocation2], 204
        %v800 = vld [vmem:[%s799] sm:$0xf]
        %v801 = vsel %vm613, %v785, %v800
        %802 = vst [vmem:[%s799] sm:$0xf] %v801
        %803 = vst [vmem:[%s799 + $0x4] sm:$0xf] %v794
        %v804 = vld [vmem:[%s799 + $0x8] sm:$0x1]
        %v805 = vsel %vm619, %v795, %v804
        %806 = vst [vmem:[%s799 + $0x8] sm:$0x1] %v805
      $region40: #{basic_block_enc_pallas.2} parent=31 // pred_fallthru
        _
      %v807 = vld [vmem:[#allocation2] sm:$0xf]
      %v808 = vld [vmem:[#allocation2 + $0x4] sm:$0xf]
      %v809 = vld [vmem:[#allocation2 + $0xc] sm:$0xf]
      %v810 = vld [vmem:[#allocation2 + $0x10] sm:$0xf]
      %v811 = vld [vmem:[#allocation2 + $0x18] sm:$0xf]
      %v812 = vld [vmem:[#allocation2 + $0x1c] sm:$0xf]
      %v813 = vld [vmem:[#allocation2 + $0x24] sm:$0xf]
      %v814 = vld [vmem:[#allocation2 + $0x28] sm:$0xf]
      %v815 = vld [vmem:[#allocation2 + $0x30] sm:$0xf]
      %v816 = vld [vmem:[#allocation2 + $0x34] sm:$0xf]
      %v817 = vld [vmem:[#allocation2 + $0x3c] sm:$0xf]
      %v818 = vld [vmem:[#allocation2 + $0x40] sm:$0xf]
      %v819 = vld [vmem:[#allocation2 + $0x48] sm:$0xf]
      %v820 = vld [vmem:[#allocation2 + $0x4c] sm:$0xf]
      %v821 = vld [vmem:[#allocation2 + $0x54] sm:$0xf]
      %v822 = vld [vmem:[#allocation2 + $0x58] sm:$0xf]
      %v823 = vld [vmem:[#allocation2 + $0x60] sm:$0xf]
      %v824 = vld [vmem:[#allocation2 + $0x64] sm:$0xf]
      %v825 = vld [vmem:[#allocation2 + $0x6c] sm:$0xf]
      %v826 = vld [vmem:[#allocation2 + $0x70] sm:$0xf]
      %v827 = vld [vmem:[#allocation2 + $0x78] sm:$0xf]
      %v828 = vld [vmem:[#allocation2 + $0x7c] sm:$0xf]
      %v829 = vld [vmem:[#allocation2 + $0x84] sm:$0xf]
      %v830 = vld [vmem:[#allocation2 + $0x88] sm:$0xf]
      %v831 = vld [vmem:[#allocation2 + $0x90] sm:$0xf]
      %v832 = vld [vmem:[#allocation2 + $0x94] sm:$0xf]
      %v833 = vld [vmem:[#allocation2 + $0x9c] sm:$0xf]
      %v834 = vld [vmem:[#allocation2 + $0xa0] sm:$0xf]
      %v835 = vld [vmem:[#allocation2 + $0xa8] sm:$0xf]
      %v836 = vld [vmem:[#allocation2 + $0xac] sm:$0xf]
      %v837 = vld [vmem:[#allocation2 + $0xb4] sm:$0xf]
      %v838 = vld [vmem:[#allocation2 + $0xb8] sm:$0xf]
      %839 = vst [vmem:[#allocation3] sm:$0xf] %v807
      %840 = vst [vmem:[#allocation3 + $0x24] sm:$0xf] %v808
      %841 = vst [vmem:[#allocation3 + $0x48] sm:$0xf] %v809
      %842 = vst [vmem:[#allocation3 + $0x6c] sm:$0xf] %v810
      %843 = vst [vmem:[#allocation3 + $0x90] sm:$0xf] %v811
      %844 = vst [vmem:[#allocation3 + $0xb4] sm:$0xf] %v812
      %845 = vst [vmem:[#allocation3 + $0xd8] sm:$0xf] %v813
      %846 = vst [vmem:[#allocation3 + $0xfc] sm:$0xf] %v814
      %847 = vst [vmem:[#allocation3 + $0x120] sm:$0xf] %v815
      %848 = vst [vmem:[#allocation3 + $0x144] sm:$0xf] %v816
      %849 = vst [vmem:[#allocation3 + $0x168] sm:$0xf] %v817
      %850 = vst [vmem:[#allocation3 + $0x18c] sm:$0xf] %v818
      %851 = vst [vmem:[#allocation3 + $0x1b0] sm:$0xf] %v819
      %852 = vst [vmem:[#allocation3 + $0x1d4] sm:$0xf] %v820
      %853 = vst [vmem:[#allocation3 + $0x1f8] sm:$0xf] %v821
      %854 = vst [vmem:[#allocation3 + $0x21c] sm:$0xf] %v822
      %855 = vst [vmem:[#allocation3 + $0x240] sm:$0xf] %v823
      %856 = vst [vmem:[#allocation3 + $0x264] sm:$0xf] %v824
      %857 = vst [vmem:[#allocation3 + $0x288] sm:$0xf] %v825
      %858 = vst [vmem:[#allocation3 + $0x2ac] sm:$0xf] %v826
      %859 = vst [vmem:[#allocation3 + $0x2d0] sm:$0xf] %v827
      %860 = vst [vmem:[#allocation3 + $0x2f4] sm:$0xf] %v828
      %861 = vst [vmem:[#allocation3 + $0x318] sm:$0xf] %v829
      %862 = vst [vmem:[#allocation3 + $0x33c] sm:$0xf] %v830
      %863 = vst [vmem:[#allocation3 + $0x360] sm:$0xf] %v831
      %864 = vst [vmem:[#allocation3 + $0x384] sm:$0xf] %v832
      %865 = vst [vmem:[#allocation3 + $0x3a8] sm:$0xf] %v833
      %866 = vst [vmem:[#allocation3 + $0x3cc] sm:$0xf] %v834
      %867 = vst [vmem:[#allocation3 + $0x3f0] sm:$0xf] %v835
      %868 = vst [vmem:[#allocation3 + $0x414] sm:$0xf] %v836
      %869 = vst [vmem:[#allocation3 + $0x438] sm:$0xf] %v837
      %870 = vst [vmem:[#allocation3 + $0x45c] sm:$0xf] %v838
      %v871 = vld [vmem:[#allocation2] sm:$0xf]
      %v872 = vld [vmem:[#allocation2 + $0x4] sm:$0xf]
      %v873 = vld [vmem:[#allocation2 + $0x8] sm:$0x1]
      %v874 = vld [vmem:[#allocation2 + $0xc] sm:$0xf]
      %v875 = vld [vmem:[#allocation2 + $0x10] sm:$0xf]
      %v876 = vld [vmem:[#allocation2 + $0x14] sm:$0x1]
      %v877 = vld [vmem:[#allocation2 + $0x18] sm:$0xf]
      %v878 = vld [vmem:[#allocation2 + $0x1c] sm:$0xf]
      %v879 = vld [vmem:[#allocation2 + $0x20] sm:$0x1]
      %v880 = vld [vmem:[#allocation2 + $0x24] sm:$0xf]
      %v881 = vld [vmem:[#allocation2 + $0x28] sm:$0xf]
      %v882 = vld [vmem:[#allocation2 + $0x2c] sm:$0x1]
      %v883 = vld [vmem:[#allocation2 + $0x30] sm:$0xf]
      %v884 = vld [vmem:[#allocation2 + $0x34] sm:$0xf]
      %v885 = vld [vmem:[#allocation2 + $0x38] sm:$0x1]
      %v886 = vld [vmem:[#allocation2 + $0x3c] sm:$0xf]
      %v887 = vld [vmem:[#allocation2 + $0x40] sm:$0xf]
      %v888 = vld [vmem:[#allocation2 + $0x44] sm:$0x1]
      %v889 = vld [vmem:[#allocation2 + $0x48] sm:$0xf]
      %v890 = vld [vmem:[#allocation2 + $0x4c] sm:$0xf]
      %v891 = vld [vmem:[#allocation2 + $0x50] sm:$0x1]
      %v892 = vld [vmem:[#allocation2 + $0x54] sm:$0xf]
      %v893 = vld [vmem:[#allocation2 + $0x58] sm:$0xf]
      %v894 = vld [vmem:[#allocation2 + $0x5c] sm:$0x1]
      %v895 = vld [vmem:[#allocation2 + $0x60] sm:$0xf]
      %v896 = vld [vmem:[#allocation2 + $0x64] sm:$0xf]
      %v897 = vld [vmem:[#allocation2 + $0x68] sm:$0x1]
      %v898 = vld [vmem:[#allocation2 + $0x6c] sm:$0xf]
      %v899 = vld [vmem:[#allocation2 + $0x70] sm:$0xf]
      %v900 = vld [vmem:[#allocation2 + $0x74] sm:$0x1]
      %v901 = vld [vmem:[#allocation2 + $0x78] sm:$0xf]
      %v902 = vld [vmem:[#allocation2 + $0x7c] sm:$0xf]
      %v903 = vld [vmem:[#allocation2 + $0x80] sm:$0x1]
      %v904 = vld [vmem:[#allocation2 + $0x84] sm:$0xf]
      %v905 = vld [vmem:[#allocation2 + $0x88] sm:$0xf]
      %v906 = vld [vmem:[#allocation2 + $0x8c] sm:$0x1]
      %v907 = vld [vmem:[#allocation2 + $0x90] sm:$0xf]
      %v908 = vld [vmem:[#allocation2 + $0x94] sm:$0xf]
      %v909 = vld [vmem:[#allocation2 + $0x98] sm:$0x1]
      %v910 = vld [vmem:[#allocation2 + $0x9c] sm:$0xf]
      %v911 = vld [vmem:[#allocation2 + $0xa0] sm:$0xf]
      %v912 = vld [vmem:[#allocation2 + $0xa4] sm:$0x1]
      %v913 = vld [vmem:[#allocation2 + $0xa8] sm:$0xf]
      %v914 = vld [vmem:[#allocation2 + $0xac] sm:$0xf]
      %v915 = vld [vmem:[#allocation2 + $0xb0] sm:$0x1]
      %v916 = vld [vmem:[#allocation2 + $0xb4] sm:$0xf]
      %v917 = vld [vmem:[#allocation2 + $0xb8] sm:$0xf]
      %v918 = vld [vmem:[#allocation2 + $0xbc] sm:$0x1]
      %vm919 = vsmask.f32 3328
      %vm920 = vsmask.f32 7440
      %vm921 = vmor %vm919, %vm920
      %v923 = vshrl.u32 %v871, 16
      %v925 = vrot.slane %v923, 4
      %v926 = vshll.u32 %v871, 16
      %v928 = vrot.slane %v926, 5
      %v929 = vor.u32 %v925, %v928
      %v930 = vrot.slane %v929, 4
      %v932 = vshll.u32 %v872, 16
      %v934 = vrot.slane %v932, 5
      %v935 = vsel %vm921, %v930, %v934
      %v936 = vshrl.u32 %v872, 16
      %v938 = vrot.slane %v936, 4
      %v939 = vor.u32 %v938, %v934
      %v940 = vrot.slane %v939, 4
      %v942 = vshll.u32 %v873, 16
      %v944 = vrot.slane %v942, 5
      %v945 = vsel %vm921, %v940, %v944
      %v947 = vshrl.u32 %v874, 16
      %v949 = vrot.slane %v947, 4
      %v950 = vshll.u32 %v874, 16
      %v952 = vrot.slane %v950, 5
      %v953 = vor.u32 %v949, %v952
      %v954 = vrot.slane %v953, 4
      %v956 = vshll.u32 %v875, 16
      %v958 = vrot.slane %v956, 5
      %v959 = vsel %vm921, %v954, %v958
      %v960 = vshrl.u32 %v875, 16
      %v962 = vrot.slane %v960, 4
      %v963 = vor.u32 %v962, %v958
      %v964 = vrot.slane %v963, 4
      %v966 = vshll.u32 %v876, 16
      %v968 = vrot.slane %v966, 5
      %v969 = vsel %vm921, %v964, %v968
      %v971 = vshrl.u32 %v877, 16
      %v973 = vrot.slane %v971, 4
      %v974 = vshll.u32 %v877, 16
      %v976 = vrot.slane %v974, 5
      %v977 = vor.u32 %v973, %v976
      %v978 = vrot.slane %v977, 4
      %v980 = vshll.u32 %v878, 16
      %v982 = vrot.slane %v980, 5
      %v983 = vsel %vm921, %v978, %v982
      %v984 = vshrl.u32 %v878, 16
      %v986 = vrot.slane %v984, 4
      %v987 = vor.u32 %v986, %v982
      %v988 = vrot.slane %v987, 4
      %v990 = vshll.u32 %v879, 16
      %v992 = vrot.slane %v990, 5
      %v993 = vsel %vm921, %v988, %v992
      %v995 = vshrl.u32 %v880, 16
      %v997 = vrot.slane %v995, 4
      %v998 = vshll.u32 %v880, 16
      %v1000 = vrot.slane %v998, 5
      %v1001 = vor.u32 %v997, %v1000
      %v1002 = vrot.slane %v1001, 4
      %v1004 = vshll.u32 %v881, 16
      %v1006 = vrot.slane %v1004, 5
      %v1007 = vsel %vm921, %v1002, %v1006
      %v1008 = vshrl.u32 %v881, 16
      %v1010 = vrot.slane %v1008, 4
      %v1011 = vor.u32 %v1010, %v1006
      %v1012 = vrot.slane %v1011, 4
      %v1014 = vshll.u32 %v882, 16
      %v1016 = vrot.slane %v1014, 5
      %v1017 = vsel %vm921, %v1012, %v1016
      %v1019 = vshrl.u32 %v883, 16
      %v1021 = vrot.slane %v1019, 4
      %v1022 = vshll.u32 %v883, 16
      %v1024 = vrot.slane %v1022, 5
      %v1025 = vor.u32 %v1021, %v1024
      %v1026 = vrot.slane %v1025, 4
      %v1028 = vshll.u32 %v884, 16
      %v1030 = vrot.slane %v1028, 5
      %v1031 = vsel %vm921, %v1026, %v1030
      %v1032 = vshrl.u32 %v884, 16
      %v1034 = vrot.slane %v1032, 4
      %v1035 = vor.u32 %v1034, %v1030
      %v1036 = vrot.slane %v1035, 4
      %v1038 = vshll.u32 %v885, 16
      %v1040 = vrot.slane %v1038, 5
      %v1041 = vsel %vm921, %v1036, %v1040
      %v1043 = vshrl.u32 %v886, 16
      %v1045 = vrot.slane %v1043, 4
      %v1046 = vshll.u32 %v886, 16
      %v1048 = vrot.slane %v1046, 5
      %v1049 = vor.u32 %v1045, %v1048
      %v1050 = vrot.slane %v1049, 4
      %v1052 = vshll.u32 %v887, 16
      %v1054 = vrot.slane %v1052, 5
      %v1055 = vsel %vm921, %v1050, %v1054
      %v1056 = vshrl.u32 %v887, 16
      %v1058 = vrot.slane %v1056, 4
      %v1059 = vor.u32 %v1058, %v1054
      %v1060 = vrot.slane %v1059, 4
      %v1062 = vshll.u32 %v888, 16
      %v1064 = vrot.slane %v1062, 5
      %v1065 = vsel %vm921, %v1060, %v1064
      %v1067 = vshrl.u32 %v889, 16
      %v1069 = vrot.slane %v1067, 4
      %v1070 = vshll.u32 %v889, 16
      %v1072 = vrot.slane %v1070, 5
      %v1073 = vor.u32 %v1069, %v1072
      %v1074 = vrot.slane %v1073, 4
      %v1076 = vshll.u32 %v890, 16
      %v1078 = vrot.slane %v1076, 5
      %v1079 = vsel %vm921, %v1074, %v1078
      %v1080 = vshrl.u32 %v890, 16
      %v1082 = vrot.slane %v1080, 4
      %v1083 = vor.u32 %v1082, %v1078
      %v1084 = vrot.slane %v1083, 4
      %v1086 = vshll.u32 %v891, 16
      %v1088 = vrot.slane %v1086, 5
      %v1089 = vsel %vm921, %v1084, %v1088
      %v1091 = vshrl.u32 %v892, 16
      %v1093 = vrot.slane %v1091, 4
      %v1094 = vshll.u32 %v892, 16
      %v1096 = vrot.slane %v1094, 5
      %v1097 = vor.u32 %v1093, %v1096
      %v1098 = vrot.slane %v1097, 4
      %v1100 = vshll.u32 %v893, 16
      %v1102 = vrot.slane %v1100, 5
      %v1103 = vsel %vm921, %v1098, %v1102
      %v1104 = vshrl.u32 %v893, 16
      %v1106 = vrot.slane %v1104, 4
      %v1107 = vor.u32 %v1106, %v1102
      %v1108 = vrot.slane %v1107, 4
      %v1110 = vshll.u32 %v894, 16
      %v1112 = vrot.slane %v1110, 5
      %v1113 = vsel %vm921, %v1108, %v1112
      %v1115 = vshrl.u32 %v895, 16
      %v1117 = vrot.slane %v1115, 4
      %v1118 = vshll.u32 %v895, 16
      %v1120 = vrot.slane %v1118, 5
      %v1121 = vor.u32 %v1117, %v1120
      %v1122 = vrot.slane %v1121, 4
      %v1124 = vshll.u32 %v896, 16
      %v1126 = vrot.slane %v1124, 5
      %v1127 = vsel %vm921, %v1122, %v1126
      %v1128 = vshrl.u32 %v896, 16
      %v1130 = vrot.slane %v1128, 4
      %v1131 = vor.u32 %v1130, %v1126
      %v1132 = vrot.slane %v1131, 4
      %v1134 = vshll.u32 %v897, 16
      %v1136 = vrot.slane %v1134, 5
      %v1137 = vsel %vm921, %v1132, %v1136
      %v1139 = vshrl.u32 %v898, 16
      %v1141 = vrot.slane %v1139, 4
      %v1142 = vshll.u32 %v898, 16
      %v1144 = vrot.slane %v1142, 5
      %v1145 = vor.u32 %v1141, %v1144
      %v1146 = vrot.slane %v1145, 4
      %v1148 = vshll.u32 %v899, 16
      %v1150 = vrot.slane %v1148, 5
      %v1151 = vsel %vm921, %v1146, %v1150
      %v1152 = vshrl.u32 %v899, 16
      %v1154 = vrot.slane %v1152, 4
      %v1155 = vor.u32 %v1154, %v1150
      %v1156 = vrot.slane %v1155, 4
      %v1158 = vshll.u32 %v900, 16
      %v1160 = vrot.slane %v1158, 5
      %v1161 = vsel %vm921, %v1156, %v1160
      %v1163 = vshrl.u32 %v901, 16
      %v1165 = vrot.slane %v1163, 4
      %v1166 = vshll.u32 %v901, 16
      %v1168 = vrot.slane %v1166, 5
      %v1169 = vor.u32 %v1165, %v1168
      %v1170 = vrot.slane %v1169, 4
      %v1172 = vshll.u32 %v902, 16
      %v1174 = vrot.slane %v1172, 5
      %v1175 = vsel %vm921, %v1170, %v1174
      %v1176 = vshrl.u32 %v902, 16
      %v1178 = vrot.slane %v1176, 4
      %v1179 = vor.u32 %v1178, %v1174
      %v1180 = vrot.slane %v1179, 4
      %v1182 = vshll.u32 %v903, 16
      %v1184 = vrot.slane %v1182, 5
      %v1185 = vsel %vm921, %v1180, %v1184
      %v1187 = vshrl.u32 %v904, 16
      %v1189 = vrot.slane %v1187, 4
      %v1190 = vshll.u32 %v904, 16
      %v1192 = vrot.slane %v1190, 5
      %v1193 = vor.u32 %v1189, %v1192
      %v1194 = vrot.slane %v1193, 4
      %v1196 = vshll.u32 %v905, 16
      %v1198 = vrot.slane %v1196, 5
      %v1199 = vsel %vm921, %v1194, %v1198
      %v1200 = vshrl.u32 %v905, 16
      %v1202 = vrot.slane %v1200, 4
      %v1203 = vor.u32 %v1202, %v1198
      %v1204 = vrot.slane %v1203, 4
      %v1206 = vshll.u32 %v906, 16
      %v1208 = vrot.slane %v1206, 5
      %v1209 = vsel %vm921, %v1204, %v1208
      %v1211 = vshrl.u32 %v907, 16
      %v1213 = vrot.slane %v1211, 4
      %v1214 = vshll.u32 %v907, 16
      %v1216 = vrot.slane %v1214, 5
      %v1217 = vor.u32 %v1213, %v1216
      %v1218 = vrot.slane %v1217, 4
      %v1220 = vshll.u32 %v908, 16
      %v1222 = vrot.slane %v1220, 5
      %v1223 = vsel %vm921, %v1218, %v1222
      %v1224 = vshrl.u32 %v908, 16
      %v1226 = vrot.slane %v1224, 4
      %v1227 = vor.u32 %v1226, %v1222
      %v1228 = vrot.slane %v1227, 4
      %v1230 = vshll.u32 %v909, 16
      %v1232 = vrot.slane %v1230, 5
      %v1233 = vsel %vm921, %v1228, %v1232
      %v1235 = vshrl.u32 %v910, 16
      %v1237 = vrot.slane %v1235, 4
      %v1238 = vshll.u32 %v910, 16
      %v1240 = vrot.slane %v1238, 5
      %v1241 = vor.u32 %v1237, %v1240
      %v1242 = vrot.slane %v1241, 4
      %v1244 = vshll.u32 %v911, 16
      %v1246 = vrot.slane %v1244, 5
      %v1247 = vsel %vm921, %v1242, %v1246
      %v1248 = vshrl.u32 %v911, 16
      %v1250 = vrot.slane %v1248, 4
      %v1251 = vor.u32 %v1250, %v1246
      %v1252 = vrot.slane %v1251, 4
      %v1254 = vshll.u32 %v912, 16
      %v1256 = vrot.slane %v1254, 5
      %v1257 = vsel %vm921, %v1252, %v1256
      %v1259 = vshrl.u32 %v913, 16
      %v1261 = vrot.slane %v1259, 4
      %v1262 = vshll.u32 %v913, 16
      %v1264 = vrot.slane %v1262, 5
      %v1265 = vor.u32 %v1261, %v1264
      %v1266 = vrot.slane %v1265, 4
      %v1268 = vshll.u32 %v914, 16
      %v1270 = vrot.slane %v1268, 5
      %v1271 = vsel %vm921, %v1266, %v1270
      %v1272 = vshrl.u32 %v914, 16
      %v1274 = vrot.slane %v1272, 4
      %v1275 = vor.u32 %v1274, %v1270
      %v1276 = vrot.slane %v1275, 4
      %v1278 = vshll.u32 %v915, 16
      %v1280 = vrot.slane %v1278, 5
      %v1281 = vsel %vm921, %v1276, %v1280
      %v1283 = vshrl.u32 %v916, 16
      %v1285 = vrot.slane %v1283, 4
      %v1286 = vshll.u32 %v916, 16
      %v1288 = vrot.slane %v1286, 5
      %v1289 = vor.u32 %v1285, %v1288
      %v1290 = vrot.slane %v1289, 4
      %v1292 = vshll.u32 %v917, 16
      %v1294 = vrot.slane %v1292, 5
      %v1295 = vsel %vm921, %v1290, %v1294
      %v1296 = vshrl.u32 %v917, 16
      %v1298 = vrot.slane %v1296, 4
      %v1299 = vor.u32 %v1298, %v1294
      %v1300 = vrot.slane %v1299, 4
      %v1302 = vshll.u32 %v918, 16
      %v1304 = vrot.slane %v1302, 5
      %v1305 = vsel %vm921, %v1300, %v1304
      %1338 = vst [vmem:[#allocation3 + $0x4] sm:$0xf] %v935
      %1339 = vst [vmem:[#allocation3 + $0x28] sm:$0xf] %v945
      %1340 = vst [vmem:[#allocation3 + $0x4c] sm:$0xf] %v959
      %1341 = vst [vmem:[#allocation3 + $0x70] sm:$0xf] %v969
      %1342 = vst [vmem:[#allocation3 + $0x94] sm:$0xf] %v983
      %1343 = vst [vmem:[#allocation3 + $0xb8] sm:$0xf] %v993
      %1344 = vst [vmem:[#allocation3 + $0xdc] sm:$0xf] %v1007
      %1345 = vst [vmem:[#allocation3 + $0x100] sm:$0xf] %v1017
      %1346 = vst [vmem:[#allocation3 + $0x124] sm:$0xf] %v1031
      %1347 = vst [vmem:[#allocation3 + $0x148] sm:$0xf] %v1041
      %1348 = vst [vmem:[#allocation3 + $0x16c] sm:$0xf] %v1055
      %1349 = vst [vmem:[#allocation3 + $0x190] sm:$0xf] %v1065
      %1350 = vst [vmem:[#allocation3 + $0x1b4] sm:$0xf] %v1079
      %1351 = vst [vmem:[#allocation3 + $0x1d8] sm:$0xf] %v1089
      %1352 = vst [vmem:[#allocation3 + $0x1fc] sm:$0xf] %v1103
      %1353 = vst [vmem:[#allocation3 + $0x220] sm:$0xf] %v1113
      %1354 = vst [vmem:[#allocation3 + $0x244] sm:$0xf] %v1127
      %1355 = vst [vmem:[#allocation3 + $0x268] sm:$0xf] %v1137
      %1356 = vst [vmem:[#allocation3 + $0x28c] sm:$0xf] %v1151
      %1357 = vst [vmem:[#allocation3 + $0x2b0] sm:$0xf] %v1161
      %1358 = vst [vmem:[#allocation3 + $0x2d4] sm:$0xf] %v1175
      %1359 = vst [vmem:[#allocation3 + $0x2f8] sm:$0xf] %v1185
      %1360 = vst [vmem:[#allocation3 + $0x31c] sm:$0xf] %v1199
      %1361 = vst [vmem:[#allocation3 + $0x340] sm:$0xf] %v1209
      %1362 = vst [vmem:[#allocation3 + $0x364] sm:$0xf] %v1223
      %1363 = vst [vmem:[#allocation3 + $0x388] sm:$0xf] %v1233
      %1364 = vst [vmem:[#allocation3 + $0x3ac] sm:$0xf] %v1247
      %1365 = vst [vmem:[#allocation3 + $0x3d0] sm:$0xf] %v1257
      %1366 = vst [vmem:[#allocation3 + $0x3f4] sm:$0xf] %v1271
      %1367 = vst [vmem:[#allocation3 + $0x418] sm:$0xf] %v1281
      %1368 = vst [vmem:[#allocation3 + $0x43c] sm:$0xf] %v1295
      %1369 = vst [vmem:[#allocation3 + $0x460] sm:$0xf] %v1305
      %v1370 = vld [vmem:[#allocation2] sm:$0xe]
      %v1371 = vld [vmem:[#allocation2 + $0x4] sm:$0xf]
      %v1372 = vld [vmem:[#allocation2 + $0x8] sm:$0x1]
      %v1373 = vld [vmem:[#allocation2 + $0xc] sm:$0xe]
      %v1374 = vld [vmem:[#allocation2 + $0x10] sm:$0xf]
      %v1375 = vld [vmem:[#allocation2 + $0x14] sm:$0x1]
      %v1376 = vld [vmem:[#allocation2 + $0x18] sm:$0xe]
      %v1377 = vld [vmem:[#allocation2 + $0x1c] sm:$0xf]
      %v1378 = vld [vmem:[#allocation2 + $0x20] sm:$0x1]
      %v1379 = vld [vmem:[#allocation2 + $0x24] sm:$0xe]
      %v1380 = vld [vmem:[#allocation2 + $0x28] sm:$0xf]
      %v1381 = vld [vmem:[#allocation2 + $0x2c] sm:$0x1]
      %v1382 = vld [vmem:[#allocation2 + $0x30] sm:$0xe]
      %v1383 = vld [vmem:[#allocation2 + $0x34] sm:$0xf]
      %v1384 = vld [vmem:[#allocation2 + $0x38] sm:$0x1]
      %v1385 = vld [vmem:[#allocation2 + $0x3c] sm:$0xe]
      %v1386 = vld [vmem:[#allocation2 + $0x40] sm:$0xf]
      %v1387 = vld [vmem:[#allocation2 + $0x44] sm:$0x1]
      %v1388 = vld [vmem:[#allocation2 + $0x48] sm:$0xe]
      %v1389 = vld [vmem:[#allocation2 + $0x4c] sm:$0xf]
      %v1390 = vld [vmem:[#allocation2 + $0x50] sm:$0x1]
      %v1391 = vld [vmem:[#allocation2 + $0x54] sm:$0xe]
      %v1392 = vld [vmem:[#allocation2 + $0x58] sm:$0xf]
      %v1393 = vld [vmem:[#allocation2 + $0x5c] sm:$0x1]
      %v1394 = vld [vmem:[#allocation2 + $0x60] sm:$0xe]
      %v1395 = vld [vmem:[#allocation2 + $0x64] sm:$0xf]
      %v1396 = vld [vmem:[#allocation2 + $0x68] sm:$0x1]
      %v1397 = vld [vmem:[#allocation2 + $0x6c] sm:$0xe]
      %v1398 = vld [vmem:[#allocation2 + $0x70] sm:$0xf]
      %v1399 = vld [vmem:[#allocation2 + $0x74] sm:$0x1]
      %v1400 = vld [vmem:[#allocation2 + $0x78] sm:$0xe]
      %v1401 = vld [vmem:[#allocation2 + $0x7c] sm:$0xf]
      %v1402 = vld [vmem:[#allocation2 + $0x80] sm:$0x1]
      %v1403 = vld [vmem:[#allocation2 + $0x84] sm:$0xe]
      %v1404 = vld [vmem:[#allocation2 + $0x88] sm:$0xf]
      %v1405 = vld [vmem:[#allocation2 + $0x8c] sm:$0x1]
      %v1406 = vld [vmem:[#allocation2 + $0x90] sm:$0xe]
      %v1407 = vld [vmem:[#allocation2 + $0x94] sm:$0xf]
      %v1408 = vld [vmem:[#allocation2 + $0x98] sm:$0x1]
      %v1409 = vld [vmem:[#allocation2 + $0x9c] sm:$0xe]
      %v1410 = vld [vmem:[#allocation2 + $0xa0] sm:$0xf]
      %v1411 = vld [vmem:[#allocation2 + $0xa4] sm:$0x1]
      %v1412 = vld [vmem:[#allocation2 + $0xa8] sm:$0xe]
      %v1413 = vld [vmem:[#allocation2 + $0xac] sm:$0xf]
      %v1414 = vld [vmem:[#allocation2 + $0xb0] sm:$0x1]
      %v1415 = vld [vmem:[#allocation2 + $0xb4] sm:$0xe]
      %v1416 = vld [vmem:[#allocation2 + $0xb8] sm:$0xf]
      %v1417 = vld [vmem:[#allocation2 + $0xbc] sm:$0x1]
      %vm1466 = vcmask 1042432
      %vm1467 = vcmask 1046532
      %vm1468 = vmor %vm1466, %vm1467
      %v1469 = vrot.slane %v1370, 5
      %v1470 = vrot.slane %v1469, 4
      %v1471 = vrot.slane %v1371, 5
      %v1472 = vsel %vm1468, %v1470, %v1471
      %v1473 = vrot.slane %v1471, 4
      %v1474 = vrot.slane %v1372, 5
      %v1475 = vsel %vm1468, %v1473, %v1474
      %v1476 = vrot.slane %v1373, 5
      %v1477 = vrot.slane %v1476, 4
      %v1478 = vrot.slane %v1374, 5
      %v1479 = vsel %vm1468, %v1477, %v1478
      %v1480 = vrot.slane %v1478, 4
      %v1481 = vrot.slane %v1375, 5
      %v1482 = vsel %vm1468, %v1480, %v1481
      %v1483 = vrot.slane %v1376, 5
      %v1484 = vrot.slane %v1483, 4
      %v1485 = vrot.slane %v1377, 5
      %v1486 = vsel %vm1468, %v1484, %v1485
      %v1487 = vrot.slane %v1485, 4
      %v1488 = vrot.slane %v1378, 5
      %v1489 = vsel %vm1468, %v1487, %v1488
      %v1490 = vrot.slane %v1379, 5
      %v1491 = vrot.slane %v1490, 4
      %v1492 = vrot.slane %v1380, 5
      %v1493 = vsel %vm1468, %v1491, %v1492
      %v1494 = vrot.slane %v1492, 4
      %v1495 = vrot.slane %v1381, 5
      %v1496 = vsel %vm1468, %v1494, %v1495
      %v1497 = vrot.slane %v1382, 5
      %v1498 = vrot.slane %v1497, 4
      %v1499 = vrot.slane %v1383, 5
      %v1500 = vsel %vm1468, %v1498, %v1499
      %v1501 = vrot.slane %v1499, 4
      %v1502 = vrot.slane %v1384, 5
      %v1503 = vsel %vm1468, %v1501, %v1502
      %v1504 = vrot.slane %v1385, 5
      %v1505 = vrot.slane %v1504, 4
      %v1506 = vrot.slane %v1386, 5
      %v1507 = vsel %vm1468, %v1505, %v1506
      %v1508 = vrot.slane %v1506, 4
      %v1509 = vrot.slane %v1387, 5
      %v1510 = vsel %vm1468, %v1508, %v1509
      %v1511 = vrot.slane %v1388, 5
      %v1512 = vrot.slane %v1511, 4
      %v1513 = vrot.slane %v1389, 5
      %v1514 = vsel %vm1468, %v1512, %v1513
      %v1515 = vrot.slane %v1513, 4
      %v1516 = vrot.slane %v1390, 5
      %v1517 = vsel %vm1468, %v1515, %v1516
      %v1518 = vrot.slane %v1391, 5
      %v1519 = vrot.slane %v1518, 4
      %v1520 = vrot.slane %v1392, 5
      %v1521 = vsel %vm1468, %v1519, %v1520
      %v1522 = vrot.slane %v1520, 4
      %v1523 = vrot.slane %v1393, 5
      %v1524 = vsel %vm1468, %v1522, %v1523
      %v1525 = vrot.slane %v1394, 5
      %v1526 = vrot.slane %v1525, 4
      %v1527 = vrot.slane %v1395, 5
      %v1528 = vsel %vm1468, %v1526, %v1527
      %v1529 = vrot.slane %v1527, 4
      %v1530 = vrot.slane %v1396, 5
      %v1531 = vsel %vm1468, %v1529, %v1530
      %v1532 = vrot.slane %v1397, 5
      %v1533 = vrot.slane %v1532, 4
      %v1534 = vrot.slane %v1398, 5
      %v1535 = vsel %vm1468, %v1533, %v1534
      %v1536 = vrot.slane %v1534, 4
      %v1537 = vrot.slane %v1399, 5
      %v1538 = vsel %vm1468, %v1536, %v1537
      %v1539 = vrot.slane %v1400, 5
      %v1540 = vrot.slane %v1539, 4
      %v1541 = vrot.slane %v1401, 5
      %v1542 = vsel %vm1468, %v1540, %v1541
      %v1543 = vrot.slane %v1541, 4
      %v1544 = vrot.slane %v1402, 5
      %v1545 = vsel %vm1468, %v1543, %v1544
      %v1546 = vrot.slane %v1403, 5
      %v1547 = vrot.slane %v1546, 4
      %v1548 = vrot.slane %v1404, 5
      %v1549 = vsel %vm1468, %v1547, %v1548
      %v1550 = vrot.slane %v1548, 4
      %v1551 = vrot.slane %v1405, 5
      %v1552 = vsel %vm1468, %v1550, %v1551
      %v1553 = vrot.slane %v1406, 5
      %v1554 = vrot.slane %v1553, 4
      %v1555 = vrot.slane %v1407, 5
      %v1556 = vsel %vm1468, %v1554, %v1555
      %v1557 = vrot.slane %v1555, 4
      %v1558 = vrot.slane %v1408, 5
      %v1559 = vsel %vm1468, %v1557, %v1558
      %v1560 = vrot.slane %v1409, 5
      %v1561 = vrot.slane %v1560, 4
      %v1562 = vrot.slane %v1410, 5
      %v1563 = vsel %vm1468, %v1561, %v1562
      %v1564 = vrot.slane %v1562, 4
      %v1565 = vrot.slane %v1411, 5
      %v1566 = vsel %vm1468, %v1564, %v1565
      %v1567 = vrot.slane %v1412, 5
      %v1568 = vrot.slane %v1567, 4
      %v1569 = vrot.slane %v1413, 5
      %v1570 = vsel %vm1468, %v1568, %v1569
      %v1571 = vrot.slane %v1569, 4
      %v1572 = vrot.slane %v1414, 5
      %v1573 = vsel %vm1468, %v1571, %v1572
      %v1574 = vrot.slane %v1415, 5
      %v1575 = vrot.slane %v1574, 4
      %v1576 = vrot.slane %v1416, 5
      %v1577 = vsel %vm1468, %v1575, %v1576
      %v1578 = vrot.slane %v1576, 4
      %v1579 = vrot.slane %v1417, 5
      %v1580 = vsel %vm1468, %v1578, %v1579
      %1613 = vst [vmem:[#allocation3 + $0x8] sm:$0xf] %v1472
      %1614 = vst [vmem:[#allocation3 + $0x2c] sm:$0xf] %v1475
      %1615 = vst [vmem:[#allocation3 + $0x50] sm:$0xf] %v1479
      %1616 = vst [vmem:[#allocation3 + $0x74] sm:$0xf] %v1482
      %1617 = vst [vmem:[#allocation3 + $0x98] sm:$0xf] %v1486
      %1618 = vst [vmem:[#allocation3 + $0xbc] sm:$0xf] %v1489
      %1619 = vst [vmem:[#allocation3 + $0xe0] sm:$0xf] %v1493
      %1620 = vst [vmem:[#allocation3 + $0x104] sm:$0xf] %v1496
      %1621 = vst [vmem:[#allocation3 + $0x128] sm:$0xf] %v1500
      %1622 = vst [vmem:[#allocation3 + $0x14c] sm:$0xf] %v1503
      %1623 = vst [vmem:[#allocation3 + $0x170] sm:$0xf] %v1507
      %1624 = vst [vmem:[#allocation3 + $0x194] sm:$0xf] %v1510
      %1625 = vst [vmem:[#allocation3 + $0x1b8] sm:$0xf] %v1514
      %1626 = vst [vmem:[#allocation3 + $0x1dc] sm:$0xf] %v1517
      %1627 = vst [vmem:[#allocation3 + $0x200] sm:$0xf] %v1521
      %1628 = vst [vmem:[#allocation3 + $0x224] sm:$0xf] %v1524
      %1629 = vst [vmem:[#allocation3 + $0x248] sm:$0xf] %v1528
      %1630 = vst [vmem:[#allocation3 + $0x26c] sm:$0xf] %v1531
      %1631 = vst [vmem:[#allocation3 + $0x290] sm:$0xf] %v1535
      %1632 = vst [vmem:[#allocation3 + $0x2b4] sm:$0xf] %v1538
      %1633 = vst [vmem:[#allocation3 + $0x2d8] sm:$0xf] %v1542
      %1634 = vst [vmem:[#allocation3 + $0x2fc] sm:$0xf] %v1545
      %1635 = vst [vmem:[#allocation3 + $0x320] sm:$0xf] %v1549
      %1636 = vst [vmem:[#allocation3 + $0x344] sm:$0xf] %v1552
      %1637 = vst [vmem:[#allocation3 + $0x368] sm:$0xf] %v1556
      %1638 = vst [vmem:[#allocation3 + $0x38c] sm:$0xf] %v1559
      %1639 = vst [vmem:[#allocation3 + $0x3b0] sm:$0xf] %v1563
      %1640 = vst [vmem:[#allocation3 + $0x3d4] sm:$0xf] %v1566
      %1641 = vst [vmem:[#allocation3 + $0x3f8] sm:$0xf] %v1570
      %1642 = vst [vmem:[#allocation3 + $0x41c] sm:$0xf] %v1573
      %1643 = vst [vmem:[#allocation3 + $0x440] sm:$0xf] %v1577
      %1644 = vst [vmem:[#allocation3 + $0x464] sm:$0xf] %v1580
      %v1645 = vld [vmem:[%s610] sm:$0xf]
      %v1646 = vld [vmem:[%s610 + $0x4] sm:$0xf]
      %v1647 = vld [vmem:[%s610 + $0xc] sm:$0xf]
      %v1648 = vld [vmem:[%s610 + $0x10] sm:$0xf]
      %v1649 = vld [vmem:[%s610 + $0x18] sm:$0xf]
      %v1650 = vld [vmem:[%s610 + $0x1c] sm:$0xf]
      %v1651 = vld [vmem:[%s610 + $0x24] sm:$0xf]
      %v1652 = vld [vmem:[%s610 + $0x28] sm:$0xf]
      %v1653 = vld [vmem:[%s610 + $0x30] sm:$0xf]
      %v1654 = vld [vmem:[%s610 + $0x34] sm:$0xf]
      %v1655 = vld [vmem:[%s610 + $0x3c] sm:$0xf]
      %v1656 = vld [vmem:[%s610 + $0x40] sm:$0xf]
      %v1657 = vld [vmem:[%s610 + $0x48] sm:$0xf]
      %v1658 = vld [vmem:[%s610 + $0x4c] sm:$0xf]
      %v1659 = vld [vmem:[%s610 + $0x54] sm:$0xf]
      %v1660 = vld [vmem:[%s610 + $0x58] sm:$0xf]
      %v1661 = vld [vmem:[%s610 + $0x60] sm:$0xf]
      %v1662 = vld [vmem:[%s610 + $0x64] sm:$0xf]
      %v1663 = vld [vmem:[%s610 + $0x6c] sm:$0xf]
      %v1664 = vld [vmem:[%s610 + $0x70] sm:$0xf]
      %v1665 = vld [vmem:[%s610 + $0x78] sm:$0xf]
      %v1666 = vld [vmem:[%s610 + $0x7c] sm:$0xf]
      %v1667 = vld [vmem:[%s610 + $0x84] sm:$0xf]
      %v1668 = vld [vmem:[%s610 + $0x88] sm:$0xf]
      %v1669 = vld [vmem:[%s610 + $0x90] sm:$0xf]
      %v1670 = vld [vmem:[%s610 + $0x94] sm:$0xf]
      %v1671 = vld [vmem:[%s610 + $0x9c] sm:$0xf]
      %v1672 = vld [vmem:[%s610 + $0xa0] sm:$0xf]
      %v1673 = vld [vmem:[%s610 + $0xa8] sm:$0xf]
      %v1674 = vld [vmem:[%s610 + $0xac] sm:$0xf]
      %v1675 = vld [vmem:[%s610 + $0xb4] sm:$0xf]
      %v1676 = vld [vmem:[%s610 + $0xb8] sm:$0xf]
      %1677 = vst [vmem:[#allocation3 + $0xc] sm:$0xf] %v1645
      %1678 = vst [vmem:[#allocation3 + $0x30] sm:$0xf] %v1646
      %1679 = vst [vmem:[#allocation3 + $0x54] sm:$0xf] %v1647
      %1680 = vst [vmem:[#allocation3 + $0x78] sm:$0xf] %v1648
      %1681 = vst [vmem:[#allocation3 + $0x9c] sm:$0xf] %v1649
      %1682 = vst [vmem:[#allocation3 + $0xc0] sm:$0xf] %v1650
      %1683 = vst [vmem:[#allocation3 + $0xe4] sm:$0xf] %v1651
      %1684 = vst [vmem:[#allocation3 + $0x108] sm:$0xf] %v1652
      %1685 = vst [vmem:[#allocation3 + $0x12c] sm:$0xf] %v1653
      %1686 = vst [vmem:[#allocation3 + $0x150] sm:$0xf] %v1654
      %1687 = vst [vmem:[#allocation3 + $0x174] sm:$0xf] %v1655
      %1688 = vst [vmem:[#allocation3 + $0x198] sm:$0xf] %v1656
      %1689 = vst [vmem:[#allocation3 + $0x1bc] sm:$0xf] %v1657
      %1690 = vst [vmem:[#allocation3 + $0x1e0] sm:$0xf] %v1658
      %1691 = vst [vmem:[#allocation3 + $0x204] sm:$0xf] %v1659
      %1692 = vst [vmem:[#allocation3 + $0x228] sm:$0xf] %v1660
      %1693 = vst [vmem:[#allocation3 + $0x24c] sm:$0xf] %v1661
      %1694 = vst [vmem:[#allocation3 + $0x270] sm:$0xf] %v1662
      %1695 = vst [vmem:[#allocation3 + $0x294] sm:$0xf] %v1663
      %1696 = vst [vmem:[#allocation3 + $0x2b8] sm:$0xf] %v1664
      %1697 = vst [vmem:[#allocation3 + $0x2dc] sm:$0xf] %v1665
      %1698 = vst [vmem:[#allocation3 + $0x300] sm:$0xf] %v1666
      %1699 = vst [vmem:[#allocation3 + $0x324] sm:$0xf] %v1667
      %1700 = vst [vmem:[#allocation3 + $0x348] sm:$0xf] %v1668
      %1701 = vst [vmem:[#allocation3 + $0x36c] sm:$0xf] %v1669
      %1702 = vst [vmem:[#allocation3 + $0x390] sm:$0xf] %v1670
      %1703 = vst [vmem:[#allocation3 + $0x3b4] sm:$0xf] %v1671
      %1704 = vst [vmem:[#allocation3 + $0x3d8] sm:$0xf] %v1672
      %1705 = vst [vmem:[#allocation3 + $0x3fc] sm:$0xf] %v1673
      %1706 = vst [vmem:[#allocation3 + $0x420] sm:$0xf] %v1674
      %1707 = vst [vmem:[#allocation3 + $0x444] sm:$0xf] %v1675
      %1708 = vst [vmem:[#allocation3 + $0x468] sm:$0xf] %v1676
      %v1709 = vld [vmem:[%s610] sm:$0xf]
      %v1710 = vld [vmem:[%s610 + $0x4] sm:$0xf]
      %v1711 = vld [vmem:[%s610 + $0x8] sm:$0x1]
      %v1712 = vld [vmem:[%s610 + $0xc] sm:$0xf]
      %v1713 = vld [vmem:[%s610 + $0x10] sm:$0xf]
      %v1714 = vld [vmem:[%s610 + $0x14] sm:$0x1]
      %v1715 = vld [vmem:[%s610 + $0x18] sm:$0xf]
      %v1716 = vld [vmem:[%s610 + $0x1c] sm:$0xf]
      %v1717 = vld [vmem:[%s610 + $0x20] sm:$0x1]
      %v1718 = vld [vmem:[%s610 + $0x24] sm:$0xf]
      %v1719 = vld [vmem:[%s610 + $0x28] sm:$0xf]
      %v1720 = vld [vmem:[%s610 + $0x2c] sm:$0x1]
      %v1721 = vld [vmem:[%s610 + $0x30] sm:$0xf]
      %v1722 = vld [vmem:[%s610 + $0x34] sm:$0xf]
      %v1723 = vld [vmem:[%s610 + $0x38] sm:$0x1]
      %v1724 = vld [vmem:[%s610 + $0x3c] sm:$0xf]
      %v1725 = vld [vmem:[%s610 + $0x40] sm:$0xf]
      %v1726 = vld [vmem:[%s610 + $0x44] sm:$0x1]
      %v1727 = vld [vmem:[%s610 + $0x48] sm:$0xf]
      %v1728 = vld [vmem:[%s610 + $0x4c] sm:$0xf]
      %v1729 = vld [vmem:[%s610 + $0x50] sm:$0x1]
      %v1730 = vld [vmem:[%s610 + $0x54] sm:$0xf]
      %v1731 = vld [vmem:[%s610 + $0x58] sm:$0xf]
      %v1732 = vld [vmem:[%s610 + $0x5c] sm:$0x1]
      %v1733 = vld [vmem:[%s610 + $0x60] sm:$0xf]
      %v1734 = vld [vmem:[%s610 + $0x64] sm:$0xf]
      %v1735 = vld [vmem:[%s610 + $0x68] sm:$0x1]
      %v1736 = vld [vmem:[%s610 + $0x6c] sm:$0xf]
      %v1737 = vld [vmem:[%s610 + $0x70] sm:$0xf]
      %v1738 = vld [vmem:[%s610 + $0x74] sm:$0x1]
      %v1739 = vld [vmem:[%s610 + $0x78] sm:$0xf]
      %v1740 = vld [vmem:[%s610 + $0x7c] sm:$0xf]
      %v1741 = vld [vmem:[%s610 + $0x80] sm:$0x1]
      %v1742 = vld [vmem:[%s610 + $0x84] sm:$0xf]
      %v1743 = vld [vmem:[%s610 + $0x88] sm:$0xf]
      %v1744 = vld [vmem:[%s610 + $0x8c] sm:$0x1]
      %v1745 = vld [vmem:[%s610 + $0x90] sm:$0xf]
      %v1746 = vld [vmem:[%s610 + $0x94] sm:$0xf]
      %v1747 = vld [vmem:[%s610 + $0x98] sm:$0x1]
      %v1748 = vld [vmem:[%s610 + $0x9c] sm:$0xf]
      %v1749 = vld [vmem:[%s610 + $0xa0] sm:$0xf]
      %v1750 = vld [vmem:[%s610 + $0xa4] sm:$0x1]
      %v1751 = vld [vmem:[%s610 + $0xa8] sm:$0xf]
      %v1752 = vld [vmem:[%s610 + $0xac] sm:$0xf]
      %v1753 = vld [vmem:[%s610 + $0xb0] sm:$0x1]
      %v1754 = vld [vmem:[%s610 + $0xb4] sm:$0xf]
      %v1755 = vld [vmem:[%s610 + $0xb8] sm:$0xf]
      %v1756 = vld [vmem:[%s610 + $0xbc] sm:$0x1]
      %v1758 = vshrl.u32 %v1709, 16
      %v1760 = vrot.slane %v1758, 4
      %v1761 = vshll.u32 %v1709, 16
      %v1763 = vrot.slane %v1761, 5
      %v1764 = vor.u32 %v1760, %v1763
      %v1765 = vrot.slane %v1764, 4
      %v1767 = vshll.u32 %v1710, 16
      %v1769 = vrot.slane %v1767, 5
      %v1770 = vsel %vm921, %v1765, %v1769
      %v1771 = vshrl.u32 %v1710, 16
      %v1773 = vrot.slane %v1771, 4
      %v1774 = vor.u32 %v1773, %v1769
      %v1775 = vrot.slane %v1774, 4
      %v1777 = vshll.u32 %v1711, 16
      %v1779 = vrot.slane %v1777, 5
      %v1780 = vsel %vm921, %v1775, %v1779
      %v1782 = vshrl.u32 %v1712, 16
      %v1784 = vrot.slane %v1782, 4
      %v1785 = vshll.u32 %v1712, 16
      %v1787 = vrot.slane %v1785, 5
      %v1788 = vor.u32 %v1784, %v1787
      %v1789 = vrot.slane %v1788, 4
      %v1791 = vshll.u32 %v1713, 16
      %v1793 = vrot.slane %v1791, 5
      %v1794 = vsel %vm921, %v1789, %v1793
      %v1795 = vshrl.u32 %v1713, 16
      %v1797 = vrot.slane %v1795, 4
      %v1798 = vor.u32 %v1797, %v1793
      %v1799 = vrot.slane %v1798, 4
      %v1801 = vshll.u32 %v1714, 16
      %v1803 = vrot.slane %v1801, 5
      %v1804 = vsel %vm921, %v1799, %v1803
      %v1806 = vshrl.u32 %v1715, 16
      %v1808 = vrot.slane %v1806, 4
      %v1809 = vshll.u32 %v1715, 16
      %v1811 = vrot.slane %v1809, 5
      %v1812 = vor.u32 %v1808, %v1811
      %v1813 = vrot.slane %v1812, 4
      %v1815 = vshll.u32 %v1716, 16
      %v1817 = vrot.slane %v1815, 5
      %v1818 = vsel %vm921, %v1813, %v1817
      %v1819 = vshrl.u32 %v1716, 16
      %v1821 = vrot.slane %v1819, 4
      %v1822 = vor.u32 %v1821, %v1817
      %v1823 = vrot.slane %v1822, 4
      %v1825 = vshll.u32 %v1717, 16
      %v1827 = vrot.slane %v1825, 5
      %v1828 = vsel %vm921, %v1823, %v1827
      %v1830 = vshrl.u32 %v1718, 16
      %v1832 = vrot.slane %v1830, 4
      %v1833 = vshll.u32 %v1718, 16
      %v1835 = vrot.slane %v1833, 5
      %v1836 = vor.u32 %v1832, %v1835
      %v1837 = vrot.slane %v1836, 4
      %v1839 = vshll.u32 %v1719, 16
      %v1841 = vrot.slane %v1839, 5
      %v1842 = vsel %vm921, %v1837, %v1841
      %v1843 = vshrl.u32 %v1719, 16
      %v1845 = vrot.slane %v1843, 4
      %v1846 = vor.u32 %v1845, %v1841
      %v1847 = vrot.slane %v1846, 4
      %v1849 = vshll.u32 %v1720, 16
      %v1851 = vrot.slane %v1849, 5
      %v1852 = vsel %vm921, %v1847, %v1851
      %v1854 = vshrl.u32 %v1721, 16
      %v1856 = vrot.slane %v1854, 4
      %v1857 = vshll.u32 %v1721, 16
      %v1859 = vrot.slane %v1857, 5
      %v1860 = vor.u32 %v1856, %v1859
      %v1861 = vrot.slane %v1860, 4
      %v1863 = vshll.u32 %v1722, 16
      %v1865 = vrot.slane %v1863, 5
      %v1866 = vsel %vm921, %v1861, %v1865
      %v1867 = vshrl.u32 %v1722, 16
      %v1869 = vrot.slane %v1867, 4
      %v1870 = vor.u32 %v1869, %v1865
      %v1871 = vrot.slane %v1870, 4
      %v1873 = vshll.u32 %v1723, 16
      %v1875 = vrot.slane %v1873, 5
      %v1876 = vsel %vm921, %v1871, %v1875
      %v1878 = vshrl.u32 %v1724, 16
      %v1880 = vrot.slane %v1878, 4
      %v1881 = vshll.u32 %v1724, 16
      %v1883 = vrot.slane %v1881, 5
      %v1884 = vor.u32 %v1880, %v1883
      %v1885 = vrot.slane %v1884, 4
      %v1887 = vshll.u32 %v1725, 16
      %v1889 = vrot.slane %v1887, 5
      %v1890 = vsel %vm921, %v1885, %v1889
      %v1891 = vshrl.u32 %v1725, 16
      %v1893 = vrot.slane %v1891, 4
      %v1894 = vor.u32 %v1893, %v1889
      %v1895 = vrot.slane %v1894, 4
      %v1897 = vshll.u32 %v1726, 16
      %v1899 = vrot.slane %v1897, 5
      %v1900 = vsel %vm921, %v1895, %v1899
      %v1902 = vshrl.u32 %v1727, 16
      %v1904 = vrot.slane %v1902, 4
      %v1905 = vshll.u32 %v1727, 16
      %v1907 = vrot.slane %v1905, 5
      %v1908 = vor.u32 %v1904, %v1907
      %v1909 = vrot.slane %v1908, 4
      %v1911 = vshll.u32 %v1728, 16
      %v1913 = vrot.slane %v1911, 5
      %v1914 = vsel %vm921, %v1909, %v1913
      %v1915 = vshrl.u32 %v1728, 16
      %v1917 = vrot.slane %v1915, 4
      %v1918 = vor.u32 %v1917, %v1913
      %v1919 = vrot.slane %v1918, 4
      %v1921 = vshll.u32 %v1729, 16
      %v1923 = vrot.slane %v1921, 5
      %v1924 = vsel %vm921, %v1919, %v1923
      %v1926 = vshrl.u32 %v1730, 16
      %v1928 = vrot.slane %v1926, 4
      %v1929 = vshll.u32 %v1730, 16
      %v1931 = vrot.slane %v1929, 5
      %v1932 = vor.u32 %v1928, %v1931
      %v1933 = vrot.slane %v1932, 4
      %v1935 = vshll.u32 %v1731, 16
      %v1937 = vrot.slane %v1935, 5
      %v1938 = vsel %vm921, %v1933, %v1937
      %v1939 = vshrl.u32 %v1731, 16
      %v1941 = vrot.slane %v1939, 4
      %v1942 = vor.u32 %v1941, %v1937
      %v1943 = vrot.slane %v1942, 4
      %v1945 = vshll.u32 %v1732, 16
      %v1947 = vrot.slane %v1945, 5
      %v1948 = vsel %vm921, %v1943, %v1947
      %v1950 = vshrl.u32 %v1733, 16
      %v1952 = vrot.slane %v1950, 4
      %v1953 = vshll.u32 %v1733, 16
      %v1955 = vrot.slane %v1953, 5
      %v1956 = vor.u32 %v1952, %v1955
      %v1957 = vrot.slane %v1956, 4
      %v1959 = vshll.u32 %v1734, 16
      %v1961 = vrot.slane %v1959, 5
      %v1962 = vsel %vm921, %v1957, %v1961
      %v1963 = vshrl.u32 %v1734, 16
      %v1965 = vrot.slane %v1963, 4
      %v1966 = vor.u32 %v1965, %v1961
      %v1967 = vrot.slane %v1966, 4
      %v1969 = vshll.u32 %v1735, 16
      %v1971 = vrot.slane %v1969, 5
      %v1972 = vsel %vm921, %v1967, %v1971
      %v1974 = vshrl.u32 %v1736, 16
      %v1976 = vrot.slane %v1974, 4
      %v1977 = vshll.u32 %v1736, 16
      %v1979 = vrot.slane %v1977, 5
      %v1980 = vor.u32 %v1976, %v1979
      %v1981 = vrot.slane %v1980, 4
      %v1983 = vshll.u32 %v1737, 16
      %v1985 = vrot.slane %v1983, 5
      %v1986 = vsel %vm921, %v1981, %v1985
      %v1987 = vshrl.u32 %v1737, 16
      %v1989 = vrot.slane %v1987, 4
      %v1990 = vor.u32 %v1989, %v1985
      %v1991 = vrot.slane %v1990, 4
      %v1993 = vshll.u32 %v1738, 16
      %v1995 = vrot.slane %v1993, 5
      %v1996 = vsel %vm921, %v1991, %v1995
      %v1998 = vshrl.u32 %v1739, 16
      %v2000 = vrot.slane %v1998, 4
      %v2001 = vshll.u32 %v1739, 16
      %v2003 = vrot.slane %v2001, 5
      %v2004 = vor.u32 %v2000, %v2003
      %v2005 = vrot.slane %v2004, 4
      %v2007 = vshll.u32 %v1740, 16
      %v2009 = vrot.slane %v2007, 5
      %v2010 = vsel %vm921, %v2005, %v2009
      %v2011 = vshrl.u32 %v1740, 16
      %v2013 = vrot.slane %v2011, 4
      %v2014 = vor.u32 %v2013, %v2009
      %v2015 = vrot.slane %v2014, 4
      %v2017 = vshll.u32 %v1741, 16
      %v2019 = vrot.slane %v2017, 5
      %v2020 = vsel %vm921, %v2015, %v2019
      %v2022 = vshrl.u32 %v1742, 16
      %v2024 = vrot.slane %v2022, 4
      %v2025 = vshll.u32 %v1742, 16
      %v2027 = vrot.slane %v2025, 5
      %v2028 = vor.u32 %v2024, %v2027
      %v2029 = vrot.slane %v2028, 4
      %v2031 = vshll.u32 %v1743, 16
      %v2033 = vrot.slane %v2031, 5
      %v2034 = vsel %vm921, %v2029, %v2033
      %v2035 = vshrl.u32 %v1743, 16
      %v2037 = vrot.slane %v2035, 4
      %v2038 = vor.u32 %v2037, %v2033
      %v2039 = vrot.slane %v2038, 4
      %v2041 = vshll.u32 %v1744, 16
      %v2043 = vrot.slane %v2041, 5
      %v2044 = vsel %vm921, %v2039, %v2043
      %v2046 = vshrl.u32 %v1745, 16
      %v2048 = vrot.slane %v2046, 4
      %v2049 = vshll.u32 %v1745, 16
      %v2051 = vrot.slane %v2049, 5
      %v2052 = vor.u32 %v2048, %v2051
      %v2053 = vrot.slane %v2052, 4
      %v2055 = vshll.u32 %v1746, 16
      %v2057 = vrot.slane %v2055, 5
      %v2058 = vsel %vm921, %v2053, %v2057
      %v2059 = vshrl.u32 %v1746, 16
      %v2061 = vrot.slane %v2059, 4
      %v2062 = vor.u32 %v2061, %v2057
      %v2063 = vrot.slane %v2062, 4
      %v2065 = vshll.u32 %v1747, 16
      %v2067 = vrot.slane %v2065, 5
      %v2068 = vsel %vm921, %v2063, %v2067
      %v2070 = vshrl.u32 %v1748, 16
      %v2072 = vrot.slane %v2070, 4
      %v2073 = vshll.u32 %v1748, 16
      %v2075 = vrot.slane %v2073, 5
      %v2076 = vor.u32 %v2072, %v2075
      %v2077 = vrot.slane %v2076, 4
      %v2079 = vshll.u32 %v1749, 16
      %v2081 = vrot.slane %v2079, 5
      %v2082 = vsel %vm921, %v2077, %v2081
      %v2083 = vshrl.u32 %v1749, 16
      %v2085 = vrot.slane %v2083, 4
      %v2086 = vor.u32 %v2085, %v2081
      %v2087 = vrot.slane %v2086, 4
      %v2089 = vshll.u32 %v1750, 16
      %v2091 = vrot.slane %v2089, 5
      %v2092 = vsel %vm921, %v2087, %v2091
      %v2094 = vshrl.u32 %v1751, 16
      %v2096 = vrot.slane %v2094, 4
      %v2097 = vshll.u32 %v1751, 16
      %v2099 = vrot.slane %v2097, 5
      %v2100 = vor.u32 %v2096, %v2099
      %v2101 = vrot.slane %v2100, 4
      %v2103 = vshll.u32 %v1752, 16
      %v2105 = vrot.slane %v2103, 5
      %v2106 = vsel %vm921, %v2101, %v2105
      %v2107 = vshrl.u32 %v1752, 16
      %v2109 = vrot.slane %v2107, 4
      %v2110 = vor.u32 %v2109, %v2105
      %v2111 = vrot.slane %v2110, 4
      %v2113 = vshll.u32 %v1753, 16
      %v2115 = vrot.slane %v2113, 5
      %v2116 = vsel %vm921, %v2111, %v2115
      %v2118 = vshrl.u32 %v1754, 16
      %v2120 = vrot.slane %v2118, 4
      %v2121 = vshll.u32 %v1754, 16
      %v2123 = vrot.slane %v2121, 5
      %v2124 = vor.u32 %v2120, %v2123
      %v2125 = vrot.slane %v2124, 4
      %v2127 = vshll.u32 %v1755, 16
      %v2129 = vrot.slane %v2127, 5
      %v2130 = vsel %vm921, %v2125, %v2129
      %v2131 = vshrl.u32 %v1755, 16
      %v2133 = vrot.slane %v2131, 4
      %v2134 = vor.u32 %v2133, %v2129
      %v2135 = vrot.slane %v2134, 4
      %v2137 = vshll.u32 %v1756, 16
      %v2139 = vrot.slane %v2137, 5
      %v2140 = vsel %vm921, %v2135, %v2139
      %2173 = vst [vmem:[#allocation3 + $0x10] sm:$0xf] %v1770
      %2174 = vst [vmem:[#allocation3 + $0x34] sm:$0xf] %v1780
      %2175 = vst [vmem:[#allocation3 + $0x58] sm:$0xf] %v1794
      %2176 = vst [vmem:[#allocation3 + $0x7c] sm:$0xf] %v1804
      %2177 = vst [vmem:[#allocation3 + $0xa0] sm:$0xf] %v1818
      %2178 = vst [vmem:[#allocation3 + $0xc4] sm:$0xf] %v1828
      %2179 = vst [vmem:[#allocation3 + $0xe8] sm:$0xf] %v1842
      %2180 = vst [vmem:[#allocation3 + $0x10c] sm:$0xf] %v1852
      %2181 = vst [vmem:[#allocation3 + $0x130] sm:$0xf] %v1866
      %2182 = vst [vmem:[#allocation3 + $0x154] sm:$0xf] %v1876
      %2183 = vst [vmem:[#allocation3 + $0x178] sm:$0xf] %v1890
      %2184 = vst [vmem:[#allocation3 + $0x19c] sm:$0xf] %v1900
      %2185 = vst [vmem:[#allocation3 + $0x1c0] sm:$0xf] %v1914
      %2186 = vst [vmem:[#allocation3 + $0x1e4] sm:$0xf] %v1924
      %2187 = vst [vmem:[#allocation3 + $0x208] sm:$0xf] %v1938
      %2188 = vst [vmem:[#allocation3 + $0x22c] sm:$0xf] %v1948
      %2189 = vst [vmem:[#allocation3 + $0x250] sm:$0xf] %v1962
      %2190 = vst [vmem:[#allocation3 + $0x274] sm:$0xf] %v1972
      %2191 = vst [vmem:[#allocation3 + $0x298] sm:$0xf] %v1986
      %2192 = vst [vmem:[#allocation3 + $0x2bc] sm:$0xf] %v1996
      %2193 = vst [vmem:[#allocation3 + $0x2e0] sm:$0xf] %v2010
      %2194 = vst [vmem:[#allocation3 + $0x304] sm:$0xf] %v2020
      %2195 = vst [vmem:[#allocation3 + $0x328] sm:$0xf] %v2034
      %2196 = vst [vmem:[#allocation3 + $0x34c] sm:$0xf] %v2044
      %2197 = vst [vmem:[#allocation3 + $0x370] sm:$0xf] %v2058
      %2198 = vst [vmem:[#allocation3 + $0x394] sm:$0xf] %v2068
      %2199 = vst [vmem:[#allocation3 + $0x3b8] sm:$0xf] %v2082
      %2200 = vst [vmem:[#allocation3 + $0x3dc] sm:$0xf] %v2092
      %2201 = vst [vmem:[#allocation3 + $0x400] sm:$0xf] %v2106
      %2202 = vst [vmem:[#allocation3 + $0x424] sm:$0xf] %v2116
      %2203 = vst [vmem:[#allocation3 + $0x448] sm:$0xf] %v2130
      %2204 = vst [vmem:[#allocation3 + $0x46c] sm:$0xf] %v2140
      %v2205 = vld [vmem:[%s610] sm:$0xe]
      %v2206 = vld [vmem:[%s610 + $0x4] sm:$0xf]
      %v2207 = vld [vmem:[%s610 + $0x8] sm:$0x1]
      %v2208 = vld [vmem:[%s610 + $0xc] sm:$0xe]
      %v2209 = vld [vmem:[%s610 + $0x10] sm:$0xf]
      %v2210 = vld [vmem:[%s610 + $0x14] sm:$0x1]
      %v2211 = vld [vmem:[%s610 + $0x18] sm:$0xe]
      %v2212 = vld [vmem:[%s610 + $0x1c] sm:$0xf]
      %v2213 = vld [vmem:[%s610 + $0x20] sm:$0x1]
      %v2214 = vld [vmem:[%s610 + $0x24] sm:$0xe]
      %v2215 = vld [vmem:[%s610 + $0x28] sm:$0xf]
      %v2216 = vld [vmem:[%s610 + $0x2c] sm:$0x1]
      %v2217 = vld [vmem:[%s610 + $0x30] sm:$0xe]
      %v2218 = vld [vmem:[%s610 + $0x34] sm:$0xf]
      %v2219 = vld [vmem:[%s610 + $0x38] sm:$0x1]
      %v2220 = vld [vmem:[%s610 + $0x3c] sm:$0xe]
      %v2221 = vld [vmem:[%s610 + $0x40] sm:$0xf]
      %v2222 = vld [vmem:[%s610 + $0x44] sm:$0x1]
      %v2223 = vld [vmem:[%s610 + $0x48] sm:$0xe]
      %v2224 = vld [vmem:[%s610 + $0x4c] sm:$0xf]
      %v2225 = vld [vmem:[%s610 + $0x50] sm:$0x1]
      %v2226 = vld [vmem:[%s610 + $0x54] sm:$0xe]
      %v2227 = vld [vmem:[%s610 + $0x58] sm:$0xf]
      %v2228 = vld [vmem:[%s610 + $0x5c] sm:$0x1]
      %v2229 = vld [vmem:[%s610 + $0x60] sm:$0xe]
      %v2230 = vld [vmem:[%s610 + $0x64] sm:$0xf]
      %v2231 = vld [vmem:[%s610 + $0x68] sm:$0x1]
      %v2232 = vld [vmem:[%s610 + $0x6c] sm:$0xe]
      %v2233 = vld [vmem:[%s610 + $0x70] sm:$0xf]
      %v2234 = vld [vmem:[%s610 + $0x74] sm:$0x1]
      %v2235 = vld [vmem:[%s610 + $0x78] sm:$0xe]
      %v2236 = vld [vmem:[%s610 + $0x7c] sm:$0xf]
      %v2237 = vld [vmem:[%s610 + $0x80] sm:$0x1]
      %v2238 = vld [vmem:[%s610 + $0x84] sm:$0xe]
      %v2239 = vld [vmem:[%s610 + $0x88] sm:$0xf]
      %v2240 = vld [vmem:[%s610 + $0x8c] sm:$0x1]
      %v2241 = vld [vmem:[%s610 + $0x90] sm:$0xe]
      %v2242 = vld [vmem:[%s610 + $0x94] sm:$0xf]
      %v2243 = vld [vmem:[%s610 + $0x98] sm:$0x1]
      %v2244 = vld [vmem:[%s610 + $0x9c] sm:$0xe]
      %v2245 = vld [vmem:[%s610 + $0xa0] sm:$0xf]
      %v2246 = vld [vmem:[%s610 + $0xa4] sm:$0x1]
      %v2247 = vld [vmem:[%s610 + $0xa8] sm:$0xe]
      %v2248 = vld [vmem:[%s610 + $0xac] sm:$0xf]
      %v2249 = vld [vmem:[%s610 + $0xb0] sm:$0x1]
      %v2250 = vld [vmem:[%s610 + $0xb4] sm:$0xe]
      %v2251 = vld [vmem:[%s610 + $0xb8] sm:$0xf]
      %v2252 = vld [vmem:[%s610 + $0xbc] sm:$0x1]
      %v2301 = vrot.slane %v2205, 5
      %v2302 = vrot.slane %v2301, 4
      %v2303 = vrot.slane %v2206, 5
      %v2304 = vsel %vm1468, %v2302, %v2303
      %v2305 = vrot.slane %v2303, 4
      %v2306 = vrot.slane %v2207, 5
      %v2307 = vsel %vm1468, %v2305, %v2306
      %v2308 = vrot.slane %v2208, 5
      %v2309 = vrot.slane %v2308, 4
      %v2310 = vrot.slane %v2209, 5
      %v2311 = vsel %vm1468, %v2309, %v2310
      %v2312 = vrot.slane %v2310, 4
      %v2313 = vrot.slane %v2210, 5
      %v2314 = vsel %vm1468, %v2312, %v2313
      %v2315 = vrot.slane %v2211, 5
      %v2316 = vrot.slane %v2315, 4
      %v2317 = vrot.slane %v2212, 5
      %v2318 = vsel %vm1468, %v2316, %v2317
      %v2319 = vrot.slane %v2317, 4
      %v2320 = vrot.slane %v2213, 5
      %v2321 = vsel %vm1468, %v2319, %v2320
      %v2322 = vrot.slane %v2214, 5
      %v2323 = vrot.slane %v2322, 4
      %v2324 = vrot.slane %v2215, 5
      %v2325 = vsel %vm1468, %v2323, %v2324
      %v2326 = vrot.slane %v2324, 4
      %v2327 = vrot.slane %v2216, 5
      %v2328 = vsel %vm1468, %v2326, %v2327
      %v2329 = vrot.slane %v2217, 5
      %v2330 = vrot.slane %v2329, 4
      %v2331 = vrot.slane %v2218, 5
      %v2332 = vsel %vm1468, %v2330, %v2331
      %v2333 = vrot.slane %v2331, 4
      %v2334 = vrot.slane %v2219, 5
      %v2335 = vsel %vm1468, %v2333, %v2334
      %v2336 = vrot.slane %v2220, 5
      %v2337 = vrot.slane %v2336, 4
      %v2338 = vrot.slane %v2221, 5
      %v2339 = vsel %vm1468, %v2337, %v2338
      %v2340 = vrot.slane %v2338, 4
      %v2341 = vrot.slane %v2222, 5
      %v2342 = vsel %vm1468, %v2340, %v2341
      %v2343 = vrot.slane %v2223, 5
      %v2344 = vrot.slane %v2343, 4
      %v2345 = vrot.slane %v2224, 5
      %v2346 = vsel %vm1468, %v2344, %v2345
      %v2347 = vrot.slane %v2345, 4
      %v2348 = vrot.slane %v2225, 5
      %v2349 = vsel %vm1468, %v2347, %v2348
      %v2350 = vrot.slane %v2226, 5
      %v2351 = vrot.slane %v2350, 4
      %v2352 = vrot.slane %v2227, 5
      %v2353 = vsel %vm1468, %v2351, %v2352
      %v2354 = vrot.slane %v2352, 4
      %v2355 = vrot.slane %v2228, 5
      %v2356 = vsel %vm1468, %v2354, %v2355
      %v2357 = vrot.slane %v2229, 5
      %v2358 = vrot.slane %v2357, 4
      %v2359 = vrot.slane %v2230, 5
      %v2360 = vsel %vm1468, %v2358, %v2359
      %v2361 = vrot.slane %v2359, 4
      %v2362 = vrot.slane %v2231, 5
      %v2363 = vsel %vm1468, %v2361, %v2362
      %v2364 = vrot.slane %v2232, 5
      %v2365 = vrot.slane %v2364, 4
      %v2366 = vrot.slane %v2233, 5
      %v2367 = vsel %vm1468, %v2365, %v2366
      %v2368 = vrot.slane %v2366, 4
      %v2369 = vrot.slane %v2234, 5
      %v2370 = vsel %vm1468, %v2368, %v2369
      %v2371 = vrot.slane %v2235, 5
      %v2372 = vrot.slane %v2371, 4
      %v2373 = vrot.slane %v2236, 5
      %v2374 = vsel %vm1468, %v2372, %v2373
      %v2375 = vrot.slane %v2373, 4
      %v2376 = vrot.slane %v2237, 5
      %v2377 = vsel %vm1468, %v2375, %v2376
      %v2378 = vrot.slane %v2238, 5
      %v2379 = vrot.slane %v2378, 4
      %v2380 = vrot.slane %v2239, 5
      %v2381 = vsel %vm1468, %v2379, %v2380
      %v2382 = vrot.slane %v2380, 4
      %v2383 = vrot.slane %v2240, 5
      %v2384 = vsel %vm1468, %v2382, %v2383
      %v2385 = vrot.slane %v2241, 5
      %v2386 = vrot.slane %v2385, 4
      %v2387 = vrot.slane %v2242, 5
      %v2388 = vsel %vm1468, %v2386, %v2387
      %v2389 = vrot.slane %v2387, 4
      %v2390 = vrot.slane %v2243, 5
      %v2391 = vsel %vm1468, %v2389, %v2390
      %v2392 = vrot.slane %v2244, 5
      %v2393 = vrot.slane %v2392, 4
      %v2394 = vrot.slane %v2245, 5
      %v2395 = vsel %vm1468, %v2393, %v2394
      %v2396 = vrot.slane %v2394, 4
      %v2397 = vrot.slane %v2246, 5
      %v2398 = vsel %vm1468, %v2396, %v2397
      %v2399 = vrot.slane %v2247, 5
      %v2400 = vrot.slane %v2399, 4
      %v2401 = vrot.slane %v2248, 5
      %v2402 = vsel %vm1468, %v2400, %v2401
      %v2403 = vrot.slane %v2401, 4
      %v2404 = vrot.slane %v2249, 5
      %v2405 = vsel %vm1468, %v2403, %v2404
      %v2406 = vrot.slane %v2250, 5
      %v2407 = vrot.slane %v2406, 4
      %v2408 = vrot.slane %v2251, 5
      %v2409 = vsel %vm1468, %v2407, %v2408
      %v2410 = vrot.slane %v2408, 4
      %v2411 = vrot.slane %v2252, 5
      %v2412 = vsel %vm1468, %v2410, %v2411
      %2445 = vst [vmem:[#allocation3 + $0x14] sm:$0xf] %v2304
      %2446 = vst [vmem:[#allocation3 + $0x38] sm:$0xf] %v2307
      %2447 = vst [vmem:[#allocation3 + $0x5c] sm:$0xf] %v2311
      %2448 = vst [vmem:[#allocation3 + $0x80] sm:$0xf] %v2314
      %2449 = vst [vmem:[#allocation3 + $0xa4] sm:$0xf] %v2318
      %2450 = vst [vmem:[#allocation3 + $0xc8] sm:$0xf] %v2321
      %2451 = vst [vmem:[#allocation3 + $0xec] sm:$0xf] %v2325
      %2452 = vst [vmem:[#allocation3 + $0x110] sm:$0xf] %v2328
      %2453 = vst [vmem:[#allocation3 + $0x134] sm:$0xf] %v2332
      %2454 = vst [vmem:[#allocation3 + $0x158] sm:$0xf] %v2335
      %2455 = vst [vmem:[#allocation3 + $0x17c] sm:$0xf] %v2339
      %2456 = vst [vmem:[#allocation3 + $0x1a0] sm:$0xf] %v2342
      %2457 = vst [vmem:[#allocation3 + $0x1c4] sm:$0xf] %v2346
      %2458 = vst [vmem:[#allocation3 + $0x1e8] sm:$0xf] %v2349
      %2459 = vst [vmem:[#allocation3 + $0x20c] sm:$0xf] %v2353
      %2460 = vst [vmem:[#allocation3 + $0x230] sm:$0xf] %v2356
      %2461 = vst [vmem:[#allocation3 + $0x254] sm:$0xf] %v2360
      %2462 = vst [vmem:[#allocation3 + $0x278] sm:$0xf] %v2363
      %2463 = vst [vmem:[#allocation3 + $0x29c] sm:$0xf] %v2367
      %2464 = vst [vmem:[#allocation3 + $0x2c0] sm:$0xf] %v2370
      %2465 = vst [vmem:[#allocation3 + $0x2e4] sm:$0xf] %v2374
      %2466 = vst [vmem:[#allocation3 + $0x308] sm:$0xf] %v2377
      %2467 = vst [vmem:[#allocation3 + $0x32c] sm:$0xf] %v2381
      %2468 = vst [vmem:[#allocation3 + $0x350] sm:$0xf] %v2384
      %2469 = vst [vmem:[#allocation3 + $0x374] sm:$0xf] %v2388
      %2470 = vst [vmem:[#allocation3 + $0x398] sm:$0xf] %v2391
      %2471 = vst [vmem:[#allocation3 + $0x3bc] sm:$0xf] %v2395
      %2472 = vst [vmem:[#allocation3 + $0x3e0] sm:$0xf] %v2398
      %2473 = vst [vmem:[#allocation3 + $0x404] sm:$0xf] %v2402
      %2474 = vst [vmem:[#allocation3 + $0x428] sm:$0xf] %v2405
      %2475 = vst [vmem:[#allocation3 + $0x44c] sm:$0xf] %v2409
      %2476 = vst [vmem:[#allocation3 + $0x470] sm:$0xf] %v2412
      %s2477 = scalar_lea.vmem [#allocation2], 24
      %v2478 = vld [vmem:[%s2477] sm:$0xf]
      %v2479 = vld [vmem:[%s2477 + $0x4] sm:$0xf]
      %v2480 = vld [vmem:[%s2477 + $0xc] sm:$0xf]
      %v2481 = vld [vmem:[%s2477 + $0x10] sm:$0xf]
      %v2482 = vld [vmem:[%s2477 + $0x18] sm:$0xf]
      %v2483 = vld [vmem:[%s2477 + $0x1c] sm:$0xf]
      %v2484 = vld [vmem:[%s2477 + $0x24] sm:$0xf]
      %v2485 = vld [vmem:[%s2477 + $0x28] sm:$0xf]
      %v2486 = vld [vmem:[%s2477 + $0x30] sm:$0xf]
      %v2487 = vld [vmem:[%s2477 + $0x34] sm:$0xf]
      %v2488 = vld [vmem:[%s2477 + $0x3c] sm:$0xf]
      %v2489 = vld [vmem:[%s2477 + $0x40] sm:$0xf]
      %v2490 = vld [vmem:[%s2477 + $0x48] sm:$0xf]
      %v2491 = vld [vmem:[%s2477 + $0x4c] sm:$0xf]
      %v2492 = vld [vmem:[%s2477 + $0x54] sm:$0xf]
      %v2493 = vld [vmem:[%s2477 + $0x58] sm:$0xf]
      %v2494 = vld [vmem:[%s2477 + $0x60] sm:$0xf]
      %v2495 = vld [vmem:[%s2477 + $0x64] sm:$0xf]
      %v2496 = vld [vmem:[%s2477 + $0x6c] sm:$0xf]
      %v2497 = vld [vmem:[%s2477 + $0x70] sm:$0xf]
      %v2498 = vld [vmem:[%s2477 + $0x78] sm:$0xf]
      %v2499 = vld [vmem:[%s2477 + $0x7c] sm:$0xf]
      %v2500 = vld [vmem:[%s2477 + $0x84] sm:$0xf]
      %v2501 = vld [vmem:[%s2477 + $0x88] sm:$0xf]
      %v2502 = vld [vmem:[%s2477 + $0x90] sm:$0xf]
      %v2503 = vld [vmem:[%s2477 + $0x94] sm:$0xf]
      %v2504 = vld [vmem:[%s2477 + $0x9c] sm:$0xf]
      %v2505 = vld [vmem:[%s2477 + $0xa0] sm:$0xf]
      %v2506 = vld [vmem:[%s2477 + $0xa8] sm:$0xf]
      %v2507 = vld [vmem:[%s2477 + $0xac] sm:$0xf]
      %v2508 = vld [vmem:[%s2477 + $0xb4] sm:$0xf]
      %v2509 = vld [vmem:[%s2477 + $0xb8] sm:$0xf]
      %2510 = vst [vmem:[#allocation3 + $0x18] sm:$0xf] %v2478
      %2511 = vst [vmem:[#allocation3 + $0x3c] sm:$0xf] %v2479
      %2512 = vst [vmem:[#allocation3 + $0x60] sm:$0xf] %v2480
      %2513 = vst [vmem:[#allocation3 + $0x84] sm:$0xf] %v2481
      %2514 = vst [vmem:[#allocation3 + $0xa8] sm:$0xf] %v2482
      %2515 = vst [vmem:[#allocation3 + $0xcc] sm:$0xf] %v2483
      %2516 = vst [vmem:[#allocation3 + $0xf0] sm:$0xf] %v2484
      %2517 = vst [vmem:[#allocation3 + $0x114] sm:$0xf] %v2485
      %2518 = vst [vmem:[#allocation3 + $0x138] sm:$0xf] %v2486
      %2519 = vst [vmem:[#allocation3 + $0x15c] sm:$0xf] %v2487
      %2520 = vst [vmem:[#allocation3 + $0x180] sm:$0xf] %v2488
      %2521 = vst [vmem:[#allocation3 + $0x1a4] sm:$0xf] %v2489
      %2522 = vst [vmem:[#allocation3 + $0x1c8] sm:$0xf] %v2490
      %2523 = vst [vmem:[#allocation3 + $0x1ec] sm:$0xf] %v2491
      %2524 = vst [vmem:[#allocation3 + $0x210] sm:$0xf] %v2492
      %2525 = vst [vmem:[#allocation3 + $0x234] sm:$0xf] %v2493
      %2526 = vst [vmem:[#allocation3 + $0x258] sm:$0xf] %v2494
      %2527 = vst [vmem:[#allocation3 + $0x27c] sm:$0xf] %v2495
      %2528 = vst [vmem:[#allocation3 + $0x2a0] sm:$0xf] %v2496
      %2529 = vst [vmem:[#allocation3 + $0x2c4] sm:$0xf] %v2497
      %2530 = vst [vmem:[#allocation3 + $0x2e8] sm:$0xf] %v2498
      %2531 = vst [vmem:[#allocation3 + $0x30c] sm:$0xf] %v2499
      %2532 = vst [vmem:[#allocation3 + $0x330] sm:$0xf] %v2500
      %2533 = vst [vmem:[#allocation3 + $0x354] sm:$0xf] %v2501
      %2534 = vst [vmem:[#allocation3 + $0x378] sm:$0xf] %v2502
      %2535 = vst [vmem:[#allocation3 + $0x39c] sm:$0xf] %v2503
      %2536 = vst [vmem:[#allocation3 + $0x3c0] sm:$0xf] %v2504
      %2537 = vst [vmem:[#allocation3 + $0x3e4] sm:$0xf] %v2505
      %2538 = vst [vmem:[#allocation3 + $0x408] sm:$0xf] %v2506
      %2539 = vst [vmem:[#allocation3 + $0x42c] sm:$0xf] %v2507
      %2540 = vst [vmem:[#allocation3 + $0x450] sm:$0xf] %v2508
      %2541 = vst [vmem:[#allocation3 + $0x474] sm:$0xf] %v2509
      %v2542 = vld [vmem:[%s2477] sm:$0xf]
      %v2543 = vld [vmem:[%s2477 + $0x4] sm:$0xf]
      %v2544 = vld [vmem:[%s2477 + $0x8] sm:$0x1]
      %v2545 = vld [vmem:[%s2477 + $0xc] sm:$0xf]
      %v2546 = vld [vmem:[%s2477 + $0x10] sm:$0xf]
      %v2547 = vld [vmem:[%s2477 + $0x14] sm:$0x1]
      %v2548 = vld [vmem:[%s2477 + $0x18] sm:$0xf]
      %v2549 = vld [vmem:[%s2477 + $0x1c] sm:$0xf]
      %v2550 = vld [vmem:[%s2477 + $0x20] sm:$0x1]
      %v2551 = vld [vmem:[%s2477 + $0x24] sm:$0xf]
      %v2552 = vld [vmem:[%s2477 + $0x28] sm:$0xf]
      %v2553 = vld [vmem:[%s2477 + $0x2c] sm:$0x1]
      %v2554 = vld [vmem:[%s2477 + $0x30] sm:$0xf]
      %v2555 = vld [vmem:[%s2477 + $0x34] sm:$0xf]
      %v2556 = vld [vmem:[%s2477 + $0x38] sm:$0x1]
      %v2557 = vld [vmem:[%s2477 + $0x3c] sm:$0xf]
      %v2558 = vld [vmem:[%s2477 + $0x40] sm:$0xf]
      %v2559 = vld [vmem:[%s2477 + $0x44] sm:$0x1]
      %v2560 = vld [vmem:[%s2477 + $0x48] sm:$0xf]
      %v2561 = vld [vmem:[%s2477 + $0x4c] sm:$0xf]
      %v2562 = vld [vmem:[%s2477 + $0x50] sm:$0x1]
      %v2563 = vld [vmem:[%s2477 + $0x54] sm:$0xf]
      %v2564 = vld [vmem:[%s2477 + $0x58] sm:$0xf]
      %v2565 = vld [vmem:[%s2477 + $0x5c] sm:$0x1]
      %v2566 = vld [vmem:[%s2477 + $0x60] sm:$0xf]
      %v2567 = vld [vmem:[%s2477 + $0x64] sm:$0xf]
      %v2568 = vld [vmem:[%s2477 + $0x68] sm:$0x1]
      %v2569 = vld [vmem:[%s2477 + $0x6c] sm:$0xf]
      %v2570 = vld [vmem:[%s2477 + $0x70] sm:$0xf]
      %v2571 = vld [vmem:[%s2477 + $0x74] sm:$0x1]
      %v2572 = vld [vmem:[%s2477 + $0x78] sm:$0xf]
      %v2573 = vld [vmem:[%s2477 + $0x7c] sm:$0xf]
      %v2574 = vld [vmem:[%s2477 + $0x80] sm:$0x1]
      %v2575 = vld [vmem:[%s2477 + $0x84] sm:$0xf]
      %v2576 = vld [vmem:[%s2477 + $0x88] sm:$0xf]
      %v2577 = vld [vmem:[%s2477 + $0x8c] sm:$0x1]
      %v2578 = vld [vmem:[%s2477 + $0x90] sm:$0xf]
      %v2579 = vld [vmem:[%s2477 + $0x94] sm:$0xf]
      %v2580 = vld [vmem:[%s2477 + $0x98] sm:$0x1]
      %v2581 = vld [vmem:[%s2477 + $0x9c] sm:$0xf]
      %v2582 = vld [vmem:[%s2477 + $0xa0] sm:$0xf]
      %v2583 = vld [vmem:[%s2477 + $0xa4] sm:$0x1]
      %v2584 = vld [vmem:[%s2477 + $0xa8] sm:$0xf]
      %v2585 = vld [vmem:[%s2477 + $0xac] sm:$0xf]
      %v2586 = vld [vmem:[%s2477 + $0xb0] sm:$0x1]
      %v2587 = vld [vmem:[%s2477 + $0xb4] sm:$0xf]
      %v2588 = vld [vmem:[%s2477 + $0xb8] sm:$0xf]
      %v2589 = vld [vmem:[%s2477 + $0xbc] sm:$0x1]
      %v2591 = vshrl.u32 %v2542, 16
      %v2593 = vrot.slane %v2591, 4
      %v2594 = vshll.u32 %v2542, 16
      %v2596 = vrot.slane %v2594, 5
      %v2597 = vor.u32 %v2593, %v2596
      %v2598 = vrot.slane %v2597, 4
      %v2600 = vshll.u32 %v2543, 16
      %v2602 = vrot.slane %v2600, 5
      %v2603 = vsel %vm921, %v2598, %v2602
      %v2604 = vshrl.u32 %v2543, 16
      %v2606 = vrot.slane %v2604, 4
      %v2607 = vor.u32 %v2606, %v2602
      %v2608 = vrot.slane %v2607, 4
      %v2610 = vshll.u32 %v2544, 16
      %v2612 = vrot.slane %v2610, 5
      %v2613 = vsel %vm921, %v2608, %v2612
      %v2615 = vshrl.u32 %v2545, 16
      %v2617 = vrot.slane %v2615, 4
      %v2618 = vshll.u32 %v2545, 16
      %v2620 = vrot.slane %v2618, 5
      %v2621 = vor.u32 %v2617, %v2620
      %v2622 = vrot.slane %v2621, 4
      %v2624 = vshll.u32 %v2546, 16
      %v2626 = vrot.slane %v2624, 5
      %v2627 = vsel %vm921, %v2622, %v2626
      %v2628 = vshrl.u32 %v2546, 16
      %v2630 = vrot.slane %v2628, 4
      %v2631 = vor.u32 %v2630, %v2626
      %v2632 = vrot.slane %v2631, 4
      %v2634 = vshll.u32 %v2547, 16
      %v2636 = vrot.slane %v2634, 5
      %v2637 = vsel %vm921, %v2632, %v2636
      %v2639 = vshrl.u32 %v2548, 16
      %v2641 = vrot.slane %v2639, 4
      %v2642 = vshll.u32 %v2548, 16
      %v2644 = vrot.slane %v2642, 5
      %v2645 = vor.u32 %v2641, %v2644
      %v2646 = vrot.slane %v2645, 4
      %v2648 = vshll.u32 %v2549, 16
      %v2650 = vrot.slane %v2648, 5
      %v2651 = vsel %vm921, %v2646, %v2650
      %v2652 = vshrl.u32 %v2549, 16
      %v2654 = vrot.slane %v2652, 4
      %v2655 = vor.u32 %v2654, %v2650
      %v2656 = vrot.slane %v2655, 4
      %v2658 = vshll.u32 %v2550, 16
      %v2660 = vrot.slane %v2658, 5
      %v2661 = vsel %vm921, %v2656, %v2660
      %v2663 = vshrl.u32 %v2551, 16
      %v2665 = vrot.slane %v2663, 4
      %v2666 = vshll.u32 %v2551, 16
      %v2668 = vrot.slane %v2666, 5
      %v2669 = vor.u32 %v2665, %v2668
      %v2670 = vrot.slane %v2669, 4
      %v2672 = vshll.u32 %v2552, 16
      %v2674 = vrot.slane %v2672, 5
      %v2675 = vsel %vm921, %v2670, %v2674
      %v2676 = vshrl.u32 %v2552, 16
      %v2678 = vrot.slane %v2676, 4
      %v2679 = vor.u32 %v2678, %v2674
      %v2680 = vrot.slane %v2679, 4
      %v2682 = vshll.u32 %v2553, 16
      %v2684 = vrot.slane %v2682, 5
      %v2685 = vsel %vm921, %v2680, %v2684
      %v2687 = vshrl.u32 %v2554, 16
      %v2689 = vrot.slane %v2687, 4
      %v2690 = vshll.u32 %v2554, 16
      %v2692 = vrot.slane %v2690, 5
      %v2693 = vor.u32 %v2689, %v2692
      %v2694 = vrot.slane %v2693, 4
      %v2696 = vshll.u32 %v2555, 16
      %v2698 = vrot.slane %v2696, 5
      %v2699 = vsel %vm921, %v2694, %v2698
      %v2700 = vshrl.u32 %v2555, 16
      %v2702 = vrot.slane %v2700, 4
      %v2703 = vor.u32 %v2702, %v2698
      %v2704 = vrot.slane %v2703, 4
      %v2706 = vshll.u32 %v2556, 16
      %v2708 = vrot.slane %v2706, 5
      %v2709 = vsel %vm921, %v2704, %v2708
      %v2711 = vshrl.u32 %v2557, 16
      %v2713 = vrot.slane %v2711, 4
      %v2714 = vshll.u32 %v2557, 16
      %v2716 = vrot.slane %v2714, 5
      %v2717 = vor.u32 %v2713, %v2716
      %v2718 = vrot.slane %v2717, 4
      %v2720 = vshll.u32 %v2558, 16
      %v2722 = vrot.slane %v2720, 5
      %v2723 = vsel %vm921, %v2718, %v2722
      %v2724 = vshrl.u32 %v2558, 16
      %v2726 = vrot.slane %v2724, 4
      %v2727 = vor.u32 %v2726, %v2722
      %v2728 = vrot.slane %v2727, 4
      %v2730 = vshll.u32 %v2559, 16
      %v2732 = vrot.slane %v2730, 5
      %v2733 = vsel %vm921, %v2728, %v2732
      %v2735 = vshrl.u32 %v2560, 16
      %v2737 = vrot.slane %v2735, 4
      %v2738 = vshll.u32 %v2560, 16
      %v2740 = vrot.slane %v2738, 5
      %v2741 = vor.u32 %v2737, %v2740
      %v2742 = vrot.slane %v2741, 4
      %v2744 = vshll.u32 %v2561, 16
      %v2746 = vrot.slane %v2744, 5
      %v2747 = vsel %vm921, %v2742, %v2746
      %v2748 = vshrl.u32 %v2561, 16
      %v2750 = vrot.slane %v2748, 4
      %v2751 = vor.u32 %v2750, %v2746
      %v2752 = vrot.slane %v2751, 4
      %v2754 = vshll.u32 %v2562, 16
      %v2756 = vrot.slane %v2754, 5
      %v2757 = vsel %vm921, %v2752, %v2756
      %v2759 = vshrl.u32 %v2563, 16
      %v2761 = vrot.slane %v2759, 4
      %v2762 = vshll.u32 %v2563, 16
      %v2764 = vrot.slane %v2762, 5
      %v2765 = vor.u32 %v2761, %v2764
      %v2766 = vrot.slane %v2765, 4
      %v2768 = vshll.u32 %v2564, 16
      %v2770 = vrot.slane %v2768, 5
      %v2771 = vsel %vm921, %v2766, %v2770
      %v2772 = vshrl.u32 %v2564, 16
      %v2774 = vrot.slane %v2772, 4
      %v2775 = vor.u32 %v2774, %v2770
      %v2776 = vrot.slane %v2775, 4
      %v2778 = vshll.u32 %v2565, 16
      %v2780 = vrot.slane %v2778, 5
      %v2781 = vsel %vm921, %v2776, %v2780
      %v2783 = vshrl.u32 %v2566, 16
      %v2785 = vrot.slane %v2783, 4
      %v2786 = vshll.u32 %v2566, 16
      %v2788 = vrot.slane %v2786, 5
      %v2789 = vor.u32 %v2785, %v2788
      %v2790 = vrot.slane %v2789, 4
      %v2792 = vshll.u32 %v2567, 16
      %v2794 = vrot.slane %v2792, 5
      %v2795 = vsel %vm921, %v2790, %v2794
      %v2796 = vshrl.u32 %v2567, 16
      %v2798 = vrot.slane %v2796, 4
      %v2799 = vor.u32 %v2798, %v2794
      %v2800 = vrot.slane %v2799, 4
      %v2802 = vshll.u32 %v2568, 16
      %v2804 = vrot.slane %v2802, 5
      %v2805 = vsel %vm921, %v2800, %v2804
      %v2807 = vshrl.u32 %v2569, 16
      %v2809 = vrot.slane %v2807, 4
      %v2810 = vshll.u32 %v2569, 16
      %v2812 = vrot.slane %v2810, 5
      %v2813 = vor.u32 %v2809, %v2812
      %v2814 = vrot.slane %v2813, 4
      %v2816 = vshll.u32 %v2570, 16
      %v2818 = vrot.slane %v2816, 5
      %v2819 = vsel %vm921, %v2814, %v2818
      %v2820 = vshrl.u32 %v2570, 16
      %v2822 = vrot.slane %v2820, 4
      %v2823 = vor.u32 %v2822, %v2818
      %v2824 = vrot.slane %v2823, 4
      %v2826 = vshll.u32 %v2571, 16
      %v2828 = vrot.slane %v2826, 5
      %v2829 = vsel %vm921, %v2824, %v2828
      %v2831 = vshrl.u32 %v2572, 16
      %v2833 = vrot.slane %v2831, 4
      %v2834 = vshll.u32 %v2572, 16
      %v2836 = vrot.slane %v2834, 5
      %v2837 = vor.u32 %v2833, %v2836
      %v2838 = vrot.slane %v2837, 4
      %v2840 = vshll.u32 %v2573, 16
      %v2842 = vrot.slane %v2840, 5
      %v2843 = vsel %vm921, %v2838, %v2842
      %v2844 = vshrl.u32 %v2573, 16
      %v2846 = vrot.slane %v2844, 4
      %v2847 = vor.u32 %v2846, %v2842
      %v2848 = vrot.slane %v2847, 4
      %v2850 = vshll.u32 %v2574, 16
      %v2852 = vrot.slane %v2850, 5
      %v2853 = vsel %vm921, %v2848, %v2852
      %v2855 = vshrl.u32 %v2575, 16
      %v2857 = vrot.slane %v2855, 4
      %v2858 = vshll.u32 %v2575, 16
      %v2860 = vrot.slane %v2858, 5
      %v2861 = vor.u32 %v2857, %v2860
      %v2862 = vrot.slane %v2861, 4
      %v2864 = vshll.u32 %v2576, 16
      %v2866 = vrot.slane %v2864, 5
      %v2867 = vsel %vm921, %v2862, %v2866
      %v2868 = vshrl.u32 %v2576, 16
      %v2870 = vrot.slane %v2868, 4
      %v2871 = vor.u32 %v2870, %v2866
      %v2872 = vrot.slane %v2871, 4
      %v2874 = vshll.u32 %v2577, 16
      %v2876 = vrot.slane %v2874, 5
      %v2877 = vsel %vm921, %v2872, %v2876
      %v2879 = vshrl.u32 %v2578, 16
      %v2881 = vrot.slane %v2879, 4
      %v2882 = vshll.u32 %v2578, 16
      %v2884 = vrot.slane %v2882, 5
      %v2885 = vor.u32 %v2881, %v2884
      %v2886 = vrot.slane %v2885, 4
      %v2888 = vshll.u32 %v2579, 16
      %v2890 = vrot.slane %v2888, 5
      %v2891 = vsel %vm921, %v2886, %v2890
      %v2892 = vshrl.u32 %v2579, 16
      %v2894 = vrot.slane %v2892, 4
      %v2895 = vor.u32 %v2894, %v2890
      %v2896 = vrot.slane %v2895, 4
      %v2898 = vshll.u32 %v2580, 16
      %v2900 = vrot.slane %v2898, 5
      %v2901 = vsel %vm921, %v2896, %v2900
      %v2903 = vshrl.u32 %v2581, 16
      %v2905 = vrot.slane %v2903, 4
      %v2906 = vshll.u32 %v2581, 16
      %v2908 = vrot.slane %v2906, 5
      %v2909 = vor.u32 %v2905, %v2908
      %v2910 = vrot.slane %v2909, 4
      %v2912 = vshll.u32 %v2582, 16
      %v2914 = vrot.slane %v2912, 5
      %v2915 = vsel %vm921, %v2910, %v2914
      %v2916 = vshrl.u32 %v2582, 16
      %v2918 = vrot.slane %v2916, 4
      %v2919 = vor.u32 %v2918, %v2914
      %v2920 = vrot.slane %v2919, 4
      %v2922 = vshll.u32 %v2583, 16
      %v2924 = vrot.slane %v2922, 5
      %v2925 = vsel %vm921, %v2920, %v2924
      %v2927 = vshrl.u32 %v2584, 16
      %v2929 = vrot.slane %v2927, 4
      %v2930 = vshll.u32 %v2584, 16
      %v2932 = vrot.slane %v2930, 5
      %v2933 = vor.u32 %v2929, %v2932
      %v2934 = vrot.slane %v2933, 4
      %v2936 = vshll.u32 %v2585, 16
      %v2938 = vrot.slane %v2936, 5
      %v2939 = vsel %vm921, %v2934, %v2938
      %v2940 = vshrl.u32 %v2585, 16
      %v2942 = vrot.slane %v2940, 4
      %v2943 = vor.u32 %v2942, %v2938
      %v2944 = vrot.slane %v2943, 4
      %v2946 = vshll.u32 %v2586, 16
      %v2948 = vrot.slane %v2946, 5
      %v2949 = vsel %vm921, %v2944, %v2948
      %v2951 = vshrl.u32 %v2587, 16
      %v2953 = vrot.slane %v2951, 4
      %v2954 = vshll.u32 %v2587, 16
      %v2956 = vrot.slane %v2954, 5
      %v2957 = vor.u32 %v2953, %v2956
      %v2958 = vrot.slane %v2957, 4
      %v2960 = vshll.u32 %v2588, 16
      %v2962 = vrot.slane %v2960, 5
      %v2963 = vsel %vm921, %v2958, %v2962
      %v2964 = vshrl.u32 %v2588, 16
      %v2966 = vrot.slane %v2964, 4
      %v2967 = vor.u32 %v2966, %v2962
      %v2968 = vrot.slane %v2967, 4
      %v2970 = vshll.u32 %v2589, 16
      %v2972 = vrot.slane %v2970, 5
      %v2973 = vsel %vm921, %v2968, %v2972
      %3006 = vst [vmem:[#allocation3 + $0x1c] sm:$0xf] %v2603
      %3007 = vst [vmem:[#allocation3 + $0x40] sm:$0xf] %v2613
      %3008 = vst [vmem:[#allocation3 + $0x64] sm:$0xf] %v2627
      %3009 = vst [vmem:[#allocation3 + $0x88] sm:$0xf] %v2637
      %3010 = vst [vmem:[#allocation3 + $0xac] sm:$0xf] %v2651
      %3011 = vst [vmem:[#allocation3 + $0xd0] sm:$0xf] %v2661
      %3012 = vst [vmem:[#allocation3 + $0xf4] sm:$0xf] %v2675
      %3013 = vst [vmem:[#allocation3 + $0x118] sm:$0xf] %v2685
      %3014 = vst [vmem:[#allocation3 + $0x13c] sm:$0xf] %v2699
      %3015 = vst [vmem:[#allocation3 + $0x160] sm:$0xf] %v2709
      %3016 = vst [vmem:[#allocation3 + $0x184] sm:$0xf] %v2723
      %3017 = vst [vmem:[#allocation3 + $0x1a8] sm:$0xf] %v2733
      %3018 = vst [vmem:[#allocation3 + $0x1cc] sm:$0xf] %v2747
      %3019 = vst [vmem:[#allocation3 + $0x1f0] sm:$0xf] %v2757
      %3020 = vst [vmem:[#allocation3 + $0x214] sm:$0xf] %v2771
      %3021 = vst [vmem:[#allocation3 + $0x238] sm:$0xf] %v2781
      %3022 = vst [vmem:[#allocation3 + $0x25c] sm:$0xf] %v2795
      %3023 = vst [vmem:[#allocation3 + $0x280] sm:$0xf] %v2805
      %3024 = vst [vmem:[#allocation3 + $0x2a4] sm:$0xf] %v2819
      %3025 = vst [vmem:[#allocation3 + $0x2c8] sm:$0xf] %v2829
      %3026 = vst [vmem:[#allocation3 + $0x2ec] sm:$0xf] %v2843
      %3027 = vst [vmem:[#allocation3 + $0x310] sm:$0xf] %v2853
      %3028 = vst [vmem:[#allocation3 + $0x334] sm:$0xf] %v2867
      %3029 = vst [vmem:[#allocation3 + $0x358] sm:$0xf] %v2877
      %3030 = vst [vmem:[#allocation3 + $0x37c] sm:$0xf] %v2891
      %3031 = vst [vmem:[#allocation3 + $0x3a0] sm:$0xf] %v2901
      %3032 = vst [vmem:[#allocation3 + $0x3c4] sm:$0xf] %v2915
      %3033 = vst [vmem:[#allocation3 + $0x3e8] sm:$0xf] %v2925
      %3034 = vst [vmem:[#allocation3 + $0x40c] sm:$0xf] %v2939
      %3035 = vst [vmem:[#allocation3 + $0x430] sm:$0xf] %v2949
      %3036 = vst [vmem:[#allocation3 + $0x454] sm:$0xf] %v2963
      %3037 = vst [vmem:[#allocation3 + $0x478] sm:$0xf] %v2973
      %v3038 = vld [vmem:[%s2477] sm:$0xe]
      %v3039 = vld [vmem:[%s2477 + $0x4] sm:$0xf]
      %v3040 = vld [vmem:[%s2477 + $0x8] sm:$0x1]
      %v3041 = vld [vmem:[%s2477 + $0xc] sm:$0xe]
      %v3042 = vld [vmem:[%s2477 + $0x10] sm:$0xf]
      %v3043 = vld [vmem:[%s2477 + $0x14] sm:$0x1]
      %v3044 = vld [vmem:[%s2477 + $0x18] sm:$0xe]
      %v3045 = vld [vmem:[%s2477 + $0x1c] sm:$0xf]
      %v3046 = vld [vmem:[%s2477 + $0x20] sm:$0x1]
      %v3047 = vld [vmem:[%s2477 + $0x24] sm:$0xe]
      %v3048 = vld [vmem:[%s2477 + $0x28] sm:$0xf]
      %v3049 = vld [vmem:[%s2477 + $0x2c] sm:$0x1]
      %v3050 = vld [vmem:[%s2477 + $0x30] sm:$0xe]
      %v3051 = vld [vmem:[%s2477 + $0x34] sm:$0xf]
      %v3052 = vld [vmem:[%s2477 + $0x38] sm:$0x1]
      %v3053 = vld [vmem:[%s2477 + $0x3c] sm:$0xe]
      %v3054 = vld [vmem:[%s2477 + $0x40] sm:$0xf]
      %v3055 = vld [vmem:[%s2477 + $0x44] sm:$0x1]
      %v3056 = vld [vmem:[%s2477 + $0x48] sm:$0xe]
      %v3057 = vld [vmem:[%s2477 + $0x4c] sm:$0xf]
      %v3058 = vld [vmem:[%s2477 + $0x50] sm:$0x1]
      %v3059 = vld [vmem:[%s2477 + $0x54] sm:$0xe]
      %v3060 = vld [vmem:[%s2477 + $0x58] sm:$0xf]
      %v3061 = vld [vmem:[%s2477 + $0x5c] sm:$0x1]
      %v3062 = vld [vmem:[%s2477 + $0x60] sm:$0xe]
      %v3063 = vld [vmem:[%s2477 + $0x64] sm:$0xf]
      %v3064 = vld [vmem:[%s2477 + $0x68] sm:$0x1]
      %v3065 = vld [vmem:[%s2477 + $0x6c] sm:$0xe]
      %v3066 = vld [vmem:[%s2477 + $0x70] sm:$0xf]
      %v3067 = vld [vmem:[%s2477 + $0x74] sm:$0x1]
      %v3068 = vld [vmem:[%s2477 + $0x78] sm:$0xe]
      %v3069 = vld [vmem:[%s2477 + $0x7c] sm:$0xf]
      %v3070 = vld [vmem:[%s2477 + $0x80] sm:$0x1]
      %v3071 = vld [vmem:[%s2477 + $0x84] sm:$0xe]
      %v3072 = vld [vmem:[%s2477 + $0x88] sm:$0xf]
      %v3073 = vld [vmem:[%s2477 + $0x8c] sm:$0x1]
      %v3074 = vld [vmem:[%s2477 + $0x90] sm:$0xe]
      %v3075 = vld [vmem:[%s2477 + $0x94] sm:$0xf]
      %v3076 = vld [vmem:[%s2477 + $0x98] sm:$0x1]
      %v3077 = vld [vmem:[%s2477 + $0x9c] sm:$0xe]
      %v3078 = vld [vmem:[%s2477 + $0xa0] sm:$0xf]
      %v3079 = vld [vmem:[%s2477 + $0xa4] sm:$0x1]
      %v3080 = vld [vmem:[%s2477 + $0xa8] sm:$0xe]
      %v3081 = vld [vmem:[%s2477 + $0xac] sm:$0xf]
      %v3082 = vld [vmem:[%s2477 + $0xb0] sm:$0x1]
      %v3083 = vld [vmem:[%s2477 + $0xb4] sm:$0xe]
      %v3084 = vld [vmem:[%s2477 + $0xb8] sm:$0xf]
      %v3085 = vld [vmem:[%s2477 + $0xbc] sm:$0x1]
      %v3134 = vrot.slane %v3038, 5
      %v3135 = vrot.slane %v3134, 4
      %v3136 = vrot.slane %v3039, 5
      %v3137 = vsel %vm1468, %v3135, %v3136
      %v3138 = vrot.slane %v3136, 4
      %v3139 = vrot.slane %v3040, 5
      %v3140 = vsel %vm1468, %v3138, %v3139
      %v3141 = vrot.slane %v3041, 5
      %v3142 = vrot.slane %v3141, 4
      %v3143 = vrot.slane %v3042, 5
      %v3144 = vsel %vm1468, %v3142, %v3143
      %v3145 = vrot.slane %v3143, 4
      %v3146 = vrot.slane %v3043, 5
      %v3147 = vsel %vm1468, %v3145, %v3146
      %v3148 = vrot.slane %v3044, 5
      %v3149 = vrot.slane %v3148, 4
      %v3150 = vrot.slane %v3045, 5
      %v3151 = vsel %vm1468, %v3149, %v3150
      %v3152 = vrot.slane %v3150, 4
      %v3153 = vrot.slane %v3046, 5
      %v3154 = vsel %vm1468, %v3152, %v3153
      %v3155 = vrot.slane %v3047, 5
      %v3156 = vrot.slane %v3155, 4
      %v3157 = vrot.slane %v3048, 5
      %v3158 = vsel %vm1468, %v3156, %v3157
      %v3159 = vrot.slane %v3157, 4
      %v3160 = vrot.slane %v3049, 5
      %v3161 = vsel %vm1468, %v3159, %v3160
      %v3162 = vrot.slane %v3050, 5
      %v3163 = vrot.slane %v3162, 4
      %v3164 = vrot.slane %v3051, 5
      %v3165 = vsel %vm1468, %v3163, %v3164
      %v3166 = vrot.slane %v3164, 4
      %v3167 = vrot.slane %v3052, 5
      %v3168 = vsel %vm1468, %v3166, %v3167
      %v3169 = vrot.slane %v3053, 5
      %v3170 = vrot.slane %v3169, 4
      %v3171 = vrot.slane %v3054, 5
      %v3172 = vsel %vm1468, %v3170, %v3171
      %v3173 = vrot.slane %v3171, 4
      %v3174 = vrot.slane %v3055, 5
      %v3175 = vsel %vm1468, %v3173, %v3174
      %v3176 = vrot.slane %v3056, 5
      %v3177 = vrot.slane %v3176, 4
      %v3178 = vrot.slane %v3057, 5
      %v3179 = vsel %vm1468, %v3177, %v3178
      %v3180 = vrot.slane %v3178, 4
      %v3181 = vrot.slane %v3058, 5
      %v3182 = vsel %vm1468, %v3180, %v3181
      %v3183 = vrot.slane %v3059, 5
      %v3184 = vrot.slane %v3183, 4
      %v3185 = vrot.slane %v3060, 5
      %v3186 = vsel %vm1468, %v3184, %v3185
      %v3187 = vrot.slane %v3185, 4
      %v3188 = vrot.slane %v3061, 5
      %v3189 = vsel %vm1468, %v3187, %v3188
      %v3190 = vrot.slane %v3062, 5
      %v3191 = vrot.slane %v3190, 4
      %v3192 = vrot.slane %v3063, 5
      %v3193 = vsel %vm1468, %v3191, %v3192
      %v3194 = vrot.slane %v3192, 4
      %v3195 = vrot.slane %v3064, 5
      %v3196 = vsel %vm1468, %v3194, %v3195
      %v3197 = vrot.slane %v3065, 5
      %v3198 = vrot.slane %v3197, 4
      %v3199 = vrot.slane %v3066, 5
      %v3200 = vsel %vm1468, %v3198, %v3199
      %v3201 = vrot.slane %v3199, 4
      %v3202 = vrot.slane %v3067, 5
      %v3203 = vsel %vm1468, %v3201, %v3202
      %v3204 = vrot.slane %v3068, 5
      %v3205 = vrot.slane %v3204, 4
      %v3206 = vrot.slane %v3069, 5
      %v3207 = vsel %vm1468, %v3205, %v3206
      %v3208 = vrot.slane %v3206, 4
      %v3209 = vrot.slane %v3070, 5
      %v3210 = vsel %vm1468, %v3208, %v3209
      %v3211 = vrot.slane %v3071, 5
      %v3212 = vrot.slane %v3211, 4
      %v3213 = vrot.slane %v3072, 5
      %v3214 = vsel %vm1468, %v3212, %v3213
      %v3215 = vrot.slane %v3213, 4
      %v3216 = vrot.slane %v3073, 5
      %v3217 = vsel %vm1468, %v3215, %v3216
      %v3218 = vrot.slane %v3074, 5
      %v3219 = vrot.slane %v3218, 4
      %v3220 = vrot.slane %v3075, 5
      %v3221 = vsel %vm1468, %v3219, %v3220
      %v3222 = vrot.slane %v3220, 4
      %v3223 = vrot.slane %v3076, 5
      %v3224 = vsel %vm1468, %v3222, %v3223
      %v3225 = vrot.slane %v3077, 5
      %v3226 = vrot.slane %v3225, 4
      %v3227 = vrot.slane %v3078, 5
      %v3228 = vsel %vm1468, %v3226, %v3227
      %v3229 = vrot.slane %v3227, 4
      %v3230 = vrot.slane %v3079, 5
      %v3231 = vsel %vm1468, %v3229, %v3230
      %v3232 = vrot.slane %v3080, 5
      %v3233 = vrot.slane %v3232, 4
      %v3234 = vrot.slane %v3081, 5
      %v3235 = vsel %vm1468, %v3233, %v3234
      %v3236 = vrot.slane %v3234, 4
      %v3237 = vrot.slane %v3082, 5
      %v3238 = vsel %vm1468, %v3236, %v3237
      %v3239 = vrot.slane %v3083, 5
      %v3240 = vrot.slane %v3239, 4
      %v3241 = vrot.slane %v3084, 5
      %v3242 = vsel %vm1468, %v3240, %v3241
      %v3243 = vrot.slane %v3241, 4
      %v3244 = vrot.slane %v3085, 5
      %v3245 = vsel %vm1468, %v3243, %v3244
      %3278 = vst [vmem:[#allocation3 + $0x20] sm:$0xf] %v3137
      %3279 = vst [vmem:[#allocation3 + $0x44] sm:$0xf] %v3140
      %3280 = vst [vmem:[#allocation3 + $0x68] sm:$0xf] %v3144
      %3281 = vst [vmem:[#allocation3 + $0x8c] sm:$0xf] %v3147
      %3282 = vst [vmem:[#allocation3 + $0xb0] sm:$0xf] %v3151
      %3283 = vst [vmem:[#allocation3 + $0xd4] sm:$0xf] %v3154
      %3284 = vst [vmem:[#allocation3 + $0xf8] sm:$0xf] %v3158
      %3285 = vst [vmem:[#allocation3 + $0x11c] sm:$0xf] %v3161
      %3286 = vst [vmem:[#allocation3 + $0x140] sm:$0xf] %v3165
      %3287 = vst [vmem:[#allocation3 + $0x164] sm:$0xf] %v3168
      %3288 = vst [vmem:[#allocation3 + $0x188] sm:$0xf] %v3172
      %3289 = vst [vmem:[#allocation3 + $0x1ac] sm:$0xf] %v3175
      %3290 = vst [vmem:[#allocation3 + $0x1d0] sm:$0xf] %v3179
      %3291 = vst [vmem:[#allocation3 + $0x1f4] sm:$0xf] %v3182
      %3292 = vst [vmem:[#allocation3 + $0x218] sm:$0xf] %v3186
      %3293 = vst [vmem:[#allocation3 + $0x23c] sm:$0xf] %v3189
      %3294 = vst [vmem:[#allocation3 + $0x260] sm:$0xf] %v3193
      %3295 = vst [vmem:[#allocation3 + $0x284] sm:$0xf] %v3196
      %3296 = vst [vmem:[#allocation3 + $0x2a8] sm:$0xf] %v3200
      %3297 = vst [vmem:[#allocation3 + $0x2cc] sm:$0xf] %v3203
      %3298 = vst [vmem:[#allocation3 + $0x2f0] sm:$0xf] %v3207
      %3299 = vst [vmem:[#allocation3 + $0x314] sm:$0xf] %v3210
      %3300 = vst [vmem:[#allocation3 + $0x338] sm:$0xf] %v3214
      %3301 = vst [vmem:[#allocation3 + $0x35c] sm:$0xf] %v3217
      %3302 = vst [vmem:[#allocation3 + $0x380] sm:$0xf] %v3221
      %3303 = vst [vmem:[#allocation3 + $0x3a4] sm:$0xf] %v3224
      %3304 = vst [vmem:[#allocation3 + $0x3c8] sm:$0xf] %v3228
      %3305 = vst [vmem:[#allocation3 + $0x3ec] sm:$0xf] %v3231
      %3306 = vst [vmem:[#allocation3 + $0x410] sm:$0xf] %v3235
      %3307 = vst [vmem:[#allocation3 + $0x434] sm:$0xf] %v3238
      %3308 = vst [vmem:[#allocation3 + $0x458] sm:$0xf] %v3242
      %3309 = vst [vmem:[#allocation3 + $0x47c] sm:$0xf] %v3245
      %v3310 = vld [vmem:[#allocation3] sm:$0xff]
      %v3311 = vld [vmem:[#allocation3 + $0x8] sm:$0xff]
      %v3312 = vld [vmem:[#allocation3 + $0x10] sm:$0xff]
      %v3313 = vld [vmem:[#allocation3 + $0x18] sm:$0xff]
      %v3314 = vld [vmem:[#allocation3 + $0x20] sm:$0xf]
      %v3315 = vld [vmem:[#allocation3 + $0x24] sm:$0xff]
      %v3316 = vld [vmem:[#allocation3 + $0x2c] sm:$0xff]
      %v3317 = vld [vmem:[#allocation3 + $0x34] sm:$0xff]
      %v3318 = vld [vmem:[#allocation3 + $0x3c] sm:$0xff]
      %v3319 = vld [vmem:[#allocation3 + $0x44] sm:$0xf]
      %v3320 = vld [vmem:[#allocation3 + $0x48] sm:$0xff]
      %v3321 = vld [vmem:[#allocation3 + $0x50] sm:$0xff]
      %v3322 = vld [vmem:[#allocation3 + $0x58] sm:$0xff]
      %v3323 = vld [vmem:[#allocation3 + $0x60] sm:$0xff]
      %v3324 = vld [vmem:[#allocation3 + $0x68] sm:$0xf]
      %v3325 = vld [vmem:[#allocation3 + $0x6c] sm:$0xff]
      %v3326 = vld [vmem:[#allocation3 + $0x74] sm:$0xff]
      %v3327 = vld [vmem:[#allocation3 + $0x7c] sm:$0xff]
      %v3328 = vld [vmem:[#allocation3 + $0x84] sm:$0xff]
      %v3329 = vld [vmem:[#allocation3 + $0x8c] sm:$0xf]
      %v3330 = vld [vmem:[#allocation3 + $0x90] sm:$0xff]
      %v3331 = vld [vmem:[#allocation3 + $0x98] sm:$0xff]
      %v3332 = vld [vmem:[#allocation3 + $0xa0] sm:$0xff]
      %v3333 = vld [vmem:[#allocation3 + $0xa8] sm:$0xff]
      %v3334 = vld [vmem:[#allocation3 + $0xb0] sm:$0xf]
      %v3335 = vld [vmem:[#allocation3 + $0xb4] sm:$0xff]
      %v3336 = vld [vmem:[#allocation3 + $0xbc] sm:$0xff]
      %v3337 = vld [vmem:[#allocation3 + $0xc4] sm:$0xff]
      %v3338 = vld [vmem:[#allocation3 + $0xcc] sm:$0xff]
      %v3339 = vld [vmem:[#allocation3 + $0xd4] sm:$0xf]
      %v3340 = vld [vmem:[#allocation3 + $0xd8] sm:$0xff]
      %v3341 = vld [vmem:[#allocation3 + $0xe0] sm:$0xff]
      %v3342 = vld [vmem:[#allocation3 + $0xe8] sm:$0xff]
      %v3343 = vld [vmem:[#allocation3 + $0xf0] sm:$0xff]
      %v3344 = vld [vmem:[#allocation3 + $0xf8] sm:$0xf]
      %v3345 = vld [vmem:[#allocation3 + $0xfc] sm:$0xff]
      %v3346 = vld [vmem:[#allocation3 + $0x104] sm:$0xff]
      %v3347 = vld [vmem:[#allocation3 + $0x10c] sm:$0xff]
      %v3348 = vld [vmem:[#allocation3 + $0x114] sm:$0xff]
      %v3349 = vld [vmem:[#allocation3 + $0x11c] sm:$0xf]
      %v3350 = vld [vmem:[#allocation3 + $0x120] sm:$0xff]
      %v3351 = vld [vmem:[#allocation3 + $0x128] sm:$0xff]
      %v3352 = vld [vmem:[#allocation3 + $0x130] sm:$0xff]
      %v3353 = vld [vmem:[#allocation3 + $0x138] sm:$0xff]
      %v3354 = vld [vmem:[#allocation3 + $0x140] sm:$0xf]
      %v3355 = vld [vmem:[#allocation3 + $0x144] sm:$0xff]
      %v3356 = vld [vmem:[#allocation3 + $0x14c] sm:$0xff]
      %v3357 = vld [vmem:[#allocation3 + $0x154] sm:$0xff]
      %v3358 = vld [vmem:[#allocation3 + $0x15c] sm:$0xff]
      %v3359 = vld [vmem:[#allocation3 + $0x164] sm:$0xf]
      %v3360 = vld [vmem:[#allocation3 + $0x168] sm:$0xff]
      %v3361 = vld [vmem:[#allocation3 + $0x170] sm:$0xff]
      %v3362 = vld [vmem:[#allocation3 + $0x178] sm:$0xff]
      %v3363 = vld [vmem:[#allocation3 + $0x180] sm:$0xff]
      %v3364 = vld [vmem:[#allocation3 + $0x188] sm:$0xf]
      %v3365 = vld [vmem:[#allocation3 + $0x18c] sm:$0xff]
      %v3366 = vld [vmem:[#allocation3 + $0x194] sm:$0xff]
      %v3367 = vld [vmem:[#allocation3 + $0x19c] sm:$0xff]
      %v3368 = vld [vmem:[#allocation3 + $0x1a4] sm:$0xff]
      %v3369 = vld [vmem:[#allocation3 + $0x1ac] sm:$0xf]
      %v3370 = vld [vmem:[#allocation3 + $0x1b0] sm:$0xff]
      %v3371 = vld [vmem:[#allocation3 + $0x1b8] sm:$0xff]
      %v3372 = vld [vmem:[#allocation3 + $0x1c0] sm:$0xff]
      %v3373 = vld [vmem:[#allocation3 + $0x1c8] sm:$0xff]
      %v3374 = vld [vmem:[#allocation3 + $0x1d0] sm:$0xf]
      %v3375 = vld [vmem:[#allocation3 + $0x1d4] sm:$0xff]
      %v3376 = vld [vmem:[#allocation3 + $0x1dc] sm:$0xff]
      %v3377 = vld [vmem:[#allocation3 + $0x1e4] sm:$0xff]
      %v3378 = vld [vmem:[#allocation3 + $0x1ec] sm:$0xff]
      %v3379 = vld [vmem:[#allocation3 + $0x1f4] sm:$0xf]
      %v3380 = vld [vmem:[#allocation3 + $0x1f8] sm:$0xff]
      %v3381 = vld [vmem:[#allocation3 + $0x200] sm:$0xff]
      %v3382 = vld [vmem:[#allocation3 + $0x208] sm:$0xff]
      %v3383 = vld [vmem:[#allocation3 + $0x210] sm:$0xff]
      %v3384 = vld [vmem:[#allocation3 + $0x218] sm:$0xf]
      %v3385 = vld [vmem:[#allocation3 + $0x21c] sm:$0xff]
      %v3386 = vld [vmem:[#allocation3 + $0x224] sm:$0xff]
      %v3387 = vld [vmem:[#allocation3 + $0x22c] sm:$0xff]
      %v3388 = vld [vmem:[#allocation3 + $0x234] sm:$0xff]
      %v3389 = vld [vmem:[#allocation3 + $0x23c] sm:$0xf]
      %v3390 = vld [vmem:[#allocation3 + $0x240] sm:$0xff]
      %v3391 = vld [vmem:[#allocation3 + $0x248] sm:$0xff]
      %v3392 = vld [vmem:[#allocation3 + $0x250] sm:$0xff]
      %v3393 = vld [vmem:[#allocation3 + $0x258] sm:$0xff]
      %v3394 = vld [vmem:[#allocation3 + $0x260] sm:$0xf]
      %v3395 = vld [vmem:[#allocation3 + $0x264] sm:$0xff]
      %v3396 = vld [vmem:[#allocation3 + $0x26c] sm:$0xff]
      %v3397 = vld [vmem:[#allocation3 + $0x274] sm:$0xff]
      %v3398 = vld [vmem:[#allocation3 + $0x27c] sm:$0xff]
      %v3399 = vld [vmem:[#allocation3 + $0x284] sm:$0xf]
      %v3400 = vld [vmem:[#allocation3 + $0x288] sm:$0xff]
      %v3401 = vld [vmem:[#allocation3 + $0x290] sm:$0xff]
      %v3402 = vld [vmem:[#allocation3 + $0x298] sm:$0xff]
      %v3403 = vld [vmem:[#allocation3 + $0x2a0] sm:$0xff]
      %v3404 = vld [vmem:[#allocation3 + $0x2a8] sm:$0xf]
      %v3405 = vld [vmem:[#allocation3 + $0x2ac] sm:$0xff]
      %v3406 = vld [vmem:[#allocation3 + $0x2b4] sm:$0xff]
      %v3407 = vld [vmem:[#allocation3 + $0x2bc] sm:$0xff]
      %v3408 = vld [vmem:[#allocation3 + $0x2c4] sm:$0xff]
      %v3409 = vld [vmem:[#allocation3 + $0x2cc] sm:$0xf]
      %v3410 = vld [vmem:[#allocation3 + $0x2d0] sm:$0xff]
      %v3411 = vld [vmem:[#allocation3 + $0x2d8] sm:$0xff]
      %v3412 = vld [vmem:[#allocation3 + $0x2e0] sm:$0xff]
      %v3413 = vld [vmem:[#allocation3 + $0x2e8] sm:$0xff]
      %v3414 = vld [vmem:[#allocation3 + $0x2f0] sm:$0xf]
      %v3415 = vld [vmem:[#allocation3 + $0x2f4] sm:$0xff]
      %v3416 = vld [vmem:[#allocation3 + $0x2fc] sm:$0xff]
      %v3417 = vld [vmem:[#allocation3 + $0x304] sm:$0xff]
      %v3418 = vld [vmem:[#allocation3 + $0x30c] sm:$0xff]
      %v3419 = vld [vmem:[#allocation3 + $0x314] sm:$0xf]
      %v3420 = vld [vmem:[#allocation3 + $0x318] sm:$0xff]
      %v3421 = vld [vmem:[#allocation3 + $0x320] sm:$0xff]
      %v3422 = vld [vmem:[#allocation3 + $0x328] sm:$0xff]
      %v3423 = vld [vmem:[#allocation3 + $0x330] sm:$0xff]
      %v3424 = vld [vmem:[#allocation3 + $0x338] sm:$0xf]
      %v3425 = vld [vmem:[#allocation3 + $0x33c] sm:$0xff]
      %v3426 = vld [vmem:[#allocation3 + $0x344] sm:$0xff]
      %v3427 = vld [vmem:[#allocation3 + $0x34c] sm:$0xff]
      %v3428 = vld [vmem:[#allocation3 + $0x354] sm:$0xff]
      %v3429 = vld [vmem:[#allocation3 + $0x35c] sm:$0xf]
      %v3430 = vld [vmem:[#allocation3 + $0x360] sm:$0xff]
      %v3431 = vld [vmem:[#allocation3 + $0x368] sm:$0xff]
      %v3432 = vld [vmem:[#allocation3 + $0x370] sm:$0xff]
      %v3433 = vld [vmem:[#allocation3 + $0x378] sm:$0xff]
      %v3434 = vld [vmem:[#allocation3 + $0x380] sm:$0xf]
      %v3435 = vld [vmem:[#allocation3 + $0x384] sm:$0xff]
      %v3436 = vld [vmem:[#allocation3 + $0x38c] sm:$0xff]
      %v3437 = vld [vmem:[#allocation3 + $0x394] sm:$0xff]
      %v3438 = vld [vmem:[#allocation3 + $0x39c] sm:$0xff]
      %v3439 = vld [vmem:[#allocation3 + $0x3a4] sm:$0xf]
      %v3440 = vld [vmem:[#allocation3 + $0x3a8] sm:$0xff]
      %v3441 = vld [vmem:[#allocation3 + $0x3b0] sm:$0xff]
      %v3442 = vld [vmem:[#allocation3 + $0x3b8] sm:$0xff]
      %v3443 = vld [vmem:[#allocation3 + $0x3c0] sm:$0xff]
      %v3444 = vld [vmem:[#allocation3 + $0x3c8] sm:$0xf]
      %v3445 = vld [vmem:[#allocation3 + $0x3cc] sm:$0xff]
      %v3446 = vld [vmem:[#allocation3 + $0x3d4] sm:$0xff]
      %v3447 = vld [vmem:[#allocation3 + $0x3dc] sm:$0xff]
      %v3448 = vld [vmem:[#allocation3 + $0x3e4] sm:$0xff]
      %v3449 = vld [vmem:[#allocation3 + $0x3ec] sm:$0xf]
      %v3450 = vld [vmem:[#allocation3 + $0x3f0] sm:$0xff]
      %v3451 = vld [vmem:[#allocation3 + $0x3f8] sm:$0xff]
      %v3452 = vld [vmem:[#allocation3 + $0x400] sm:$0xff]
      %v3453 = vld [vmem:[#allocation3 + $0x408] sm:$0xff]
      %v3454 = vld [vmem:[#allocation3 + $0x410] sm:$0xf]
      %v3455 = vld [vmem:[#allocation3 + $0x414] sm:$0xff]
      %v3456 = vld [vmem:[#allocation3 + $0x41c] sm:$0xff]
      %v3457 = vld [vmem:[#allocation3 + $0x424] sm:$0xff]
      %v3458 = vld [vmem:[#allocation3 + $0x42c] sm:$0xff]
      %v3459 = vld [vmem:[#allocation3 + $0x434] sm:$0xf]
      %v3460 = vld [vmem:[#allocation3 + $0x438] sm:$0xff]
      %v3461 = vld [vmem:[#allocation3 + $0x440] sm:$0xff]
      %v3462 = vld [vmem:[#allocation3 + $0x448] sm:$0xff]
      %v3463 = vld [vmem:[#allocation3 + $0x450] sm:$0xff]
      %v3464 = vld [vmem:[#allocation3 + $0x458] sm:$0xf]
      %v3465 = vld [vmem:[#allocation3 + $0x45c] sm:$0xff]
      %v3466 = vld [vmem:[#allocation3 + $0x464] sm:$0xff]
      %v3467 = vld [vmem:[#allocation3 + $0x46c] sm:$0xff]
      %v3468 = vld [vmem:[#allocation3 + $0x474] sm:$0xff]
      %v3469 = vld [vmem:[#allocation3 + $0x47c] sm:$0xf]
      %v3470 = vld [vmem:[%s1] sm:$0xf]
      %v3471 = vld [vmem:[%s1 + $0x4] sm:$0xf]
      %v3472 = vld [vmem:[%s1 + $0x8] sm:$0xf]
      %v3473 = vld [vmem:[%s1 + $0xc] sm:$0xf]
      %v3474 = vld [vmem:[%s1 + $0x10] sm:$0xf]
      %v3475 = vld [vmem:[%s1 + $0x14] sm:$0xf]
      %v3476 = vld [vmem:[%s1 + $0x18] sm:$0xf]
      %v3477 = vld [vmem:[%s1 + $0x1c] sm:$0xf]
      %v3478 = vld [vmem:[%s1 + $0x20] sm:$0xf]
      %v3479 = vld [vmem:[%s1 + $0x24] sm:$0xf]
      %v3480 = vld [vmem:[%s1 + $0x28] sm:$0xf]
      %v3481 = vld [vmem:[%s1 + $0x2c] sm:$0xf]
      %v3482 = vld [vmem:[%s1 + $0x30] sm:$0xf]
      %v3483 = vld [vmem:[%s1 + $0x34] sm:$0xf]
      %v3484 = vld [vmem:[%s1 + $0x38] sm:$0xf]
      %v3485 = vld [vmem:[%s1 + $0x3c] sm:$0xf]
      %v3486 = vld [vmem:[%s1 + $0x40] sm:$0xf]
      %v3487 = vld [vmem:[%s1 + $0x44] sm:$0xf]
      %v3488 = vld [vmem:[%s1 + $0x48] sm:$0xf]
      %v3489 = vld [vmem:[%s1 + $0x4c] sm:$0xf]
      %v3490 = vld [vmem:[%s1 + $0x50] sm:$0xf]
      %v3491 = vld [vmem:[%s1 + $0x54] sm:$0xf]
      %v3492 = vld [vmem:[%s1 + $0x58] sm:$0xf]
      %v3493 = vld [vmem:[%s1 + $0x5c] sm:$0xf]
      %v3494 = vld [vmem:[%s1 + $0x60] sm:$0xf]
      %v3495 = vld [vmem:[%s1 + $0x64] sm:$0xf]
      %v3496 = vld [vmem:[%s1 + $0x68] sm:$0xf]
      %v3497 = vld [vmem:[%s1 + $0x6c] sm:$0xf]
      %v3498 = vld [vmem:[%s1 + $0x70] sm:$0xf]
      %v3499 = vld [vmem:[%s1 + $0x74] sm:$0xf]
      %v3500 = vld [vmem:[%s1 + $0x78] sm:$0xf]
      %v3501 = vld [vmem:[%s1 + $0x7c] sm:$0xf]
      %v3502 = vld [vmem:[%s1 + $0x80] sm:$0xf]
      %v3503 = vld [vmem:[%s1 + $0x84] sm:$0xf]
      %v3504 = vld [vmem:[%s1 + $0x88] sm:$0xf]
      %v3505 = vld [vmem:[%s1 + $0x8c] sm:$0xf]
      %v3506 = vld [vmem:[%s1 + $0x90] sm:$0xf]
      %v3507 = vld [vmem:[%s1 + $0x94] sm:$0xf]
      %v3508 = vld [vmem:[%s1 + $0x98] sm:$0xf]
      %v3509 = vld [vmem:[%s1 + $0x9c] sm:$0xf]
      %v3510 = vld [vmem:[%s1 + $0xa0] sm:$0xf]
      %v3511 = vld [vmem:[%s1 + $0xa4] sm:$0xf]
      %v3512 = vld [vmem:[%s1 + $0xa8] sm:$0xf]
      %v3513 = vld [vmem:[%s1 + $0xac] sm:$0xf]
      %v3514 = vld [vmem:[%s1 + $0xb0] sm:$0xf]
      %v3515 = vld [vmem:[%s1 + $0xb4] sm:$0xf]
      %v3516 = vld [vmem:[%s1 + $0xb8] sm:$0xf]
      %v3517 = vld [vmem:[%s1 + $0xbc] sm:$0xf]
      %v3518 = vld [vmem:[%s1 + $0xc0] sm:$0xf]
      %v3519 = vld [vmem:[%s1 + $0xc4] sm:$0xf]
      %v3520 = vld [vmem:[%s1 + $0xc8] sm:$0xf]
      %v3521 = vld [vmem:[%s1 + $0xcc] sm:$0xf]
      %v3522 = vld [vmem:[%s1 + $0xd0] sm:$0xf]
      %v3523 = vld [vmem:[%s1 + $0xd4] sm:$0xf]
      %v3524 = vld [vmem:[%s1 + $0xd8] sm:$0xf]
      %v3525 = vld [vmem:[%s1 + $0xdc] sm:$0xf]
      %v3526 = vld [vmem:[%s1 + $0xe0] sm:$0xf]
      %v3527 = vld [vmem:[%s1 + $0xe4] sm:$0xf]
      %v3528 = vld [vmem:[%s1 + $0xe8] sm:$0xf]
      %v3529 = vld [vmem:[%s1 + $0xec] sm:$0xf]
      %v3530 = vld [vmem:[%s1 + $0xf0] sm:$0xf]
      %v3531 = vld [vmem:[%s1 + $0xf4] sm:$0xf]
      %v3532 = vld [vmem:[%s1 + $0xf8] sm:$0xf]
      %v3533 = vld [vmem:[%s1 + $0xfc] sm:$0xf]
      %v3534 = vld [vmem:[%s1 + $0x100] sm:$0xf]
      %v3535 = vld [vmem:[%s1 + $0x104] sm:$0xf]
      %v3536 = vld [vmem:[%s1 + $0x108] sm:$0xf]
      %v3537 = vld [vmem:[%s1 + $0x10c] sm:$0xf]
      %v3538 = vld [vmem:[%s1 + $0x110] sm:$0xf]
      %v3539 = vld [vmem:[%s1 + $0x114] sm:$0xf]
      %v3540 = vld [vmem:[%s1 + $0x118] sm:$0xf]
      %v3541 = vld [vmem:[%s1 + $0x11c] sm:$0xf]
      %v3542 = vld [vmem:[%s1 + $0x120] sm:$0xf]
      %v3543 = vld [vmem:[%s1 + $0x124] sm:$0xf]
      %v3544 = vld [vmem:[%s1 + $0x128] sm:$0xf]
      %v3545 = vld [vmem:[%s1 + $0x12c] sm:$0xf]
      %v3546 = vld [vmem:[%s1 + $0x130] sm:$0xf]
      %v3547 = vld [vmem:[%s1 + $0x134] sm:$0xf]
      %v3548 = vld [vmem:[%s1 + $0x138] sm:$0xf]
      %v3549 = vld [vmem:[%s1 + $0x13c] sm:$0xf]
      %v3550 = vld [vmem:[%s1 + $0x140] sm:$0xf]
      %v3551 = vld [vmem:[%s1 + $0x144] sm:$0xf]
      %v3552 = vld [vmem:[%s1 + $0x148] sm:$0xf]
      %v3553 = vld [vmem:[%s1 + $0x14c] sm:$0xf]
      %v3554 = vld [vmem:[%s1 + $0x150] sm:$0xf]
      %v3555 = vld [vmem:[%s1 + $0x154] sm:$0xf]
      %v3556 = vld [vmem:[%s1 + $0x158] sm:$0xf]
      %v3557 = vld [vmem:[%s1 + $0x15c] sm:$0xf]
      %v3558 = vld [vmem:[%s1 + $0x160] sm:$0xf]
      %v3559 = vld [vmem:[%s1 + $0x164] sm:$0xf]
      %v3560 = vld [vmem:[%s1 + $0x168] sm:$0xf]
      %v3561 = vld [vmem:[%s1 + $0x16c] sm:$0xf]
      %v3562 = vld [vmem:[%s1 + $0x170] sm:$0xf]
      %v3563 = vld [vmem:[%s1 + $0x174] sm:$0xf]
      %v3564 = vld [vmem:[%s1 + $0x178] sm:$0xf]
      %v3565 = vld [vmem:[%s1 + $0x17c] sm:$0xf]
      %v3566 = vld [vmem:[%s1 + $0x180] sm:$0xf]
      %v3567 = vld [vmem:[%s1 + $0x184] sm:$0xf]
      %v3568 = vld [vmem:[%s1 + $0x188] sm:$0xf]
      %v3569 = vld [vmem:[%s1 + $0x18c] sm:$0xf]
      %v3570 = vld [vmem:[%s1 + $0x190] sm:$0xf]
      %v3571 = vld [vmem:[%s1 + $0x194] sm:$0xf]
      %v3572 = vld [vmem:[%s1 + $0x198] sm:$0xf]
      %v3573 = vld [vmem:[%s1 + $0x19c] sm:$0xf]
      %v3574 = vld [vmem:[%s1 + $0x1a0] sm:$0xf]
      %v3575 = vld [vmem:[%s1 + $0x1a4] sm:$0xf]
      %v3576 = vld [vmem:[%s1 + $0x1a8] sm:$0xf]
      %v3577 = vld [vmem:[%s1 + $0x1ac] sm:$0xf]
      %v3578 = vld [vmem:[%s1 + $0x1b0] sm:$0xf]
      %v3579 = vld [vmem:[%s1 + $0x1b4] sm:$0xf]
      %v3580 = vld [vmem:[%s1 + $0x1b8] sm:$0xf]
      %v3581 = vld [vmem:[%s1 + $0x1bc] sm:$0xf]
      %v3582 = vld [vmem:[%s1 + $0x1c0] sm:$0xf]
      %v3583 = vld [vmem:[%s1 + $0x1c4] sm:$0xf]
      %v3584 = vld [vmem:[%s1 + $0x1c8] sm:$0xf]
      %v3585 = vld [vmem:[%s1 + $0x1cc] sm:$0xf]
      %v3586 = vld [vmem:[%s1 + $0x1d0] sm:$0xf]
      %v3587 = vld [vmem:[%s1 + $0x1d4] sm:$0xf]
      %v3588 = vld [vmem:[%s1 + $0x1d8] sm:$0xf]
      %v3589 = vld [vmem:[%s1 + $0x1dc] sm:$0xf]
      %v3590 = vld [vmem:[%s1 + $0x1e0] sm:$0xf]
      %v3591 = vld [vmem:[%s1 + $0x1e4] sm:$0xf]
      %v3592 = vld [vmem:[%s1 + $0x1e8] sm:$0xf]
      %v3593 = vld [vmem:[%s1 + $0x1ec] sm:$0xf]
      %v3594 = vld [vmem:[%s1 + $0x1f0] sm:$0xf]
      %v3595 = vld [vmem:[%s1 + $0x1f4] sm:$0xf]
      %v3596 = vld [vmem:[%s1 + $0x1f8] sm:$0xf]
      %v3597 = vld [vmem:[%s1 + $0x1fc] sm:$0xf]
      %v3598 = vld [vmem:[%s1 + $0x200] sm:$0xf]
      %v3599 = vld [vmem:[%s1 + $0x204] sm:$0xf]
      %v3600 = vld [vmem:[%s1 + $0x208] sm:$0xf]
      %v3601 = vld [vmem:[%s1 + $0x20c] sm:$0xf]
      %v3602 = vld [vmem:[%s1 + $0x210] sm:$0xf]
      %v3603 = vld [vmem:[%s1 + $0x214] sm:$0xf]
      %v3604 = vld [vmem:[%s1 + $0x218] sm:$0xf]
      %v3605 = vld [vmem:[%s1 + $0x21c] sm:$0xf]
      %v3606 = vld [vmem:[%s1 + $0x220] sm:$0xf]
      %v3607 = vld [vmem:[%s1 + $0x224] sm:$0xf]
      %v3608 = vld [vmem:[%s1 + $0x228] sm:$0xf]
      %v3609 = vld [vmem:[%s1 + $0x22c] sm:$0xf]
      %v3610 = vld [vmem:[%s1 + $0x230] sm:$0xf]
      %v3611 = vld [vmem:[%s1 + $0x234] sm:$0xf]
      %v3612 = vld [vmem:[%s1 + $0x238] sm:$0xf]
      %v3613 = vld [vmem:[%s1 + $0x23c] sm:$0xf]
      %v3614 = vld [vmem:[%s2] sm:$0x1]
      %v3616 = vlaneseq
      %v3617 = vshrl.u32 %v3616, 7
      %v3618 = vsub.s32 0, %v3617
      %v3619 = vrot.slane %v3614, %v3618
      %v3781 = vunpack.c.l.b16 %v3310
      %v3782 = vunpack.c.h.b16 %v3310
      %v3783 = vunpack.c.l.b16 %v3311
      %v3784 = vunpack.c.h.b16 %v3311
      %v3785 = vunpack.c.l.b16 %v3312
      %v3786 = vunpack.c.h.b16 %v3312
      %v3787 = vunpack.c.l.b16 %v3313
      %v3788 = vunpack.c.h.b16 %v3313
      %v3789 = vunpack.c.l.b16 %v3314
      %v3790 = vunpack.c.l.b16 %v3315
      %v3791 = vunpack.c.h.b16 %v3315
      %v3792 = vunpack.c.l.b16 %v3316
      %v3793 = vunpack.c.h.b16 %v3316
      %v3794 = vunpack.c.l.b16 %v3317
      %v3795 = vunpack.c.h.b16 %v3317
      %v3796 = vunpack.c.l.b16 %v3318
      %v3797 = vunpack.c.h.b16 %v3318
      %v3798 = vunpack.c.l.b16 %v3319
      %v3799 = vunpack.c.l.b16 %v3320
      %v3800 = vunpack.c.h.b16 %v3320
      %v3801 = vunpack.c.l.b16 %v3321
      %v3802 = vunpack.c.h.b16 %v3321
      %v3803 = vunpack.c.l.b16 %v3322
      %v3804 = vunpack.c.h.b16 %v3322
      %v3805 = vunpack.c.l.b16 %v3323
      %v3806 = vunpack.c.h.b16 %v3323
      %v3807 = vunpack.c.l.b16 %v3324
      %v3808 = vunpack.c.l.b16 %v3325
      %v3809 = vunpack.c.h.b16 %v3325
      %v3810 = vunpack.c.l.b16 %v3326
      %v3811 = vunpack.c.h.b16 %v3326
      %v3812 = vunpack.c.l.b16 %v3327
      %v3813 = vunpack.c.h.b16 %v3327
      %v3814 = vunpack.c.l.b16 %v3328
      %v3815 = vunpack.c.h.b16 %v3328
      %v3816 = vunpack.c.l.b16 %v3329
      %v3817 = vunpack.c.l.b16 %v3330
      %v3818 = vunpack.c.h.b16 %v3330
      %v3819 = vunpack.c.l.b16 %v3331
      %v3820 = vunpack.c.h.b16 %v3331
      %v3821 = vunpack.c.l.b16 %v3332
      %v3822 = vunpack.c.h.b16 %v3332
      %v3823 = vunpack.c.l.b16 %v3333
      %v3824 = vunpack.c.h.b16 %v3333
      %v3825 = vunpack.c.l.b16 %v3334
      %v3826 = vunpack.c.l.b16 %v3335
      %v3827 = vunpack.c.h.b16 %v3335
      %v3828 = vunpack.c.l.b16 %v3336
      %v3829 = vunpack.c.h.b16 %v3336
      %v3830 = vunpack.c.l.b16 %v3337
      %v3831 = vunpack.c.h.b16 %v3337
      %v3832 = vunpack.c.l.b16 %v3338
      %v3833 = vunpack.c.h.b16 %v3338
      %v3834 = vunpack.c.l.b16 %v3339
      %v3835 = vunpack.c.l.b16 %v3340
      %v3836 = vunpack.c.h.b16 %v3340
      %v3837 = vunpack.c.l.b16 %v3341
      %v3838 = vunpack.c.h.b16 %v3341
      %v3839 = vunpack.c.l.b16 %v3342
      %v3840 = vunpack.c.h.b16 %v3342
      %v3841 = vunpack.c.l.b16 %v3343
      %v3842 = vunpack.c.h.b16 %v3343
      %v3843 = vunpack.c.l.b16 %v3344
      %v3844 = vunpack.c.l.b16 %v3345
      %v3845 = vunpack.c.h.b16 %v3345
      %v3846 = vunpack.c.l.b16 %v3346
      %v3847 = vunpack.c.h.b16 %v3346
      %v3848 = vunpack.c.l.b16 %v3347
      %v3849 = vunpack.c.h.b16 %v3347
      %v3850 = vunpack.c.l.b16 %v3348
      %v3851 = vunpack.c.h.b16 %v3348
      %v3852 = vunpack.c.l.b16 %v3349
      %v3853 = vunpack.c.l.b16 %v3350
      %v3854 = vunpack.c.h.b16 %v3350
      %v3855 = vunpack.c.l.b16 %v3351
      %v3856 = vunpack.c.h.b16 %v3351
      %v3857 = vunpack.c.l.b16 %v3352
      %v3858 = vunpack.c.h.b16 %v3352
      %v3859 = vunpack.c.l.b16 %v3353
      %v3860 = vunpack.c.h.b16 %v3353
      %v3861 = vunpack.c.l.b16 %v3354
      %v3862 = vunpack.c.l.b16 %v3355
      %v3863 = vunpack.c.h.b16 %v3355
      %v3864 = vunpack.c.l.b16 %v3356
      %v3865 = vunpack.c.h.b16 %v3356
      %v3866 = vunpack.c.l.b16 %v3357
      %v3867 = vunpack.c.h.b16 %v3357
      %v3868 = vunpack.c.l.b16 %v3358
      %v3869 = vunpack.c.h.b16 %v3358
      %v3870 = vunpack.c.l.b16 %v3359
      %v3871 = vunpack.c.l.b16 %v3360
      %v3872 = vunpack.c.h.b16 %v3360
      %v3873 = vunpack.c.l.b16 %v3361
      %v3874 = vunpack.c.h.b16 %v3361
      %v3875 = vunpack.c.l.b16 %v3362
      %v3876 = vunpack.c.h.b16 %v3362
      %v3877 = vunpack.c.l.b16 %v3363
      %v3878 = vunpack.c.h.b16 %v3363
      %v3879 = vunpack.c.l.b16 %v3364
      %v3880 = vunpack.c.l.b16 %v3365
      %v3881 = vunpack.c.h.b16 %v3365
      %v3882 = vunpack.c.l.b16 %v3366
      %v3883 = vunpack.c.h.b16 %v3366
      %v3884 = vunpack.c.l.b16 %v3367
      %v3885 = vunpack.c.h.b16 %v3367
      %v3886 = vunpack.c.l.b16 %v3368
      %v3887 = vunpack.c.h.b16 %v3368
      %v3888 = vunpack.c.l.b16 %v3369
      %v3889 = vunpack.c.l.b16 %v3370
      %v3890 = vunpack.c.h.b16 %v3370
      %v3891 = vunpack.c.l.b16 %v3371
      %v3892 = vunpack.c.h.b16 %v3371
      %v3893 = vunpack.c.l.b16 %v3372
      %v3894 = vunpack.c.h.b16 %v3372
      %v3895 = vunpack.c.l.b16 %v3373
      %v3896 = vunpack.c.h.b16 %v3373
      %v3897 = vunpack.c.l.b16 %v3374
      %v3898 = vunpack.c.l.b16 %v3375
      %v3899 = vunpack.c.h.b16 %v3375
      %v3900 = vunpack.c.l.b16 %v3376
      %v3901 = vunpack.c.h.b16 %v3376
      %v3902 = vunpack.c.l.b16 %v3377
      %v3903 = vunpack.c.h.b16 %v3377
      %v3904 = vunpack.c.l.b16 %v3378
      %v3905 = vunpack.c.h.b16 %v3378
      %v3906 = vunpack.c.l.b16 %v3379
      %v3907 = vunpack.c.l.b16 %v3380
      %v3908 = vunpack.c.h.b16 %v3380
      %v3909 = vunpack.c.l.b16 %v3381
      %v3910 = vunpack.c.h.b16 %v3381
      %v3911 = vunpack.c.l.b16 %v3382
      %v3912 = vunpack.c.h.b16 %v3382
      %v3913 = vunpack.c.l.b16 %v3383
      %v3914 = vunpack.c.h.b16 %v3383
      %v3915 = vunpack.c.l.b16 %v3384
      %v3916 = vunpack.c.l.b16 %v3385
      %v3917 = vunpack.c.h.b16 %v3385
      %v3918 = vunpack.c.l.b16 %v3386
      %v3919 = vunpack.c.h.b16 %v3386
      %v3920 = vunpack.c.l.b16 %v3387
      %v3921 = vunpack.c.h.b16 %v3387
      %v3922 = vunpack.c.l.b16 %v3388
      %v3923 = vunpack.c.h.b16 %v3388
      %v3924 = vunpack.c.l.b16 %v3389
      %v3925 = vunpack.c.l.b16 %v3390
      %v3926 = vunpack.c.h.b16 %v3390
      %v3927 = vunpack.c.l.b16 %v3391
      %v3928 = vunpack.c.h.b16 %v3391
      %v3929 = vunpack.c.l.b16 %v3392
      %v3930 = vunpack.c.h.b16 %v3392
      %v3931 = vunpack.c.l.b16 %v3393
      %v3932 = vunpack.c.h.b16 %v3393
      %v3933 = vunpack.c.l.b16 %v3394
      %v3934 = vunpack.c.l.b16 %v3395
      %v3935 = vunpack.c.h.b16 %v3395
      %v3936 = vunpack.c.l.b16 %v3396
      %v3937 = vunpack.c.h.b16 %v3396
      %v3938 = vunpack.c.l.b16 %v3397
      %v3939 = vunpack.c.h.b16 %v3397
      %v3940 = vunpack.c.l.b16 %v3398
      %v3941 = vunpack.c.h.b16 %v3398
      %v3942 = vunpack.c.l.b16 %v3399
      %v3943 = vunpack.c.l.b16 %v3400
      %v3944 = vunpack.c.h.b16 %v3400
      %v3945 = vunpack.c.l.b16 %v3401
      %v3946 = vunpack.c.h.b16 %v3401
      %v3947 = vunpack.c.l.b16 %v3402
      %v3948 = vunpack.c.h.b16 %v3402
      %v3949 = vunpack.c.l.b16 %v3403
      %v3950 = vunpack.c.h.b16 %v3403
      %v3951 = vunpack.c.l.b16 %v3404
      %v3952 = vunpack.c.l.b16 %v3405
      %v3953 = vunpack.c.h.b16 %v3405
      %v3954 = vunpack.c.l.b16 %v3406
      %v3955 = vunpack.c.h.b16 %v3406
      %v3956 = vunpack.c.l.b16 %v3407
      %v3957 = vunpack.c.h.b16 %v3407
      %v3958 = vunpack.c.l.b16 %v3408
      %v3959 = vunpack.c.h.b16 %v3408
      %v3960 = vunpack.c.l.b16 %v3409
      %v3961 = vunpack.c.l.b16 %v3410
      %v3962 = vunpack.c.h.b16 %v3410
      %v3963 = vunpack.c.l.b16 %v3411
      %v3964 = vunpack.c.h.b16 %v3411
      %v3965 = vunpack.c.l.b16 %v3412
      %v3966 = vunpack.c.h.b16 %v3412
      %v3967 = vunpack.c.l.b16 %v3413
      %v3968 = vunpack.c.h.b16 %v3413
      %v3969 = vunpack.c.l.b16 %v3414
      %v3970 = vunpack.c.l.b16 %v3415
      %v3971 = vunpack.c.h.b16 %v3415
      %v3972 = vunpack.c.l.b16 %v3416
      %v3973 = vunpack.c.h.b16 %v3416
      %v3974 = vunpack.c.l.b16 %v3417
      %v3975 = vunpack.c.h.b16 %v3417
      %v3976 = vunpack.c.l.b16 %v3418
      %v3977 = vunpack.c.h.b16 %v3418
      %v3978 = vunpack.c.l.b16 %v3419
      %v3979 = vunpack.c.l.b16 %v3420
      %v3980 = vunpack.c.h.b16 %v3420
      %v3981 = vunpack.c.l.b16 %v3421
      %v3982 = vunpack.c.h.b16 %v3421
      %v3983 = vunpack.c.l.b16 %v3422
      %v3984 = vunpack.c.h.b16 %v3422
      %v3985 = vunpack.c.l.b16 %v3423
      %v3986 = vunpack.c.h.b16 %v3423
      %v3987 = vunpack.c.l.b16 %v3424
      %v3988 = vunpack.c.l.b16 %v3425
      %v3989 = vunpack.c.h.b16 %v3425
      %v3990 = vunpack.c.l.b16 %v3426
      %v3991 = vunpack.c.h.b16 %v3426
      %v3992 = vunpack.c.l.b16 %v3427
      %v3993 = vunpack.c.h.b16 %v3427
      %v3994 = vunpack.c.l.b16 %v3428
      %v3995 = vunpack.c.h.b16 %v3428
      %v3996 = vunpack.c.l.b16 %v3429
      %v3997 = vunpack.c.l.b16 %v3430
      %v3998 = vunpack.c.h.b16 %v3430
      %v3999 = vunpack.c.l.b16 %v3431
      %v4000 = vunpack.c.h.b16 %v3431
      %v4001 = vunpack.c.l.b16 %v3432
      %v4002 = vunpack.c.h.b16 %v3432
      %v4003 = vunpack.c.l.b16 %v3433
      %v4004 = vunpack.c.h.b16 %v3433
      %v4005 = vunpack.c.l.b16 %v3434
      %v4006 = vunpack.c.l.b16 %v3435
      %v4007 = vunpack.c.h.b16 %v3435
      %v4008 = vunpack.c.l.b16 %v3436
      %v4009 = vunpack.c.h.b16 %v3436
      %v4010 = vunpack.c.l.b16 %v3437
      %v4011 = vunpack.c.h.b16 %v3437
      %v4012 = vunpack.c.l.b16 %v3438
      %v4013 = vunpack.c.h.b16 %v3438
      %v4014 = vunpack.c.l.b16 %v3439
      %v4015 = vunpack.c.l.b16 %v3440
      %v4016 = vunpack.c.h.b16 %v3440
      %v4017 = vunpack.c.l.b16 %v3441
      %v4018 = vunpack.c.h.b16 %v3441
      %v4019 = vunpack.c.l.b16 %v3442
      %v4020 = vunpack.c.h.b16 %v3442
      %v4021 = vunpack.c.l.b16 %v3443
      %v4022 = vunpack.c.h.b16 %v3443
      %v4023 = vunpack.c.l.b16 %v3444
      %v4024 = vunpack.c.l.b16 %v3445
      %v4025 = vunpack.c.h.b16 %v3445
      %v4026 = vunpack.c.l.b16 %v3446
      %v4027 = vunpack.c.h.b16 %v3446
      %v4028 = vunpack.c.l.b16 %v3447
      %v4029 = vunpack.c.h.b16 %v3447
      %v4030 = vunpack.c.l.b16 %v3448
      %v4031 = vunpack.c.h.b16 %v3448
      %v4032 = vunpack.c.l.b16 %v3449
      %v4033 = vunpack.c.l.b16 %v3450
      %v4034 = vunpack.c.h.b16 %v3450
      %v4035 = vunpack.c.l.b16 %v3451
      %v4036 = vunpack.c.h.b16 %v3451
      %v4037 = vunpack.c.l.b16 %v3452
      %v4038 = vunpack.c.h.b16 %v3452
      %v4039 = vunpack.c.l.b16 %v3453
      %v4040 = vunpack.c.h.b16 %v3453
      %v4041 = vunpack.c.l.b16 %v3454
      %v4042 = vunpack.c.l.b16 %v3455
      %v4043 = vunpack.c.h.b16 %v3455
      %v4044 = vunpack.c.l.b16 %v3456
      %v4045 = vunpack.c.h.b16 %v3456
      %v4046 = vunpack.c.l.b16 %v3457
      %v4047 = vunpack.c.h.b16 %v3457
      %v4048 = vunpack.c.l.b16 %v3458
      %v4049 = vunpack.c.h.b16 %v3458
      %v4050 = vunpack.c.l.b16 %v3459
      %v4051 = vunpack.c.l.b16 %v3460
      %v4052 = vunpack.c.h.b16 %v3460
      %v4053 = vunpack.c.l.b16 %v3461
      %v4054 = vunpack.c.h.b16 %v3461
      %v4055 = vunpack.c.l.b16 %v3462
      %v4056 = vunpack.c.h.b16 %v3462
      %v4057 = vunpack.c.l.b16 %v3463
      %v4058 = vunpack.c.h.b16 %v3463
      %v4059 = vunpack.c.l.b16 %v3464
      %v4060 = vunpack.c.l.b16 %v3465
      %v4061 = vunpack.c.h.b16 %v3465
      %v4062 = vunpack.c.l.b16 %v3466
      %v4063 = vunpack.c.h.b16 %v3466
      %v4064 = vunpack.c.l.b16 %v3467
      %v4065 = vunpack.c.h.b16 %v3467
      %v4066 = vunpack.c.l.b16 %v3468
      %v4067 = vunpack.c.h.b16 %v3468
      %v4068 = vunpack.c.l.b16 %v3469
      %v4069 = vpack.c.b16 %v3790, %v3781
      %v4070 = vpack.c.b16 %v3791, %v3782
      %v4071 = vpack.c.b16 %v3792, %v3783
      %v4072 = vpack.c.b16 %v3793, %v3784
      %v4073 = vpack.c.b16 %v3794, %v3785
      %v4074 = vpack.c.b16 %v3795, %v3786
      %v4075 = vpack.c.b16 %v3796, %v3787
      %v4076 = vpack.c.b16 %v3797, %v3788
      %v4077 = vpack.c.b16 %v3798, %v3789
      %v4078 = vpack.c.b16 %v3808, %v3799
      %v4079 = vpack.c.b16 %v3809, %v3800
      %v4080 = vpack.c.b16 %v3810, %v3801
      %v4081 = vpack.c.b16 %v3811, %v3802
      %v4082 = vpack.c.b16 %v3812, %v3803
      %v4083 = vpack.c.b16 %v3813, %v3804
      %v4084 = vpack.c.b16 %v3814, %v3805
      %v4085 = vpack.c.b16 %v3815, %v3806
      %v4086 = vpack.c.b16 %v3816, %v3807
      %v4087 = vpack.c.b16 %v3826, %v3817
      %v4088 = vpack.c.b16 %v3827, %v3818
      %v4089 = vpack.c.b16 %v3828, %v3819
      %v4090 = vpack.c.b16 %v3829, %v3820
      %v4091 = vpack.c.b16 %v3830, %v3821
      %v4092 = vpack.c.b16 %v3831, %v3822
      %v4093 = vpack.c.b16 %v3832, %v3823
      %v4094 = vpack.c.b16 %v3833, %v3824
      %v4095 = vpack.c.b16 %v3834, %v3825
      %v4096 = vpack.c.b16 %v3844, %v3835
      %v4097 = vpack.c.b16 %v3845, %v3836
      %v4098 = vpack.c.b16 %v3846, %v3837
      %v4099 = vpack.c.b16 %v3847, %v3838
      %v4100 = vpack.c.b16 %v3848, %v3839
      %v4101 = vpack.c.b16 %v3849, %v3840
      %v4102 = vpack.c.b16 %v3850, %v3841
      %v4103 = vpack.c.b16 %v3851, %v3842
      %v4104 = vpack.c.b16 %v3852, %v3843
      %v4105 = vpack.c.b16 %v3862, %v3853
      %v4106 = vpack.c.b16 %v3863, %v3854
      %v4107 = vpack.c.b16 %v3864, %v3855
      %v4108 = vpack.c.b16 %v3865, %v3856
      %v4109 = vpack.c.b16 %v3866, %v3857
      %v4110 = vpack.c.b16 %v3867, %v3858
      %v4111 = vpack.c.b16 %v3868, %v3859
      %v4112 = vpack.c.b16 %v3869, %v3860
      %v4113 = vpack.c.b16 %v3870, %v3861
      %v4114 = vpack.c.b16 %v3880, %v3871
      %v4115 = vpack.c.b16 %v3881, %v3872
      %v4116 = vpack.c.b16 %v3882, %v3873
      %v4117 = vpack.c.b16 %v3883, %v3874
      %v4118 = vpack.c.b16 %v3884, %v3875
      %v4119 = vpack.c.b16 %v3885, %v3876
      %v4120 = vpack.c.b16 %v3886, %v3877
      %v4121 = vpack.c.b16 %v3887, %v3878
      %v4122 = vpack.c.b16 %v3888, %v3879
      %v4123 = vpack.c.b16 %v3898, %v3889
      %v4124 = vpack.c.b16 %v3899, %v3890
      %v4125 = vpack.c.b16 %v3900, %v3891
      %v4126 = vpack.c.b16 %v3901, %v3892
      %v4127 = vpack.c.b16 %v3902, %v3893
      %v4128 = vpack.c.b16 %v3903, %v3894
      %v4129 = vpack.c.b16 %v3904, %v3895
      %v4130 = vpack.c.b16 %v3905, %v3896
      %v4131 = vpack.c.b16 %v3906, %v3897
      %v4132 = vpack.c.b16 %v3916, %v3907
      %v4133 = vpack.c.b16 %v3917, %v3908
      %v4134 = vpack.c.b16 %v3918, %v3909
      %v4135 = vpack.c.b16 %v3919, %v3910
      %v4136 = vpack.c.b16 %v3920, %v3911
      %v4137 = vpack.c.b16 %v3921, %v3912
      %v4138 = vpack.c.b16 %v3922, %v3913
      %v4139 = vpack.c.b16 %v3923, %v3914
      %v4140 = vpack.c.b16 %v3924, %v3915
      %v4141 = vpack.c.b16 %v3934, %v3925
      %v4142 = vpack.c.b16 %v3935, %v3926
      %v4143 = vpack.c.b16 %v3936, %v3927
      %v4144 = vpack.c.b16 %v3937, %v3928
      %v4145 = vpack.c.b16 %v3938, %v3929
      %v4146 = vpack.c.b16 %v3939, %v3930
      %v4147 = vpack.c.b16 %v3940, %v3931
      %v4148 = vpack.c.b16 %v3941, %v3932
      %v4149 = vpack.c.b16 %v3942, %v3933
      %v4150 = vpack.c.b16 %v3952, %v3943
      %v4151 = vpack.c.b16 %v3953, %v3944
      %v4152 = vpack.c.b16 %v3954, %v3945
      %v4153 = vpack.c.b16 %v3955, %v3946
      %v4154 = vpack.c.b16 %v3956, %v3947
      %v4155 = vpack.c.b16 %v3957, %v3948
      %v4156 = vpack.c.b16 %v3958, %v3949
      %v4157 = vpack.c.b16 %v3959, %v3950
      %v4158 = vpack.c.b16 %v3960, %v3951
      %v4159 = vpack.c.b16 %v3970, %v3961
      %v4160 = vpack.c.b16 %v3971, %v3962
      %v4161 = vpack.c.b16 %v3972, %v3963
      %v4162 = vpack.c.b16 %v3973, %v3964
      %v4163 = vpack.c.b16 %v3974, %v3965
      %v4164 = vpack.c.b16 %v3975, %v3966
      %v4165 = vpack.c.b16 %v3976, %v3967
      %v4166 = vpack.c.b16 %v3977, %v3968
      %v4167 = vpack.c.b16 %v3978, %v3969
      %v4168 = vpack.c.b16 %v3988, %v3979
      %v4169 = vpack.c.b16 %v3989, %v3980
      %v4170 = vpack.c.b16 %v3990, %v3981
      %v4171 = vpack.c.b16 %v3991, %v3982
      %v4172 = vpack.c.b16 %v3992, %v3983
      %v4173 = vpack.c.b16 %v3993, %v3984
      %v4174 = vpack.c.b16 %v3994, %v3985
      %v4175 = vpack.c.b16 %v3995, %v3986
      %v4176 = vpack.c.b16 %v3996, %v3987
      %v4177 = vpack.c.b16 %v4006, %v3997
      %v4178 = vpack.c.b16 %v4007, %v3998
      %v4179 = vpack.c.b16 %v4008, %v3999
      %v4180 = vpack.c.b16 %v4009, %v4000
      %v4181 = vpack.c.b16 %v4010, %v4001
      %v4182 = vpack.c.b16 %v4011, %v4002
      %v4183 = vpack.c.b16 %v4012, %v4003
      %v4184 = vpack.c.b16 %v4013, %v4004
      %v4185 = vpack.c.b16 %v4014, %v4005
      %v4186 = vpack.c.b16 %v4024, %v4015
      %v4187 = vpack.c.b16 %v4025, %v4016
      %v4188 = vpack.c.b16 %v4026, %v4017
      %v4189 = vpack.c.b16 %v4027, %v4018
      %v4190 = vpack.c.b16 %v4028, %v4019
      %v4191 = vpack.c.b16 %v4029, %v4020
      %v4192 = vpack.c.b16 %v4030, %v4021
      %v4193 = vpack.c.b16 %v4031, %v4022
      %v4194 = vpack.c.b16 %v4032, %v4023
      %v4195 = vpack.c.b16 %v4042, %v4033
      %v4196 = vpack.c.b16 %v4043, %v4034
      %v4197 = vpack.c.b16 %v4044, %v4035
      %v4198 = vpack.c.b16 %v4045, %v4036
      %v4199 = vpack.c.b16 %v4046, %v4037
      %v4200 = vpack.c.b16 %v4047, %v4038
      %v4201 = vpack.c.b16 %v4048, %v4039
      %v4202 = vpack.c.b16 %v4049, %v4040
      %v4203 = vpack.c.b16 %v4050, %v4041
      %v4204 = vpack.c.b16 %v4060, %v4051
      %v4205 = vpack.c.b16 %v4061, %v4052
      %v4206 = vpack.c.b16 %v4062, %v4053
      %v4207 = vpack.c.b16 %v4063, %v4054
      %v4208 = vpack.c.b16 %v4064, %v4055
      %v4209 = vpack.c.b16 %v4065, %v4056
      %v4210 = vpack.c.b16 %v4066, %v4057
      %v4211 = vpack.c.b16 %v4067, %v4058
      %v4212 = vpack.c.b16 %v4068, %v4059
      %v4501 = vunpack.c.l.b16 %v3470
      %v4502 = vunpack.c.l.b16 %v3471
      %v4503 = vunpack.c.l.b16 %v3472
      %v4504 = vunpack.c.l.b16 %v3473
      %v4505 = vunpack.c.l.b16 %v3474
      %v4506 = vunpack.c.l.b16 %v3475
      %v4507 = vunpack.c.l.b16 %v3476
      %v4508 = vunpack.c.l.b16 %v3477
      %v4509 = vunpack.c.l.b16 %v3478
      %v4510 = vunpack.c.l.b16 %v3479
      %v4511 = vunpack.c.l.b16 %v3480
      %v4512 = vunpack.c.l.b16 %v3481
      %v4513 = vunpack.c.l.b16 %v3482
      %v4514 = vunpack.c.l.b16 %v3483
      %v4515 = vunpack.c.l.b16 %v3484
      %v4516 = vunpack.c.l.b16 %v3485
      %v4517 = vunpack.c.l.b16 %v3486
      %v4518 = vunpack.c.l.b16 %v3487
      %v4519 = vunpack.c.l.b16 %v3488
      %v4520 = vunpack.c.l.b16 %v3489
      %v4521 = vunpack.c.l.b16 %v3490
      %v4522 = vunpack.c.l.b16 %v3491
      %v4523 = vunpack.c.l.b16 %v3492
      %v4524 = vunpack.c.l.b16 %v3493
      %v4525 = vunpack.c.l.b16 %v3494
      %v4526 = vunpack.c.l.b16 %v3495
      %v4527 = vunpack.c.l.b16 %v3496
      %v4528 = vunpack.c.l.b16 %v3497
      %v4529 = vunpack.c.l.b16 %v3498
      %v4530 = vunpack.c.l.b16 %v3499
      %v4531 = vunpack.c.l.b16 %v3500
      %v4532 = vunpack.c.l.b16 %v3501
      %v4533 = vunpack.c.l.b16 %v3502
      %v4534 = vunpack.c.l.b16 %v3503
      %v4535 = vunpack.c.l.b16 %v3504
      %v4536 = vunpack.c.l.b16 %v3505
      %v4537 = vunpack.c.l.b16 %v3506
      %v4538 = vunpack.c.l.b16 %v3507
      %v4539 = vunpack.c.l.b16 %v3508
      %v4540 = vunpack.c.l.b16 %v3509
      %v4541 = vunpack.c.l.b16 %v3510
      %v4542 = vunpack.c.l.b16 %v3511
      %v4543 = vunpack.c.l.b16 %v3512
      %v4544 = vunpack.c.l.b16 %v3513
      %v4545 = vunpack.c.l.b16 %v3514
      %v4546 = vunpack.c.l.b16 %v3515
      %v4547 = vunpack.c.l.b16 %v3516
      %v4548 = vunpack.c.l.b16 %v3517
      %v4549 = vunpack.c.l.b16 %v3518
      %v4550 = vunpack.c.l.b16 %v3519
      %v4551 = vunpack.c.l.b16 %v3520
      %v4552 = vunpack.c.l.b16 %v3521
      %v4553 = vunpack.c.l.b16 %v3522
      %v4554 = vunpack.c.l.b16 %v3523
      %v4555 = vunpack.c.l.b16 %v3524
      %v4556 = vunpack.c.l.b16 %v3525
      %v4557 = vunpack.c.l.b16 %v3526
      %v4558 = vunpack.c.l.b16 %v3527
      %v4559 = vunpack.c.l.b16 %v3528
      %v4560 = vunpack.c.l.b16 %v3529
      %v4561 = vunpack.c.l.b16 %v3530
      %v4562 = vunpack.c.l.b16 %v3531
      %v4563 = vunpack.c.l.b16 %v3532
      %v4564 = vunpack.c.l.b16 %v3533
      %v4565 = vunpack.c.l.b16 %v3534
      %v4566 = vunpack.c.l.b16 %v3535
      %v4567 = vunpack.c.l.b16 %v3536
      %v4568 = vunpack.c.l.b16 %v3537
      %v4569 = vunpack.c.l.b16 %v3538
      %v4570 = vunpack.c.l.b16 %v3539
      %v4571 = vunpack.c.l.b16 %v3540
      %v4572 = vunpack.c.l.b16 %v3541
      %v4573 = vunpack.c.l.b16 %v3542
      %v4574 = vunpack.c.l.b16 %v3543
      %v4575 = vunpack.c.l.b16 %v3544
      %v4576 = vunpack.c.l.b16 %v3545
      %v4577 = vunpack.c.l.b16 %v3546
      %v4578 = vunpack.c.l.b16 %v3547
      %v4579 = vunpack.c.l.b16 %v3548
      %v4580 = vunpack.c.l.b16 %v3549
      %v4581 = vunpack.c.l.b16 %v3550
      %v4582 = vunpack.c.l.b16 %v3551
      %v4583 = vunpack.c.l.b16 %v3552
      %v4584 = vunpack.c.l.b16 %v3553
      %v4585 = vunpack.c.l.b16 %v3554
      %v4586 = vunpack.c.l.b16 %v3555
      %v4587 = vunpack.c.l.b16 %v3556
      %v4588 = vunpack.c.l.b16 %v3557
      %v4589 = vunpack.c.l.b16 %v3558
      %v4590 = vunpack.c.l.b16 %v3559
      %v4591 = vunpack.c.l.b16 %v3560
      %v4592 = vunpack.c.l.b16 %v3561
      %v4593 = vunpack.c.l.b16 %v3562
      %v4594 = vunpack.c.l.b16 %v3563
      %v4595 = vunpack.c.l.b16 %v3564
      %v4596 = vunpack.c.l.b16 %v3565
      %v4597 = vunpack.c.l.b16 %v3566
      %v4598 = vunpack.c.l.b16 %v3567
      %v4599 = vunpack.c.l.b16 %v3568
      %v4600 = vunpack.c.l.b16 %v3569
      %v4601 = vunpack.c.l.b16 %v3570
      %v4602 = vunpack.c.l.b16 %v3571
      %v4603 = vunpack.c.l.b16 %v3572
      %v4604 = vunpack.c.l.b16 %v3573
      %v4605 = vunpack.c.l.b16 %v3574
      %v4606 = vunpack.c.l.b16 %v3575
      %v4607 = vunpack.c.l.b16 %v3576
      %v4608 = vunpack.c.l.b16 %v3577
      %v4609 = vunpack.c.l.b16 %v3578
      %v4610 = vunpack.c.l.b16 %v3579
      %v4611 = vunpack.c.l.b16 %v3580
      %v4612 = vunpack.c.l.b16 %v3581
      %v4613 = vunpack.c.l.b16 %v3582
      %v4614 = vunpack.c.l.b16 %v3583
      %v4615 = vunpack.c.l.b16 %v3584
      %v4616 = vunpack.c.l.b16 %v3585
      %v4617 = vunpack.c.l.b16 %v3586
      %v4618 = vunpack.c.l.b16 %v3587
      %v4619 = vunpack.c.l.b16 %v3588
      %v4620 = vunpack.c.l.b16 %v3589
      %v4621 = vunpack.c.l.b16 %v3590
      %v4622 = vunpack.c.l.b16 %v3591
      %v4623 = vunpack.c.l.b16 %v3592
      %v4624 = vunpack.c.l.b16 %v3593
      %v4625 = vunpack.c.l.b16 %v3594
      %v4626 = vunpack.c.l.b16 %v3595
      %v4627 = vunpack.c.l.b16 %v3596
      %v4628 = vunpack.c.l.b16 %v3597
      %v4629 = vunpack.c.l.b16 %v3598
      %v4630 = vunpack.c.l.b16 %v3599
      %v4631 = vunpack.c.l.b16 %v3600
      %v4632 = vunpack.c.l.b16 %v3601
      %v4633 = vunpack.c.l.b16 %v3602
      %v4634 = vunpack.c.l.b16 %v3603
      %v4635 = vunpack.c.l.b16 %v3604
      %v4636 = vunpack.c.l.b16 %v3605
      %v4637 = vunpack.c.l.b16 %v3606
      %v4638 = vunpack.c.l.b16 %v3607
      %v4639 = vunpack.c.l.b16 %v3608
      %v4640 = vunpack.c.l.b16 %v3609
      %v4641 = vunpack.c.l.b16 %v3610
      %v4642 = vunpack.c.l.b16 %v3611
      %v4643 = vunpack.c.l.b16 %v3612
      %v4644 = vunpack.c.l.b16 %v3613
      %v4645 = vpack.c.b16 %v4502, %v4501
      %v4646 = vpack.c.b16 %v4504, %v4503
      %v4647 = vpack.c.b16 %v4506, %v4505
      %v4648 = vpack.c.b16 %v4508, %v4507
      %v4649 = vpack.c.b16 %v4510, %v4509
      %v4650 = vpack.c.b16 %v4512, %v4511
      %v4651 = vpack.c.b16 %v4514, %v4513
      %v4652 = vpack.c.b16 %v4516, %v4515
      %v4653 = vpack.c.b16 %v4518, %v4517
      %v4654 = vpack.c.b16 %v4520, %v4519
      %v4655 = vpack.c.b16 %v4522, %v4521
      %v4656 = vpack.c.b16 %v4524, %v4523
      %v4657 = vpack.c.b16 %v4526, %v4525
      %v4658 = vpack.c.b16 %v4528, %v4527
      %v4659 = vpack.c.b16 %v4530, %v4529
      %v4660 = vpack.c.b16 %v4532, %v4531
      %v4661 = vpack.c.b16 %v4534, %v4533
      %v4662 = vpack.c.b16 %v4536, %v4535
      %v4663 = vpack.c.b16 %v4538, %v4537
      %v4664 = vpack.c.b16 %v4540, %v4539
      %v4665 = vpack.c.b16 %v4542, %v4541
      %v4666 = vpack.c.b16 %v4544, %v4543
      %v4667 = vpack.c.b16 %v4546, %v4545
      %v4668 = vpack.c.b16 %v4548, %v4547
      %v4669 = vpack.c.b16 %v4550, %v4549
      %v4670 = vpack.c.b16 %v4552, %v4551
      %v4671 = vpack.c.b16 %v4554, %v4553
      %v4672 = vpack.c.b16 %v4556, %v4555
      %v4673 = vpack.c.b16 %v4558, %v4557
      %v4674 = vpack.c.b16 %v4560, %v4559
      %v4675 = vpack.c.b16 %v4562, %v4561
      %v4676 = vpack.c.b16 %v4564, %v4563
      %v4677 = vpack.c.b16 %v4566, %v4565
      %v4678 = vpack.c.b16 %v4568, %v4567
      %v4679 = vpack.c.b16 %v4570, %v4569
      %v4680 = vpack.c.b16 %v4572, %v4571
      %v4681 = vpack.c.b16 %v4574, %v4573
      %v4682 = vpack.c.b16 %v4576, %v4575
      %v4683 = vpack.c.b16 %v4578, %v4577
      %v4684 = vpack.c.b16 %v4580, %v4579
      %v4685 = vpack.c.b16 %v4582, %v4581
      %v4686 = vpack.c.b16 %v4584, %v4583
      %v4687 = vpack.c.b16 %v4586, %v4585
      %v4688 = vpack.c.b16 %v4588, %v4587
      %v4689 = vpack.c.b16 %v4590, %v4589
      %v4690 = vpack.c.b16 %v4592, %v4591
      %v4691 = vpack.c.b16 %v4594, %v4593
      %v4692 = vpack.c.b16 %v4596, %v4595
      %v4693 = vpack.c.b16 %v4598, %v4597
      %v4694 = vpack.c.b16 %v4600, %v4599
      %v4695 = vpack.c.b16 %v4602, %v4601
      %v4696 = vpack.c.b16 %v4604, %v4603
      %v4697 = vpack.c.b16 %v4606, %v4605
      %v4698 = vpack.c.b16 %v4608, %v4607
      %v4699 = vpack.c.b16 %v4610, %v4609
      %v4700 = vpack.c.b16 %v4612, %v4611
      %v4701 = vpack.c.b16 %v4614, %v4613
      %v4702 = vpack.c.b16 %v4616, %v4615
      %v4703 = vpack.c.b16 %v4618, %v4617
      %v4704 = vpack.c.b16 %v4620, %v4619
      %v4705 = vpack.c.b16 %v4622, %v4621
      %v4706 = vpack.c.b16 %v4624, %v4623
      %v4707 = vpack.c.b16 %v4626, %v4625
      %v4708 = vpack.c.b16 %v4628, %v4627
      %v4709 = vpack.c.b16 %v4630, %v4629
      %v4710 = vpack.c.b16 %v4632, %v4631
      %v4711 = vpack.c.b16 %v4634, %v4633
      %v4712 = vpack.c.b16 %v4636, %v4635
      %v4713 = vpack.c.b16 %v4638, %v4637
      %v4714 = vpack.c.b16 %v4640, %v4639
      %v4715 = vpack.c.b16 %v4642, %v4641
      %v4716 = vpack.c.b16 %v4644, %v4643
      %4789 = vmatprep.subr.bf16.mxu0 0
      %4790 = vmatpush1.bf16.msra.mxu0 %v4652
      %4791 = vmatprep.subr.bf16.mxu0 0
      %4792 = vmatpush1.bf16.msra.mxu0 %v4651
      %4793 = vmatprep.subr.bf16.mxu0 0
      %4794 = vmatpush1.bf16.msra.mxu0 %v4650
      %4795 = vmatprep.subr.bf16.mxu0 0
      %4796 = vmatpush1.bf16.msra.mxu0 %v4649
      %4797 = vmatprep.subr.bf16.mxu0 0
      %4798 = vmatpush1.bf16.msra.mxu0 %v4648
      %4799 = vmatprep.subr.bf16.mxu0 0
      %4800 = vmatpush1.bf16.msra.mxu0 %v4647
      %4801 = vmatprep.subr.bf16.mxu0 0
      %4802 = vmatpush1.bf16.msra.mxu0 %v4646
      %4803 = vmatprep.subr.bf16.mxu0 0
      %4804 = vmatpush1.bf16.msra.mxu0 %v4645
      %4805 = vmatprep.subr.bf16.mxu0 0
      %4806 = vmatpush2.bf16.msra.mxu0 %v4660
      %4807 = vmatprep.subr.bf16.mxu0 0
      %4808 = vmatpush2.bf16.msra.mxu0 %v4659
      %4809 = vmatprep.subr.bf16.mxu0 0
      %4810 = vmatpush2.bf16.msra.mxu0 %v4658
      %4811 = vmatprep.subr.bf16.mxu0 0
      %4812 = vmatpush2.bf16.msra.mxu0 %v4657
      %4813 = vmatprep.subr.bf16.mxu0 0
      %4814 = vmatpush2.bf16.msra.mxu0 %v4656
      %4815 = vmatprep.subr.bf16.mxu0 0
      %4816 = vmatpush2.bf16.msra.mxu0 %v4655
      %4817 = vmatprep.subr.bf16.mxu0 0
      %4818 = vmatpush2.bf16.msra.mxu0 %v4654
      %4819 = vmatprep.subr.bf16.mxu0 0
      %4820 = vmatpush2.bf16.msra.mxu0 %v4653
      %4821 = vmatprep.mubr.bf16.mxu0 %v4070
      %4822 = vmatmul.mubr.bf16.gmra.mxu0 %v4069
      %v4823 = vpop.f32.mrf.mxu0
      %v4824 = vadd.f32 %v3619, %v4823
      %v4825 = vpop.f32.mrf.mxu0
      %v4826 = vpop.f32.mrf.mxu0
      %v4827 = vadd.f32 %v3619, %v4826
      %v4828 = vpop.f32.mrf.mxu0
      %4829 = vmatprep.mubr.bf16.mxu0 %v4079
      %4830 = vmatmul.mubr.bf16.gmra.mxu0 %v4078
      %v4831 = vpop.f32.mrf.mxu0
      %v4832 = vadd.f32 %v3619, %v4831
      %v4833 = vpop.f32.mrf.mxu0
      %v4834 = vpop.f32.mrf.mxu0
      %v4835 = vadd.f32 %v3619, %v4834
      %v4836 = vpop.f32.mrf.mxu0
      %4837 = vmatprep.mubr.bf16.mxu0 %v4088
      %4838 = vmatmul.mubr.bf16.gmra.mxu0 %v4087
      %v4839 = vpop.f32.mrf.mxu0
      %v4840 = vadd.f32 %v3619, %v4839
      %v4841 = vpop.f32.mrf.mxu0
      %v4842 = vpop.f32.mrf.mxu0
      %v4843 = vadd.f32 %v3619, %v4842
      %v4844 = vpop.f32.mrf.mxu0
      %4845 = vmatprep.mubr.bf16.mxu0 %v4097
      %4846 = vmatmul.mubr.bf16.gmra.mxu0 %v4096
      %v4847 = vpop.f32.mrf.mxu0
      %v4848 = vadd.f32 %v3619, %v4847
      %v4849 = vpop.f32.mrf.mxu0
      %v4850 = vpop.f32.mrf.mxu0
      %v4851 = vadd.f32 %v3619, %v4850
      %v4852 = vpop.f32.mrf.mxu0
      %4853 = vmatprep.mubr.bf16.mxu0 %v4106
      %4854 = vmatmul.mubr.bf16.gmra.mxu0 %v4105
      %v4855 = vpop.f32.mrf.mxu0
      %v4856 = vadd.f32 %v3619, %v4855
      %v4857 = vpop.f32.mrf.mxu0
      %v4858 = vpop.f32.mrf.mxu0
      %v4859 = vadd.f32 %v3619, %v4858
      %v4860 = vpop.f32.mrf.mxu0
      %4861 = vmatprep.mubr.bf16.mxu0 %v4115
      %4862 = vmatmul.mubr.bf16.gmra.mxu0 %v4114
      %v4863 = vpop.f32.mrf.mxu0
      %v4864 = vadd.f32 %v3619, %v4863
      %v4865 = vpop.f32.mrf.mxu0
      %v4866 = vpop.f32.mrf.mxu0
      %v4867 = vadd.f32 %v3619, %v4866
      %v4868 = vpop.f32.mrf.mxu0
      %4869 = vmatprep.mubr.bf16.mxu0 %v4124
      %4870 = vmatmul.mubr.bf16.gmra.mxu0 %v4123
      %v4871 = vpop.f32.mrf.mxu0
      %v4872 = vadd.f32 %v3619, %v4871
      %v4873 = vpop.f32.mrf.mxu0
      %v4874 = vpop.f32.mrf.mxu0
      %v4875 = vadd.f32 %v3619, %v4874
      %v4876 = vpop.f32.mrf.mxu0
      %4877 = vmatprep.mubr.bf16.mxu0 %v4133
      %4878 = vmatmul.mubr.bf16.gmra.mxu0 %v4132
      %v4879 = vpop.f32.mrf.mxu0
      %v4880 = vadd.f32 %v3619, %v4879
      %v4881 = vpop.f32.mrf.mxu0
      %v4882 = vpop.f32.mrf.mxu0
      %v4883 = vadd.f32 %v3619, %v4882
      %v4884 = vpop.f32.mrf.mxu0
      %4885 = vmatprep.mubr.bf16.mxu0 %v4142
      %4886 = vmatmul.mubr.bf16.gmra.mxu0 %v4141
      %v4887 = vpop.f32.mrf.mxu0
      %v4888 = vadd.f32 %v3619, %v4887
      %v4889 = vpop.f32.mrf.mxu0
      %v4890 = vpop.f32.mrf.mxu0
      %v4891 = vadd.f32 %v3619, %v4890
      %v4892 = vpop.f32.mrf.mxu0
      %4893 = vmatprep.mubr.bf16.mxu0 %v4151
      %4894 = vmatmul.mubr.bf16.gmra.mxu0 %v4150
      %v4895 = vpop.f32.mrf.mxu0
      %v4896 = vadd.f32 %v3619, %v4895
      %v4897 = vpop.f32.mrf.mxu0
      %v4898 = vpop.f32.mrf.mxu0
      %v4899 = vadd.f32 %v3619, %v4898
      %v4900 = vpop.f32.mrf.mxu0
      %4901 = vmatprep.mubr.bf16.mxu0 %v4160
      %4902 = vmatmul.mubr.bf16.gmra.mxu0 %v4159
      %v4903 = vpop.f32.mrf.mxu0
      %v4904 = vadd.f32 %v3619, %v4903
      %v4905 = vpop.f32.mrf.mxu0
      %v4906 = vpop.f32.mrf.mxu0
      %v4907 = vadd.f32 %v3619, %v4906
      %v4908 = vpop.f32.mrf.mxu0
      %4909 = vmatprep.mubr.bf16.mxu0 %v4169
      %4910 = vmatmul.mubr.bf16.gmra.mxu0 %v4168
      %v4911 = vpop.f32.mrf.mxu0
      %v4912 = vadd.f32 %v3619, %v4911
      %v4913 = vpop.f32.mrf.mxu0
      %v4914 = vpop.f32.mrf.mxu0
      %v4915 = vadd.f32 %v3619, %v4914
      %v4916 = vpop.f32.mrf.mxu0
      %4917 = vmatprep.mubr.bf16.mxu0 %v4178
      %4918 = vmatmul.mubr.bf16.gmra.mxu0 %v4177
      %v4919 = vpop.f32.mrf.mxu0
      %v4920 = vadd.f32 %v3619, %v4919
      %v4921 = vpop.f32.mrf.mxu0
      %v4922 = vpop.f32.mrf.mxu0
      %v4923 = vadd.f32 %v3619, %v4922
      %v4924 = vpop.f32.mrf.mxu0
      %4925 = vmatprep.mubr.bf16.mxu0 %v4187
      %4926 = vmatmul.mubr.bf16.gmra.mxu0 %v4186
      %v4927 = vpop.f32.mrf.mxu0
      %v4928 = vadd.f32 %v3619, %v4927
      %v4929 = vpop.f32.mrf.mxu0
      %v4930 = vpop.f32.mrf.mxu0
      %v4931 = vadd.f32 %v3619, %v4930
      %v4932 = vpop.f32.mrf.mxu0
      %4933 = vmatprep.mubr.bf16.mxu0 %v4196
      %4934 = vmatmul.mubr.bf16.gmra.mxu0 %v4195
      %v4935 = vpop.f32.mrf.mxu0
      %v4936 = vadd.f32 %v3619, %v4935
      %v4937 = vpop.f32.mrf.mxu0
      %v4938 = vpop.f32.mrf.mxu0
      %v4939 = vadd.f32 %v3619, %v4938
      %v4940 = vpop.f32.mrf.mxu0
      %4941 = vmatprep.mubr.bf16.mxu0 %v4205
      %4942 = vmatmul.mubr.bf16.gmra.mxu0 %v4204
      %v4943 = vpop.f32.mrf.mxu0
      %v4944 = vadd.f32 %v3619, %v4943
      %v4945 = vpop.f32.mrf.mxu0
      %v4946 = vpop.f32.mrf.mxu0
      %v4947 = vadd.f32 %v3619, %v4946
      %v4948 = vpop.f32.mrf.mxu0
      %4949 = vdwg.mxu0
      %4950 = vmatprep.subr.bf16.mxu0 0
      %4951 = vmatpush1.bf16.msra.mxu0 %v4668
      %4952 = vmatprep.subr.bf16.mxu0 0
      %4953 = vmatpush1.bf16.msra.mxu0 %v4667
      %4954 = vmatprep.subr.bf16.mxu0 0
      %4955 = vmatpush1.bf16.msra.mxu0 %v4666
      %4956 = vmatprep.subr.bf16.mxu0 0
      %4957 = vmatpush1.bf16.msra.mxu0 %v4665
      %4958 = vmatprep.subr.bf16.mxu0 0
      %4959 = vmatpush1.bf16.msra.mxu0 %v4664
      %4960 = vmatprep.subr.bf16.mxu0 0
      %4961 = vmatpush1.bf16.msra.mxu0 %v4663
      %4962 = vmatprep.subr.bf16.mxu0 0
      %4963 = vmatpush1.bf16.msra.mxu0 %v4662
      %4964 = vmatprep.subr.bf16.mxu0 0
      %4965 = vmatpush1.bf16.msra.mxu0 %v4661
      %4966 = vmatprep.subr.bf16.mxu0 0
      %4967 = vmatpush2.bf16.msra.mxu0 %v4676
      %4968 = vmatprep.subr.bf16.mxu0 0
      %4969 = vmatpush2.bf16.msra.mxu0 %v4675
      %4970 = vmatprep.subr.bf16.mxu0 0
      %4971 = vmatpush2.bf16.msra.mxu0 %v4674
      %4972 = vmatprep.subr.bf16.mxu0 0
      %4973 = vmatpush2.bf16.msra.mxu0 %v4673
      %4974 = vmatprep.subr.bf16.mxu0 0
      %4975 = vmatpush2.bf16.msra.mxu0 %v4672
      %4976 = vmatprep.subr.bf16.mxu0 0
      %4977 = vmatpush2.bf16.msra.mxu0 %v4671
      %4978 = vmatprep.subr.bf16.mxu0 0
      %4979 = vmatpush2.bf16.msra.mxu0 %v4670
      %4980 = vmatprep.subr.bf16.mxu0 0
      %4981 = vmatpush2.bf16.msra.mxu0 %v4669
      %4982 = vmatprep.mubr.bf16.mxu0 %v4072
      %4983 = vmatmul.mubr.bf16.gmra.mxu0 %v4071
      %v4984 = vpop.f32.mrf.mxu0
      %v4985 = vadd.f32 %v4824, %v4984
      %v4986 = vpop.f32.mrf.mxu0
      %v4987 = vpop.f32.mrf.mxu0
      %v4988 = vadd.f32 %v4827, %v4987
      %v4989 = vpop.f32.mrf.mxu0
      %4990 = vmatprep.mubr.bf16.mxu0 %v4081
      %4991 = vmatmul.mubr.bf16.gmra.mxu0 %v4080
      %v4992 = vpop.f32.mrf.mxu0
      %v4993 = vadd.f32 %v4832, %v4992
      %v4994 = vpop.f32.mrf.mxu0
      %v4995 = vpop.f32.mrf.mxu0
      %v4996 = vadd.f32 %v4835, %v4995
      %v4997 = vpop.f32.mrf.mxu0
      %4998 = vmatprep.mubr.bf16.mxu0 %v4090
      %4999 = vmatmul.mubr.bf16.gmra.mxu0 %v4089
      %v5000 = vpop.f32.mrf.mxu0
      %v5001 = vadd.f32 %v4840, %v5000
      %v5002 = vpop.f32.mrf.mxu0
      %v5003 = vpop.f32.mrf.mxu0
      %v5004 = vadd.f32 %v4843, %v5003
      %v5005 = vpop.f32.mrf.mxu0
      %5006 = vmatprep.mubr.bf16.mxu0 %v4099
      %5007 = vmatmul.mubr.bf16.gmra.mxu0 %v4098
      %v5008 = vpop.f32.mrf.mxu0
      %v5009 = vadd.f32 %v4848, %v5008
      %v5010 = vpop.f32.mrf.mxu0
      %v5011 = vpop.f32.mrf.mxu0
      %v5012 = vadd.f32 %v4851, %v5011
      %v5013 = vpop.f32.mrf.mxu0
      %5014 = vmatprep.mubr.bf16.mxu0 %v4108
      %5015 = vmatmul.mubr.bf16.gmra.mxu0 %v4107
      %v5016 = vpop.f32.mrf.mxu0
      %v5017 = vadd.f32 %v4856, %v5016
      %v5018 = vpop.f32.mrf.mxu0
      %v5019 = vpop.f32.mrf.mxu0
      %v5020 = vadd.f32 %v4859, %v5019
      %v5021 = vpop.f32.mrf.mxu0
      %5022 = vmatprep.mubr.bf16.mxu0 %v4117
      %5023 = vmatmul.mubr.bf16.gmra.mxu0 %v4116
      %v5024 = vpop.f32.mrf.mxu0
      %v5025 = vadd.f32 %v4864, %v5024
      %v5026 = vpop.f32.mrf.mxu0
      %v5027 = vpop.f32.mrf.mxu0
      %v5028 = vadd.f32 %v4867, %v5027
      %v5029 = vpop.f32.mrf.mxu0
      %5030 = vmatprep.mubr.bf16.mxu0 %v4126
      %5031 = vmatmul.mubr.bf16.gmra.mxu0 %v4125
      %v5032 = vpop.f32.mrf.mxu0
      %v5033 = vadd.f32 %v4872, %v5032
      %v5034 = vpop.f32.mrf.mxu0
      %v5035 = vpop.f32.mrf.mxu0
      %v5036 = vadd.f32 %v4875, %v5035
      %v5037 = vpop.f32.mrf.mxu0
      %5038 = vmatprep.mubr.bf16.mxu0 %v4135
      %5039 = vmatmul.mubr.bf16.gmra.mxu0 %v4134
      %v5040 = vpop.f32.mrf.mxu0
      %v5041 = vadd.f32 %v4880, %v5040
      %v5042 = vpop.f32.mrf.mxu0
      %v5043 = vpop.f32.mrf.mxu0
      %v5044 = vadd.f32 %v4883, %v5043
      %v5045 = vpop.f32.mrf.mxu0
      %5046 = vmatprep.mubr.bf16.mxu0 %v4144
      %5047 = vmatmul.mubr.bf16.gmra.mxu0 %v4143
      %v5048 = vpop.f32.mrf.mxu0
      %v5049 = vadd.f32 %v4888, %v5048
      %v5050 = vpop.f32.mrf.mxu0
      %v5051 = vpop.f32.mrf.mxu0
      %v5052 = vadd.f32 %v4891, %v5051
      %v5053 = vpop.f32.mrf.mxu0
      %5054 = vmatprep.mubr.bf16.mxu0 %v4153
      %5055 = vmatmul.mubr.bf16.gmra.mxu0 %v4152
      %v5056 = vpop.f32.mrf.mxu0
      %v5057 = vadd.f32 %v4896, %v5056
      %v5058 = vpop.f32.mrf.mxu0
      %v5059 = vpop.f32.mrf.mxu0
      %v5060 = vadd.f32 %v4899, %v5059
      %v5061 = vpop.f32.mrf.mxu0
      %5062 = vmatprep.mubr.bf16.mxu0 %v4162
      %5063 = vmatmul.mubr.bf16.gmra.mxu0 %v4161
      %v5064 = vpop.f32.mrf.mxu0
      %v5065 = vadd.f32 %v4904, %v5064
      %v5066 = vpop.f32.mrf.mxu0
      %v5067 = vpop.f32.mrf.mxu0
      %v5068 = vadd.f32 %v4907, %v5067
      %v5069 = vpop.f32.mrf.mxu0
      %5070 = vmatprep.mubr.bf16.mxu0 %v4171
      %5071 = vmatmul.mubr.bf16.gmra.mxu0 %v4170
      %v5072 = vpop.f32.mrf.mxu0
      %v5073 = vadd.f32 %v4912, %v5072
      %v5074 = vpop.f32.mrf.mxu0
      %v5075 = vpop.f32.mrf.mxu0
      %v5076 = vadd.f32 %v4915, %v5075
      %v5077 = vpop.f32.mrf.mxu0
      %5078 = vmatprep.mubr.bf16.mxu0 %v4180
      %5079 = vmatmul.mubr.bf16.gmra.mxu0 %v4179
      %v5080 = vpop.f32.mrf.mxu0
      %v5081 = vadd.f32 %v4920, %v5080
      %v5082 = vpop.f32.mrf.mxu0
      %v5083 = vpop.f32.mrf.mxu0
      %v5084 = vadd.f32 %v4923, %v5083
      %v5085 = vpop.f32.mrf.mxu0
      %5086 = vmatprep.mubr.bf16.mxu0 %v4189
      %5087 = vmatmul.mubr.bf16.gmra.mxu0 %v4188
      %v5088 = vpop.f32.mrf.mxu0
      %v5089 = vadd.f32 %v4928, %v5088
      %v5090 = vpop.f32.mrf.mxu0
      %v5091 = vpop.f32.mrf.mxu0
      %v5092 = vadd.f32 %v4931, %v5091
      %v5093 = vpop.f32.mrf.mxu0
      %5094 = vmatprep.mubr.bf16.mxu0 %v4198
      %5095 = vmatmul.mubr.bf16.gmra.mxu0 %v4197
      %v5096 = vpop.f32.mrf.mxu0
      %v5097 = vadd.f32 %v4936, %v5096
      %v5098 = vpop.f32.mrf.mxu0
      %v5099 = vpop.f32.mrf.mxu0
      %v5100 = vadd.f32 %v4939, %v5099
      %v5101 = vpop.f32.mrf.mxu0
      %5102 = vmatprep.mubr.bf16.mxu0 %v4207
      %5103 = vmatmul.mubr.bf16.gmra.mxu0 %v4206
      %v5104 = vpop.f32.mrf.mxu0
      %v5105 = vadd.f32 %v4944, %v5104
      %v5106 = vpop.f32.mrf.mxu0
      %v5107 = vpop.f32.mrf.mxu0
      %v5108 = vadd.f32 %v4947, %v5107
      %v5109 = vpop.f32.mrf.mxu0
      %5110 = vdwg.mxu0
      %5111 = vmatprep.subr.bf16.mxu0 0
      %5112 = vmatpush1.bf16.msra.mxu0 %v4684
      %5113 = vmatprep.subr.bf16.mxu0 0
      %5114 = vmatpush1.bf16.msra.mxu0 %v4683
      %5115 = vmatprep.subr.bf16.mxu0 0
      %5116 = vmatpush1.bf16.msra.mxu0 %v4682
      %5117 = vmatprep.subr.bf16.mxu0 0
      %5118 = vmatpush1.bf16.msra.mxu0 %v4681
      %5119 = vmatprep.subr.bf16.mxu0 0
      %5120 = vmatpush1.bf16.msra.mxu0 %v4680
      %5121 = vmatprep.subr.bf16.mxu0 0
      %5122 = vmatpush1.bf16.msra.mxu0 %v4679
      %5123 = vmatprep.subr.bf16.mxu0 0
      %5124 = vmatpush1.bf16.msra.mxu0 %v4678
      %5125 = vmatprep.subr.bf16.mxu0 0
      %5126 = vmatpush1.bf16.msra.mxu0 %v4677
      %5127 = vmatprep.subr.bf16.mxu0 0
      %5128 = vmatpush2.bf16.msra.mxu0 %v4692
      %5129 = vmatprep.subr.bf16.mxu0 0
      %5130 = vmatpush2.bf16.msra.mxu0 %v4691
      %5131 = vmatprep.subr.bf16.mxu0 0
      %5132 = vmatpush2.bf16.msra.mxu0 %v4690
      %5133 = vmatprep.subr.bf16.mxu0 0
      %5134 = vmatpush2.bf16.msra.mxu0 %v4689
      %5135 = vmatprep.subr.bf16.mxu0 0
      %5136 = vmatpush2.bf16.msra.mxu0 %v4688
      %5137 = vmatprep.subr.bf16.mxu0 0
      %5138 = vmatpush2.bf16.msra.mxu0 %v4687
      %5139 = vmatprep.subr.bf16.mxu0 0
      %5140 = vmatpush2.bf16.msra.mxu0 %v4686
      %5141 = vmatprep.subr.bf16.mxu0 0
      %5142 = vmatpush2.bf16.msra.mxu0 %v4685
      %5143 = vmatprep.mubr.bf16.mxu0 %v4074
      %5144 = vmatmul.mubr.bf16.gmra.mxu0 %v4073
      %v5145 = vpop.f32.mrf.mxu0
      %v5146 = vadd.f32 %v4985, %v5145
      %v5147 = vpop.f32.mrf.mxu0
      %v5148 = vpop.f32.mrf.mxu0
      %v5149 = vadd.f32 %v4988, %v5148
      %v5150 = vpop.f32.mrf.mxu0
      %5151 = vmatprep.mubr.bf16.mxu0 %v4083
      %5152 = vmatmul.mubr.bf16.gmra.mxu0 %v4082
      %v5153 = vpop.f32.mrf.mxu0
      %v5154 = vadd.f32 %v4993, %v5153
      %v5155 = vpop.f32.mrf.mxu0
      %v5156 = vpop.f32.mrf.mxu0
      %v5157 = vadd.f32 %v4996, %v5156
      %v5158 = vpop.f32.mrf.mxu0
      %5159 = vmatprep.mubr.bf16.mxu0 %v4092
      %5160 = vmatmul.mubr.bf16.gmra.mxu0 %v4091
      %v5161 = vpop.f32.mrf.mxu0
      %v5162 = vadd.f32 %v5001, %v5161
      %v5163 = vpop.f32.mrf.mxu0
      %v5164 = vpop.f32.mrf.mxu0
      %v5165 = vadd.f32 %v5004, %v5164
      %v5166 = vpop.f32.mrf.mxu0
      %5167 = vmatprep.mubr.bf16.mxu0 %v4101
      %5168 = vmatmul.mubr.bf16.gmra.mxu0 %v4100
      %v5169 = vpop.f32.mrf.mxu0
      %v5170 = vadd.f32 %v5009, %v5169
      %v5171 = vpop.f32.mrf.mxu0
      %v5172 = vpop.f32.mrf.mxu0
      %v5173 = vadd.f32 %v5012, %v5172
      %v5174 = vpop.f32.mrf.mxu0
      %5175 = vmatprep.mubr.bf16.mxu0 %v4110
      %5176 = vmatmul.mubr.bf16.gmra.mxu0 %v4109
      %v5177 = vpop.f32.mrf.mxu0
      %v5178 = vadd.f32 %v5017, %v5177
      %v5179 = vpop.f32.mrf.mxu0
      %v5180 = vpop.f32.mrf.mxu0
      %v5181 = vadd.f32 %v5020, %v5180
      %v5182 = vpop.f32.mrf.mxu0
      %5183 = vmatprep.mubr.bf16.mxu0 %v4119
      %5184 = vmatmul.mubr.bf16.gmra.mxu0 %v4118
      %v5185 = vpop.f32.mrf.mxu0
      %v5186 = vadd.f32 %v5025, %v5185
      %v5187 = vpop.f32.mrf.mxu0
      %v5188 = vpop.f32.mrf.mxu0
      %v5189 = vadd.f32 %v5028, %v5188
      %v5190 = vpop.f32.mrf.mxu0
      %5191 = vmatprep.mubr.bf16.mxu0 %v4128
      %5192 = vmatmul.mubr.bf16.gmra.mxu0 %v4127
      %v5193 = vpop.f32.mrf.mxu0
      %v5194 = vadd.f32 %v5033, %v5193
      %v5195 = vpop.f32.mrf.mxu0
      %v5196 = vpop.f32.mrf.mxu0
      %v5197 = vadd.f32 %v5036, %v5196
      %v5198 = vpop.f32.mrf.mxu0
      %5199 = vmatprep.mubr.bf16.mxu0 %v4137
      %5200 = vmatmul.mubr.bf16.gmra.mxu0 %v4136
      %v5201 = vpop.f32.mrf.mxu0
      %v5202 = vadd.f32 %v5041, %v5201
      %v5203 = vpop.f32.mrf.mxu0
      %v5204 = vpop.f32.mrf.mxu0
      %v5205 = vadd.f32 %v5044, %v5204
      %v5206 = vpop.f32.mrf.mxu0
      %5207 = vmatprep.mubr.bf16.mxu0 %v4146
      %5208 = vmatmul.mubr.bf16.gmra.mxu0 %v4145
      %v5209 = vpop.f32.mrf.mxu0
      %v5210 = vadd.f32 %v5049, %v5209
      %v5211 = vpop.f32.mrf.mxu0
      %v5212 = vpop.f32.mrf.mxu0
      %v5213 = vadd.f32 %v5052, %v5212
      %v5214 = vpop.f32.mrf.mxu0
      %5215 = vmatprep.mubr.bf16.mxu0 %v4155
      %5216 = vmatmul.mubr.bf16.gmra.mxu0 %v4154
      %v5217 = vpop.f32.mrf.mxu0
      %v5218 = vadd.f32 %v5057, %v5217
      %v5219 = vpop.f32.mrf.mxu0
      %v5220 = vpop.f32.mrf.mxu0
      %v5221 = vadd.f32 %v5060, %v5220
      %v5222 = vpop.f32.mrf.mxu0
      %5223 = vmatprep.mubr.bf16.mxu0 %v4164
      %5224 = vmatmul.mubr.bf16.gmra.mxu0 %v4163
      %v5225 = vpop.f32.mrf.mxu0
      %v5226 = vadd.f32 %v5065, %v5225
      %v5227 = vpop.f32.mrf.mxu0
      %v5228 = vpop.f32.mrf.mxu0
      %v5229 = vadd.f32 %v5068, %v5228
      %v5230 = vpop.f32.mrf.mxu0
      %5231 = vmatprep.mubr.bf16.mxu0 %v4173
      %5232 = vmatmul.mubr.bf16.gmra.mxu0 %v4172
      %v5233 = vpop.f32.mrf.mxu0
      %v5234 = vadd.f32 %v5073, %v5233
      %v5235 = vpop.f32.mrf.mxu0
      %v5236 = vpop.f32.mrf.mxu0
      %v5237 = vadd.f32 %v5076, %v5236
      %v5238 = vpop.f32.mrf.mxu0
      %5239 = vmatprep.mubr.bf16.mxu0 %v4182
      %5240 = vmatmul.mubr.bf16.gmra.mxu0 %v4181
      %v5241 = vpop.f32.mrf.mxu0
      %v5242 = vadd.f32 %v5081, %v5241
      %v5243 = vpop.f32.mrf.mxu0
      %v5244 = vpop.f32.mrf.mxu0
      %v5245 = vadd.f32 %v5084, %v5244
      %v5246 = vpop.f32.mrf.mxu0
      %5247 = vmatprep.mubr.bf16.mxu0 %v4191
      %5248 = vmatmul.mubr.bf16.gmra.mxu0 %v4190
      %v5249 = vpop.f32.mrf.mxu0
      %v5250 = vadd.f32 %v5089, %v5249
      %v5251 = vpop.f32.mrf.mxu0
      %v5252 = vpop.f32.mrf.mxu0
      %v5253 = vadd.f32 %v5092, %v5252
      %v5254 = vpop.f32.mrf.mxu0
      %5255 = vmatprep.mubr.bf16.mxu0 %v4200
      %5256 = vmatmul.mubr.bf16.gmra.mxu0 %v4199
      %v5257 = vpop.f32.mrf.mxu0
      %v5258 = vadd.f32 %v5097, %v5257
      %v5259 = vpop.f32.mrf.mxu0
      %v5260 = vpop.f32.mrf.mxu0
      %v5261 = vadd.f32 %v5100, %v5260
      %v5262 = vpop.f32.mrf.mxu0
      %5263 = vmatprep.mubr.bf16.mxu0 %v4209
      %5264 = vmatmul.mubr.bf16.gmra.mxu0 %v4208
      %v5265 = vpop.f32.mrf.mxu0
      %v5266 = vadd.f32 %v5105, %v5265
      %v5267 = vpop.f32.mrf.mxu0
      %v5268 = vpop.f32.mrf.mxu0
      %v5269 = vadd.f32 %v5108, %v5268
      %v5270 = vpop.f32.mrf.mxu0
      %5271 = vdwg.mxu0
      %5272 = vmatprep.subr.bf16.mxu0 0
      %5273 = vmatpush1.bf16.msra.mxu0 %v4700
      %5274 = vmatprep.subr.bf16.mxu0 0
      %5275 = vmatpush1.bf16.msra.mxu0 %v4699
      %5276 = vmatprep.subr.bf16.mxu0 0
      %5277 = vmatpush1.bf16.msra.mxu0 %v4698
      %5278 = vmatprep.subr.bf16.mxu0 0
      %5279 = vmatpush1.bf16.msra.mxu0 %v4697
      %5280 = vmatprep.subr.bf16.mxu0 0
      %5281 = vmatpush1.bf16.msra.mxu0 %v4696
      %5282 = vmatprep.subr.bf16.mxu0 0
      %5283 = vmatpush1.bf16.msra.mxu0 %v4695
      %5284 = vmatprep.subr.bf16.mxu0 0
      %5285 = vmatpush1.bf16.msra.mxu0 %v4694
      %5286 = vmatprep.subr.bf16.mxu0 0
      %5287 = vmatpush1.bf16.msra.mxu0 %v4693
      %5288 = vmatprep.subr.bf16.mxu0 0
      %5289 = vmatpush2.bf16.msra.mxu0 %v4708
      %5290 = vmatprep.subr.bf16.mxu0 0
      %5291 = vmatpush2.bf16.msra.mxu0 %v4707
      %5292 = vmatprep.subr.bf16.mxu0 0
      %5293 = vmatpush2.bf16.msra.mxu0 %v4706
      %5294 = vmatprep.subr.bf16.mxu0 0
      %5295 = vmatpush2.bf16.msra.mxu0 %v4705
      %5296 = vmatprep.subr.bf16.mxu0 0
      %5297 = vmatpush2.bf16.msra.mxu0 %v4704
      %5298 = vmatprep.subr.bf16.mxu0 0
      %5299 = vmatpush2.bf16.msra.mxu0 %v4703
      %5300 = vmatprep.subr.bf16.mxu0 0
      %5301 = vmatpush2.bf16.msra.mxu0 %v4702
      %5302 = vmatprep.subr.bf16.mxu0 0
      %5303 = vmatpush2.bf16.msra.mxu0 %v4701
      %5304 = vmatprep.mubr.bf16.mxu0 %v4076
      %5305 = vmatmul.mubr.bf16.gmra.mxu0 %v4075
      %v5306 = vpop.f32.mrf.mxu0
      %v5307 = vadd.f32 %v5146, %v5306
      %v5308 = vpop.f32.mrf.mxu0
      %v5309 = vpop.f32.mrf.mxu0
      %v5310 = vadd.f32 %v5149, %v5309
      %v5311 = vpop.f32.mrf.mxu0
      %5312 = vmatprep.mubr.bf16.mxu0 %v4085
      %5313 = vmatmul.mubr.bf16.gmra.mxu0 %v4084
      %v5314 = vpop.f32.mrf.mxu0
      %v5315 = vadd.f32 %v5154, %v5314
      %v5316 = vpop.f32.mrf.mxu0
      %v5317 = vpop.f32.mrf.mxu0
      %v5318 = vadd.f32 %v5157, %v5317
      %v5319 = vpop.f32.mrf.mxu0
      %5320 = vmatprep.mubr.bf16.mxu0 %v4094
      %5321 = vmatmul.mubr.bf16.gmra.mxu0 %v4093
      %v5322 = vpop.f32.mrf.mxu0
      %v5323 = vadd.f32 %v5162, %v5322
      %v5324 = vpop.f32.mrf.mxu0
      %v5325 = vpop.f32.mrf.mxu0
      %v5326 = vadd.f32 %v5165, %v5325
      %v5327 = vpop.f32.mrf.mxu0
      %5328 = vmatprep.mubr.bf16.mxu0 %v4103
      %5329 = vmatmul.mubr.bf16.gmra.mxu0 %v4102
      %v5330 = vpop.f32.mrf.mxu0
      %v5331 = vadd.f32 %v5170, %v5330
      %v5332 = vpop.f32.mrf.mxu0
      %v5333 = vpop.f32.mrf.mxu0
      %v5334 = vadd.f32 %v5173, %v5333
      %v5335 = vpop.f32.mrf.mxu0
      %5336 = vmatprep.mubr.bf16.mxu0 %v4112
      %5337 = vmatmul.mubr.bf16.gmra.mxu0 %v4111
      %v5338 = vpop.f32.mrf.mxu0
      %v5339 = vadd.f32 %v5178, %v5338
      %v5340 = vpop.f32.mrf.mxu0
      %v5341 = vpop.f32.mrf.mxu0
      %v5342 = vadd.f32 %v5181, %v5341
      %v5343 = vpop.f32.mrf.mxu0
      %5344 = vmatprep.mubr.bf16.mxu0 %v4121
      %5345 = vmatmul.mubr.bf16.gmra.mxu0 %v4120
      %v5346 = vpop.f32.mrf.mxu0
      %v5347 = vadd.f32 %v5186, %v5346
      %v5348 = vpop.f32.mrf.mxu0
      %v5349 = vpop.f32.mrf.mxu0
      %v5350 = vadd.f32 %v5189, %v5349
      %v5351 = vpop.f32.mrf.mxu0
      %5352 = vmatprep.mubr.bf16.mxu0 %v4130
      %5353 = vmatmul.mubr.bf16.gmra.mxu0 %v4129
      %v5354 = vpop.f32.mrf.mxu0
      %v5355 = vadd.f32 %v5194, %v5354
      %v5356 = vpop.f32.mrf.mxu0
      %v5357 = vpop.f32.mrf.mxu0
      %v5358 = vadd.f32 %v5197, %v5357
      %v5359 = vpop.f32.mrf.mxu0
      %5360 = vmatprep.mubr.bf16.mxu0 %v4139
      %5361 = vmatmul.mubr.bf16.gmra.mxu0 %v4138
      %v5362 = vpop.f32.mrf.mxu0
      %v5363 = vadd.f32 %v5202, %v5362
      %v5364 = vpop.f32.mrf.mxu0
      %v5365 = vpop.f32.mrf.mxu0
      %v5366 = vadd.f32 %v5205, %v5365
      %v5367 = vpop.f32.mrf.mxu0
      %5368 = vmatprep.mubr.bf16.mxu0 %v4148
      %5369 = vmatmul.mubr.bf16.gmra.mxu0 %v4147
      %v5370 = vpop.f32.mrf.mxu0
      %v5371 = vadd.f32 %v5210, %v5370
      %v5372 = vpop.f32.mrf.mxu0
      %v5373 = vpop.f32.mrf.mxu0
      %v5374 = vadd.f32 %v5213, %v5373
      %v5375 = vpop.f32.mrf.mxu0
      %5376 = vmatprep.mubr.bf16.mxu0 %v4157
      %5377 = vmatmul.mubr.bf16.gmra.mxu0 %v4156
      %v5378 = vpop.f32.mrf.mxu0
      %v5379 = vadd.f32 %v5218, %v5378
      %v5380 = vpop.f32.mrf.mxu0
      %v5381 = vpop.f32.mrf.mxu0
      %v5382 = vadd.f32 %v5221, %v5381
      %v5383 = vpop.f32.mrf.mxu0
      %5384 = vmatprep.mubr.bf16.mxu0 %v4166
      %5385 = vmatmul.mubr.bf16.gmra.mxu0 %v4165
      %v5386 = vpop.f32.mrf.mxu0
      %v5387 = vadd.f32 %v5226, %v5386
      %v5388 = vpop.f32.mrf.mxu0
      %v5389 = vpop.f32.mrf.mxu0
      %v5390 = vadd.f32 %v5229, %v5389
      %v5391 = vpop.f32.mrf.mxu0
      %5392 = vmatprep.mubr.bf16.mxu0 %v4175
      %5393 = vmatmul.mubr.bf16.gmra.mxu0 %v4174
      %v5394 = vpop.f32.mrf.mxu0
      %v5395 = vadd.f32 %v5234, %v5394
      %v5396 = vpop.f32.mrf.mxu0
      %v5397 = vpop.f32.mrf.mxu0
      %v5398 = vadd.f32 %v5237, %v5397
      %v5399 = vpop.f32.mrf.mxu0
      %5400 = vmatprep.mubr.bf16.mxu0 %v4184
      %5401 = vmatmul.mubr.bf16.gmra.mxu0 %v4183
      %v5402 = vpop.f32.mrf.mxu0
      %v5403 = vadd.f32 %v5242, %v5402
      %v5404 = vpop.f32.mrf.mxu0
      %v5405 = vpop.f32.mrf.mxu0
      %v5406 = vadd.f32 %v5245, %v5405
      %v5407 = vpop.f32.mrf.mxu0
      %5408 = vmatprep.mubr.bf16.mxu0 %v4193
      %5409 = vmatmul.mubr.bf16.gmra.mxu0 %v4192
      %v5410 = vpop.f32.mrf.mxu0
      %v5411 = vadd.f32 %v5250, %v5410
      %v5412 = vpop.f32.mrf.mxu0
      %v5413 = vpop.f32.mrf.mxu0
      %v5414 = vadd.f32 %v5253, %v5413
      %v5415 = vpop.f32.mrf.mxu0
      %5416 = vmatprep.mubr.bf16.mxu0 %v4202
      %5417 = vmatmul.mubr.bf16.gmra.mxu0 %v4201
      %v5418 = vpop.f32.mrf.mxu0
      %v5419 = vadd.f32 %v5258, %v5418
      %v5420 = vpop.f32.mrf.mxu0
      %v5421 = vpop.f32.mrf.mxu0
      %v5422 = vadd.f32 %v5261, %v5421
      %v5423 = vpop.f32.mrf.mxu0
      %5424 = vmatprep.mubr.bf16.mxu0 %v4211
      %5425 = vmatmul.mubr.bf16.gmra.mxu0 %v4210
      %v5426 = vpop.f32.mrf.mxu0
      %v5427 = vadd.f32 %v5266, %v5426
      %v5428 = vpop.f32.mrf.mxu0
      %v5429 = vpop.f32.mrf.mxu0
      %v5430 = vadd.f32 %v5269, %v5429
      %v5431 = vpop.f32.mrf.mxu0
      %5432 = vdwg.mxu0
      %5433 = vmatprep.subr.bf16.mxu0 0
      %5434 = vmatpush1.bf16.msra.mxu0 %v4716
      %5435 = vmatprep.subr.bf16.mxu0 0
      %5436 = vmatpush1.bf16.msra.mxu0 %v4715
      %5437 = vmatprep.subr.bf16.mxu0 0
      %5438 = vmatpush1.bf16.msra.mxu0 %v4714
      %5439 = vmatprep.subr.bf16.mxu0 0
      %5440 = vmatpush1.bf16.msra.mxu0 %v4713
      %5441 = vmatprep.subr.bf16.mxu0 0
      %5442 = vmatpush1.bf16.msra.mxu0 %v4712
      %5443 = vmatprep.subr.bf16.mxu0 0
      %5444 = vmatpush1.bf16.msra.mxu0 %v4711
      %5445 = vmatprep.subr.bf16.mxu0 0
      %5446 = vmatpush1.bf16.msra.mxu0 %v4710
      %5447 = vmatprep.subr.bf16.mxu0 0
      %5448 = vmatpush1.bf16.msra.mxu0 %v4709
      %5449 = vmatprep.subr.bf16.mxu0 0
      %5450 = vmatpush2.bf16.msra.mxu0 0
      %5451 = vmatprep.subr.bf16.mxu0 0
      %5452 = vmatpush2.bf16.msra.mxu0 0
      %5453 = vmatprep.subr.bf16.mxu0 0
      %5454 = vmatpush2.bf16.msra.mxu0 0
      %5455 = vmatprep.subr.bf16.mxu0 0
      %5456 = vmatpush2.bf16.msra.mxu0 0
      %5457 = vmatprep.subr.bf16.mxu0 0
      %5458 = vmatpush2.bf16.msra.mxu0 0
      %5459 = vmatprep.subr.bf16.mxu0 0
      %5460 = vmatpush2.bf16.msra.mxu0 0
      %5461 = vmatprep.subr.bf16.mxu0 0
      %5462 = vmatpush2.bf16.msra.mxu0 0
      %5463 = vmatprep.subr.bf16.mxu0 0
      %5464 = vmatpush2.bf16.msra.mxu0 0
      %5465 = vmatprep.mubr.bf16.mxu0 0
      %5466 = vmatmul.mubr.bf16.gmra.mxu0 %v4077
      %v5467 = vpop.f32.mrf.mxu0
      %v5468 = vadd.f32 %v5307, %v5467
      %v5469 = vpop.f32.mrf.mxu0
      %v5470 = vpop.f32.mrf.mxu0
      %v5471 = vadd.f32 %v5310, %v5470
      %v5472 = vpop.f32.mrf.mxu0
      %5473 = vmatprep.mubr.bf16.mxu0 0
      %5474 = vmatmul.mubr.bf16.gmra.mxu0 %v4086
      %v5475 = vpop.f32.mrf.mxu0
      %v5476 = vadd.f32 %v5315, %v5475
      %v5477 = vpop.f32.mrf.mxu0
      %v5478 = vpop.f32.mrf.mxu0
      %v5479 = vadd.f32 %v5318, %v5478
      %v5480 = vpop.f32.mrf.mxu0
      %5481 = vmatprep.mubr.bf16.mxu0 0
      %5482 = vmatmul.mubr.bf16.gmra.mxu0 %v4095
      %v5483 = vpop.f32.mrf.mxu0
      %v5484 = vadd.f32 %v5323, %v5483
      %v5485 = vpop.f32.mrf.mxu0
      %v5486 = vpop.f32.mrf.mxu0
      %v5487 = vadd.f32 %v5326, %v5486
      %v5488 = vpop.f32.mrf.mxu0
      %5489 = vmatprep.mubr.bf16.mxu0 0
      %5490 = vmatmul.mubr.bf16.gmra.mxu0 %v4104
      %v5491 = vpop.f32.mrf.mxu0
      %v5492 = vadd.f32 %v5331, %v5491
      %v5493 = vpop.f32.mrf.mxu0
      %v5494 = vpop.f32.mrf.mxu0
      %v5495 = vadd.f32 %v5334, %v5494
      %v5496 = vpop.f32.mrf.mxu0
      %5497 = vmatprep.mubr.bf16.mxu0 0
      %5498 = vmatmul.mubr.bf16.gmra.mxu0 %v4113
      %v5499 = vpop.f32.mrf.mxu0
      %v5500 = vadd.f32 %v5339, %v5499
      %v5501 = vpop.f32.mrf.mxu0
      %v5502 = vpop.f32.mrf.mxu0
      %v5503 = vadd.f32 %v5342, %v5502
      %v5504 = vpop.f32.mrf.mxu0
      %5505 = vmatprep.mubr.bf16.mxu0 0
      %5506 = vmatmul.mubr.bf16.gmra.mxu0 %v4122
      %v5507 = vpop.f32.mrf.mxu0
      %v5508 = vadd.f32 %v5347, %v5507
      %v5509 = vpop.f32.mrf.mxu0
      %v5510 = vpop.f32.mrf.mxu0
      %v5511 = vadd.f32 %v5350, %v5510
      %v5512 = vpop.f32.mrf.mxu0
      %5513 = vmatprep.mubr.bf16.mxu0 0
      %5514 = vmatmul.mubr.bf16.gmra.mxu0 %v4131
      %v5515 = vpop.f32.mrf.mxu0
      %v5516 = vadd.f32 %v5355, %v5515
      %v5517 = vpop.f32.mrf.mxu0
      %v5518 = vpop.f32.mrf.mxu0
      %v5519 = vadd.f32 %v5358, %v5518
      %v5520 = vpop.f32.mrf.mxu0
      %5521 = vmatprep.mubr.bf16.mxu0 0
      %5522 = vmatmul.mubr.bf16.gmra.mxu0 %v4140
      %v5523 = vpop.f32.mrf.mxu0
      %v5524 = vadd.f32 %v5363, %v5523
      %v5525 = vpop.f32.mrf.mxu0
      %v5526 = vpop.f32.mrf.mxu0
      %v5527 = vadd.f32 %v5366, %v5526
      %v5528 = vpop.f32.mrf.mxu0
      %5529 = vmatprep.mubr.bf16.mxu0 0
      %5530 = vmatmul.mubr.bf16.gmra.mxu0 %v4149
      %v5531 = vpop.f32.mrf.mxu0
      %v5532 = vadd.f32 %v5371, %v5531
      %v5533 = vpop.f32.mrf.mxu0
      %v5534 = vpop.f32.mrf.mxu0
      %v5535 = vadd.f32 %v5374, %v5534
      %v5536 = vpop.f32.mrf.mxu0
      %5537 = vmatprep.mubr.bf16.mxu0 0
      %5538 = vmatmul.mubr.bf16.gmra.mxu0 %v4158
      %v5539 = vpop.f32.mrf.mxu0
      %v5540 = vadd.f32 %v5379, %v5539
      %v5541 = vpop.f32.mrf.mxu0
      %v5542 = vpop.f32.mrf.mxu0
      %v5543 = vadd.f32 %v5382, %v5542
      %v5544 = vpop.f32.mrf.mxu0
      %5545 = vmatprep.mubr.bf16.mxu0 0
      %5546 = vmatmul.mubr.bf16.gmra.mxu0 %v4167
      %v5547 = vpop.f32.mrf.mxu0
      %v5548 = vadd.f32 %v5387, %v5547
      %v5549 = vpop.f32.mrf.mxu0
      %v5550 = vpop.f32.mrf.mxu0
      %v5551 = vadd.f32 %v5390, %v5550
      %v5552 = vpop.f32.mrf.mxu0
      %5553 = vmatprep.mubr.bf16.mxu0 0
      %5554 = vmatmul.mubr.bf16.gmra.mxu0 %v4176
      %v5555 = vpop.f32.mrf.mxu0
      %v5556 = vadd.f32 %v5395, %v5555
      %v5557 = vpop.f32.mrf.mxu0
      %v5558 = vpop.f32.mrf.mxu0
      %v5559 = vadd.f32 %v5398, %v5558
      %v5560 = vpop.f32.mrf.mxu0
      %5561 = vmatprep.mubr.bf16.mxu0 0
      %5562 = vmatmul.mubr.bf16.gmra.mxu0 %v4185
      %v5563 = vpop.f32.mrf.mxu0
      %v5564 = vadd.f32 %v5403, %v5563
      %v5565 = vpop.f32.mrf.mxu0
      %v5566 = vpop.f32.mrf.mxu0
      %v5567 = vadd.f32 %v5406, %v5566
      %v5568 = vpop.f32.mrf.mxu0
      %5569 = vmatprep.mubr.bf16.mxu0 0
      %5570 = vmatmul.mubr.bf16.gmra.mxu0 %v4194
      %v5571 = vpop.f32.mrf.mxu0
      %v5572 = vadd.f32 %v5411, %v5571
      %v5573 = vpop.f32.mrf.mxu0
      %v5574 = vpop.f32.mrf.mxu0
      %v5575 = vadd.f32 %v5414, %v5574
      %v5576 = vpop.f32.mrf.mxu0
      %5577 = vmatprep.mubr.bf16.mxu0 0
      %5578 = vmatmul.mubr.bf16.gmra.mxu0 %v4203
      %v5579 = vpop.f32.mrf.mxu0
      %v5580 = vadd.f32 %v5419, %v5579
      %v5581 = vpop.f32.mrf.mxu0
      %v5582 = vpop.f32.mrf.mxu0
      %v5583 = vadd.f32 %v5422, %v5582
      %v5584 = vpop.f32.mrf.mxu0
      %5585 = vmatprep.mubr.bf16.mxu0 0
      %5586 = vmatmul.mubr.bf16.gmra.mxu0 %v4212
      %v5587 = vpop.f32.mrf.mxu0
      %v5588 = vadd.f32 %v5427, %v5587
      %v5589 = vpop.f32.mrf.mxu0
      %v5590 = vpop.f32.mrf.mxu0
      %v5591 = vadd.f32 %v5430, %v5590
      %v5592 = vpop.f32.mrf.mxu0
      %5593 = vdwg.mxu0
      %v5594 = vmax.f32 %v5468, 0.0
      %v5595 = vmax.f32 %v5471, 0.0
      %v5596 = vmax.f32 %v5476, 0.0
      %v5597 = vmax.f32 %v5479, 0.0
      %v5598 = vmax.f32 %v5484, 0.0
      %v5599 = vmax.f32 %v5487, 0.0
      %v5600 = vmax.f32 %v5492, 0.0
      %v5601 = vmax.f32 %v5495, 0.0
      %v5602 = vmax.f32 %v5500, 0.0
      %v5603 = vmax.f32 %v5503, 0.0
      %v5604 = vmax.f32 %v5508, 0.0
      %v5605 = vmax.f32 %v5511, 0.0
      %v5606 = vmax.f32 %v5516, 0.0
      %v5607 = vmax.f32 %v5519, 0.0
      %v5608 = vmax.f32 %v5524, 0.0
      %v5609 = vmax.f32 %v5527, 0.0
      %v5610 = vmax.f32 %v5532, 0.0
      %v5611 = vmax.f32 %v5535, 0.0
      %v5612 = vmax.f32 %v5540, 0.0
      %v5613 = vmax.f32 %v5543, 0.0
      %v5614 = vmax.f32 %v5548, 0.0
      %v5615 = vmax.f32 %v5551, 0.0
      %v5616 = vmax.f32 %v5556, 0.0
      %v5617 = vmax.f32 %v5559, 0.0
      %v5618 = vmax.f32 %v5564, 0.0
      %v5619 = vmax.f32 %v5567, 0.0
      %v5620 = vmax.f32 %v5572, 0.0
      %v5621 = vmax.f32 %v5575, 0.0
      %v5622 = vmax.f32 %v5580, 0.0
      %v5623 = vmax.f32 %v5583, 0.0
      %v5624 = vmax.f32 %v5588, 0.0
      %v5625 = vmax.f32 %v5591, 0.0
      %v5626 = vpack.c.bf16 %v5595, %v5594
      %v5627 = vpack.c.bf16 %v5597, %v5596
      %v5628 = vpack.c.bf16 %v5599, %v5598
      %v5629 = vpack.c.bf16 %v5601, %v5600
      %v5630 = vpack.c.bf16 %v5603, %v5602
      %v5631 = vpack.c.bf16 %v5605, %v5604
      %v5632 = vpack.c.bf16 %v5607, %v5606
      %v5633 = vpack.c.bf16 %v5609, %v5608
      %v5634 = vpack.c.bf16 %v5611, %v5610
      %v5635 = vpack.c.bf16 %v5613, %v5612
      %v5636 = vpack.c.bf16 %v5615, %v5614
      %v5637 = vpack.c.bf16 %v5617, %v5616
      %v5638 = vpack.c.bf16 %v5619, %v5618
      %v5639 = vpack.c.bf16 %v5621, %v5620
      %v5640 = vpack.c.bf16 %v5623, %v5622
      %v5641 = vpack.c.bf16 %v5625, %v5624
      %v5658 = vunpack.c.l.b16 %v5626
      %v5659 = vunpack.c.h.b16 %v5626
      %v5660 = vunpack.c.l.b16 %v5627
      %v5661 = vunpack.c.h.b16 %v5627
      %v5662 = vunpack.c.l.b16 %v5628
      %v5663 = vunpack.c.h.b16 %v5628
      %v5664 = vunpack.c.l.b16 %v5629
      %v5665 = vunpack.c.h.b16 %v5629
      %v5666 = vunpack.c.l.b16 %v5630
      %v5667 = vunpack.c.h.b16 %v5630
      %v5668 = vunpack.c.l.b16 %v5631
      %v5669 = vunpack.c.h.b16 %v5631
      %v5670 = vunpack.c.l.b16 %v5632
      %v5671 = vunpack.c.h.b16 %v5632
      %v5672 = vunpack.c.l.b16 %v5633
      %v5673 = vunpack.c.h.b16 %v5633
      %v5674 = vunpack.c.l.b16 %v5634
      %v5675 = vunpack.c.h.b16 %v5634
      %v5676 = vunpack.c.l.b16 %v5635
      %v5677 = vunpack.c.h.b16 %v5635
      %v5678 = vunpack.c.l.b16 %v5636
      %v5679 = vunpack.c.h.b16 %v5636
      %v5680 = vunpack.c.l.b16 %v5637
      %v5681 = vunpack.c.h.b16 %v5637
      %v5682 = vunpack.c.l.b16 %v5638
      %v5683 = vunpack.c.h.b16 %v5638
      %v5684 = vunpack.c.l.b16 %v5639
      %v5685 = vunpack.c.h.b16 %v5639
      %v5686 = vunpack.c.l.b16 %v5640
      %v5687 = vunpack.c.h.b16 %v5640
      %v5688 = vunpack.c.l.b16 %v5641
      %v5689 = vunpack.c.h.b16 %v5641
      %v5690 = vpack.c.b16 %v5658, %v5658
      %v5691 = vpack.c.b16 %v5659, %v5659
      %v5692 = vpack.c.b16 %v5660, %v5660
      %v5693 = vpack.c.b16 %v5661, %v5661
      %v5694 = vpack.c.b16 %v5662, %v5662
      %v5695 = vpack.c.b16 %v5663, %v5663
      %v5696 = vpack.c.b16 %v5664, %v5664
      %v5697 = vpack.c.b16 %v5665, %v5665
      %v5698 = vpack.c.b16 %v5666, %v5666
      %v5699 = vpack.c.b16 %v5667, %v5667
      %v5700 = vpack.c.b16 %v5668, %v5668
      %v5701 = vpack.c.b16 %v5669, %v5669
      %v5702 = vpack.c.b16 %v5670, %v5670
      %v5703 = vpack.c.b16 %v5671, %v5671
      %v5704 = vpack.c.b16 %v5672, %v5672
      %v5705 = vpack.c.b16 %v5673, %v5673
      %v5706 = vpack.c.b16 %v5674, %v5674
      %v5707 = vpack.c.b16 %v5675, %v5675
      %v5708 = vpack.c.b16 %v5676, %v5676
      %v5709 = vpack.c.b16 %v5677, %v5677
      %v5710 = vpack.c.b16 %v5678, %v5678
      %v5711 = vpack.c.b16 %v5679, %v5679
      %v5712 = vpack.c.b16 %v5680, %v5680
      %v5713 = vpack.c.b16 %v5681, %v5681
      %v5714 = vpack.c.b16 %v5682, %v5682
      %v5715 = vpack.c.b16 %v5683, %v5683
      %v5716 = vpack.c.b16 %v5684, %v5684
      %v5717 = vpack.c.b16 %v5685, %v5685
      %v5718 = vpack.c.b16 %v5686, %v5686
      %v5719 = vpack.c.b16 %v5687, %v5687
      %v5720 = vpack.c.b16 %v5688, %v5688
      %v5721 = vpack.c.b16 %v5689, %v5689
      %5754 = vst [vmem:[%s194] sm:$0xf] %v5690
      %5755 = vst [vmem:[%s194 + $0x4] sm:$0xf] %v5691
      %5756 = vst [vmem:[%s194 + $0x8] sm:$0xf] %v5692
      %5757 = vst [vmem:[%s194 + $0xc] sm:$0xf] %v5693
      %5758 = vst [vmem:[%s194 + $0x10] sm:$0xf] %v5694
      %5759 = vst [vmem:[%s194 + $0x14] sm:$0xf] %v5695
      %5760 = vst [vmem:[%s194 + $0x18] sm:$0xf] %v5696
      %5761 = vst [vmem:[%s194 + $0x1c] sm:$0xf] %v5697
      %5762 = vst [vmem:[%s194 + $0x20] sm:$0xf] %v5698
      %5763 = vst [vmem:[%s194 + $0x24] sm:$0xf] %v5699
      %5764 = vst [vmem:[%s194 + $0x28] sm:$0xf] %v5700
      %5765 = vst [vmem:[%s194 + $0x2c] sm:$0xf] %v5701
      %5766 = vst [vmem:[%s194 + $0x30] sm:$0xf] %v5702
      %5767 = vst [vmem:[%s194 + $0x34] sm:$0xf] %v5703
      %5768 = vst [vmem:[%s194 + $0x38] sm:$0xf] %v5704
      %5769 = vst [vmem:[%s194 + $0x3c] sm:$0xf] %v5705
      %5770 = vst [vmem:[%s194 + $0x40] sm:$0xf] %v5706
      %5771 = vst [vmem:[%s194 + $0x44] sm:$0xf] %v5707
      %5772 = vst [vmem:[%s194 + $0x48] sm:$0xf] %v5708
      %5773 = vst [vmem:[%s194 + $0x4c] sm:$0xf] %v5709
      %5774 = vst [vmem:[%s194 + $0x50] sm:$0xf] %v5710
      %5775 = vst [vmem:[%s194 + $0x54] sm:$0xf] %v5711
      %5776 = vst [vmem:[%s194 + $0x58] sm:$0xf] %v5712
      %5777 = vst [vmem:[%s194 + $0x5c] sm:$0xf] %v5713
      %5778 = vst [vmem:[%s194 + $0x60] sm:$0xf] %v5714
      %5779 = vst [vmem:[%s194 + $0x64] sm:$0xf] %v5715
      %5780 = vst [vmem:[%s194 + $0x68] sm:$0xf] %v5716
      %5781 = vst [vmem:[%s194 + $0x6c] sm:$0xf] %v5717
      %5782 = vst [vmem:[%s194 + $0x70] sm:$0xf] %v5718
      %5783 = vst [vmem:[%s194 + $0x74] sm:$0xf] %v5719
      %5784 = vst [vmem:[%s194 + $0x78] sm:$0xf] %v5720
      %5785 = vst [vmem:[%s194 + $0x7c] sm:$0xf] %v5721
      %s5786 = smul.u32 16, %s19
      %p5787 = scmp.lt.s32.totalorder %s18, 1
      %s5788 = scalar_select %p5787, %s18, 1
      %p5789 = scmp.lt.s32.totalorder %s5786, 15
      %s5790 = scalar_select %p5789, %s5786, 15
      %s5791 = smul.addr %s5790, 2
      %s5792 = smul.addr %s5788, 32
      %s5793 = sadd.s32 %s5791, %s5792
      %s5794 = smul.addr %s5793, 4
      %s5795 = scalar_lea.vmem %s3, %s5794
      // Predicated region
      $region41: #{basic_block_enc_pallas.2} parent=31 // pred_check
        %p5796 = pneg %p114
      $region42: #{basic_block_enc_pallas.2} parent=31 // pred_check_branch
        %5798 = sbr.rel (%p5796) target = $region44
      $region43: #{basic_block_enc_pallas.2} parent=31 // pred_region
        %s5799 = smul.u32 16, %s19
      $region44: #{basic_block_enc_pallas.2} parent=31 // pred_fallthru
        _
    $region32: #{basic_block_enc_pallas.2} parent=5 // pred_fallthru
      _
    %p5800 = scmp.le.s32.totalorder 2, %s9
    // Predicated region
    $region45: #{basic_block_enc_pallas.2} parent=5 // pred_check
      %p5801 = pneg %p5800
    $region46: #{basic_block_enc_pallas.2} parent=5 // pred_check_branch
      %5803 = sbr.rel (%p5801) target = $region48
    $region47: #{basic_block_enc_pallas.2} parent=5 // pred_region
      %s5804 = ssub.s32 %s9, 2
      // Predicated region
      $region49: #{basic_block_enc_pallas.2} parent=47 // pred_check
        %p5805 = pneg %p120
      $region50: #{basic_block_enc_pallas.2} parent=47 // pred_check_branch
        %5807 = sbr.rel (%p5805) target = $region52
      $region51: #{basic_block_enc_pallas.2} parent=47 // pred_region
        %s5808 = smul.u32 16, %s21
        %p5809 = scmp.lt.s32.totalorder %s20, 1
        %s5810 = scalar_select %p5809, %s20, 1
        %p5811 = scmp.lt.s32.totalorder %s5808, 15
        %s5812 = scalar_select %p5811, %s5808, 15
        %s5813 = smul.addr %s5812, 2
        %s5814 = smul.addr %s5810, 32
        %s5815 = sadd.s32 %s5813, %s5814
        %s5816 = smul.addr %s5815, 4
        %s5817 = scalar_lea.vmem %s3, %s5816
      $region52: #{basic_block_enc_pallas.2} parent=47 // pred_fallthru
        _
    $region48: #{basic_block_enc_pallas.2} parent=5 // pred_fallthru
      _
  $region6: #{basic_block_enc_pallas.2} parent=0 // loop_footer
    %s13 = sadd.s32 1, %s9
  $region7: #{basic_block_enc_pallas.2} parent=0 // loop_footer_branch
    %8 = sbr.rel target = $region3
  $region8: #{basic_block_enc_pallas.2} parent=0 // loop_exit
    _

</llo_original>
